<compile_context>
chip_gen: v7x
topology: tpu7x:2x2x1
jax: 0.10.0
libtpu: 0.0.40
codegen_flags: <defaults>
</compile_context>

<pallas_src>
import functools

import jax
import jax.numpy as jnp
from jax.experimental import pallas as pl
from jax.experimental.pallas import tpu as pltpu


def _round_up(x, m):
    return (x + m - 1) // m * m


def _vq_kernel(x_ref, et_ref, e2_ref, ehi_ref, elo_ref,
               q_ref, idx_ref, sse_ref, cnt_ref, *, n_valid):
    """Quantizes one tile of TN flattened D-dim vectors.

    x_ref:   (TN, D)     input tile (native dtype, D not lane-padded)
    et_ref:  (D, Kp)     f32 codebook, pre-transposed (distance matmul RHS)
    e2_ref:  (1, Kp)     ||e||^2 per code (+1e30 sentinel on padded codes)
    ehi_ref: (Kp, D)     bf16 hi half of the f32 codebook (gather matmul)
    elo_ref: (Kp, D)     bf16 lo half (residual) of the f32 codebook
    q_ref:   (TN, D)     quantized output tile
    idx_ref: (1, 1, TN)  int32 nearest-code indices, lane-dense
    sse_ref: (1, 1, 1)   per-tile sum of squared error (partial sum)
    cnt_ref: (1, 1, Kp)  per-tile code counts (partial sum)
    """
    i = pl.program_id(0)
    x = x_ref[...].astype(jnp.float32)
    tn = x.shape[0]
    kp = e2_ref.shape[-1]

    # Distance up to the row-constant ||x||^2 term (argmin-invariant):
    #   ||e||^2 - 2 * x . e^T
    # Kept in f32: a bf16 distance matmul can (and did) select a non-nearest
    # code, breaking parity with the exact-f32 argmin of the reference.
    xe = jnp.dot(x, et_ref[...], preferred_element_type=jnp.float32)   # (TN, Kp)
    dist = e2_ref[...] - 2.0 * xe

    idx = jnp.argmin(dist, axis=1).astype(jnp.int32)                   # (TN,)
    lane = jax.lax.broadcasted_iota(jnp.int32, (tn, kp), 1)
    onehot = (idx[:, None] == lane).astype(jnp.bfloat16)               # exact 0/1

    # Nearest-code gather: two bf16 MXU passes against the hi/lo split of the
    # f32 codebook with f32 accumulation -> ~f32-exact selected codes at bf16
    # matmul rate (instead of an emulated f32 matmul on every generation).
    quant = (jnp.dot(onehot, ehi_ref[...], preferred_element_type=jnp.float32)
             + jnp.dot(onehot, elo_ref[...], preferred_element_type=jnp.float32))

    q_ref[...] = quant.astype(q_ref.dtype)
    # Lane-dense index writeback (last dim = TN): full-width vector stores
    # instead of masked (TN, 1) partial stores.
    idx_ref[...] = idx.reshape(1, 1, tn)

    # Statistics; rows past the true N (padding of the last row tile) must not
    # contribute.  Mask the (TN, 1) row sums, not the full (TN, D) tile.
    row0 = i * tn
    valid_col = (jax.lax.broadcasted_iota(jnp.int32, (tn, 1), 0) + row0) < n_valid
    diff = quant - x
    row_sse = jnp.sum(diff * diff, axis=1, keepdims=True)              # (TN, 1)
    sse_ref[...] = jnp.sum(jnp.where(valid_col, row_sse, 0.0)).reshape(1, 1, 1)

    # Per-code counts on the MXU: valid(1,TN) @ onehot(TN,Kp); all products are
    # 0/1 and accumulation is f32, so the counts are exact.
    valid_row = ((jax.lax.broadcasted_iota(jnp.int32, (1, tn), 1) + row0)
                 < n_valid).astype(jnp.bfloat16)                        # (1, TN)
    cnt = jnp.dot(valid_row, onehot, preferred_element_type=jnp.float32)  # (1, Kp)
    cnt_ref[...] = cnt.reshape(1, 1, kp)


def _vq_pallas(flat_x, e_t, e2, e_hi, e_lo, *, tile_n, n_valid):
    """Run the VQ hot path on row-padded [Np, D] inputs."""
    np_, d = flat_x.shape
    kp = e2.shape[1]
    num_tiles = np_ // tile_n

    kernel = functools.partial(_vq_kernel, n_valid=n_valid)
    return pl.pallas_call(
        kernel,
        out_shape=(
            jax.ShapeDtypeStruct((np_, d), flat_x.dtype),              # quantized
            jax.ShapeDtypeStruct((num_tiles, 1, tile_n), jnp.int32),   # indices
            jax.ShapeDtypeStruct((num_tiles, 1, 1), jnp.float32),      # sse partials
            jax.ShapeDtypeStruct((num_tiles, 1, kp), jnp.float32),     # count partials
        ),
        grid_spec=pltpu.PrefetchScalarGridSpec(
            num_scalar_prefetch=0,
            grid=(num_tiles,),
            in_specs=[
                pl.BlockSpec((tile_n, d), lambda i: (i, 0)),
                # Constant codebook operands (constant block index -> resident
                # in VMEM, never re-fetched).  NOTE: pl.Buffered(1) single-
                # buffering would additionally halve their VMEM footprint for
                # large K (matters on v7x's 64 MiB/TC budget).
                pl.BlockSpec((d, kp), lambda i: (0, 0)),
                pl.BlockSpec((1, kp), lambda i: (0, 0)),
                pl.BlockSpec((kp, d), lambda i: (0, 0)),
                pl.BlockSpec((kp, d), lambda i: (0, 0)),
            ],
            out_specs=[
                pl.BlockSpec((tile_n, d), lambda i: (i, 0)),
                pl.BlockSpec((1, 1, tile_n), lambda i: (i, 0, 0)),
                pl.BlockSpec((1, 1, 1), lambda i: (i, 0, 0)),
                pl.BlockSpec((1, 1, kp), lambda i: (i, 0, 0)),
            ],
        ),
        compiler_params=pltpu.CompilerParams(
            # No carried state across the grid (per-tile partial outputs), so
            # the grid axis can be sharded across TensorCores (v7x megacore).
            dimension_semantics=("parallel",),
            # Fits the 64 MiB/TC budget on v7x; v5e/v6e have headroom to raise
            # this further together with tile_n for large K / D.
            vmem_limit_bytes=48 * 1024 * 1024,
        ),
    )(flat_x, e_t, e2, e_hi, e_lo)


class VectorQuantizerEMAPallas:
    """Eval-mode forward of the PyTorch VectorQuantizerEMA module."""

    def __init__(self, num_embeddings, embedding_dim, commitment_cost, decay,
                 epsilon=1e-5, *, key):
        self.num_embeddings = num_embeddings
        self.embedding_dim = embedding_dim
        self.commitment_cost = commitment_cost
        self.decay = decay
        self.epsilon = epsilon
        k_emb, k_ema = jax.random.split(key)
        # nn.Embedding weight .normal_(): standard normal (K, D)
        self.embedding_weight = jax.random.normal(
            k_emb, (num_embeddings, embedding_dim), dtype=jnp.float32)
        # _ema_w / _ema_cluster_size buffers (unused in eval forward, kept for parity)
        self.ema_w = jax.random.normal(
            k_ema, (num_embeddings, embedding_dim), dtype=jnp.float32)
        self.ema_cluster_size = jnp.zeros((num_embeddings,), jnp.float32)

    # TODO(synk): training-branch EMA buffer updates (cluster-size decay, ema_w
    # update and codebook rewrite) are stateful side effects and are not part
    # of the eval-mode forward implemented here.
    @functools.partial(jax.jit, static_argnums=0)
    def forward(self, inputs_nchw):
        b, c, h, w = inputs_nchw.shape
        d = self.embedding_dim
        k = self.num_embeddings
        assert c == d
        # NCHW -> NHWC -> [N, D]: per-pixel D-dim fibers, native dtype.
        # TODO(synk): a (D, N)/NCHW-native kernel layout would also drop these
        # two full-tensor transposes for small D; the [N, D] orientation is
        # kept because lane-axis argmin / one-hot is the proven-lowering path.
        inputs_nhwc = jnp.transpose(inputs_nchw, (0, 2, 3, 1))
        flat = inputs_nhwc.reshape(-1, d)
        n = flat.shape[0]

        # D is NOT padded to 128 lanes (block last dim == full array dim is
        # legal): at D=4, lane-padding would inflate x / quantized HBM traffic
        # by 32x on an HBM-bound kernel.  K is padded to full lanes.
        kp = _round_up(k, 128)
        if n <= 512:
            tile_n = _round_up(n, 128)
        else:
            # Large row tiles (<= 2048) amortize the ~0.35us/step overhead;
            # keep >= 2 grid steps so the parallel axis can feed both v7x TCs.
            tile_n = min(2048, _round_up((n + 1) // 2, 128))
        np_ = _round_up(n, tile_n)

        flat_p = jnp.pad(flat, ((0, np_ - n), (0, 0)))      # rows only, D native

        emb = self.embedding_weight.astype(jnp.float32)
        emb_p = jnp.pad(emb, ((0, kp - k), (0, 0)))          # (Kp, D)
        # Constant codebook operands prepared once in the wrapper (no per-step
        # cast / transpose of constants inside the kernel):
        #   e_t   : (D, Kp) f32 pre-transposed RHS of the distance matmul
        #   e2    : (1, Kp) ||e||^2 (+1e30 sentinel so padded codes never win)
        #   e_hi/e_lo : bf16 hi/lo split of the f32 codebook for the gather
        e_t = emb_p.T
        e2 = jnp.sum(emb_p * emb_p, axis=1)[None, :]
        e2 = jnp.where(jnp.arange(kp)[None, :] < k, e2, jnp.float32(1e30))
        e_hi = emb_p.astype(jnp.bfloat16)
        e_lo = (emb_p - e_hi.astype(jnp.float32)).astype(jnp.bfloat16)

        quant_p, idx_t, sse_part, cnt_part = _vq_pallas(
            flat_p, e_t, e2, e_hi, e_lo, tile_n=tile_n, n_valid=n)

        quant_flat = quant_p[:n].astype(jnp.float32)
        idx = idx_t.reshape(-1)[:n]
        sse = jnp.sum(sse_part)
        cnt = jnp.sum(cnt_part, axis=(0, 1))[:k]

        # e_latent_loss = mean((quantized - inputs)^2); loss = beta * that
        e_latent_loss = sse / jnp.float32(n * d)
        loss = self.commitment_cost * e_latent_loss

        # Straight-through estimator: forward value equals quantized.
        quantized_nchw = jnp.transpose(
            quant_flat.reshape(b, h, w, d), (0, 3, 1, 2))

        avg_probs = cnt / jnp.float32(n)
        perplexity = jnp.exp(-jnp.sum(avg_probs * jnp.log(avg_probs + 1e-10)))

        # The module API returns full one-hot encodings; rebuild them from the
        # compact indices outside the kernel (avoids an (N, K) f32 HBM
        # writeback in the hot loop).
        encodings = jax.nn.one_hot(idx, k, dtype=jnp.float32)

        return loss, quantized_nchw, perplexity, encodings


if __name__ == "__main__":
    key = jax.random.PRNGKey(0)
    k_param, k_in1, k_in2 = jax.random.split(key, 3)

    num_embeddings = 8
    embedding_dim = 4
    commitment_cost = 0.25
    decay = 0.99

    vq = VectorQuantizerEMAPallas(
        num_embeddings, embedding_dim, commitment_cost, decay, key=k_param)

    def check(x):
        loss, quantized, perplexity, encodings = vq.forward(x)
        jax.block_until_ready((loss, quantized, perplexity, encodings))

        b, c, h, w = x.shape
        flat = jnp.transpose(x, (0, 2, 3, 1)).reshape(-1, c).astype(jnp.float32)
        n = flat.shape[0]
        emb = vq.embedding_weight
        assert encodings.shape == (n, num_embeddings)

        # Indices implied by the returned one-hot encodings.
        idx_k = jnp.argmax(encodings, axis=1)

        # 1) quantized must equal the codebook rows selected by encodings.
        q_sel = emb[idx_k]
        q_out = jnp.transpose(quantized, (0, 2, 3, 1)).reshape(-1, c)
        assert jnp.allclose(q_out, q_sel, atol=1e-4), "quantized != selected codes"

        # 2) selected codes must be the nearest under exact f32 distances
        #    (reference computed without any matmul, so it is exact).
        d_full = jnp.sum((flat[:, None, :] - emb[None, :, :]) ** 2, axis=-1)
        d_sel = jnp.take_along_axis(d_full, idx_k[:, None], axis=1)[:, 0]
        assert jnp.all(d_sel <= d_full.min(axis=1) + 1e-3), "non-nearest code chosen"

        # 3) loss / perplexity consistent with the selected codes.
        loss_ref = commitment_cost * jnp.mean((q_sel - flat) ** 2)
        assert jnp.allclose(loss, loss_ref, atol=1e-4), "loss mismatch"
        avg_ref = jnp.mean(jax.nn.one_hot(idx_k, num_embeddings), axis=0)
        perp_ref = jnp.exp(-jnp.sum(avg_ref * jnp.log(avg_ref + 1e-10)))
        assert jnp.allclose(perplexity, perp_ref, atol=1e-4), "perplexity mismatch"

    # Main shape from the module spec: NCHW, batch=2, C=embedding_dim=4, 16x16
    # (N = 512 -> single row tile).
    check(jax.random.normal(k_in1, (2, 4, 16, 16), dtype=jnp.float32))
    # Second shape: N = 960 -> grid of 2 tiles with 64 masked padding rows in
    # the last tile (exercises grid > 1 and statistics masking).
    check(jax.random.normal(k_in2, (3, 4, 16, 20), dtype=jnp.float32))

    print("KERNEL_OK")
</pallas_src>

<mosaic_0001>
module attributes {stable_mosaic.version = 11 : i64} {
  func.func @_vq_kernel(%arg0: i32, %arg1: memref<512x4xf32, #tpu.memory_space<vmem>>, %arg2: memref<4x128xf32, #tpu.memory_space<vmem>>, %arg3: memref<1x128xf32, #tpu.memory_space<vmem>>, %arg4: memref<128x4xbf16, #tpu.memory_space<vmem>>, %arg5: memref<128x4xbf16, #tpu.memory_space<vmem>>, %arg6: memref<512x4xf32, #tpu.memory_space<vmem>>, %arg7: memref<1x1x512xi32, #tpu.memory_space<vmem>>, %arg8: memref<1x1x1xf32, #tpu.memory_space<vmem>>, %arg9: memref<1x1x128xf32, #tpu.memory_space<vmem>>) attributes {dimension_semantics = [#tpu.dimension_semantics<parallel>], iteration_bounds = array<i64: 1>, scalar_prefetch = 0 : i64, scratch_operands = 0 : i64, tpu.core_type = #tpu.core_type<tc>, window_params = [{transform_indices = @transform_0, window_bounds = array<i64: 512, 4>}, {pipeline_mode = #tpu.pipeline_mode<synchronous>, transform_indices = @transform_1, window_bounds = array<i64: 4, 128>}, {pipeline_mode = #tpu.pipeline_mode<synchronous>, transform_indices = @transform_2, window_bounds = array<i64: 1, 128>}, {pipeline_mode = #tpu.pipeline_mode<synchronous>, transform_indices = @transform_3, window_bounds = array<i64: 128, 4>}, {pipeline_mode = #tpu.pipeline_mode<synchronous>, transform_indices = @transform_4, window_bounds = array<i64: 128, 4>}, {transform_indices = @transform_5, window_bounds = array<i64: 512, 4>}, {transform_indices = @transform_6, window_bounds = array<i64: 1, 1, 512>}, {transform_indices = @transform_7, window_bounds = array<i64: 1, 1, 1>}, {transform_indices = @transform_8, window_bounds = array<i64: 1, 1, 128>}]} {
    %c0 = arith.constant 0 : index
    %c0_0 = arith.constant 0 : index
    %0 = vector.load %arg1[%c0, %c0_0] : memref<512x4xf32, #tpu.memory_space<vmem>>, vector<512x4xf32>
    %c0_1 = arith.constant 0 : index
    %c0_2 = arith.constant 0 : index
    %1 = vector.load %arg2[%c0_1, %c0_2] : memref<4x128xf32, #tpu.memory_space<vmem>>, vector<4x128xf32>
    %cst = arith.constant dense<0.000000e+00> : vector<512x128xf32>
    %2 = tpu.matmul %0, %1, %cst {dimension_numbers = #tpu.dot_dimension_numbers<[1], [0], [0], [1], [0, 0, 1, 1], [], []>} : vector<512x4xf32>, vector<4x128xf32>, vector<512x128xf32> -> vector<512x128xf32>
    %c0_3 = arith.constant 0 : index
    %c0_4 = arith.constant 0 : index
    %3 = vector.load %arg3[%c0_3, %c0_4] : memref<1x128xf32, #tpu.memory_space<vmem>>, vector<1x128xf32>
    %cst_5 = arith.constant 2.000000e+00 : f32
    %4 = vector.broadcast %cst_5 : f32 to vector<512x128xf32>
    %5 = arith.mulf %4, %2 : vector<512x128xf32>
    %6 = vector.broadcast %3 : vector<1x128xf32> to vector<512x128xf32>
    %7 = arith.subf %6, %5 : vector<512x128xf32>
    %8 = tpu.reduce_index %7 {axis = 1 : i32, kind = #tpu.reduction_kind<arg_min>} : vector<512x128xf32> -> vector<512xi32>
    %9 = tpu.iota {dimensions = array<i32: 1>} : vector<512x128xi32>
    %10 = vector.shape_cast %8 : vector<512xi32> to vector<512x1xi32>
    %11 = vector.broadcast %10 : vector<512x1xi32> to vector<512x128xi32>
    %12 = arith.cmpi eq, %11, %9 : vector<512x128xi32>
    %13 = arith.extui %12 : vector<512x128xi1> to vector<512x128xi32>
    %14 = arith.sitofp %13 : vector<512x128xi32> to vector<512x128xf32>
    %15 = arith.truncf %14 : vector<512x128xf32> to vector<512x128xbf16>
    %c0_6 = arith.constant 0 : index
    %c0_7 = arith.constant 0 : index
    %16 = vector.load %arg4[%c0_6, %c0_7] : memref<128x4xbf16, #tpu.memory_space<vmem>>, vector<128x4xbf16>
    %cst_8 = arith.constant dense<0.000000e+00> : vector<512x4xf32>
    %17 = tpu.matmul %15, %16, %cst_8 {dimension_numbers = #tpu.dot_dimension_numbers<[1], [0], [0], [1], [0, 0, 1, 1], [], []>} : vector<512x128xbf16>, vector<128x4xbf16>, vector<512x4xf32> -> vector<512x4xf32>
    %c0_9 = arith.constant 0 : index
    %c0_10 = arith.constant 0 : index
    %18 = vector.load %arg5[%c0_9, %c0_10] : memref<128x4xbf16, #tpu.memory_space<vmem>>, vector<128x4xbf16>
    %cst_11 = arith.constant dense<0.000000e+00> : vector<512x4xf32>
    %19 = tpu.matmul %15, %18, %cst_11 {dimension_numbers = #tpu.dot_dimension_numbers<[1], [0], [0], [1], [0, 0, 1, 1], [], []>} : vector<512x128xbf16>, vector<128x4xbf16>, vector<512x4xf32> -> vector<512x4xf32>
    %20 = arith.addf %17, %19 : vector<512x4xf32>
    %c0_12 = arith.constant 0 : index
    %c0_13 = arith.constant 0 : index
    %21 = vector.load %arg6[%c0_12, %c0_13] : memref<512x4xf32, #tpu.memory_space<vmem>>, vector<512x4xf32>
    tpu.vector_store %arg6[%c0_12, %c0_13], %20 {strides = array<i32>} : memref<512x4xf32, #tpu.memory_space<vmem>>, vector<512x4xf32>,
    %22 = vector.shape_cast %8 : vector<512xi32> to vector<1x1x512xi32>
    %c0_14 = arith.constant 0 : index
    %c0_15 = arith.constant 0 : index
    %c0_16 = arith.constant 0 : index
    %23 = vector.load %arg7[%c0_14, %c0_15, %c0_16] : memref<1x1x512xi32, #tpu.memory_space<vmem>>, vector<1x1x512xi32>
    tpu.vector_store %arg7[%c0_14, %c0_15, %c0_16], %22 {strides = array<i32>} : memref<1x1x512xi32, #tpu.memory_space<vmem>>, vector<1x1x512xi32>,
    %c512_i32 = arith.constant 512 : i32
    %24 = arith.muli %arg0, %c512_i32 : i32
    %25 = tpu.iota {dimensions = array<i32: 0>} : vector<512x1xi32>
    %26 = vector.broadcast %24 : i32 to vector<512x1xi32>
    %27 = arith.addi %25, %26 : vector<512x1xi32>
    %c512_i32_17 = arith.constant 512 : i32
    %28 = vector.broadcast %c512_i32_17 : i32 to vector<512x1xi32>
    %29 = arith.cmpi slt, %27, %28 : vector<512x1xi32>
    %30 = arith.subf %20, %0 : vector<512x4xf32>
    %31 = arith.mulf %30, %30 : vector<512x4xf32>
    %cst_18 = arith.constant dense<0.000000e+00> : vector<512xf32>
    %32 = vector.multi_reduction <add>, %31, %cst_18 [1] : vector<512x4xf32> to vector<512xf32>
    %33 = vector.shape_cast %32 : vector<512xf32> to vector<512x1xf32>
    %cst_19 = arith.constant 0.000000e+00 : f32
    %34 = vector.broadcast %cst_19 : f32 to vector<512x1xf32>
    %35 = arith.select %29, %33, %34 : vector<512x1xi1>, vector<512x1xf32>
    %36 = vector.shape_cast %35 : vector<512x1xf32> to vector<1x512x1xf32>
    %cst_20 = arith.constant dense<0.000000e+00> : vector<1xf32>
    %37 = vector.multi_reduction <add>, %36, %cst_20 [1, 2] : vector<1x512x1xf32> to vector<1xf32>
    %38 = vector.shape_cast %37 : vector<1xf32> to vector<1x1x1xf32>
    %39 = vector.extract %38[0, 0, 0] : f32 from vector<1x1x1xf32>
    %40 = vector.broadcast %39 : f32 to vector<1x1x1xf32>
    %c0_21 = arith.constant 0 : index
    %c0_22 = arith.constant 0 : index
    %c0_23 = arith.constant 0 : index
    %41 = vector.load %arg8[%c0_21, %c0_22, %c0_23] : memref<1x1x1xf32, #tpu.memory_space<vmem>>, vector<1x1x1xf32>
    tpu.vector_store %arg8[%c0_21, %c0_22, %c0_23], %40 {strides = array<i32>} : memref<1x1x1xf32, #tpu.memory_space<vmem>>, vector<1x1x1xf32>,
    %42 = tpu.iota {dimensions = array<i32: 1>} : vector<1x512xi32>
    %43 = vector.broadcast %24 : i32 to vector<1x512xi32>
    %44 = arith.addi %42, %43 : vector<1x512xi32>
    %c512_i32_24 = arith.constant 512 : i32
    %45 = vector.broadcast %c512_i32_24 : i32 to vector<1x512xi32>
    %46 = arith.cmpi slt, %44, %45 : vector<1x512xi32>
    %47 = arith.extui %46 : vector<1x512xi1> to vector<1x512xi32>
    %48 = arith.sitofp %47 : vector<1x512xi32> to vector<1x512xf32>
    %49 = arith.truncf %48 : vector<1x512xf32> to vector<1x512xbf16>
    %cst_25 = arith.constant dense<0.000000e+00> : vector<1x128xf32>
    %50 = tpu.matmul %49, %15, %cst_25 {dimension_numbers = #tpu.dot_dimension_numbers<[1], [0], [0], [1], [0, 0, 1, 1], [], []>} : vector<1x512xbf16>, vector<512x128xbf16>, vector<1x128xf32> -> vector<1x128xf32>
    %51 = vector.shape_cast %50 : vector<1x128xf32> to vector<1x1x128xf32>
    %c0_26 = arith.constant 0 : index
    %c0_27 = arith.constant 0 : index
    %c0_28 = arith.constant 0 : index
    %52 = vector.load %arg9[%c0_26, %c0_27, %c0_28] : memref<1x1x128xf32, #tpu.memory_space<vmem>>, vector<1x1x128xf32>
    tpu.vector_store %arg9[%c0_26, %c0_27, %c0_28], %51 {strides = array<i32>} : memref<1x1x128xf32, #tpu.memory_space<vmem>>, vector<1x1x128xf32>,
    return
  }
  func.func @transform_0(%arg0: i32) -> (i32, i32) {
    %c0_i32 = arith.constant 0 : i32
    %c0_i32_0 = arith.constant 0 : i32
    return %arg0, %c0_i32 : i32, i32
  }
  func.func @transform_1(%arg0: i32) -> (i32, i32) {
    %c0_i32 = arith.constant 0 : i32
    %c0_i32_0 = arith.constant 0 : i32
    %c0_i32_1 = arith.constant 0 : i32
    return %c0_i32, %c0_i32_0 : i32, i32
  }
  func.func @transform_2(%arg0: i32) -> (i32, i32) {
    %c0_i32 = arith.constant 0 : i32
    %c0_i32_0 = arith.constant 0 : i32
    %c0_i32_1 = arith.constant 0 : i32
    return %c0_i32, %c0_i32_0 : i32, i32
  }
  func.func @transform_3(%arg0: i32) -> (i32, i32) {
    %c0_i32 = arith.constant 0 : i32
    %c0_i32_0 = arith.constant 0 : i32
    %c0_i32_1 = arith.constant 0 : i32
    return %c0_i32, %c0_i32_0 : i32, i32
  }
  func.func @transform_4(%arg0: i32) -> (i32, i32) {
    %c0_i32 = arith.constant 0 : i32
    %c0_i32_0 = arith.constant 0 : i32
    %c0_i32_1 = arith.constant 0 : i32
    return %c0_i32, %c0_i32_0 : i32, i32
  }
  func.func @transform_5(%arg0: i32) -> (i32, i32) {
    %c0_i32 = arith.constant 0 : i32
    %c0_i32_0 = arith.constant 0 : i32
    return %arg0, %c0_i32 : i32, i32
  }
  func.func @transform_6(%arg0: i32) -> (i32, i32, i32) {
    %c0_i32 = arith.constant 0 : i32
    %c0_i32_0 = arith.constant 0 : i32
    %c0_i32_1 = arith.constant 0 : i32
    return %arg0, %c0_i32, %c0_i32_0 : i32, i32, i32
  }
  func.func @transform_7(%arg0: i32) -> (i32, i32, i32) {
    %c0_i32 = arith.constant 0 : i32
    %c0_i32_0 = arith.constant 0 : i32
    %c0_i32_1 = arith.constant 0 : i32
    return %arg0, %c0_i32, %c0_i32_0 : i32, i32, i32
  }
  func.func @transform_8(%arg0: i32) -> (i32, i32, i32) {
    %c0_i32 = arith.constant 0 : i32
    %c0_i32_0 = arith.constant 0 : i32
    %c0_i32_1 = arith.constant 0 : i32
    return %arg0, %c0_i32, %c0_i32_0 : i32, i32, i32
  }
}

</mosaic_0001>

<llo_original>
// kernel: forward.1
$region0: #{forward.1}
  #allocation0 [shape = 'u32[]', space=smem, size = 0x4, offset = 0x4, fixed_abs, tag = 'smem constant byte address 0x4 - core index']
  #allocation1 [shape = 'u32[144,128]{1,0:T(1,128)}', space=vmem, size = 0x12000, scoped, tag = 'internal scratch']
  %s0 = inlined_call_operand.vmem [shape: f32[512,4], index: 0, kind: input, shape index: {}]
  %s1 = inlined_call_operand.vmem [shape: f32[4,128], index: 1, kind: input, shape index: {}]
  %s2 = inlined_call_operand.vmem [shape: f32[1,128], index: 2, kind: input, shape index: {}]
  %s3 = inlined_call_operand.vmem [shape: bf16[128,4], index: 3, kind: input, shape index: {}]
  %s4 = inlined_call_operand.vmem [shape: bf16[128,4], index: 4, kind: input, shape index: {}]
  %s5 = inlined_call_operand.vmem [shape: f32[512,4], index: 5, kind: output, shape index: {0}]
  %s6 = inlined_call_operand.vmem [shape: s32[1,1,512], index: 6, kind: output, shape index: {1}]
  %s7 = inlined_call_operand.hbm [shape: f32[1,1,1], index: 7, kind: output, shape index: {2}]
  %s8 = inlined_call_operand.vmem [shape: f32[1,1,128], index: 8, kind: output, shape index: {3}]
  %9 = xla_tuple %s5, %s6, %s7, %s8
  %s10 = sld [smem:[#allocation0]]
  $region54: #{forward.1} parent=0
    _
  %s12 = ssub.s32 1, %s10
  %s13 = scalar_select 0, %s12, %s10
  $region1: #{forward.1} parent=0
    #allocation2 [shape = 'u8[512]{0}', space=vmem, size = 0x400, scoped, tag = 'output window, operand 2, single buffered']
    #allocation3 [shape = 's32[1]{0}', space=sflag, size = 0x4, scoped, tag = 'scoped memory for forward.1']
    %14 = vsyncpa [#allocation3], 0
    // Predicated region
    $region2: #{forward.1} parent=1 // pred_check
      _
    $region3: #{forward.1} parent=1 // pred_check_branch
      %16 = sbr.rel (0) target = $region5
    $region4: #{forward.1} parent=1 // pred_region
      _
    $region5: #{forward.1} parent=1 // pred_fallthru
      _
    // Predicated region
    $region6: #{forward.1} parent=1 // pred_check
      _
    $region7: #{forward.1} parent=1 // pred_check_branch
      %18 = sbr.rel (0) target = $region9
    $region8: #{forward.1} parent=1 // pred_region
      _
    $region9: #{forward.1} parent=1 // pred_fallthru
      _
    // Predicated region
    $region10: #{forward.1} parent=1 // pred_check
      _
    $region11: #{forward.1} parent=1 // pred_check_branch
      %20 = sbr.rel (0) target = $region13
    $region12: #{forward.1} parent=1 // pred_region
      _
    $region13: #{forward.1} parent=1 // pred_fallthru
      _
    // Predicated region
    $region14: #{forward.1} parent=1 // pred_check
      _
    $region15: #{forward.1} parent=1 // pred_check_branch
      %22 = sbr.rel (0) target = $region17
    $region16: #{forward.1} parent=1 // pred_region
      _
    $region17: #{forward.1} parent=1 // pred_fallthru
      _
    // Predicated region
    $region18: #{forward.1} parent=1 // pred_check
      _
    $region19: #{forward.1} parent=1 // pred_check_branch
      %24 = sbr.rel (0) target = $region21
    $region20: #{forward.1} parent=1 // pred_region
      _
    $region21: #{forward.1} parent=1 // pred_fallthru
      _
    %v26 = vld [vmem:[%s0] sm:$0xff]
    %v27 = vld [vmem:[%s0 + $0x8] sm:$0xff]
    %v28 = vld [vmem:[%s0 + $0x10] sm:$0xff]
    %v29 = vld [vmem:[%s0 + $0x18] sm:$0xff]
    %v30 = vld [vmem:[%s0 + $0x20] sm:$0xff]
    %v31 = vld [vmem:[%s0 + $0x28] sm:$0xff]
    %v32 = vld [vmem:[%s0 + $0x30] sm:$0xff]
    %v33 = vld [vmem:[%s0 + $0x38] sm:$0xff]
    %v34 = vld [vmem:[%s0 + $0x40] sm:$0xff]
    %v35 = vld [vmem:[%s0 + $0x48] sm:$0xff]
    %v36 = vld [vmem:[%s0 + $0x50] sm:$0xff]
    %v37 = vld [vmem:[%s0 + $0x58] sm:$0xff]
    %v38 = vld [vmem:[%s0 + $0x60] sm:$0xff]
    %v39 = vld [vmem:[%s0 + $0x68] sm:$0xff]
    %v40 = vld [vmem:[%s0 + $0x70] sm:$0xff]
    %v41 = vld [vmem:[%s0 + $0x78] sm:$0xff]
    %v42 = vld [vmem:[%s0 + $0x80] sm:$0xff]
    %v43 = vld [vmem:[%s0 + $0x88] sm:$0xff]
    %v44 = vld [vmem:[%s0 + $0x90] sm:$0xff]
    %v45 = vld [vmem:[%s0 + $0x98] sm:$0xff]
    %v46 = vld [vmem:[%s0 + $0xa0] sm:$0xff]
    %v47 = vld [vmem:[%s0 + $0xa8] sm:$0xff]
    %v48 = vld [vmem:[%s0 + $0xb0] sm:$0xff]
    %v49 = vld [vmem:[%s0 + $0xb8] sm:$0xff]
    %v50 = vld [vmem:[%s0 + $0xc0] sm:$0xff]
    %v51 = vld [vmem:[%s0 + $0xc8] sm:$0xff]
    %v52 = vld [vmem:[%s0 + $0xd0] sm:$0xff]
    %v53 = vld [vmem:[%s0 + $0xd8] sm:$0xff]
    %v54 = vld [vmem:[%s0 + $0xe0] sm:$0xff]
    %v55 = vld [vmem:[%s0 + $0xe8] sm:$0xff]
    %v56 = vld [vmem:[%s0 + $0xf0] sm:$0xff]
    %v57 = vld [vmem:[%s0 + $0xf8] sm:$0xff]
    %v58 = vld [vmem:[%s0 + $0x100] sm:$0xff]
    %v59 = vld [vmem:[%s0 + $0x108] sm:$0xff]
    %v60 = vld [vmem:[%s0 + $0x110] sm:$0xff]
    %v61 = vld [vmem:[%s0 + $0x118] sm:$0xff]
    %v62 = vld [vmem:[%s0 + $0x120] sm:$0xff]
    %v63 = vld [vmem:[%s0 + $0x128] sm:$0xff]
    %v64 = vld [vmem:[%s0 + $0x130] sm:$0xff]
    %v65 = vld [vmem:[%s0 + $0x138] sm:$0xff]
    %v66 = vld [vmem:[%s0 + $0x140] sm:$0xff]
    %v67 = vld [vmem:[%s0 + $0x148] sm:$0xff]
    %v68 = vld [vmem:[%s0 + $0x150] sm:$0xff]
    %v69 = vld [vmem:[%s0 + $0x158] sm:$0xff]
    %v70 = vld [vmem:[%s0 + $0x160] sm:$0xff]
    %v71 = vld [vmem:[%s0 + $0x168] sm:$0xff]
    %v72 = vld [vmem:[%s0 + $0x170] sm:$0xff]
    %v73 = vld [vmem:[%s0 + $0x178] sm:$0xff]
    %v74 = vld [vmem:[%s0 + $0x180] sm:$0xff]
    %v75 = vld [vmem:[%s0 + $0x188] sm:$0xff]
    %v76 = vld [vmem:[%s0 + $0x190] sm:$0xff]
    %v77 = vld [vmem:[%s0 + $0x198] sm:$0xff]
    %v78 = vld [vmem:[%s0 + $0x1a0] sm:$0xff]
    %v79 = vld [vmem:[%s0 + $0x1a8] sm:$0xff]
    %v80 = vld [vmem:[%s0 + $0x1b0] sm:$0xff]
    %v81 = vld [vmem:[%s0 + $0x1b8] sm:$0xff]
    %v82 = vld [vmem:[%s0 + $0x1c0] sm:$0xff]
    %v83 = vld [vmem:[%s0 + $0x1c8] sm:$0xff]
    %v84 = vld [vmem:[%s0 + $0x1d0] sm:$0xff]
    %v85 = vld [vmem:[%s0 + $0x1d8] sm:$0xff]
    %v86 = vld [vmem:[%s0 + $0x1e0] sm:$0xff]
    %v87 = vld [vmem:[%s0 + $0x1e8] sm:$0xff]
    %v88 = vld [vmem:[%s0 + $0x1f0] sm:$0xff]
    %v89 = vld [vmem:[%s0 + $0x1f8] sm:$0xff]
    %v90 = vld [vmem:[%s1] sm:$0xf]
    %vm91 = vcmask 31744
    %v93 = vsel %vm91, %v26, 0
    %v96 = vsel %vm91, %v27, 0
    %v99 = vsel %vm91, %v28, 0
    %v102 = vsel %vm91, %v29, 0
    %v105 = vsel %vm91, %v30, 0
    %v108 = vsel %vm91, %v31, 0
    %v111 = vsel %vm91, %v32, 0
    %v114 = vsel %vm91, %v33, 0
    %v117 = vsel %vm91, %v34, 0
    %v120 = vsel %vm91, %v35, 0
    %v123 = vsel %vm91, %v36, 0
    %v126 = vsel %vm91, %v37, 0
    %v129 = vsel %vm91, %v38, 0
    %v132 = vsel %vm91, %v39, 0
    %v135 = vsel %vm91, %v40, 0
    %v138 = vsel %vm91, %v41, 0
    %v141 = vsel %vm91, %v42, 0
    %v144 = vsel %vm91, %v43, 0
    %v147 = vsel %vm91, %v44, 0
    %v150 = vsel %vm91, %v45, 0
    %v153 = vsel %vm91, %v46, 0
    %v156 = vsel %vm91, %v47, 0
    %v159 = vsel %vm91, %v48, 0
    %v162 = vsel %vm91, %v49, 0
    %v165 = vsel %vm91, %v50, 0
    %v168 = vsel %vm91, %v51, 0
    %v171 = vsel %vm91, %v52, 0
    %v174 = vsel %vm91, %v53, 0
    %v177 = vsel %vm91, %v54, 0
    %v180 = vsel %vm91, %v55, 0
    %v183 = vsel %vm91, %v56, 0
    %v186 = vsel %vm91, %v57, 0
    %v189 = vsel %vm91, %v58, 0
    %v192 = vsel %vm91, %v59, 0
    %v195 = vsel %vm91, %v60, 0
    %v198 = vsel %vm91, %v61, 0
    %v201 = vsel %vm91, %v62, 0
    %v204 = vsel %vm91, %v63, 0
    %v207 = vsel %vm91, %v64, 0
    %v210 = vsel %vm91, %v65, 0
    %v213 = vsel %vm91, %v66, 0
    %v216 = vsel %vm91, %v67, 0
    %v219 = vsel %vm91, %v68, 0
    %v222 = vsel %vm91, %v69, 0
    %v225 = vsel %vm91, %v70, 0
    %v228 = vsel %vm91, %v71, 0
    %v231 = vsel %vm91, %v72, 0
    %v234 = vsel %vm91, %v73, 0
    %v237 = vsel %vm91, %v74, 0
    %v240 = vsel %vm91, %v75, 0
    %v243 = vsel %vm91, %v76, 0
    %v246 = vsel %vm91, %v77, 0
    %v249 = vsel %vm91, %v78, 0
    %v252 = vsel %vm91, %v79, 0
    %v255 = vsel %vm91, %v80, 0
    %v258 = vsel %vm91, %v81, 0
    %v261 = vsel %vm91, %v82, 0
    %v264 = vsel %vm91, %v83, 0
    %v267 = vsel %vm91, %v84, 0
    %v270 = vsel %vm91, %v85, 0
    %v273 = vsel %vm91, %v86, 0
    %v276 = vsel %vm91, %v87, 0
    %v279 = vsel %vm91, %v88, 0
    %v282 = vsel %vm91, %v89, 0
    %vm284 = vcmask 1043456
    %v286 = vsel %vm284, %v90, 0
    %288 = vmatprep.subr.mxu0 0.0
    %289 = vmatpush1.msra.mxu0 %v286
    %290 = vmatprep.subr.mxu0 0.0
    %291 = vmatpush1.msra.mxu0 0.0
    %292 = vmatprep.subr.mxu0 0.0
    %293 = vmatpush1.msra.mxu0 0.0
    %294 = vmatprep.subr.mxu0 0.0
    %295 = vmatpush1.msra.mxu0 0.0
    %296 = vmatprep.subr.mxu0 0.0
    %297 = vmatpush1.msra.mxu0 0.0
    %298 = vmatprep.subr.mxu0 0.0
    %299 = vmatpush1.msra.mxu0 0.0
    %300 = vmatprep.subr.mxu0 0.0
    %301 = vmatpush1.msra.mxu0 0.0
    %302 = vmatprep.subr.mxu0 0.0
    %303 = vmatpush1.msra.mxu0 0.0
    %304 = vmatprep.subr.mxu0 0.0
    %305 = vmatpush1.msra.mxu0 0.0
    %306 = vmatprep.subr.mxu0 0.0
    %307 = vmatpush1.msra.mxu0 0.0
    %308 = vmatprep.subr.mxu0 0.0
    %309 = vmatpush1.msra.mxu0 0.0
    %310 = vmatprep.subr.mxu0 0.0
    %311 = vmatpush1.msra.mxu0 0.0
    %312 = vmatprep.subr.mxu0 0.0
    %313 = vmatpush1.msra.mxu0 0.0
    %314 = vmatprep.subr.mxu0 0.0
    %315 = vmatpush1.msra.mxu0 0.0
    %316 = vmatprep.subr.mxu0 0.0
    %317 = vmatpush1.msra.mxu0 0.0
    %318 = vmatprep.subr.mxu0 0.0
    %319 = vmatpush1.msra.mxu0 0.0
    %320 = vmatprep.subr.mxu0 0.0
    %321 = vmatpush1.msra.mxu0 0.0
    %322 = vmatprep.subr.mxu0 0.0
    %323 = vmatpush1.msra.mxu0 0.0
    %324 = vmatprep.subr.mxu0 0.0
    %325 = vmatpush1.msra.mxu0 0.0
    %326 = vmatprep.subr.mxu0 0.0
    %327 = vmatpush1.msra.mxu0 0.0
    %328 = vmatprep.subr.mxu0 0.0
    %329 = vmatpush1.msra.mxu0 0.0
    %330 = vmatprep.subr.mxu0 0.0
    %331 = vmatpush1.msra.mxu0 0.0
    %332 = vmatprep.subr.mxu0 0.0
    %333 = vmatpush1.msra.mxu0 0.0
    %334 = vmatprep.subr.mxu0 0.0
    %335 = vmatpush1.msra.mxu0 0.0
    %336 = vmatprep.subr.mxu0 0.0
    %337 = vmatpush1.msra.mxu0 0.0
    %338 = vmatprep.subr.mxu0 0.0
    %339 = vmatpush1.msra.mxu0 0.0
    %340 = vmatprep.subr.mxu0 0.0
    %341 = vmatpush1.msra.mxu0 0.0
    %342 = vmatprep.subr.mxu0 0.0
    %343 = vmatpush1.msra.mxu0 0.0
    %344 = vmatprep.subr.mxu0 0.0
    %345 = vmatpush1.msra.mxu0 0.0
    %346 = vmatprep.subr.mxu0 0.0
    %347 = vmatpush1.msra.mxu0 0.0
    %348 = vmatprep.subr.mxu0 0.0
    %349 = vmatpush1.msra.mxu0 0.0
    %350 = vmatprep.subr.mxu0 0.0
    %351 = vmatpush1.msra.mxu0 0.0
    %352 = vmatprep.mubr.f32.mxu0 0.0
    %353 = vmatmul.mubr.f32.gmra.mrb[0].mxu0 %v93
    %v354 = vpop.f32.mrb[0].mxu0
    %v355 = vadd.f32 0.0, %v354
    %v356 = vpop.f32.mrb[0].mxu0
    %357 = vmatprep.mubr.f32.mxu0 0.0
    %358 = vmatmul.mubr.f32.gmra.mrb[0].mxu0 %v96
    %v359 = vpop.f32.mrb[0].mxu0
    %v360 = vadd.f32 0.0, %v359
    %v361 = vpop.f32.mrb[0].mxu0
    %362 = vmatprep.mubr.f32.mxu0 0.0
    %363 = vmatmul.mubr.f32.gmra.mrb[0].mxu0 %v99
    %v364 = vpop.f32.mrb[0].mxu0
    %v365 = vadd.f32 0.0, %v364
    %v366 = vpop.f32.mrb[0].mxu0
    %367 = vmatprep.mubr.f32.mxu0 0.0
    %368 = vmatmul.mubr.f32.gmra.mrb[0].mxu0 %v102
    %v369 = vpop.f32.mrb[0].mxu0
    %v370 = vadd.f32 0.0, %v369
    %v371 = vpop.f32.mrb[0].mxu0
    %372 = vmatprep.mubr.f32.mxu0 0.0
    %373 = vmatmul.mubr.f32.gmra.mrb[0].mxu0 %v105
    %v374 = vpop.f32.mrb[0].mxu0
    %v375 = vadd.f32 0.0, %v374
    %v376 = vpop.f32.mrb[0].mxu0
    %377 = vmatprep.mubr.f32.mxu0 0.0
    %378 = vmatmul.mubr.f32.gmra.mrb[0].mxu0 %v108
    %v379 = vpop.f32.mrb[0].mxu0
    %v380 = vadd.f32 0.0, %v379
    %v381 = vpop.f32.mrb[0].mxu0
    %382 = vmatprep.mubr.f32.mxu0 0.0
    %383 = vmatmul.mubr.f32.gmra.mrb[0].mxu0 %v111
    %v384 = vpop.f32.mrb[0].mxu0
    %v385 = vadd.f32 0.0, %v384
    %v386 = vpop.f32.mrb[0].mxu0
    %387 = vmatprep.mubr.f32.mxu0 0.0
    %388 = vmatmul.mubr.f32.gmra.mrb[0].mxu0 %v114
    %v389 = vpop.f32.mrb[0].mxu0
    %v390 = vadd.f32 0.0, %v389
    %v391 = vpop.f32.mrb[0].mxu0
    %392 = vmatprep.mubr.f32.mxu0 0.0
    %393 = vmatmul.mubr.f32.gmra.mrb[0].mxu0 %v117
    %v394 = vpop.f32.mrb[0].mxu0
    %v395 = vadd.f32 0.0, %v394
    %v396 = vpop.f32.mrb[0].mxu0
    %397 = vmatprep.mubr.f32.mxu0 0.0
    %398 = vmatmul.mubr.f32.gmra.mrb[0].mxu0 %v120
    %v399 = vpop.f32.mrb[0].mxu0
    %v400 = vadd.f32 0.0, %v399
    %v401 = vpop.f32.mrb[0].mxu0
    %402 = vmatprep.mubr.f32.mxu0 0.0
    %403 = vmatmul.mubr.f32.gmra.mrb[0].mxu0 %v123
    %v404 = vpop.f32.mrb[0].mxu0
    %v405 = vadd.f32 0.0, %v404
    %v406 = vpop.f32.mrb[0].mxu0
    %407 = vmatprep.mubr.f32.mxu0 0.0
    %408 = vmatmul.mubr.f32.gmra.mrb[0].mxu0 %v126
    %v409 = vpop.f32.mrb[0].mxu0
    %v410 = vadd.f32 0.0, %v409
    %v411 = vpop.f32.mrb[0].mxu0
    %412 = vmatprep.mubr.f32.mxu0 0.0
    %413 = vmatmul.mubr.f32.gmra.mrb[0].mxu0 %v129
    %v414 = vpop.f32.mrb[0].mxu0
    %v415 = vadd.f32 0.0, %v414
    %v416 = vpop.f32.mrb[0].mxu0
    %417 = vmatprep.mubr.f32.mxu0 0.0
    %418 = vmatmul.mubr.f32.gmra.mrb[0].mxu0 %v132
    %v419 = vpop.f32.mrb[0].mxu0
    %v420 = vadd.f32 0.0, %v419
    %v421 = vpop.f32.mrb[0].mxu0
    %422 = vmatprep.mubr.f32.mxu0 0.0
    %423 = vmatmul.mubr.f32.gmra.mrb[0].mxu0 %v135
    %v424 = vpop.f32.mrb[0].mxu0
    %v425 = vadd.f32 0.0, %v424
    %v426 = vpop.f32.mrb[0].mxu0
    %427 = vmatprep.mubr.f32.mxu0 0.0
    %428 = vmatmul.mubr.f32.gmra.mrb[0].mxu0 %v138
    %v429 = vpop.f32.mrb[0].mxu0
    %v430 = vadd.f32 0.0, %v429
    %v431 = vpop.f32.mrb[0].mxu0
    %432 = vmatprep.mubr.f32.mxu0 0.0
    %433 = vmatmul.mubr.f32.gmra.mrb[0].mxu0 %v141
    %v434 = vpop.f32.mrb[0].mxu0
    %v435 = vadd.f32 0.0, %v434
    %v436 = vpop.f32.mrb[0].mxu0
    %437 = vmatprep.mubr.f32.mxu0 0.0
    %438 = vmatmul.mubr.f32.gmra.mrb[0].mxu0 %v144
    %v439 = vpop.f32.mrb[0].mxu0
    %v440 = vadd.f32 0.0, %v439
    %v441 = vpop.f32.mrb[0].mxu0
    %442 = vmatprep.mubr.f32.mxu0 0.0
    %443 = vmatmul.mubr.f32.gmra.mrb[0].mxu0 %v147
    %v444 = vpop.f32.mrb[0].mxu0
    %v445 = vadd.f32 0.0, %v444
    %v446 = vpop.f32.mrb[0].mxu0
    %447 = vmatprep.mubr.f32.mxu0 0.0
    %448 = vmatmul.mubr.f32.gmra.mrb[0].mxu0 %v150
    %v449 = vpop.f32.mrb[0].mxu0
    %v450 = vadd.f32 0.0, %v449
    %v451 = vpop.f32.mrb[0].mxu0
    %452 = vmatprep.mubr.f32.mxu0 0.0
    %453 = vmatmul.mubr.f32.gmra.mrb[0].mxu0 %v153
    %v454 = vpop.f32.mrb[0].mxu0
    %v455 = vadd.f32 0.0, %v454
    %v456 = vpop.f32.mrb[0].mxu0
    %457 = vmatprep.mubr.f32.mxu0 0.0
    %458 = vmatmul.mubr.f32.gmra.mrb[0].mxu0 %v156
    %v459 = vpop.f32.mrb[0].mxu0
    %v460 = vadd.f32 0.0, %v459
    %v461 = vpop.f32.mrb[0].mxu0
    %462 = vmatprep.mubr.f32.mxu0 0.0
    %463 = vmatmul.mubr.f32.gmra.mrb[0].mxu0 %v159
    %v464 = vpop.f32.mrb[0].mxu0
    %v465 = vadd.f32 0.0, %v464
    %v466 = vpop.f32.mrb[0].mxu0
    %467 = vmatprep.mubr.f32.mxu0 0.0
    %468 = vmatmul.mubr.f32.gmra.mrb[0].mxu0 %v162
    %v469 = vpop.f32.mrb[0].mxu0
    %v470 = vadd.f32 0.0, %v469
    %v471 = vpop.f32.mrb[0].mxu0
    %472 = vmatprep.mubr.f32.mxu0 0.0
    %473 = vmatmul.mubr.f32.gmra.mrb[0].mxu0 %v165
    %v474 = vpop.f32.mrb[0].mxu0
    %v475 = vadd.f32 0.0, %v474
    %v476 = vpop.f32.mrb[0].mxu0
    %477 = vmatprep.mubr.f32.mxu0 0.0
    %478 = vmatmul.mubr.f32.gmra.mrb[0].mxu0 %v168
    %v479 = vpop.f32.mrb[0].mxu0
    %v480 = vadd.f32 0.0, %v479
    %v481 = vpop.f32.mrb[0].mxu0
    %482 = vmatprep.mubr.f32.mxu0 0.0
    %483 = vmatmul.mubr.f32.gmra.mrb[0].mxu0 %v171
    %v484 = vpop.f32.mrb[0].mxu0
    %v485 = vadd.f32 0.0, %v484
    %v486 = vpop.f32.mrb[0].mxu0
    %487 = vmatprep.mubr.f32.mxu0 0.0
    %488 = vmatmul.mubr.f32.gmra.mrb[0].mxu0 %v174
    %v489 = vpop.f32.mrb[0].mxu0
    %v490 = vadd.f32 0.0, %v489
    %v491 = vpop.f32.mrb[0].mxu0
    %492 = vmatprep.mubr.f32.mxu0 0.0
    %493 = vmatmul.mubr.f32.gmra.mrb[0].mxu0 %v177
    %v494 = vpop.f32.mrb[0].mxu0
    %v495 = vadd.f32 0.0, %v494
    %v496 = vpop.f32.mrb[0].mxu0
    %497 = vmatprep.mubr.f32.mxu0 0.0
    %498 = vmatmul.mubr.f32.gmra.mrb[0].mxu0 %v180
    %v499 = vpop.f32.mrb[0].mxu0
    %v500 = vadd.f32 0.0, %v499
    %v501 = vpop.f32.mrb[0].mxu0
    %502 = vmatprep.mubr.f32.mxu0 0.0
    %503 = vmatmul.mubr.f32.gmra.mrb[0].mxu0 %v183
    %v504 = vpop.f32.mrb[0].mxu0
    %v505 = vadd.f32 0.0, %v504
    %v506 = vpop.f32.mrb[0].mxu0
    %507 = vmatprep.mubr.f32.mxu0 0.0
    %508 = vmatmul.mubr.f32.gmra.mrb[0].mxu0 %v186
    %v509 = vpop.f32.mrb[0].mxu0
    %v510 = vadd.f32 0.0, %v509
    %v511 = vpop.f32.mrb[0].mxu0
    %512 = vmatprep.mubr.f32.mxu0 0.0
    %513 = vmatmul.mubr.f32.gmra.mrb[0].mxu0 %v189
    %v514 = vpop.f32.mrb[0].mxu0
    %v515 = vadd.f32 0.0, %v514
    %v516 = vpop.f32.mrb[0].mxu0
    %517 = vmatprep.mubr.f32.mxu0 0.0
    %518 = vmatmul.mubr.f32.gmra.mrb[0].mxu0 %v192
    %v519 = vpop.f32.mrb[0].mxu0
    %v520 = vadd.f32 0.0, %v519
    %v521 = vpop.f32.mrb[0].mxu0
    %522 = vmatprep.mubr.f32.mxu0 0.0
    %523 = vmatmul.mubr.f32.gmra.mrb[0].mxu0 %v195
    %v524 = vpop.f32.mrb[0].mxu0
    %v525 = vadd.f32 0.0, %v524
    %v526 = vpop.f32.mrb[0].mxu0
    %527 = vmatprep.mubr.f32.mxu0 0.0
    %528 = vmatmul.mubr.f32.gmra.mrb[0].mxu0 %v198
    %v529 = vpop.f32.mrb[0].mxu0
    %v530 = vadd.f32 0.0, %v529
    %v531 = vpop.f32.mrb[0].mxu0
    %532 = vmatprep.mubr.f32.mxu0 0.0
    %533 = vmatmul.mubr.f32.gmra.mrb[0].mxu0 %v201
    %v534 = vpop.f32.mrb[0].mxu0
    %v535 = vadd.f32 0.0, %v534
    %v536 = vpop.f32.mrb[0].mxu0
    %537 = vmatprep.mubr.f32.mxu0 0.0
    %538 = vmatmul.mubr.f32.gmra.mrb[0].mxu0 %v204
    %v539 = vpop.f32.mrb[0].mxu0
    %v540 = vadd.f32 0.0, %v539
    %v541 = vpop.f32.mrb[0].mxu0
    %542 = vmatprep.mubr.f32.mxu0 0.0
    %543 = vmatmul.mubr.f32.gmra.mrb[0].mxu0 %v207
    %v544 = vpop.f32.mrb[0].mxu0
    %v545 = vadd.f32 0.0, %v544
    %v546 = vpop.f32.mrb[0].mxu0
    %547 = vmatprep.mubr.f32.mxu0 0.0
    %548 = vmatmul.mubr.f32.gmra.mrb[0].mxu0 %v210
    %v549 = vpop.f32.mrb[0].mxu0
    %v550 = vadd.f32 0.0, %v549
    %v551 = vpop.f32.mrb[0].mxu0
    %552 = vmatprep.mubr.f32.mxu0 0.0
    %553 = vmatmul.mubr.f32.gmra.mrb[0].mxu0 %v213
    %v554 = vpop.f32.mrb[0].mxu0
    %v555 = vadd.f32 0.0, %v554
    %v556 = vpop.f32.mrb[0].mxu0
    %557 = vmatprep.mubr.f32.mxu0 0.0
    %558 = vmatmul.mubr.f32.gmra.mrb[0].mxu0 %v216
    %v559 = vpop.f32.mrb[0].mxu0
    %v560 = vadd.f32 0.0, %v559
    %v561 = vpop.f32.mrb[0].mxu0
    %562 = vmatprep.mubr.f32.mxu0 0.0
    %563 = vmatmul.mubr.f32.gmra.mrb[0].mxu0 %v219
    %v564 = vpop.f32.mrb[0].mxu0
    %v565 = vadd.f32 0.0, %v564
    %v566 = vpop.f32.mrb[0].mxu0
    %567 = vmatprep.mubr.f32.mxu0 0.0
    %568 = vmatmul.mubr.f32.gmra.mrb[0].mxu0 %v222
    %v569 = vpop.f32.mrb[0].mxu0
    %v570 = vadd.f32 0.0, %v569
    %v571 = vpop.f32.mrb[0].mxu0
    %572 = vmatprep.mubr.f32.mxu0 0.0
    %573 = vmatmul.mubr.f32.gmra.mrb[0].mxu0 %v225
    %v574 = vpop.f32.mrb[0].mxu0
    %v575 = vadd.f32 0.0, %v574
    %v576 = vpop.f32.mrb[0].mxu0
    %577 = vmatprep.mubr.f32.mxu0 0.0
    %578 = vmatmul.mubr.f32.gmra.mrb[0].mxu0 %v228
    %v579 = vpop.f32.mrb[0].mxu0
    %v580 = vadd.f32 0.0, %v579
    %v581 = vpop.f32.mrb[0].mxu0
    %582 = vmatprep.mubr.f32.mxu0 0.0
    %583 = vmatmul.mubr.f32.gmra.mrb[0].mxu0 %v231
    %v584 = vpop.f32.mrb[0].mxu0
    %v585 = vadd.f32 0.0, %v584
    %v586 = vpop.f32.mrb[0].mxu0
    %587 = vmatprep.mubr.f32.mxu0 0.0
    %588 = vmatmul.mubr.f32.gmra.mrb[0].mxu0 %v234
    %v589 = vpop.f32.mrb[0].mxu0
    %v590 = vadd.f32 0.0, %v589
    %v591 = vpop.f32.mrb[0].mxu0
    %592 = vmatprep.mubr.f32.mxu0 0.0
    %593 = vmatmul.mubr.f32.gmra.mrb[0].mxu0 %v237
    %v594 = vpop.f32.mrb[0].mxu0
    %v595 = vadd.f32 0.0, %v594
    %v596 = vpop.f32.mrb[0].mxu0
    %597 = vmatprep.mubr.f32.mxu0 0.0
    %598 = vmatmul.mubr.f32.gmra.mrb[0].mxu0 %v240
    %v599 = vpop.f32.mrb[0].mxu0
    %v600 = vadd.f32 0.0, %v599
    %v601 = vpop.f32.mrb[0].mxu0
    %602 = vmatprep.mubr.f32.mxu0 0.0
    %603 = vmatmul.mubr.f32.gmra.mrb[0].mxu0 %v243
    %v604 = vpop.f32.mrb[0].mxu0
    %v605 = vadd.f32 0.0, %v604
    %v606 = vpop.f32.mrb[0].mxu0
    %607 = vmatprep.mubr.f32.mxu0 0.0
    %608 = vmatmul.mubr.f32.gmra.mrb[0].mxu0 %v246
    %v609 = vpop.f32.mrb[0].mxu0
    %v610 = vadd.f32 0.0, %v609
    %v611 = vpop.f32.mrb[0].mxu0
    %612 = vmatprep.mubr.f32.mxu0 0.0
    %613 = vmatmul.mubr.f32.gmra.mrb[0].mxu0 %v249
    %v614 = vpop.f32.mrb[0].mxu0
    %v615 = vadd.f32 0.0, %v614
    %v616 = vpop.f32.mrb[0].mxu0
    %617 = vmatprep.mubr.f32.mxu0 0.0
    %618 = vmatmul.mubr.f32.gmra.mrb[0].mxu0 %v252
    %v619 = vpop.f32.mrb[0].mxu0
    %v620 = vadd.f32 0.0, %v619
    %v621 = vpop.f32.mrb[0].mxu0
    %622 = vmatprep.mubr.f32.mxu0 0.0
    %623 = vmatmul.mubr.f32.gmra.mrb[0].mxu0 %v255
    %v624 = vpop.f32.mrb[0].mxu0
    %v625 = vadd.f32 0.0, %v624
    %v626 = vpop.f32.mrb[0].mxu0
    %627 = vmatprep.mubr.f32.mxu0 0.0
    %628 = vmatmul.mubr.f32.gmra.mrb[0].mxu0 %v258
    %v629 = vpop.f32.mrb[0].mxu0
    %v630 = vadd.f32 0.0, %v629
    %v631 = vpop.f32.mrb[0].mxu0
    %632 = vmatprep.mubr.f32.mxu0 0.0
    %633 = vmatmul.mubr.f32.gmra.mrb[0].mxu0 %v261
    %v634 = vpop.f32.mrb[0].mxu0
    %v635 = vadd.f32 0.0, %v634
    %v636 = vpop.f32.mrb[0].mxu0
    %637 = vmatprep.mubr.f32.mxu0 0.0
    %638 = vmatmul.mubr.f32.gmra.mrb[0].mxu0 %v264
    %v639 = vpop.f32.mrb[0].mxu0
    %v640 = vadd.f32 0.0, %v639
    %v641 = vpop.f32.mrb[0].mxu0
    %642 = vmatprep.mubr.f32.mxu0 0.0
    %643 = vmatmul.mubr.f32.gmra.mrb[0].mxu0 %v267
    %v644 = vpop.f32.mrb[0].mxu0
    %v645 = vadd.f32 0.0, %v644
    %v646 = vpop.f32.mrb[0].mxu0
    %647 = vmatprep.mubr.f32.mxu0 0.0
    %648 = vmatmul.mubr.f32.gmra.mrb[0].mxu0 %v270
    %v649 = vpop.f32.mrb[0].mxu0
    %v650 = vadd.f32 0.0, %v649
    %v651 = vpop.f32.mrb[0].mxu0
    %652 = vmatprep.mubr.f32.mxu0 0.0
    %653 = vmatmul.mubr.f32.gmra.mrb[0].mxu0 %v273
    %v654 = vpop.f32.mrb[0].mxu0
    %v655 = vadd.f32 0.0, %v654
    %v656 = vpop.f32.mrb[0].mxu0
    %657 = vmatprep.mubr.f32.mxu0 0.0
    %658 = vmatmul.mubr.f32.gmra.mrb[0].mxu0 %v276
    %v659 = vpop.f32.mrb[0].mxu0
    %v660 = vadd.f32 0.0, %v659
    %v661 = vpop.f32.mrb[0].mxu0
    %662 = vmatprep.mubr.f32.mxu0 0.0
    %663 = vmatmul.mubr.f32.gmra.mrb[0].mxu0 %v279
    %v664 = vpop.f32.mrb[0].mxu0
    %v665 = vadd.f32 0.0, %v664
    %v666 = vpop.f32.mrb[0].mxu0
    %667 = vmatprep.mubr.f32.mxu0 0.0
    %668 = vmatmul.mubr.f32.gmra.mrb[0].mxu0 %v282
    %v669 = vpop.f32.mrb[0].mxu0
    %v670 = vadd.f32 0.0, %v669
    %v671 = vpop.f32.mrb[0].mxu0
    %672 = vdwg.mxu0
    %v673 = vld [vmem:[%s2] sm:$0x1]
    %v674 = vmul.f32 %v355, 2.0
    %v675 = vmul.f32 %v360, 2.0
    %v676 = vmul.f32 %v365, 2.0
    %v677 = vmul.f32 %v370, 2.0
    %v678 = vmul.f32 %v375, 2.0
    %v679 = vmul.f32 %v380, 2.0
    %v680 = vmul.f32 %v385, 2.0
    %v681 = vmul.f32 %v390, 2.0
    %v682 = vmul.f32 %v395, 2.0
    %v683 = vmul.f32 %v400, 2.0
    %v684 = vmul.f32 %v405, 2.0
    %v685 = vmul.f32 %v410, 2.0
    %v686 = vmul.f32 %v415, 2.0
    %v687 = vmul.f32 %v420, 2.0
    %v688 = vmul.f32 %v425, 2.0
    %v689 = vmul.f32 %v430, 2.0
    %v690 = vmul.f32 %v435, 2.0
    %v691 = vmul.f32 %v440, 2.0
    %v692 = vmul.f32 %v445, 2.0
    %v693 = vmul.f32 %v450, 2.0
    %v694 = vmul.f32 %v455, 2.0
    %v695 = vmul.f32 %v460, 2.0
    %v696 = vmul.f32 %v465, 2.0
    %v697 = vmul.f32 %v470, 2.0
    %v698 = vmul.f32 %v475, 2.0
    %v699 = vmul.f32 %v480, 2.0
    %v700 = vmul.f32 %v485, 2.0
    %v701 = vmul.f32 %v490, 2.0
    %v702 = vmul.f32 %v495, 2.0
    %v703 = vmul.f32 %v500, 2.0
    %v704 = vmul.f32 %v505, 2.0
    %v705 = vmul.f32 %v510, 2.0
    %v706 = vmul.f32 %v515, 2.0
    %v707 = vmul.f32 %v520, 2.0
    %v708 = vmul.f32 %v525, 2.0
    %v709 = vmul.f32 %v530, 2.0
    %v710 = vmul.f32 %v535, 2.0
    %v711 = vmul.f32 %v540, 2.0
    %v712 = vmul.f32 %v545, 2.0
    %v713 = vmul.f32 %v550, 2.0
    %v714 = vmul.f32 %v555, 2.0
    %v715 = vmul.f32 %v560, 2.0
    %v716 = vmul.f32 %v565, 2.0
    %v717 = vmul.f32 %v570, 2.0
    %v718 = vmul.f32 %v575, 2.0
    %v719 = vmul.f32 %v580, 2.0
    %v720 = vmul.f32 %v585, 2.0
    %v721 = vmul.f32 %v590, 2.0
    %v722 = vmul.f32 %v595, 2.0
    %v723 = vmul.f32 %v600, 2.0
    %v724 = vmul.f32 %v605, 2.0
    %v725 = vmul.f32 %v610, 2.0
    %v726 = vmul.f32 %v615, 2.0
    %v727 = vmul.f32 %v620, 2.0
    %v728 = vmul.f32 %v625, 2.0
    %v729 = vmul.f32 %v630, 2.0
    %v730 = vmul.f32 %v635, 2.0
    %v731 = vmul.f32 %v640, 2.0
    %v732 = vmul.f32 %v645, 2.0
    %v733 = vmul.f32 %v650, 2.0
    %v734 = vmul.f32 %v655, 2.0
    %v735 = vmul.f32 %v660, 2.0
    %v736 = vmul.f32 %v665, 2.0
    %v737 = vmul.f32 %v670, 2.0
    %v739 = vlaneseq
    %v740 = vshrl.u32 %v739, 7
    %v741 = vsub.s32 0, %v740
    %v742 = vrot.slane %v673, %v741
    %v744 = vsub.f32 %v742, %v674
    %v745 = vsub.f32 %v742, %v675
    %v746 = vsub.f32 %v742, %v676
    %v747 = vsub.f32 %v742, %v677
    %v748 = vsub.f32 %v742, %v678
    %v749 = vsub.f32 %v742, %v679
    %v750 = vsub.f32 %v742, %v680
    %v751 = vsub.f32 %v742, %v681
    %v752 = vsub.f32 %v742, %v682
    %v753 = vsub.f32 %v742, %v683
    %v754 = vsub.f32 %v742, %v684
    %v755 = vsub.f32 %v742, %v685
    %v756 = vsub.f32 %v742, %v686
    %v757 = vsub.f32 %v742, %v687
    %v758 = vsub.f32 %v742, %v688
    %v759 = vsub.f32 %v742, %v689
    %v760 = vsub.f32 %v742, %v690
    %v761 = vsub.f32 %v742, %v691
    %v762 = vsub.f32 %v742, %v692
    %v763 = vsub.f32 %v742, %v693
    %v764 = vsub.f32 %v742, %v694
    %v765 = vsub.f32 %v742, %v695
    %v766 = vsub.f32 %v742, %v696
    %v767 = vsub.f32 %v742, %v697
    %v768 = vsub.f32 %v742, %v698
    %v769 = vsub.f32 %v742, %v699
    %v770 = vsub.f32 %v742, %v700
    %v771 = vsub.f32 %v742, %v701
    %v772 = vsub.f32 %v742, %v702
    %v773 = vsub.f32 %v742, %v703
    %v774 = vsub.f32 %v742, %v704
    %v775 = vsub.f32 %v742, %v705
    %v776 = vsub.f32 %v742, %v706
    %v777 = vsub.f32 %v742, %v707
    %v778 = vsub.f32 %v742, %v708
    %v779 = vsub.f32 %v742, %v709
    %v780 = vsub.f32 %v742, %v710
    %v781 = vsub.f32 %v742, %v711
    %v782 = vsub.f32 %v742, %v712
    %v783 = vsub.f32 %v742, %v713
    %v784 = vsub.f32 %v742, %v714
    %v785 = vsub.f32 %v742, %v715
    %v786 = vsub.f32 %v742, %v716
    %v787 = vsub.f32 %v742, %v717
    %v788 = vsub.f32 %v742, %v718
    %v789 = vsub.f32 %v742, %v719
    %v790 = vsub.f32 %v742, %v720
    %v791 = vsub.f32 %v742, %v721
    %v792 = vsub.f32 %v742, %v722
    %v793 = vsub.f32 %v742, %v723
    %v794 = vsub.f32 %v742, %v724
    %v795 = vsub.f32 %v742, %v725
    %v796 = vsub.f32 %v742, %v726
    %v797 = vsub.f32 %v742, %v727
    %v798 = vsub.f32 %v742, %v728
    %v799 = vsub.f32 %v742, %v729
    %v800 = vsub.f32 %v742, %v730
    %v801 = vsub.f32 %v742, %v731
    %v802 = vsub.f32 %v742, %v732
    %v803 = vsub.f32 %v742, %v733
    %v804 = vsub.f32 %v742, %v734
    %v805 = vsub.f32 %v742, %v735
    %v806 = vsub.f32 %v742, %v736
    %v807 = vsub.f32 %v742, %v737
    %808 = vmin.index.xlane.f32.xlu0 %v744
    %v809 = vpop.xlane.xlu0 %808
    %810 = vmin.index.xlane.f32.xlu0 %v745
    %v811 = vpop.xlane.xlu0 %810
    %812 = vmin.index.xlane.f32.xlu0 %v746
    %v813 = vpop.xlane.xlu0 %812
    %814 = vmin.index.xlane.f32.xlu0 %v747
    %v815 = vpop.xlane.xlu0 %814
    %816 = vmin.index.xlane.f32.xlu0 %v748
    %v817 = vpop.xlane.xlu0 %816
    %818 = vmin.index.xlane.f32.xlu0 %v749
    %v819 = vpop.xlane.xlu0 %818
    %820 = vmin.index.xlane.f32.xlu0 %v750
    %v821 = vpop.xlane.xlu0 %820
    %822 = vmin.index.xlane.f32.xlu0 %v751
    %v823 = vpop.xlane.xlu0 %822
    %824 = vmin.index.xlane.f32.xlu0 %v752
    %v825 = vpop.xlane.xlu0 %824
    %826 = vmin.index.xlane.f32.xlu0 %v753
    %v827 = vpop.xlane.xlu0 %826
    %828 = vmin.index.xlane.f32.xlu0 %v754
    %v829 = vpop.xlane.xlu0 %828
    %830 = vmin.index.xlane.f32.xlu0 %v755
    %v831 = vpop.xlane.xlu0 %830
    %832 = vmin.index.xlane.f32.xlu0 %v756
    %v833 = vpop.xlane.xlu0 %832
    %834 = vmin.index.xlane.f32.xlu0 %v757
    %v835 = vpop.xlane.xlu0 %834
    %836 = vmin.index.xlane.f32.xlu0 %v758
    %v837 = vpop.xlane.xlu0 %836
    %838 = vmin.index.xlane.f32.xlu0 %v759
    %v839 = vpop.xlane.xlu0 %838
    %840 = vmin.index.xlane.f32.xlu0 %v760
    %v841 = vpop.xlane.xlu0 %840
    %842 = vmin.index.xlane.f32.xlu0 %v761
    %v843 = vpop.xlane.xlu0 %842
    %844 = vmin.index.xlane.f32.xlu0 %v762
    %v845 = vpop.xlane.xlu0 %844
    %846 = vmin.index.xlane.f32.xlu0 %v763
    %v847 = vpop.xlane.xlu0 %846
    %848 = vmin.index.xlane.f32.xlu0 %v764
    %v849 = vpop.xlane.xlu0 %848
    %850 = vmin.index.xlane.f32.xlu0 %v765
    %v851 = vpop.xlane.xlu0 %850
    %852 = vmin.index.xlane.f32.xlu0 %v766
    %v853 = vpop.xlane.xlu0 %852
    %854 = vmin.index.xlane.f32.xlu0 %v767
    %v855 = vpop.xlane.xlu0 %854
    %856 = vmin.index.xlane.f32.xlu0 %v768
    %v857 = vpop.xlane.xlu0 %856
    %858 = vmin.index.xlane.f32.xlu0 %v769
    %v859 = vpop.xlane.xlu0 %858
    %860 = vmin.index.xlane.f32.xlu0 %v770
    %v861 = vpop.xlane.xlu0 %860
    %862 = vmin.index.xlane.f32.xlu0 %v771
    %v863 = vpop.xlane.xlu0 %862
    %864 = vmin.index.xlane.f32.xlu0 %v772
    %v865 = vpop.xlane.xlu0 %864
    %866 = vmin.index.xlane.f32.xlu0 %v773
    %v867 = vpop.xlane.xlu0 %866
    %868 = vmin.index.xlane.f32.xlu0 %v774
    %v869 = vpop.xlane.xlu0 %868
    %870 = vmin.index.xlane.f32.xlu0 %v775
    %v871 = vpop.xlane.xlu0 %870
    %872 = vmin.index.xlane.f32.xlu0 %v776
    %v873 = vpop.xlane.xlu0 %872
    %874 = vmin.index.xlane.f32.xlu0 %v777
    %v875 = vpop.xlane.xlu0 %874
    %876 = vmin.index.xlane.f32.xlu0 %v778
    %v877 = vpop.xlane.xlu0 %876
    %878 = vmin.index.xlane.f32.xlu0 %v779
    %v879 = vpop.xlane.xlu0 %878
    %880 = vmin.index.xlane.f32.xlu0 %v780
    %v881 = vpop.xlane.xlu0 %880
    %882 = vmin.index.xlane.f32.xlu0 %v781
    %v883 = vpop.xlane.xlu0 %882
    %884 = vmin.index.xlane.f32.xlu0 %v782
    %v885 = vpop.xlane.xlu0 %884
    %886 = vmin.index.xlane.f32.xlu0 %v783
    %v887 = vpop.xlane.xlu0 %886
    %888 = vmin.index.xlane.f32.xlu0 %v784
    %v889 = vpop.xlane.xlu0 %888
    %890 = vmin.index.xlane.f32.xlu0 %v785
    %v891 = vpop.xlane.xlu0 %890
    %892 = vmin.index.xlane.f32.xlu0 %v786
    %v893 = vpop.xlane.xlu0 %892
    %894 = vmin.index.xlane.f32.xlu0 %v787
    %v895 = vpop.xlane.xlu0 %894
    %896 = vmin.index.xlane.f32.xlu0 %v788
    %v897 = vpop.xlane.xlu0 %896
    %898 = vmin.index.xlane.f32.xlu0 %v789
    %v899 = vpop.xlane.xlu0 %898
    %900 = vmin.index.xlane.f32.xlu0 %v790
    %v901 = vpop.xlane.xlu0 %900
    %902 = vmin.index.xlane.f32.xlu0 %v791
    %v903 = vpop.xlane.xlu0 %902
    %904 = vmin.index.xlane.f32.xlu0 %v792
    %v905 = vpop.xlane.xlu0 %904
    %906 = vmin.index.xlane.f32.xlu0 %v793
    %v907 = vpop.xlane.xlu0 %906
    %908 = vmin.index.xlane.f32.xlu0 %v794
    %v909 = vpop.xlane.xlu0 %908
    %910 = vmin.index.xlane.f32.xlu0 %v795
    %v911 = vpop.xlane.xlu0 %910
    %912 = vmin.index.xlane.f32.xlu0 %v796
    %v913 = vpop.xlane.xlu0 %912
    %914 = vmin.index.xlane.f32.xlu0 %v797
    %v915 = vpop.xlane.xlu0 %914
    %916 = vmin.index.xlane.f32.xlu0 %v798
    %v917 = vpop.xlane.xlu0 %916
    %918 = vmin.index.xlane.f32.xlu0 %v799
    %v919 = vpop.xlane.xlu0 %918
    %920 = vmin.index.xlane.f32.xlu0 %v800
    %v921 = vpop.xlane.xlu0 %920
    %922 = vmin.index.xlane.f32.xlu0 %v801
    %v923 = vpop.xlane.xlu0 %922
    %924 = vmin.index.xlane.f32.xlu0 %v802
    %v925 = vpop.xlane.xlu0 %924
    %926 = vmin.index.xlane.f32.xlu0 %v803
    %v927 = vpop.xlane.xlu0 %926
    %928 = vmin.index.xlane.f32.xlu0 %v804
    %v929 = vpop.xlane.xlu0 %928
    %930 = vmin.index.xlane.f32.xlu0 %v805
    %v931 = vpop.xlane.xlu0 %930
    %932 = vmin.index.xlane.f32.xlu0 %v806
    %v933 = vpop.xlane.xlu0 %932
    %934 = vmin.index.xlane.f32.xlu0 %v807
    %v935 = vpop.xlane.xlu0 %934
    %v936 = vlaneseq
    %v937 = vand.u32 %v936, 127
    %vm938 = vcmp.eq.s32.totalorder %v809, %v937
    %vm939 = vcmp.eq.s32.totalorder %v811, %v937
    %vm940 = vcmp.eq.s32.totalorder %v813, %v937
    %vm941 = vcmp.eq.s32.totalorder %v815, %v937
    %vm942 = vcmp.eq.s32.totalorder %v817, %v937
    %vm943 = vcmp.eq.s32.totalorder %v819, %v937
    %vm944 = vcmp.eq.s32.totalorder %v821, %v937
    %vm945 = vcmp.eq.s32.totalorder %v823, %v937
    %vm946 = vcmp.eq.s32.totalorder %v825, %v937
    %vm947 = vcmp.eq.s32.totalorder %v827, %v937
    %vm948 = vcmp.eq.s32.totalorder %v829, %v937
    %vm949 = vcmp.eq.s32.totalorder %v831, %v937
    %vm950 = vcmp.eq.s32.totalorder %v833, %v937
    %vm951 = vcmp.eq.s32.totalorder %v835, %v937
    %vm952 = vcmp.eq.s32.totalorder %v837, %v937
    %vm953 = vcmp.eq.s32.totalorder %v839, %v937
    %vm954 = vcmp.eq.s32.totalorder %v841, %v937
    %vm955 = vcmp.eq.s32.totalorder %v843, %v937
    %vm956 = vcmp.eq.s32.totalorder %v845, %v937
    %vm957 = vcmp.eq.s32.totalorder %v847, %v937
    %vm958 = vcmp.eq.s32.totalorder %v849, %v937
    %vm959 = vcmp.eq.s32.totalorder %v851, %v937
    %vm960 = vcmp.eq.s32.totalorder %v853, %v937
    %vm961 = vcmp.eq.s32.totalorder %v855, %v937
    %vm962 = vcmp.eq.s32.totalorder %v857, %v937
    %vm963 = vcmp.eq.s32.totalorder %v859, %v937
    %vm964 = vcmp.eq.s32.totalorder %v861, %v937
    %vm965 = vcmp.eq.s32.totalorder %v863, %v937
    %vm966 = vcmp.eq.s32.totalorder %v865, %v937
    %vm967 = vcmp.eq.s32.totalorder %v867, %v937
    %vm968 = vcmp.eq.s32.totalorder %v869, %v937
    %vm969 = vcmp.eq.s32.totalorder %v871, %v937
    %vm970 = vcmp.eq.s32.totalorder %v873, %v937
    %vm971 = vcmp.eq.s32.totalorder %v875, %v937
    %vm972 = vcmp.eq.s32.totalorder %v877, %v937
    %vm973 = vcmp.eq.s32.totalorder %v879, %v937
    %vm974 = vcmp.eq.s32.totalorder %v881, %v937
    %vm975 = vcmp.eq.s32.totalorder %v883, %v937
    %vm976 = vcmp.eq.s32.totalorder %v885, %v937
    %vm977 = vcmp.eq.s32.totalorder %v887, %v937
    %vm978 = vcmp.eq.s32.totalorder %v889, %v937
    %vm979 = vcmp.eq.s32.totalorder %v891, %v937
    %vm980 = vcmp.eq.s32.totalorder %v893, %v937
    %vm981 = vcmp.eq.s32.totalorder %v895, %v937
    %vm982 = vcmp.eq.s32.totalorder %v897, %v937
    %vm983 = vcmp.eq.s32.totalorder %v899, %v937
    %vm984 = vcmp.eq.s32.totalorder %v901, %v937
    %vm985 = vcmp.eq.s32.totalorder %v903, %v937
    %vm986 = vcmp.eq.s32.totalorder %v905, %v937
    %vm987 = vcmp.eq.s32.totalorder %v907, %v937
    %vm988 = vcmp.eq.s32.totalorder %v909, %v937
    %vm989 = vcmp.eq.s32.totalorder %v911, %v937
    %vm990 = vcmp.eq.s32.totalorder %v913, %v937
    %vm991 = vcmp.eq.s32.totalorder %v915, %v937
    %vm992 = vcmp.eq.s32.totalorder %v917, %v937
    %vm993 = vcmp.eq.s32.totalorder %v919, %v937
    %vm994 = vcmp.eq.s32.totalorder %v921, %v937
    %vm995 = vcmp.eq.s32.totalorder %v923, %v937
    %vm996 = vcmp.eq.s32.totalorder %v925, %v937
    %vm997 = vcmp.eq.s32.totalorder %v927, %v937
    %vm998 = vcmp.eq.s32.totalorder %v929, %v937
    %vm999 = vcmp.eq.s32.totalorder %v931, %v937
    %vm1000 = vcmp.eq.s32.totalorder %v933, %v937
    %vm1001 = vcmp.eq.s32.totalorder %v935, %v937
    %v1002 = vsel %vm938, 1, 0
    %v1003 = vsel %vm939, 1, 0
    %v1004 = vsel %vm940, 1, 0
    %v1005 = vsel %vm941, 1, 0
    %v1006 = vsel %vm942, 1, 0
    %v1007 = vsel %vm943, 1, 0
    %v1008 = vsel %vm944, 1, 0
    %v1009 = vsel %vm945, 1, 0
    %v1010 = vsel %vm946, 1, 0
    %v1011 = vsel %vm947, 1, 0
    %v1012 = vsel %vm948, 1, 0
    %v1013 = vsel %vm949, 1, 0
    %v1014 = vsel %vm950, 1, 0
    %v1015 = vsel %vm951, 1, 0
    %v1016 = vsel %vm952, 1, 0
    %v1017 = vsel %vm953, 1, 0
    %v1018 = vsel %vm954, 1, 0
    %v1019 = vsel %vm955, 1, 0
    %v1020 = vsel %vm956, 1, 0
    %v1021 = vsel %vm957, 1, 0
    %v1022 = vsel %vm958, 1, 0
    %v1023 = vsel %vm959, 1, 0
    %v1024 = vsel %vm960, 1, 0
    %v1025 = vsel %vm961, 1, 0
    %v1026 = vsel %vm962, 1, 0
    %v1027 = vsel %vm963, 1, 0
    %v1028 = vsel %vm964, 1, 0
    %v1029 = vsel %vm965, 1, 0
    %v1030 = vsel %vm966, 1, 0
    %v1031 = vsel %vm967, 1, 0
    %v1032 = vsel %vm968, 1, 0
    %v1033 = vsel %vm969, 1, 0
    %v1034 = vsel %vm970, 1, 0
    %v1035 = vsel %vm971, 1, 0
    %v1036 = vsel %vm972, 1, 0
    %v1037 = vsel %vm973, 1, 0
    %v1038 = vsel %vm974, 1, 0
    %v1039 = vsel %vm975, 1, 0
    %v1040 = vsel %vm976, 1, 0
    %v1041 = vsel %vm977, 1, 0
    %v1042 = vsel %vm978, 1, 0
    %v1043 = vsel %vm979, 1, 0
    %v1044 = vsel %vm980, 1, 0
    %v1045 = vsel %vm981, 1, 0
    %v1046 = vsel %vm982, 1, 0
    %v1047 = vsel %vm983, 1, 0
    %v1048 = vsel %vm984, 1, 0
    %v1049 = vsel %vm985, 1, 0
    %v1050 = vsel %vm986, 1, 0
    %v1051 = vsel %vm987, 1, 0
    %v1052 = vsel %vm988, 1, 0
    %v1053 = vsel %vm989, 1, 0
    %v1054 = vsel %vm990, 1, 0
    %v1055 = vsel %vm991, 1, 0
    %v1056 = vsel %vm992, 1, 0
    %v1057 = vsel %vm993, 1, 0
    %v1058 = vsel %vm994, 1, 0
    %v1059 = vsel %vm995, 1, 0
    %v1060 = vsel %vm996, 1, 0
    %v1061 = vsel %vm997, 1, 0
    %v1062 = vsel %vm998, 1, 0
    %v1063 = vsel %vm999, 1, 0
    %v1064 = vsel %vm1000, 1, 0
    %v1065 = vsel %vm1001, 1, 0
    %v1066 = vcvt.s32.f32 %v1002
    %v1067 = vcvt.s32.f32 %v1003
    %v1068 = vcvt.s32.f32 %v1004
    %v1069 = vcvt.s32.f32 %v1005
    %v1070 = vcvt.s32.f32 %v1006
    %v1071 = vcvt.s32.f32 %v1007
    %v1072 = vcvt.s32.f32 %v1008
    %v1073 = vcvt.s32.f32 %v1009
    %v1074 = vcvt.s32.f32 %v1010
    %v1075 = vcvt.s32.f32 %v1011
    %v1076 = vcvt.s32.f32 %v1012
    %v1077 = vcvt.s32.f32 %v1013
    %v1078 = vcvt.s32.f32 %v1014
    %v1079 = vcvt.s32.f32 %v1015
    %v1080 = vcvt.s32.f32 %v1016
    %v1081 = vcvt.s32.f32 %v1017
    %v1082 = vcvt.s32.f32 %v1018
    %v1083 = vcvt.s32.f32 %v1019
    %v1084 = vcvt.s32.f32 %v1020
    %v1085 = vcvt.s32.f32 %v1021
    %v1086 = vcvt.s32.f32 %v1022
    %v1087 = vcvt.s32.f32 %v1023
    %v1088 = vcvt.s32.f32 %v1024
    %v1089 = vcvt.s32.f32 %v1025
    %v1090 = vcvt.s32.f32 %v1026
    %v1091 = vcvt.s32.f32 %v1027
    %v1092 = vcvt.s32.f32 %v1028
    %v1093 = vcvt.s32.f32 %v1029
    %v1094 = vcvt.s32.f32 %v1030
    %v1095 = vcvt.s32.f32 %v1031
    %v1096 = vcvt.s32.f32 %v1032
    %v1097 = vcvt.s32.f32 %v1033
    %v1098 = vcvt.s32.f32 %v1034
    %v1099 = vcvt.s32.f32 %v1035
    %v1100 = vcvt.s32.f32 %v1036
    %v1101 = vcvt.s32.f32 %v1037
    %v1102 = vcvt.s32.f32 %v1038
    %v1103 = vcvt.s32.f32 %v1039
    %v1104 = vcvt.s32.f32 %v1040
    %v1105 = vcvt.s32.f32 %v1041
    %v1106 = vcvt.s32.f32 %v1042
    %v1107 = vcvt.s32.f32 %v1043
    %v1108 = vcvt.s32.f32 %v1044
    %v1109 = vcvt.s32.f32 %v1045
    %v1110 = vcvt.s32.f32 %v1046
    %v1111 = vcvt.s32.f32 %v1047
    %v1112 = vcvt.s32.f32 %v1048
    %v1113 = vcvt.s32.f32 %v1049
    %v1114 = vcvt.s32.f32 %v1050
    %v1115 = vcvt.s32.f32 %v1051
    %v1116 = vcvt.s32.f32 %v1052
    %v1117 = vcvt.s32.f32 %v1053
    %v1118 = vcvt.s32.f32 %v1054
    %v1119 = vcvt.s32.f32 %v1055
    %v1120 = vcvt.s32.f32 %v1056
    %v1121 = vcvt.s32.f32 %v1057
    %v1122 = vcvt.s32.f32 %v1058
    %v1123 = vcvt.s32.f32 %v1059
    %v1124 = vcvt.s32.f32 %v1060
    %v1125 = vcvt.s32.f32 %v1061
    %v1126 = vcvt.s32.f32 %v1062
    %v1127 = vcvt.s32.f32 %v1063
    %v1128 = vcvt.s32.f32 %v1064
    %v1129 = vcvt.s32.f32 %v1065
    %v1130 = vpack.c.bf16 %v1067, %v1066
    %v1131 = vpack.c.bf16 %v1069, %v1068
    %v1132 = vpack.c.bf16 %v1071, %v1070
    %v1133 = vpack.c.bf16 %v1073, %v1072
    %v1134 = vpack.c.bf16 %v1075, %v1074
    %v1135 = vpack.c.bf16 %v1077, %v1076
    %v1136 = vpack.c.bf16 %v1079, %v1078
    %v1137 = vpack.c.bf16 %v1081, %v1080
    %v1138 = vpack.c.bf16 %v1083, %v1082
    %v1139 = vpack.c.bf16 %v1085, %v1084
    %v1140 = vpack.c.bf16 %v1087, %v1086
    %v1141 = vpack.c.bf16 %v1089, %v1088
    %v1142 = vpack.c.bf16 %v1091, %v1090
    %v1143 = vpack.c.bf16 %v1093, %v1092
    %v1144 = vpack.c.bf16 %v1095, %v1094
    %v1145 = vpack.c.bf16 %v1097, %v1096
    %v1146 = vpack.c.bf16 %v1099, %v1098
    %v1147 = vpack.c.bf16 %v1101, %v1100
    %v1148 = vpack.c.bf16 %v1103, %v1102
    %v1149 = vpack.c.bf16 %v1105, %v1104
    %v1150 = vpack.c.bf16 %v1107, %v1106
    %v1151 = vpack.c.bf16 %v1109, %v1108
    %v1152 = vpack.c.bf16 %v1111, %v1110
    %v1153 = vpack.c.bf16 %v1113, %v1112
    %v1154 = vpack.c.bf16 %v1115, %v1114
    %v1155 = vpack.c.bf16 %v1117, %v1116
    %v1156 = vpack.c.bf16 %v1119, %v1118
    %v1157 = vpack.c.bf16 %v1121, %v1120
    %v1158 = vpack.c.bf16 %v1123, %v1122
    %v1159 = vpack.c.bf16 %v1125, %v1124
    %v1160 = vpack.c.bf16 %v1127, %v1126
    %v1161 = vpack.c.bf16 %v1129, %v1128
    %v1162 = vld [vmem:[%s3] sm:$0xf]
    %v1163 = vld [vmem:[%s3 + $0x4] sm:$0xf]
    %v1164 = vld [vmem:[%s3 + $0x8] sm:$0xf]
    %v1165 = vld [vmem:[%s3 + $0xc] sm:$0xf]
    %v1166 = vld [vmem:[%s3 + $0x10] sm:$0xf]
    %v1167 = vld [vmem:[%s3 + $0x14] sm:$0xf]
    %v1168 = vld [vmem:[%s3 + $0x18] sm:$0xf]
    %v1169 = vld [vmem:[%s3 + $0x1c] sm:$0xf]
    %v1170 = vld [vmem:[%s3 + $0x20] sm:$0xf]
    %v1171 = vld [vmem:[%s3 + $0x24] sm:$0xf]
    %v1172 = vld [vmem:[%s3 + $0x28] sm:$0xf]
    %v1173 = vld [vmem:[%s3 + $0x2c] sm:$0xf]
    %v1174 = vld [vmem:[%s3 + $0x30] sm:$0xf]
    %v1175 = vld [vmem:[%s3 + $0x34] sm:$0xf]
    %v1176 = vld [vmem:[%s3 + $0x38] sm:$0xf]
    %v1177 = vld [vmem:[%s3 + $0x3c] sm:$0xf]
    %v1178 = vld [vmem:[%s4] sm:$0xf]
    %v1179 = vld [vmem:[%s4 + $0x4] sm:$0xf]
    %v1180 = vld [vmem:[%s4 + $0x8] sm:$0xf]
    %v1181 = vld [vmem:[%s4 + $0xc] sm:$0xf]
    %v1182 = vld [vmem:[%s4 + $0x10] sm:$0xf]
    %v1183 = vld [vmem:[%s4 + $0x14] sm:$0xf]
    %v1184 = vld [vmem:[%s4 + $0x18] sm:$0xf]
    %v1185 = vld [vmem:[%s4 + $0x1c] sm:$0xf]
    %v1186 = vld [vmem:[%s4 + $0x20] sm:$0xf]
    %v1187 = vld [vmem:[%s4 + $0x24] sm:$0xf]
    %v1188 = vld [vmem:[%s4 + $0x28] sm:$0xf]
    %v1189 = vld [vmem:[%s4 + $0x2c] sm:$0xf]
    %v1190 = vld [vmem:[%s4 + $0x30] sm:$0xf]
    %v1191 = vld [vmem:[%s4 + $0x34] sm:$0xf]
    %v1192 = vld [vmem:[%s4 + $0x38] sm:$0xf]
    %v1193 = vld [vmem:[%s4 + $0x3c] sm:$0xf]
    %v1210 = vunpack.c.l.b16 %v1178
    %v1211 = vunpack.c.l.b16 %v1179
    %v1212 = vunpack.c.l.b16 %v1180
    %v1213 = vunpack.c.l.b16 %v1181
    %v1214 = vunpack.c.l.b16 %v1182
    %v1215 = vunpack.c.l.b16 %v1183
    %v1216 = vunpack.c.l.b16 %v1184
    %v1217 = vunpack.c.l.b16 %v1185
    %v1218 = vunpack.c.l.b16 %v1186
    %v1219 = vunpack.c.l.b16 %v1187
    %v1220 = vunpack.c.l.b16 %v1188
    %v1221 = vunpack.c.l.b16 %v1189
    %v1222 = vunpack.c.l.b16 %v1190
    %v1223 = vunpack.c.l.b16 %v1191
    %v1224 = vunpack.c.l.b16 %v1192
    %v1225 = vunpack.c.l.b16 %v1193
    %v1226 = vpack.c.b16 %v1211, %v1210
    %v1227 = vpack.c.b16 %v1213, %v1212
    %v1228 = vpack.c.b16 %v1215, %v1214
    %v1229 = vpack.c.b16 %v1217, %v1216
    %v1230 = vpack.c.b16 %v1219, %v1218
    %v1231 = vpack.c.b16 %v1221, %v1220
    %v1232 = vpack.c.b16 %v1223, %v1222
    %v1233 = vpack.c.b16 %v1225, %v1224
    %1242 = vmatprep.subr.bf16.mxu0 0
    %1243 = vmatpush1.bf16.msra.mxu0 %v1226
    %1244 = vmatprep.subr.bf16.mxu0 0
    %1245 = vmatpush1.bf16.msra.mxu0 %v1227
    %1246 = vmatprep.subr.bf16.mxu0 0
    %1247 = vmatpush1.bf16.msra.mxu0 %v1228
    %1248 = vmatprep.subr.bf16.mxu0 0
    %1249 = vmatpush1.bf16.msra.mxu0 %v1229
    %1250 = vmatprep.subr.bf16.mxu0 0
    %1251 = vmatpush1.bf16.msra.mxu0 %v1230
    %1252 = vmatprep.subr.bf16.mxu0 0
    %1253 = vmatpush1.bf16.msra.mxu0 %v1231
    %1254 = vmatprep.subr.bf16.mxu0 0
    %1255 = vmatpush1.bf16.msra.mxu0 %v1232
    %1256 = vmatprep.subr.bf16.mxu0 0
    %1257 = vmatpush1.bf16.msra.mxu0 %v1233
    %1258 = vmatprep.subr.bf16.mxu0 0
    %1259 = vmatpush1.bf16.msra.mxu0 0
    %1260 = vmatprep.subr.bf16.mxu0 0
    %1261 = vmatpush1.bf16.msra.mxu0 0
    %1262 = vmatprep.subr.bf16.mxu0 0
    %1263 = vmatpush1.bf16.msra.mxu0 0
    %1264 = vmatprep.subr.bf16.mxu0 0
    %1265 = vmatpush1.bf16.msra.mxu0 0
    %1266 = vmatprep.subr.bf16.mxu0 0
    %1267 = vmatpush1.bf16.msra.mxu0 0
    %1268 = vmatprep.subr.bf16.mxu0 0
    %1269 = vmatpush1.bf16.msra.mxu0 0
    %1270 = vmatprep.subr.bf16.mxu0 0
    %1271 = vmatpush1.bf16.msra.mxu0 0
    %1272 = vmatprep.subr.bf16.mxu0 0
    %1273 = vmatpush1.bf16.msra.mxu0 0
    %1274 = vmatprep.mubr.bf16.mxu0 0
    %1275 = vmatmul.mubr.bf16.gmra.mrb[0].mxu0 %v1130
    %v1276 = vpop.f32.mrb[0].mxu0
    %v1277 = vadd.f32 0.0, %v1276
    %v1278 = vpop.f32.mrb[0].mxu0
    %v1279 = vpop.f32.mrb[0].mxu0
    %v1280 = vadd.f32 0.0, %v1279
    %v1281 = vpop.f32.mrb[0].mxu0
    %1282 = vmatprep.mubr.bf16.mxu0 0
    %1283 = vmatmul.mubr.bf16.gmra.mrb[0].mxu0 %v1131
    %v1284 = vpop.f32.mrb[0].mxu0
    %v1285 = vadd.f32 0.0, %v1284
    %v1286 = vpop.f32.mrb[0].mxu0
    %v1287 = vpop.f32.mrb[0].mxu0
    %v1288 = vadd.f32 0.0, %v1287
    %v1289 = vpop.f32.mrb[0].mxu0
    %1290 = vmatprep.mubr.bf16.mxu0 0
    %1291 = vmatmul.mubr.bf16.gmra.mrb[0].mxu0 %v1132
    %v1292 = vpop.f32.mrb[0].mxu0
    %v1293 = vadd.f32 0.0, %v1292
    %v1294 = vpop.f32.mrb[0].mxu0
    %v1295 = vpop.f32.mrb[0].mxu0
    %v1296 = vadd.f32 0.0, %v1295
    %v1297 = vpop.f32.mrb[0].mxu0
    %1298 = vmatprep.mubr.bf16.mxu0 0
    %1299 = vmatmul.mubr.bf16.gmra.mrb[0].mxu0 %v1133
    %v1300 = vpop.f32.mrb[0].mxu0
    %v1301 = vadd.f32 0.0, %v1300
    %v1302 = vpop.f32.mrb[0].mxu0
    %v1303 = vpop.f32.mrb[0].mxu0
    %v1304 = vadd.f32 0.0, %v1303
    %v1305 = vpop.f32.mrb[0].mxu0
    %1306 = vmatprep.mubr.bf16.mxu0 0
    %1307 = vmatmul.mubr.bf16.gmra.mrb[0].mxu0 %v1134
    %v1308 = vpop.f32.mrb[0].mxu0
    %v1309 = vadd.f32 0.0, %v1308
    %v1310 = vpop.f32.mrb[0].mxu0
    %v1311 = vpop.f32.mrb[0].mxu0
    %v1312 = vadd.f32 0.0, %v1311
    %v1313 = vpop.f32.mrb[0].mxu0
    %1314 = vmatprep.mubr.bf16.mxu0 0
    %1315 = vmatmul.mubr.bf16.gmra.mrb[0].mxu0 %v1135
    %v1316 = vpop.f32.mrb[0].mxu0
    %v1317 = vadd.f32 0.0, %v1316
    %v1318 = vpop.f32.mrb[0].mxu0
    %v1319 = vpop.f32.mrb[0].mxu0
    %v1320 = vadd.f32 0.0, %v1319
    %v1321 = vpop.f32.mrb[0].mxu0
    %1322 = vmatprep.mubr.bf16.mxu0 0
    %1323 = vmatmul.mubr.bf16.gmra.mrb[0].mxu0 %v1136
    %v1324 = vpop.f32.mrb[0].mxu0
    %v1325 = vadd.f32 0.0, %v1324
    %v1326 = vpop.f32.mrb[0].mxu0
    %v1327 = vpop.f32.mrb[0].mxu0
    %v1328 = vadd.f32 0.0, %v1327
    %v1329 = vpop.f32.mrb[0].mxu0
    %1330 = vmatprep.mubr.bf16.mxu0 0
    %1331 = vmatmul.mubr.bf16.gmra.mrb[0].mxu0 %v1137
    %v1332 = vpop.f32.mrb[0].mxu0
    %v1333 = vadd.f32 0.0, %v1332
    %v1334 = vpop.f32.mrb[0].mxu0
    %v1335 = vpop.f32.mrb[0].mxu0
    %v1336 = vadd.f32 0.0, %v1335
    %v1337 = vpop.f32.mrb[0].mxu0
    %1338 = vmatprep.mubr.bf16.mxu0 0
    %1339 = vmatmul.mubr.bf16.gmra.mrb[0].mxu0 %v1138
    %v1340 = vpop.f32.mrb[0].mxu0
    %v1341 = vadd.f32 0.0, %v1340
    %v1342 = vpop.f32.mrb[0].mxu0
    %v1343 = vpop.f32.mrb[0].mxu0
    %v1344 = vadd.f32 0.0, %v1343
    %v1345 = vpop.f32.mrb[0].mxu0
    %1346 = vmatprep.mubr.bf16.mxu0 0
    %1347 = vmatmul.mubr.bf16.gmra.mrb[0].mxu0 %v1139
    %v1348 = vpop.f32.mrb[0].mxu0
    %v1349 = vadd.f32 0.0, %v1348
    %v1350 = vpop.f32.mrb[0].mxu0
    %v1351 = vpop.f32.mrb[0].mxu0
    %v1352 = vadd.f32 0.0, %v1351
    %v1353 = vpop.f32.mrb[0].mxu0
    %1354 = vmatprep.mubr.bf16.mxu0 0
    %1355 = vmatmul.mubr.bf16.gmra.mrb[0].mxu0 %v1140
    %v1356 = vpop.f32.mrb[0].mxu0
    %v1357 = vadd.f32 0.0, %v1356
    %v1358 = vpop.f32.mrb[0].mxu0
    %v1359 = vpop.f32.mrb[0].mxu0
    %v1360 = vadd.f32 0.0, %v1359
    %v1361 = vpop.f32.mrb[0].mxu0
    %1362 = vmatprep.mubr.bf16.mxu0 0
    %1363 = vmatmul.mubr.bf16.gmra.mrb[0].mxu0 %v1141
    %v1364 = vpop.f32.mrb[0].mxu0
    %v1365 = vadd.f32 0.0, %v1364
    %v1366 = vpop.f32.mrb[0].mxu0
    %v1367 = vpop.f32.mrb[0].mxu0
    %v1368 = vadd.f32 0.0, %v1367
    %v1369 = vpop.f32.mrb[0].mxu0
    %1370 = vmatprep.mubr.bf16.mxu0 0
    %1371 = vmatmul.mubr.bf16.gmra.mrb[0].mxu0 %v1142
    %v1372 = vpop.f32.mrb[0].mxu0
    %v1373 = vadd.f32 0.0, %v1372
    %v1374 = vpop.f32.mrb[0].mxu0
    %v1375 = vpop.f32.mrb[0].mxu0
    %v1376 = vadd.f32 0.0, %v1375
    %v1377 = vpop.f32.mrb[0].mxu0
    %1378 = vmatprep.mubr.bf16.mxu0 0
    %1379 = vmatmul.mubr.bf16.gmra.mrb[0].mxu0 %v1143
    %v1380 = vpop.f32.mrb[0].mxu0
    %v1381 = vadd.f32 0.0, %v1380
    %v1382 = vpop.f32.mrb[0].mxu0
    %v1383 = vpop.f32.mrb[0].mxu0
    %v1384 = vadd.f32 0.0, %v1383
    %v1385 = vpop.f32.mrb[0].mxu0
    %1386 = vmatprep.mubr.bf16.mxu0 0
    %1387 = vmatmul.mubr.bf16.gmra.mrb[0].mxu0 %v1144
    %v1388 = vpop.f32.mrb[0].mxu0
    %v1389 = vadd.f32 0.0, %v1388
    %v1390 = vpop.f32.mrb[0].mxu0
    %v1391 = vpop.f32.mrb[0].mxu0
    %v1392 = vadd.f32 0.0, %v1391
    %v1393 = vpop.f32.mrb[0].mxu0
    %1394 = vmatprep.mubr.bf16.mxu0 0
    %1395 = vmatmul.mubr.bf16.gmra.mrb[0].mxu0 %v1145
    %v1396 = vpop.f32.mrb[0].mxu0
    %v1397 = vadd.f32 0.0, %v1396
    %v1398 = vpop.f32.mrb[0].mxu0
    %v1399 = vpop.f32.mrb[0].mxu0
    %v1400 = vadd.f32 0.0, %v1399
    %v1401 = vpop.f32.mrb[0].mxu0
    %1402 = vmatprep.mubr.bf16.mxu0 0
    %1403 = vmatmul.mubr.bf16.gmra.mrb[0].mxu0 %v1146
    %v1404 = vpop.f32.mrb[0].mxu0
    %v1405 = vadd.f32 0.0, %v1404
    %v1406 = vpop.f32.mrb[0].mxu0
    %v1407 = vpop.f32.mrb[0].mxu0
    %v1408 = vadd.f32 0.0, %v1407
    %v1409 = vpop.f32.mrb[0].mxu0
    %1410 = vmatprep.mubr.bf16.mxu0 0
    %1411 = vmatmul.mubr.bf16.gmra.mrb[0].mxu0 %v1147
    %v1412 = vpop.f32.mrb[0].mxu0
    %v1413 = vadd.f32 0.0, %v1412
    %v1414 = vpop.f32.mrb[0].mxu0
    %v1415 = vpop.f32.mrb[0].mxu0
    %v1416 = vadd.f32 0.0, %v1415
    %v1417 = vpop.f32.mrb[0].mxu0
    %1418 = vmatprep.mubr.bf16.mxu0 0
    %1419 = vmatmul.mubr.bf16.gmra.mrb[0].mxu0 %v1148
    %v1420 = vpop.f32.mrb[0].mxu0
    %v1421 = vadd.f32 0.0, %v1420
    %v1422 = vpop.f32.mrb[0].mxu0
    %v1423 = vpop.f32.mrb[0].mxu0
    %v1424 = vadd.f32 0.0, %v1423
    %v1425 = vpop.f32.mrb[0].mxu0
    %1426 = vmatprep.mubr.bf16.mxu0 0
    %1427 = vmatmul.mubr.bf16.gmra.mrb[0].mxu0 %v1149
    %v1428 = vpop.f32.mrb[0].mxu0
    %v1429 = vadd.f32 0.0, %v1428
    %v1430 = vpop.f32.mrb[0].mxu0
    %v1431 = vpop.f32.mrb[0].mxu0
    %v1432 = vadd.f32 0.0, %v1431
    %v1433 = vpop.f32.mrb[0].mxu0
    %1434 = vmatprep.mubr.bf16.mxu0 0
    %1435 = vmatmul.mubr.bf16.gmra.mrb[0].mxu0 %v1150
    %v1436 = vpop.f32.mrb[0].mxu0
    %v1437 = vadd.f32 0.0, %v1436
    %v1438 = vpop.f32.mrb[0].mxu0
    %v1439 = vpop.f32.mrb[0].mxu0
    %v1440 = vadd.f32 0.0, %v1439
    %v1441 = vpop.f32.mrb[0].mxu0
    %1442 = vmatprep.mubr.bf16.mxu0 0
    %1443 = vmatmul.mubr.bf16.gmra.mrb[0].mxu0 %v1151
    %v1444 = vpop.f32.mrb[0].mxu0
    %v1445 = vadd.f32 0.0, %v1444
    %v1446 = vpop.f32.mrb[0].mxu0
    %v1447 = vpop.f32.mrb[0].mxu0
    %v1448 = vadd.f32 0.0, %v1447
    %v1449 = vpop.f32.mrb[0].mxu0
    %1450 = vmatprep.mubr.bf16.mxu0 0
    %1451 = vmatmul.mubr.bf16.gmra.mrb[0].mxu0 %v1152
    %v1452 = vpop.f32.mrb[0].mxu0
    %v1453 = vadd.f32 0.0, %v1452
    %v1454 = vpop.f32.mrb[0].mxu0
    %v1455 = vpop.f32.mrb[0].mxu0
    %v1456 = vadd.f32 0.0, %v1455
    %v1457 = vpop.f32.mrb[0].mxu0
    %1458 = vmatprep.mubr.bf16.mxu0 0
    %1459 = vmatmul.mubr.bf16.gmra.mrb[0].mxu0 %v1153
    %v1460 = vpop.f32.mrb[0].mxu0
    %v1461 = vadd.f32 0.0, %v1460
    %v1462 = vpop.f32.mrb[0].mxu0
    %v1463 = vpop.f32.mrb[0].mxu0
    %v1464 = vadd.f32 0.0, %v1463
    %v1465 = vpop.f32.mrb[0].mxu0
    %1466 = vmatprep.mubr.bf16.mxu0 0
    %1467 = vmatmul.mubr.bf16.gmra.mrb[0].mxu0 %v1154
    %v1468 = vpop.f32.mrb[0].mxu0
    %v1469 = vadd.f32 0.0, %v1468
    %v1470 = vpop.f32.mrb[0].mxu0
    %v1471 = vpop.f32.mrb[0].mxu0
    %v1472 = vadd.f32 0.0, %v1471
    %v1473 = vpop.f32.mrb[0].mxu0
    %1474 = vmatprep.mubr.bf16.mxu0 0
    %1475 = vmatmul.mubr.bf16.gmra.mrb[0].mxu0 %v1155
    %v1476 = vpop.f32.mrb[0].mxu0
    %v1477 = vadd.f32 0.0, %v1476
    %v1478 = vpop.f32.mrb[0].mxu0
    %v1479 = vpop.f32.mrb[0].mxu0
    %v1480 = vadd.f32 0.0, %v1479
    %v1481 = vpop.f32.mrb[0].mxu0
    %1482 = vmatprep.mubr.bf16.mxu0 0
    %1483 = vmatmul.mubr.bf16.gmra.mrb[0].mxu0 %v1156
    %v1484 = vpop.f32.mrb[0].mxu0
    %v1485 = vadd.f32 0.0, %v1484
    %v1486 = vpop.f32.mrb[0].mxu0
    %v1487 = vpop.f32.mrb[0].mxu0
    %v1488 = vadd.f32 0.0, %v1487
    %v1489 = vpop.f32.mrb[0].mxu0
    %1490 = vmatprep.mubr.bf16.mxu0 0
    %1491 = vmatmul.mubr.bf16.gmra.mrb[0].mxu0 %v1157
    %v1492 = vpop.f32.mrb[0].mxu0
    %v1493 = vadd.f32 0.0, %v1492
    %v1494 = vpop.f32.mrb[0].mxu0
    %v1495 = vpop.f32.mrb[0].mxu0
    %v1496 = vadd.f32 0.0, %v1495
    %v1497 = vpop.f32.mrb[0].mxu0
    %1498 = vmatprep.mubr.bf16.mxu0 0
    %1499 = vmatmul.mubr.bf16.gmra.mrb[0].mxu0 %v1158
    %v1500 = vpop.f32.mrb[0].mxu0
    %v1501 = vadd.f32 0.0, %v1500
    %v1502 = vpop.f32.mrb[0].mxu0
    %v1503 = vpop.f32.mrb[0].mxu0
    %v1504 = vadd.f32 0.0, %v1503
    %v1505 = vpop.f32.mrb[0].mxu0
    %1506 = vmatprep.mubr.bf16.mxu0 0
    %1507 = vmatmul.mubr.bf16.gmra.mrb[0].mxu0 %v1159
    %v1508 = vpop.f32.mrb[0].mxu0
    %v1509 = vadd.f32 0.0, %v1508
    %v1510 = vpop.f32.mrb[0].mxu0
    %v1511 = vpop.f32.mrb[0].mxu0
    %v1512 = vadd.f32 0.0, %v1511
    %v1513 = vpop.f32.mrb[0].mxu0
    %1514 = vmatprep.mubr.bf16.mxu0 0
    %1515 = vmatmul.mubr.bf16.gmra.mrb[0].mxu0 %v1160
    %v1516 = vpop.f32.mrb[0].mxu0
    %v1517 = vadd.f32 0.0, %v1516
    %v1518 = vpop.f32.mrb[0].mxu0
    %v1519 = vpop.f32.mrb[0].mxu0
    %v1520 = vadd.f32 0.0, %v1519
    %v1521 = vpop.f32.mrb[0].mxu0
    %1522 = vmatprep.mubr.bf16.mxu0 0
    %1523 = vmatmul.mubr.bf16.gmra.mrb[0].mxu0 %v1161
    %v1524 = vpop.f32.mrb[0].mxu0
    %v1525 = vadd.f32 0.0, %v1524
    %v1526 = vpop.f32.mrb[0].mxu0
    %v1527 = vpop.f32.mrb[0].mxu0
    %v1528 = vadd.f32 0.0, %v1527
    %v1529 = vpop.f32.mrb[0].mxu0
    %1530 = vdwg.mxu0
    %v1547 = vunpack.c.l.b16 %v1162
    %v1548 = vunpack.c.l.b16 %v1163
    %v1549 = vunpack.c.l.b16 %v1164
    %v1550 = vunpack.c.l.b16 %v1165
    %v1551 = vunpack.c.l.b16 %v1166
    %v1552 = vunpack.c.l.b16 %v1167
    %v1553 = vunpack.c.l.b16 %v1168
    %v1554 = vunpack.c.l.b16 %v1169
    %v1555 = vunpack.c.l.b16 %v1170
    %v1556 = vunpack.c.l.b16 %v1171
    %v1557 = vunpack.c.l.b16 %v1172
    %v1558 = vunpack.c.l.b16 %v1173
    %v1559 = vunpack.c.l.b16 %v1174
    %v1560 = vunpack.c.l.b16 %v1175
    %v1561 = vunpack.c.l.b16 %v1176
    %v1562 = vunpack.c.l.b16 %v1177
    %v1563 = vpack.c.b16 %v1548, %v1547
    %v1564 = vpack.c.b16 %v1550, %v1549
    %v1565 = vpack.c.b16 %v1552, %v1551
    %v1566 = vpack.c.b16 %v1554, %v1553
    %v1567 = vpack.c.b16 %v1556, %v1555
    %v1568 = vpack.c.b16 %v1558, %v1557
    %v1569 = vpack.c.b16 %v1560, %v1559
    %v1570 = vpack.c.b16 %v1562, %v1561
    %1579 = vmatprep.subr.bf16.mxu0 0
    %1580 = vmatpush1.bf16.msra.mxu0 %v1563
    %1581 = vmatprep.subr.bf16.mxu0 0
    %1582 = vmatpush1.bf16.msra.mxu0 %v1564
    %1583 = vmatprep.subr.bf16.mxu0 0
    %1584 = vmatpush1.bf16.msra.mxu0 %v1565
    %1585 = vmatprep.subr.bf16.mxu0 0
    %1586 = vmatpush1.bf16.msra.mxu0 %v1566
    %1587 = vmatprep.subr.bf16.mxu0 0
    %1588 = vmatpush1.bf16.msra.mxu0 %v1567
    %1589 = vmatprep.subr.bf16.mxu0 0
    %1590 = vmatpush1.bf16.msra.mxu0 %v1568
    %1591 = vmatprep.subr.bf16.mxu0 0
    %1592 = vmatpush1.bf16.msra.mxu0 %v1569
    %1593 = vmatprep.subr.bf16.mxu0 0
    %1594 = vmatpush1.bf16.msra.mxu0 %v1570
    %1595 = vmatprep.subr.bf16.mxu0 0
    %1596 = vmatpush1.bf16.msra.mxu0 0
    %1597 = vmatprep.subr.bf16.mxu0 0
    %1598 = vmatpush1.bf16.msra.mxu0 0
    %1599 = vmatprep.subr.bf16.mxu0 0
    %1600 = vmatpush1.bf16.msra.mxu0 0
    %1601 = vmatprep.subr.bf16.mxu0 0
    %1602 = vmatpush1.bf16.msra.mxu0 0
    %1603 = vmatprep.subr.bf16.mxu0 0
    %1604 = vmatpush1.bf16.msra.mxu0 0
    %1605 = vmatprep.subr.bf16.mxu0 0
    %1606 = vmatpush1.bf16.msra.mxu0 0
    %1607 = vmatprep.subr.bf16.mxu0 0
    %1608 = vmatpush1.bf16.msra.mxu0 0
    %1609 = vmatprep.subr.bf16.mxu0 0
    %1610 = vmatpush1.bf16.msra.mxu0 0
    %1611 = vmatprep.mubr.bf16.mxu0 0
    %1612 = vmatmul.mubr.bf16.gmra.mrb[0].mxu0 %v1130
    %v1613 = vpop.f32.mrb[0].mxu0
    %v1614 = vadd.f32 %v1277, %v1613
    %v1615 = vpop.f32.mrb[0].mxu0
    %v1616 = vpop.f32.mrb[0].mxu0
    %v1617 = vadd.f32 %v1280, %v1616
    %v1618 = vpop.f32.mrb[0].mxu0
    %1619 = vmatprep.mubr.bf16.mxu0 0
    %1620 = vmatmul.mubr.bf16.gmra.mrb[0].mxu0 %v1131
    %v1621 = vpop.f32.mrb[0].mxu0
    %v1622 = vadd.f32 %v1285, %v1621
    %v1623 = vpop.f32.mrb[0].mxu0
    %v1624 = vpop.f32.mrb[0].mxu0
    %v1625 = vadd.f32 %v1288, %v1624
    %v1626 = vpop.f32.mrb[0].mxu0
    %1627 = vmatprep.mubr.bf16.mxu0 0
    %1628 = vmatmul.mubr.bf16.gmra.mrb[0].mxu0 %v1132
    %v1629 = vpop.f32.mrb[0].mxu0
    %v1630 = vadd.f32 %v1293, %v1629
    %v1631 = vpop.f32.mrb[0].mxu0
    %v1632 = vpop.f32.mrb[0].mxu0
    %v1633 = vadd.f32 %v1296, %v1632
    %v1634 = vpop.f32.mrb[0].mxu0
    %1635 = vmatprep.mubr.bf16.mxu0 0
    %1636 = vmatmul.mubr.bf16.gmra.mrb[0].mxu0 %v1133
    %v1637 = vpop.f32.mrb[0].mxu0
    %v1638 = vadd.f32 %v1301, %v1637
    %v1639 = vpop.f32.mrb[0].mxu0
    %v1640 = vpop.f32.mrb[0].mxu0
    %v1641 = vadd.f32 %v1304, %v1640
    %v1642 = vpop.f32.mrb[0].mxu0
    %1643 = vmatprep.mubr.bf16.mxu0 0
    %1644 = vmatmul.mubr.bf16.gmra.mrb[0].mxu0 %v1134
    %v1645 = vpop.f32.mrb[0].mxu0
    %v1646 = vadd.f32 %v1309, %v1645
    %v1647 = vpop.f32.mrb[0].mxu0
    %v1648 = vpop.f32.mrb[0].mxu0
    %v1649 = vadd.f32 %v1312, %v1648
    %v1650 = vpop.f32.mrb[0].mxu0
    %1651 = vmatprep.mubr.bf16.mxu0 0
    %1652 = vmatmul.mubr.bf16.gmra.mrb[0].mxu0 %v1135
    %v1653 = vpop.f32.mrb[0].mxu0
    %v1654 = vadd.f32 %v1317, %v1653
    %v1655 = vpop.f32.mrb[0].mxu0
    %v1656 = vpop.f32.mrb[0].mxu0
    %v1657 = vadd.f32 %v1320, %v1656
    %v1658 = vpop.f32.mrb[0].mxu0
    %1659 = vmatprep.mubr.bf16.mxu0 0
    %1660 = vmatmul.mubr.bf16.gmra.mrb[0].mxu0 %v1136
    %v1661 = vpop.f32.mrb[0].mxu0
    %v1662 = vadd.f32 %v1325, %v1661
    %v1663 = vpop.f32.mrb[0].mxu0
    %v1664 = vpop.f32.mrb[0].mxu0
    %v1665 = vadd.f32 %v1328, %v1664
    %v1666 = vpop.f32.mrb[0].mxu0
    %1667 = vmatprep.mubr.bf16.mxu0 0
    %1668 = vmatmul.mubr.bf16.gmra.mrb[0].mxu0 %v1137
    %v1669 = vpop.f32.mrb[0].mxu0
    %v1670 = vadd.f32 %v1333, %v1669
    %v1671 = vpop.f32.mrb[0].mxu0
    %v1672 = vpop.f32.mrb[0].mxu0
    %v1673 = vadd.f32 %v1336, %v1672
    %v1674 = vpop.f32.mrb[0].mxu0
    %1675 = vmatprep.mubr.bf16.mxu0 0
    %1676 = vmatmul.mubr.bf16.gmra.mrb[0].mxu0 %v1138
    %v1677 = vpop.f32.mrb[0].mxu0
    %v1678 = vadd.f32 %v1341, %v1677
    %v1679 = vpop.f32.mrb[0].mxu0
    %v1680 = vpop.f32.mrb[0].mxu0
    %v1681 = vadd.f32 %v1344, %v1680
    %v1682 = vpop.f32.mrb[0].mxu0
    %1683 = vmatprep.mubr.bf16.mxu0 0
    %1684 = vmatmul.mubr.bf16.gmra.mrb[0].mxu0 %v1139
    %v1685 = vpop.f32.mrb[0].mxu0
    %v1686 = vadd.f32 %v1349, %v1685
    %v1687 = vpop.f32.mrb[0].mxu0
    %v1688 = vpop.f32.mrb[0].mxu0
    %v1689 = vadd.f32 %v1352, %v1688
    %v1690 = vpop.f32.mrb[0].mxu0
    %1691 = vmatprep.mubr.bf16.mxu0 0
    %1692 = vmatmul.mubr.bf16.gmra.mrb[0].mxu0 %v1140
    %v1693 = vpop.f32.mrb[0].mxu0
    %v1694 = vadd.f32 %v1357, %v1693
    %v1695 = vpop.f32.mrb[0].mxu0
    %v1696 = vpop.f32.mrb[0].mxu0
    %v1697 = vadd.f32 %v1360, %v1696
    %v1698 = vpop.f32.mrb[0].mxu0
    %1699 = vmatprep.mubr.bf16.mxu0 0
    %1700 = vmatmul.mubr.bf16.gmra.mrb[0].mxu0 %v1141
    %v1701 = vpop.f32.mrb[0].mxu0
    %v1702 = vadd.f32 %v1365, %v1701
    %v1703 = vpop.f32.mrb[0].mxu0
    %v1704 = vpop.f32.mrb[0].mxu0
    %v1705 = vadd.f32 %v1368, %v1704
    %v1706 = vpop.f32.mrb[0].mxu0
    %1707 = vmatprep.mubr.bf16.mxu0 0
    %1708 = vmatmul.mubr.bf16.gmra.mrb[0].mxu0 %v1142
    %v1709 = vpop.f32.mrb[0].mxu0
    %v1710 = vadd.f32 %v1373, %v1709
    %v1711 = vpop.f32.mrb[0].mxu0
    %v1712 = vpop.f32.mrb[0].mxu0
    %v1713 = vadd.f32 %v1376, %v1712
    %v1714 = vpop.f32.mrb[0].mxu0
    %1715 = vmatprep.mubr.bf16.mxu0 0
    %1716 = vmatmul.mubr.bf16.gmra.mrb[0].mxu0 %v1143
    %v1717 = vpop.f32.mrb[0].mxu0
    %v1718 = vadd.f32 %v1381, %v1717
    %v1719 = vpop.f32.mrb[0].mxu0
    %v1720 = vpop.f32.mrb[0].mxu0
    %v1721 = vadd.f32 %v1384, %v1720
    %v1722 = vpop.f32.mrb[0].mxu0
    %1723 = vmatprep.mubr.bf16.mxu0 0
    %1724 = vmatmul.mubr.bf16.gmra.mrb[0].mxu0 %v1144
    %v1725 = vpop.f32.mrb[0].mxu0
    %v1726 = vadd.f32 %v1389, %v1725
    %v1727 = vpop.f32.mrb[0].mxu0
    %v1728 = vpop.f32.mrb[0].mxu0
    %v1729 = vadd.f32 %v1392, %v1728
    %v1730 = vpop.f32.mrb[0].mxu0
    %1731 = vmatprep.mubr.bf16.mxu0 0
    %1732 = vmatmul.mubr.bf16.gmra.mrb[0].mxu0 %v1145
    %v1733 = vpop.f32.mrb[0].mxu0
    %v1734 = vadd.f32 %v1397, %v1733
    %v1735 = vpop.f32.mrb[0].mxu0
    %v1736 = vpop.f32.mrb[0].mxu0
    %v1737 = vadd.f32 %v1400, %v1736
    %v1738 = vpop.f32.mrb[0].mxu0
    %1739 = vmatprep.mubr.bf16.mxu0 0
    %1740 = vmatmul.mubr.bf16.gmra.mrb[0].mxu0 %v1146
    %v1741 = vpop.f32.mrb[0].mxu0
    %v1742 = vadd.f32 %v1405, %v1741
    %v1743 = vpop.f32.mrb[0].mxu0
    %v1744 = vpop.f32.mrb[0].mxu0
    %v1745 = vadd.f32 %v1408, %v1744
    %v1746 = vpop.f32.mrb[0].mxu0
    %1747 = vmatprep.mubr.bf16.mxu0 0
    %1748 = vmatmul.mubr.bf16.gmra.mrb[0].mxu0 %v1147
    %v1749 = vpop.f32.mrb[0].mxu0
    %v1750 = vadd.f32 %v1413, %v1749
    %v1751 = vpop.f32.mrb[0].mxu0
    %v1752 = vpop.f32.mrb[0].mxu0
    %v1753 = vadd.f32 %v1416, %v1752
    %v1754 = vpop.f32.mrb[0].mxu0
    %1755 = vmatprep.mubr.bf16.mxu0 0
    %1756 = vmatmul.mubr.bf16.gmra.mrb[0].mxu0 %v1148
    %v1757 = vpop.f32.mrb[0].mxu0
    %v1758 = vadd.f32 %v1421, %v1757
    %v1759 = vpop.f32.mrb[0].mxu0
    %v1760 = vpop.f32.mrb[0].mxu0
    %v1761 = vadd.f32 %v1424, %v1760
    %v1762 = vpop.f32.mrb[0].mxu0
    %1763 = vmatprep.mubr.bf16.mxu0 0
    %1764 = vmatmul.mubr.bf16.gmra.mrb[0].mxu0 %v1149
    %v1765 = vpop.f32.mrb[0].mxu0
    %v1766 = vadd.f32 %v1429, %v1765
    %v1767 = vpop.f32.mrb[0].mxu0
    %v1768 = vpop.f32.mrb[0].mxu0
    %v1769 = vadd.f32 %v1432, %v1768
    %v1770 = vpop.f32.mrb[0].mxu0
    %1771 = vmatprep.mubr.bf16.mxu0 0
    %1772 = vmatmul.mubr.bf16.gmra.mrb[0].mxu0 %v1150
    %v1773 = vpop.f32.mrb[0].mxu0
    %v1774 = vadd.f32 %v1437, %v1773
    %v1775 = vpop.f32.mrb[0].mxu0
    %v1776 = vpop.f32.mrb[0].mxu0
    %v1777 = vadd.f32 %v1440, %v1776
    %v1778 = vpop.f32.mrb[0].mxu0
    %1779 = vmatprep.mubr.bf16.mxu0 0
    %1780 = vmatmul.mubr.bf16.gmra.mrb[0].mxu0 %v1151
    %v1781 = vpop.f32.mrb[0].mxu0
    %v1782 = vadd.f32 %v1445, %v1781
    %v1783 = vpop.f32.mrb[0].mxu0
    %v1784 = vpop.f32.mrb[0].mxu0
    %v1785 = vadd.f32 %v1448, %v1784
    %v1786 = vpop.f32.mrb[0].mxu0
    %1787 = vmatprep.mubr.bf16.mxu0 0
    %1788 = vmatmul.mubr.bf16.gmra.mrb[0].mxu0 %v1152
    %v1789 = vpop.f32.mrb[0].mxu0
    %v1790 = vadd.f32 %v1453, %v1789
    %v1791 = vpop.f32.mrb[0].mxu0
    %v1792 = vpop.f32.mrb[0].mxu0
    %v1793 = vadd.f32 %v1456, %v1792
    %v1794 = vpop.f32.mrb[0].mxu0
    %1795 = vmatprep.mubr.bf16.mxu0 0
    %1796 = vmatmul.mubr.bf16.gmra.mrb[0].mxu0 %v1153
    %v1797 = vpop.f32.mrb[0].mxu0
    %v1798 = vadd.f32 %v1461, %v1797
    %v1799 = vpop.f32.mrb[0].mxu0
    %v1800 = vpop.f32.mrb[0].mxu0
    %v1801 = vadd.f32 %v1464, %v1800
    %v1802 = vpop.f32.mrb[0].mxu0
    %1803 = vmatprep.mubr.bf16.mxu0 0
    %1804 = vmatmul.mubr.bf16.gmra.mrb[0].mxu0 %v1154
    %v1805 = vpop.f32.mrb[0].mxu0
    %v1806 = vadd.f32 %v1469, %v1805
    %v1807 = vpop.f32.mrb[0].mxu0
    %v1808 = vpop.f32.mrb[0].mxu0
    %v1809 = vadd.f32 %v1472, %v1808
    %v1810 = vpop.f32.mrb[0].mxu0
    %1811 = vmatprep.mubr.bf16.mxu0 0
    %1812 = vmatmul.mubr.bf16.gmra.mrb[0].mxu0 %v1155
    %v1813 = vpop.f32.mrb[0].mxu0
    %v1814 = vadd.f32 %v1477, %v1813
    %v1815 = vpop.f32.mrb[0].mxu0
    %v1816 = vpop.f32.mrb[0].mxu0
    %v1817 = vadd.f32 %v1480, %v1816
    %v1818 = vpop.f32.mrb[0].mxu0
    %1819 = vmatprep.mubr.bf16.mxu0 0
    %1820 = vmatmul.mubr.bf16.gmra.mrb[0].mxu0 %v1156
    %v1821 = vpop.f32.mrb[0].mxu0
    %v1822 = vadd.f32 %v1485, %v1821
    %v1823 = vpop.f32.mrb[0].mxu0
    %v1824 = vpop.f32.mrb[0].mxu0
    %v1825 = vadd.f32 %v1488, %v1824
    %v1826 = vpop.f32.mrb[0].mxu0
    %1827 = vmatprep.mubr.bf16.mxu0 0
    %1828 = vmatmul.mubr.bf16.gmra.mrb[0].mxu0 %v1157
    %v1829 = vpop.f32.mrb[0].mxu0
    %v1830 = vadd.f32 %v1493, %v1829
    %v1831 = vpop.f32.mrb[0].mxu0
    %v1832 = vpop.f32.mrb[0].mxu0
    %v1833 = vadd.f32 %v1496, %v1832
    %v1834 = vpop.f32.mrb[0].mxu0
    %1835 = vmatprep.mubr.bf16.mxu0 0
    %1836 = vmatmul.mubr.bf16.gmra.mrb[0].mxu0 %v1158
    %v1837 = vpop.f32.mrb[0].mxu0
    %v1838 = vadd.f32 %v1501, %v1837
    %v1839 = vpop.f32.mrb[0].mxu0
    %v1840 = vpop.f32.mrb[0].mxu0
    %v1841 = vadd.f32 %v1504, %v1840
    %v1842 = vpop.f32.mrb[0].mxu0
    %1843 = vmatprep.mubr.bf16.mxu0 0
    %1844 = vmatmul.mubr.bf16.gmra.mrb[0].mxu0 %v1159
    %v1845 = vpop.f32.mrb[0].mxu0
    %v1846 = vadd.f32 %v1509, %v1845
    %v1847 = vpop.f32.mrb[0].mxu0
    %v1848 = vpop.f32.mrb[0].mxu0
    %v1849 = vadd.f32 %v1512, %v1848
    %v1850 = vpop.f32.mrb[0].mxu0
    %1851 = vmatprep.mubr.bf16.mxu0 0
    %1852 = vmatmul.mubr.bf16.gmra.mrb[0].mxu0 %v1160
    %v1853 = vpop.f32.mrb[0].mxu0
    %v1854 = vadd.f32 %v1517, %v1853
    %v1855 = vpop.f32.mrb[0].mxu0
    %v1856 = vpop.f32.mrb[0].mxu0
    %v1857 = vadd.f32 %v1520, %v1856
    %v1858 = vpop.f32.mrb[0].mxu0
    %1859 = vmatprep.mubr.bf16.mxu0 0
    %1860 = vmatmul.mubr.bf16.gmra.mrb[0].mxu0 %v1161
    %v1861 = vpop.f32.mrb[0].mxu0
    %v1862 = vadd.f32 %v1525, %v1861
    %v1863 = vpop.f32.mrb[0].mxu0
    %v1864 = vpop.f32.mrb[0].mxu0
    %v1865 = vadd.f32 %v1528, %v1864
    %v1866 = vpop.f32.mrb[0].mxu0
    %1867 = vdwg.mxu0
    %1868 = vst.msk [vmem:[%s5] sm:$0xff] %vm91, %v1614
    %1869 = vst.msk [vmem:[%s5 + $0x8] sm:$0xff] %vm91, %v1617
    %1870 = vst.msk [vmem:[%s5 + $0x10] sm:$0xff] %vm91, %v1622
    %1871 = vst.msk [vmem:[%s5 + $0x18] sm:$0xff] %vm91, %v1625
    %1872 = vst.msk [vmem:[%s5 + $0x20] sm:$0xff] %vm91, %v1630
    %1873 = vst.msk [vmem:[%s5 + $0x28] sm:$0xff] %vm91, %v1633
    %1874 = vst.msk [vmem:[%s5 + $0x30] sm:$0xff] %vm91, %v1638
    %1875 = vst.msk [vmem:[%s5 + $0x38] sm:$0xff] %vm91, %v1641
    %1876 = vst.msk [vmem:[%s5 + $0x40] sm:$0xff] %vm91, %v1646
    %1877 = vst.msk [vmem:[%s5 + $0x48] sm:$0xff] %vm91, %v1649
    %1878 = vst.msk [vmem:[%s5 + $0x50] sm:$0xff] %vm91, %v1654
    %1879 = vst.msk [vmem:[%s5 + $0x58] sm:$0xff] %vm91, %v1657
    %1880 = vst.msk [vmem:[%s5 + $0x60] sm:$0xff] %vm91, %v1662
    %1881 = vst.msk [vmem:[%s5 + $0x68] sm:$0xff] %vm91, %v1665
    %1882 = vst.msk [vmem:[%s5 + $0x70] sm:$0xff] %vm91, %v1670
    %1883 = vst.msk [vmem:[%s5 + $0x78] sm:$0xff] %vm91, %v1673
    %1884 = vst.msk [vmem:[%s5 + $0x80] sm:$0xff] %vm91, %v1678
    %1885 = vst.msk [vmem:[%s5 + $0x88] sm:$0xff] %vm91, %v1681
    %1886 = vst.msk [vmem:[%s5 + $0x90] sm:$0xff] %vm91, %v1686
    %1887 = vst.msk [vmem:[%s5 + $0x98] sm:$0xff] %vm91, %v1689
    %1888 = vst.msk [vmem:[%s5 + $0xa0] sm:$0xff] %vm91, %v1694
    %1889 = vst.msk [vmem:[%s5 + $0xa8] sm:$0xff] %vm91, %v1697
    %1890 = vst.msk [vmem:[%s5 + $0xb0] sm:$0xff] %vm91, %v1702
    %1891 = vst.msk [vmem:[%s5 + $0xb8] sm:$0xff] %vm91, %v1705
    %1892 = vst.msk [vmem:[%s5 + $0xc0] sm:$0xff] %vm91, %v1710
    %1893 = vst.msk [vmem:[%s5 + $0xc8] sm:$0xff] %vm91, %v1713
    %1894 = vst.msk [vmem:[%s5 + $0xd0] sm:$0xff] %vm91, %v1718
    %1895 = vst.msk [vmem:[%s5 + $0xd8] sm:$0xff] %vm91, %v1721
    %1896 = vst.msk [vmem:[%s5 + $0xe0] sm:$0xff] %vm91, %v1726
    %1897 = vst.msk [vmem:[%s5 + $0xe8] sm:$0xff] %vm91, %v1729
    %1898 = vst.msk [vmem:[%s5 + $0xf0] sm:$0xff] %vm91, %v1734
    %1899 = vst.msk [vmem:[%s5 + $0xf8] sm:$0xff] %vm91, %v1737
    %1900 = vst.msk [vmem:[%s5 + $0x100] sm:$0xff] %vm91, %v1742
    %1901 = vst.msk [vmem:[%s5 + $0x108] sm:$0xff] %vm91, %v1745
    %1902 = vst.msk [vmem:[%s5 + $0x110] sm:$0xff] %vm91, %v1750
    %1903 = vst.msk [vmem:[%s5 + $0x118] sm:$0xff] %vm91, %v1753
    %1904 = vst.msk [vmem:[%s5 + $0x120] sm:$0xff] %vm91, %v1758
    %1905 = vst.msk [vmem:[%s5 + $0x128] sm:$0xff] %vm91, %v1761
    %1906 = vst.msk [vmem:[%s5 + $0x130] sm:$0xff] %vm91, %v1766
    %1907 = vst.msk [vmem:[%s5 + $0x138] sm:$0xff] %vm91, %v1769
    %1908 = vst.msk [vmem:[%s5 + $0x140] sm:$0xff] %vm91, %v1774
    %1909 = vst.msk [vmem:[%s5 + $0x148] sm:$0xff] %vm91, %v1777
    %1910 = vst.msk [vmem:[%s5 + $0x150] sm:$0xff] %vm91, %v1782
    %1911 = vst.msk [vmem:[%s5 + $0x158] sm:$0xff] %vm91, %v1785
    %1912 = vst.msk [vmem:[%s5 + $0x160] sm:$0xff] %vm91, %v1790
    %1913 = vst.msk [vmem:[%s5 + $0x168] sm:$0xff] %vm91, %v1793
    %1914 = vst.msk [vmem:[%s5 + $0x170] sm:$0xff] %vm91, %v1798
    %1915 = vst.msk [vmem:[%s5 + $0x178] sm:$0xff] %vm91, %v1801
    %1916 = vst.msk [vmem:[%s5 + $0x180] sm:$0xff] %vm91, %v1806
    %1917 = vst.msk [vmem:[%s5 + $0x188] sm:$0xff] %vm91, %v1809
    %1918 = vst.msk [vmem:[%s5 + $0x190] sm:$0xff] %vm91, %v1814
    %1919 = vst.msk [vmem:[%s5 + $0x198] sm:$0xff] %vm91, %v1817
    %1920 = vst.msk [vmem:[%s5 + $0x1a0] sm:$0xff] %vm91, %v1822
    %1921 = vst.msk [vmem:[%s5 + $0x1a8] sm:$0xff] %vm91, %v1825
    %1922 = vst.msk [vmem:[%s5 + $0x1b0] sm:$0xff] %vm91, %v1830
    %1923 = vst.msk [vmem:[%s5 + $0x1b8] sm:$0xff] %vm91, %v1833
    %1924 = vst.msk [vmem:[%s5 + $0x1c0] sm:$0xff] %vm91, %v1838
    %1925 = vst.msk [vmem:[%s5 + $0x1c8] sm:$0xff] %vm91, %v1841
    %1926 = vst.msk [vmem:[%s5 + $0x1d0] sm:$0xff] %vm91, %v1846
    %1927 = vst.msk [vmem:[%s5 + $0x1d8] sm:$0xff] %vm91, %v1849
    %1928 = vst.msk [vmem:[%s5 + $0x1e0] sm:$0xff] %vm91, %v1854
    %1929 = vst.msk [vmem:[%s5 + $0x1e8] sm:$0xff] %vm91, %v1857
    %1930 = vst.msk [vmem:[%s5 + $0x1f0] sm:$0xff] %vm91, %v1862
    %1931 = vst.msk [vmem:[%s5 + $0x1f8] sm:$0xff] %vm91, %v1865
    %v1932 = vlaneseq
    %v1933 = vshrl.u32 %v1932, 7
    %v1934 = vsub.s32 0, %v1933
    %v1935 = vrot.slane %v809, %v1934
    %v1936 = vlaneseq
    %v1937 = vshrl.u32 %v1936, 7
    %v1938 = vsub.s32 1, %v1937
    %v1939 = vrot.slane %v809, %v1938
    %v1940 = vlaneseq
    %v1941 = vshrl.u32 %v1940, 7
    %v1942 = vsub.s32 2, %v1941
    %v1943 = vrot.slane %v809, %v1942
    %v1944 = vlaneseq
    %v1945 = vshrl.u32 %v1944, 7
    %v1946 = vsub.s32 3, %v1945
    %v1947 = vrot.slane %v809, %v1946
    %v1948 = vlaneseq
    %v1949 = vshrl.u32 %v1948, 7
    %v1950 = vsub.s32 4, %v1949
    %v1951 = vrot.slane %v809, %v1950
    %v1952 = vlaneseq
    %v1953 = vshrl.u32 %v1952, 7
    %v1954 = vsub.s32 5, %v1953
    %v1955 = vrot.slane %v809, %v1954
    %v1956 = vlaneseq
    %v1957 = vshrl.u32 %v1956, 7
    %v1958 = vsub.s32 6, %v1957
    %v1959 = vrot.slane %v809, %v1958
    %v1960 = vlaneseq
    %v1961 = vshrl.u32 %v1960, 7
    %v1962 = vsub.s32 7, %v1961
    %v1963 = vrot.slane %v809, %v1962
    %v1964 = vlaneseq
    %v1965 = vshrl.u32 %v1964, 7
    %v1966 = vsub.s32 0, %v1965
    %v1967 = vrot.slane %v811, %v1966
    %v1968 = vlaneseq
    %v1969 = vshrl.u32 %v1968, 7
    %v1970 = vsub.s32 1, %v1969
    %v1971 = vrot.slane %v811, %v1970
    %v1972 = vlaneseq
    %v1973 = vshrl.u32 %v1972, 7
    %v1974 = vsub.s32 2, %v1973
    %v1975 = vrot.slane %v811, %v1974
    %v1976 = vlaneseq
    %v1977 = vshrl.u32 %v1976, 7
    %v1978 = vsub.s32 3, %v1977
    %v1979 = vrot.slane %v811, %v1978
    %v1980 = vlaneseq
    %v1981 = vshrl.u32 %v1980, 7
    %v1982 = vsub.s32 4, %v1981
    %v1983 = vrot.slane %v811, %v1982
    %v1984 = vlaneseq
    %v1985 = vshrl.u32 %v1984, 7
    %v1986 = vsub.s32 5, %v1985
    %v1987 = vrot.slane %v811, %v1986
    %v1988 = vlaneseq
    %v1989 = vshrl.u32 %v1988, 7
    %v1990 = vsub.s32 6, %v1989
    %v1991 = vrot.slane %v811, %v1990
    %v1992 = vlaneseq
    %v1993 = vshrl.u32 %v1992, 7
    %v1994 = vsub.s32 7, %v1993
    %v1995 = vrot.slane %v811, %v1994
    %v1996 = vlaneseq
    %v1997 = vshrl.u32 %v1996, 7
    %v1998 = vsub.s32 0, %v1997
    %v1999 = vrot.slane %v813, %v1998
    %v2000 = vlaneseq
    %v2001 = vshrl.u32 %v2000, 7
    %v2002 = vsub.s32 1, %v2001
    %v2003 = vrot.slane %v813, %v2002
    %v2004 = vlaneseq
    %v2005 = vshrl.u32 %v2004, 7
    %v2006 = vsub.s32 2, %v2005
    %v2007 = vrot.slane %v813, %v2006
    %v2008 = vlaneseq
    %v2009 = vshrl.u32 %v2008, 7
    %v2010 = vsub.s32 3, %v2009
    %v2011 = vrot.slane %v813, %v2010
    %v2012 = vlaneseq
    %v2013 = vshrl.u32 %v2012, 7
    %v2014 = vsub.s32 4, %v2013
    %v2015 = vrot.slane %v813, %v2014
    %v2016 = vlaneseq
    %v2017 = vshrl.u32 %v2016, 7
    %v2018 = vsub.s32 5, %v2017
    %v2019 = vrot.slane %v813, %v2018
    %v2020 = vlaneseq
    %v2021 = vshrl.u32 %v2020, 7
    %v2022 = vsub.s32 6, %v2021
    %v2023 = vrot.slane %v813, %v2022
    %v2024 = vlaneseq
    %v2025 = vshrl.u32 %v2024, 7
    %v2026 = vsub.s32 7, %v2025
    %v2027 = vrot.slane %v813, %v2026
    %v2028 = vlaneseq
    %v2029 = vshrl.u32 %v2028, 7
    %v2030 = vsub.s32 0, %v2029
    %v2031 = vrot.slane %v815, %v2030
    %v2032 = vlaneseq
    %v2033 = vshrl.u32 %v2032, 7
    %v2034 = vsub.s32 1, %v2033
    %v2035 = vrot.slane %v815, %v2034
    %v2036 = vlaneseq
    %v2037 = vshrl.u32 %v2036, 7
    %v2038 = vsub.s32 2, %v2037
    %v2039 = vrot.slane %v815, %v2038
    %v2040 = vlaneseq
    %v2041 = vshrl.u32 %v2040, 7
    %v2042 = vsub.s32 3, %v2041
    %v2043 = vrot.slane %v815, %v2042
    %v2044 = vlaneseq
    %v2045 = vshrl.u32 %v2044, 7
    %v2046 = vsub.s32 4, %v2045
    %v2047 = vrot.slane %v815, %v2046
    %v2048 = vlaneseq
    %v2049 = vshrl.u32 %v2048, 7
    %v2050 = vsub.s32 5, %v2049
    %v2051 = vrot.slane %v815, %v2050
    %v2052 = vlaneseq
    %v2053 = vshrl.u32 %v2052, 7
    %v2054 = vsub.s32 6, %v2053
    %v2055 = vrot.slane %v815, %v2054
    %v2056 = vlaneseq
    %v2057 = vshrl.u32 %v2056, 7
    %v2058 = vsub.s32 7, %v2057
    %v2059 = vrot.slane %v815, %v2058
    %v2060 = vlaneseq
    %v2061 = vshrl.u32 %v2060, 7
    %v2062 = vsub.s32 0, %v2061
    %v2063 = vrot.slane %v817, %v2062
    %v2064 = vlaneseq
    %v2065 = vshrl.u32 %v2064, 7
    %v2066 = vsub.s32 1, %v2065
    %v2067 = vrot.slane %v817, %v2066
    %v2068 = vlaneseq
    %v2069 = vshrl.u32 %v2068, 7
    %v2070 = vsub.s32 2, %v2069
    %v2071 = vrot.slane %v817, %v2070
    %v2072 = vlaneseq
    %v2073 = vshrl.u32 %v2072, 7
    %v2074 = vsub.s32 3, %v2073
    %v2075 = vrot.slane %v817, %v2074
    %v2076 = vlaneseq
    %v2077 = vshrl.u32 %v2076, 7
    %v2078 = vsub.s32 4, %v2077
    %v2079 = vrot.slane %v817, %v2078
    %v2080 = vlaneseq
    %v2081 = vshrl.u32 %v2080, 7
    %v2082 = vsub.s32 5, %v2081
    %v2083 = vrot.slane %v817, %v2082
    %v2084 = vlaneseq
    %v2085 = vshrl.u32 %v2084, 7
    %v2086 = vsub.s32 6, %v2085
    %v2087 = vrot.slane %v817, %v2086
    %v2088 = vlaneseq
    %v2089 = vshrl.u32 %v2088, 7
    %v2090 = vsub.s32 7, %v2089
    %v2091 = vrot.slane %v817, %v2090
    %v2092 = vlaneseq
    %v2093 = vshrl.u32 %v2092, 7
    %v2094 = vsub.s32 0, %v2093
    %v2095 = vrot.slane %v819, %v2094
    %v2096 = vlaneseq
    %v2097 = vshrl.u32 %v2096, 7
    %v2098 = vsub.s32 1, %v2097
    %v2099 = vrot.slane %v819, %v2098
    %v2100 = vlaneseq
    %v2101 = vshrl.u32 %v2100, 7
    %v2102 = vsub.s32 2, %v2101
    %v2103 = vrot.slane %v819, %v2102
    %v2104 = vlaneseq
    %v2105 = vshrl.u32 %v2104, 7
    %v2106 = vsub.s32 3, %v2105
    %v2107 = vrot.slane %v819, %v2106
    %v2108 = vlaneseq
    %v2109 = vshrl.u32 %v2108, 7
    %v2110 = vsub.s32 4, %v2109
    %v2111 = vrot.slane %v819, %v2110
    %v2112 = vlaneseq
    %v2113 = vshrl.u32 %v2112, 7
    %v2114 = vsub.s32 5, %v2113
    %v2115 = vrot.slane %v819, %v2114
    %v2116 = vlaneseq
    %v2117 = vshrl.u32 %v2116, 7
    %v2118 = vsub.s32 6, %v2117
    %v2119 = vrot.slane %v819, %v2118
    %v2120 = vlaneseq
    %v2121 = vshrl.u32 %v2120, 7
    %v2122 = vsub.s32 7, %v2121
    %v2123 = vrot.slane %v819, %v2122
    %v2124 = vlaneseq
    %v2125 = vshrl.u32 %v2124, 7
    %v2126 = vsub.s32 0, %v2125
    %v2127 = vrot.slane %v821, %v2126
    %v2128 = vlaneseq
    %v2129 = vshrl.u32 %v2128, 7
    %v2130 = vsub.s32 1, %v2129
    %v2131 = vrot.slane %v821, %v2130
    %v2132 = vlaneseq
    %v2133 = vshrl.u32 %v2132, 7
    %v2134 = vsub.s32 2, %v2133
    %v2135 = vrot.slane %v821, %v2134
    %v2136 = vlaneseq
    %v2137 = vshrl.u32 %v2136, 7
    %v2138 = vsub.s32 3, %v2137
    %v2139 = vrot.slane %v821, %v2138
    %v2140 = vlaneseq
    %v2141 = vshrl.u32 %v2140, 7
    %v2142 = vsub.s32 4, %v2141
    %v2143 = vrot.slane %v821, %v2142
    %v2144 = vlaneseq
    %v2145 = vshrl.u32 %v2144, 7
    %v2146 = vsub.s32 5, %v2145
    %v2147 = vrot.slane %v821, %v2146
    %v2148 = vlaneseq
    %v2149 = vshrl.u32 %v2148, 7
    %v2150 = vsub.s32 6, %v2149
    %v2151 = vrot.slane %v821, %v2150
    %v2152 = vlaneseq
    %v2153 = vshrl.u32 %v2152, 7
    %v2154 = vsub.s32 7, %v2153
    %v2155 = vrot.slane %v821, %v2154
    %v2156 = vlaneseq
    %v2157 = vshrl.u32 %v2156, 7
    %v2158 = vsub.s32 0, %v2157
    %v2159 = vrot.slane %v823, %v2158
    %v2160 = vlaneseq
    %v2161 = vshrl.u32 %v2160, 7
    %v2162 = vsub.s32 1, %v2161
    %v2163 = vrot.slane %v823, %v2162
    %v2164 = vlaneseq
    %v2165 = vshrl.u32 %v2164, 7
    %v2166 = vsub.s32 2, %v2165
    %v2167 = vrot.slane %v823, %v2166
    %v2168 = vlaneseq
    %v2169 = vshrl.u32 %v2168, 7
    %v2170 = vsub.s32 3, %v2169
    %v2171 = vrot.slane %v823, %v2170
    %v2172 = vlaneseq
    %v2173 = vshrl.u32 %v2172, 7
    %v2174 = vsub.s32 4, %v2173
    %v2175 = vrot.slane %v823, %v2174
    %v2176 = vlaneseq
    %v2177 = vshrl.u32 %v2176, 7
    %v2178 = vsub.s32 5, %v2177
    %v2179 = vrot.slane %v823, %v2178
    %v2180 = vlaneseq
    %v2181 = vshrl.u32 %v2180, 7
    %v2182 = vsub.s32 6, %v2181
    %v2183 = vrot.slane %v823, %v2182
    %v2184 = vlaneseq
    %v2185 = vshrl.u32 %v2184, 7
    %v2186 = vsub.s32 7, %v2185
    %v2187 = vrot.slane %v823, %v2186
    %v2188 = vlaneseq
    %v2189 = vshrl.u32 %v2188, 7
    %v2190 = vsub.s32 0, %v2189
    %v2191 = vrot.slane %v825, %v2190
    %v2192 = vlaneseq
    %v2193 = vshrl.u32 %v2192, 7
    %v2194 = vsub.s32 1, %v2193
    %v2195 = vrot.slane %v825, %v2194
    %v2196 = vlaneseq
    %v2197 = vshrl.u32 %v2196, 7
    %v2198 = vsub.s32 2, %v2197
    %v2199 = vrot.slane %v825, %v2198
    %v2200 = vlaneseq
    %v2201 = vshrl.u32 %v2200, 7
    %v2202 = vsub.s32 3, %v2201
    %v2203 = vrot.slane %v825, %v2202
    %v2204 = vlaneseq
    %v2205 = vshrl.u32 %v2204, 7
    %v2206 = vsub.s32 4, %v2205
    %v2207 = vrot.slane %v825, %v2206
    %v2208 = vlaneseq
    %v2209 = vshrl.u32 %v2208, 7
    %v2210 = vsub.s32 5, %v2209
    %v2211 = vrot.slane %v825, %v2210
    %v2212 = vlaneseq
    %v2213 = vshrl.u32 %v2212, 7
    %v2214 = vsub.s32 6, %v2213
    %v2215 = vrot.slane %v825, %v2214
    %v2216 = vlaneseq
    %v2217 = vshrl.u32 %v2216, 7
    %v2218 = vsub.s32 7, %v2217
    %v2219 = vrot.slane %v825, %v2218
    %v2220 = vlaneseq
    %v2221 = vshrl.u32 %v2220, 7
    %v2222 = vsub.s32 0, %v2221
    %v2223 = vrot.slane %v827, %v2222
    %v2224 = vlaneseq
    %v2225 = vshrl.u32 %v2224, 7
    %v2226 = vsub.s32 1, %v2225
    %v2227 = vrot.slane %v827, %v2226
    %v2228 = vlaneseq
    %v2229 = vshrl.u32 %v2228, 7
    %v2230 = vsub.s32 2, %v2229
    %v2231 = vrot.slane %v827, %v2230
    %v2232 = vlaneseq
    %v2233 = vshrl.u32 %v2232, 7
    %v2234 = vsub.s32 3, %v2233
    %v2235 = vrot.slane %v827, %v2234
    %v2236 = vlaneseq
    %v2237 = vshrl.u32 %v2236, 7
    %v2238 = vsub.s32 4, %v2237
    %v2239 = vrot.slane %v827, %v2238
    %v2240 = vlaneseq
    %v2241 = vshrl.u32 %v2240, 7
    %v2242 = vsub.s32 5, %v2241
    %v2243 = vrot.slane %v827, %v2242
    %v2244 = vlaneseq
    %v2245 = vshrl.u32 %v2244, 7
    %v2246 = vsub.s32 6, %v2245
    %v2247 = vrot.slane %v827, %v2246
    %v2248 = vlaneseq
    %v2249 = vshrl.u32 %v2248, 7
    %v2250 = vsub.s32 7, %v2249
    %v2251 = vrot.slane %v827, %v2250
    %v2252 = vlaneseq
    %v2253 = vshrl.u32 %v2252, 7
    %v2254 = vsub.s32 0, %v2253
    %v2255 = vrot.slane %v829, %v2254
    %v2256 = vlaneseq
    %v2257 = vshrl.u32 %v2256, 7
    %v2258 = vsub.s32 1, %v2257
    %v2259 = vrot.slane %v829, %v2258
    %v2260 = vlaneseq
    %v2261 = vshrl.u32 %v2260, 7
    %v2262 = vsub.s32 2, %v2261
    %v2263 = vrot.slane %v829, %v2262
    %v2264 = vlaneseq
    %v2265 = vshrl.u32 %v2264, 7
    %v2266 = vsub.s32 3, %v2265
    %v2267 = vrot.slane %v829, %v2266
    %v2268 = vlaneseq
    %v2269 = vshrl.u32 %v2268, 7
    %v2270 = vsub.s32 4, %v2269
    %v2271 = vrot.slane %v829, %v2270
    %v2272 = vlaneseq
    %v2273 = vshrl.u32 %v2272, 7
    %v2274 = vsub.s32 5, %v2273
    %v2275 = vrot.slane %v829, %v2274
    %v2276 = vlaneseq
    %v2277 = vshrl.u32 %v2276, 7
    %v2278 = vsub.s32 6, %v2277
    %v2279 = vrot.slane %v829, %v2278
    %v2280 = vlaneseq
    %v2281 = vshrl.u32 %v2280, 7
    %v2282 = vsub.s32 7, %v2281
    %v2283 = vrot.slane %v829, %v2282
    %v2284 = vlaneseq
    %v2285 = vshrl.u32 %v2284, 7
    %v2286 = vsub.s32 0, %v2285
    %v2287 = vrot.slane %v831, %v2286
    %v2288 = vlaneseq
    %v2289 = vshrl.u32 %v2288, 7
    %v2290 = vsub.s32 1, %v2289
    %v2291 = vrot.slane %v831, %v2290
    %v2292 = vlaneseq
    %v2293 = vshrl.u32 %v2292, 7
    %v2294 = vsub.s32 2, %v2293
    %v2295 = vrot.slane %v831, %v2294
    %v2296 = vlaneseq
    %v2297 = vshrl.u32 %v2296, 7
    %v2298 = vsub.s32 3, %v2297
    %v2299 = vrot.slane %v831, %v2298
    %v2300 = vlaneseq
    %v2301 = vshrl.u32 %v2300, 7
    %v2302 = vsub.s32 4, %v2301
    %v2303 = vrot.slane %v831, %v2302
    %v2304 = vlaneseq
    %v2305 = vshrl.u32 %v2304, 7
    %v2306 = vsub.s32 5, %v2305
    %v2307 = vrot.slane %v831, %v2306
    %v2308 = vlaneseq
    %v2309 = vshrl.u32 %v2308, 7
    %v2310 = vsub.s32 6, %v2309
    %v2311 = vrot.slane %v831, %v2310
    %v2312 = vlaneseq
    %v2313 = vshrl.u32 %v2312, 7
    %v2314 = vsub.s32 7, %v2313
    %v2315 = vrot.slane %v831, %v2314
    %v2316 = vlaneseq
    %v2317 = vshrl.u32 %v2316, 7
    %v2318 = vsub.s32 0, %v2317
    %v2319 = vrot.slane %v833, %v2318
    %v2320 = vlaneseq
    %v2321 = vshrl.u32 %v2320, 7
    %v2322 = vsub.s32 1, %v2321
    %v2323 = vrot.slane %v833, %v2322
    %v2324 = vlaneseq
    %v2325 = vshrl.u32 %v2324, 7
    %v2326 = vsub.s32 2, %v2325
    %v2327 = vrot.slane %v833, %v2326
    %v2328 = vlaneseq
    %v2329 = vshrl.u32 %v2328, 7
    %v2330 = vsub.s32 3, %v2329
    %v2331 = vrot.slane %v833, %v2330
    %v2332 = vlaneseq
    %v2333 = vshrl.u32 %v2332, 7
    %v2334 = vsub.s32 4, %v2333
    %v2335 = vrot.slane %v833, %v2334
    %v2336 = vlaneseq
    %v2337 = vshrl.u32 %v2336, 7
    %v2338 = vsub.s32 5, %v2337
    %v2339 = vrot.slane %v833, %v2338
    %v2340 = vlaneseq
    %v2341 = vshrl.u32 %v2340, 7
    %v2342 = vsub.s32 6, %v2341
    %v2343 = vrot.slane %v833, %v2342
    %v2344 = vlaneseq
    %v2345 = vshrl.u32 %v2344, 7
    %v2346 = vsub.s32 7, %v2345
    %v2347 = vrot.slane %v833, %v2346
    %v2348 = vlaneseq
    %v2349 = vshrl.u32 %v2348, 7
    %v2350 = vsub.s32 0, %v2349
    %v2351 = vrot.slane %v835, %v2350
    %v2352 = vlaneseq
    %v2353 = vshrl.u32 %v2352, 7
    %v2354 = vsub.s32 1, %v2353
    %v2355 = vrot.slane %v835, %v2354
    %v2356 = vlaneseq
    %v2357 = vshrl.u32 %v2356, 7
    %v2358 = vsub.s32 2, %v2357
    %v2359 = vrot.slane %v835, %v2358
    %v2360 = vlaneseq
    %v2361 = vshrl.u32 %v2360, 7
    %v2362 = vsub.s32 3, %v2361
    %v2363 = vrot.slane %v835, %v2362
    %v2364 = vlaneseq
    %v2365 = vshrl.u32 %v2364, 7
    %v2366 = vsub.s32 4, %v2365
    %v2367 = vrot.slane %v835, %v2366
    %v2368 = vlaneseq
    %v2369 = vshrl.u32 %v2368, 7
    %v2370 = vsub.s32 5, %v2369
    %v2371 = vrot.slane %v835, %v2370
    %v2372 = vlaneseq
    %v2373 = vshrl.u32 %v2372, 7
    %v2374 = vsub.s32 6, %v2373
    %v2375 = vrot.slane %v835, %v2374
    %v2376 = vlaneseq
    %v2377 = vshrl.u32 %v2376, 7
    %v2378 = vsub.s32 7, %v2377
    %v2379 = vrot.slane %v835, %v2378
    %v2380 = vlaneseq
    %v2381 = vshrl.u32 %v2380, 7
    %v2382 = vsub.s32 0, %v2381
    %v2383 = vrot.slane %v837, %v2382
    %v2384 = vlaneseq
    %v2385 = vshrl.u32 %v2384, 7
    %v2386 = vsub.s32 1, %v2385
    %v2387 = vrot.slane %v837, %v2386
    %v2388 = vlaneseq
    %v2389 = vshrl.u32 %v2388, 7
    %v2390 = vsub.s32 2, %v2389
    %v2391 = vrot.slane %v837, %v2390
    %v2392 = vlaneseq
    %v2393 = vshrl.u32 %v2392, 7
    %v2394 = vsub.s32 3, %v2393
    %v2395 = vrot.slane %v837, %v2394
    %v2396 = vlaneseq
    %v2397 = vshrl.u32 %v2396, 7
    %v2398 = vsub.s32 4, %v2397
    %v2399 = vrot.slane %v837, %v2398
    %v2400 = vlaneseq
    %v2401 = vshrl.u32 %v2400, 7
    %v2402 = vsub.s32 5, %v2401
    %v2403 = vrot.slane %v837, %v2402
    %v2404 = vlaneseq
    %v2405 = vshrl.u32 %v2404, 7
    %v2406 = vsub.s32 6, %v2405
    %v2407 = vrot.slane %v837, %v2406
    %v2408 = vlaneseq
    %v2409 = vshrl.u32 %v2408, 7
    %v2410 = vsub.s32 7, %v2409
    %v2411 = vrot.slane %v837, %v2410
    %v2412 = vlaneseq
    %v2413 = vshrl.u32 %v2412, 7
    %v2414 = vsub.s32 0, %v2413
    %v2415 = vrot.slane %v839, %v2414
    %v2416 = vlaneseq
    %v2417 = vshrl.u32 %v2416, 7
    %v2418 = vsub.s32 1, %v2417
    %v2419 = vrot.slane %v839, %v2418
    %v2420 = vlaneseq
    %v2421 = vshrl.u32 %v2420, 7
    %v2422 = vsub.s32 2, %v2421
    %v2423 = vrot.slane %v839, %v2422
    %v2424 = vlaneseq
    %v2425 = vshrl.u32 %v2424, 7
    %v2426 = vsub.s32 3, %v2425
    %v2427 = vrot.slane %v839, %v2426
    %v2428 = vlaneseq
    %v2429 = vshrl.u32 %v2428, 7
    %v2430 = vsub.s32 4, %v2429
    %v2431 = vrot.slane %v839, %v2430
    %v2432 = vlaneseq
    %v2433 = vshrl.u32 %v2432, 7
    %v2434 = vsub.s32 5, %v2433
    %v2435 = vrot.slane %v839, %v2434
    %v2436 = vlaneseq
    %v2437 = vshrl.u32 %v2436, 7
    %v2438 = vsub.s32 6, %v2437
    %v2439 = vrot.slane %v839, %v2438
    %v2440 = vlaneseq
    %v2441 = vshrl.u32 %v2440, 7
    %v2442 = vsub.s32 7, %v2441
    %v2443 = vrot.slane %v839, %v2442
    %v2444 = vlaneseq
    %v2445 = vshrl.u32 %v2444, 7
    %v2446 = vsub.s32 0, %v2445
    %v2447 = vrot.slane %v841, %v2446
    %v2448 = vlaneseq
    %v2449 = vshrl.u32 %v2448, 7
    %v2450 = vsub.s32 1, %v2449
    %v2451 = vrot.slane %v841, %v2450
    %v2452 = vlaneseq
    %v2453 = vshrl.u32 %v2452, 7
    %v2454 = vsub.s32 2, %v2453
    %v2455 = vrot.slane %v841, %v2454
    %v2456 = vlaneseq
    %v2457 = vshrl.u32 %v2456, 7
    %v2458 = vsub.s32 3, %v2457
    %v2459 = vrot.slane %v841, %v2458
    %v2460 = vlaneseq
    %v2461 = vshrl.u32 %v2460, 7
    %v2462 = vsub.s32 4, %v2461
    %v2463 = vrot.slane %v841, %v2462
    %v2464 = vlaneseq
    %v2465 = vshrl.u32 %v2464, 7
    %v2466 = vsub.s32 5, %v2465
    %v2467 = vrot.slane %v841, %v2466
    %v2468 = vlaneseq
    %v2469 = vshrl.u32 %v2468, 7
    %v2470 = vsub.s32 6, %v2469
    %v2471 = vrot.slane %v841, %v2470
    %v2472 = vlaneseq
    %v2473 = vshrl.u32 %v2472, 7
    %v2474 = vsub.s32 7, %v2473
    %v2475 = vrot.slane %v841, %v2474
    %v2476 = vlaneseq
    %v2477 = vshrl.u32 %v2476, 7
    %v2478 = vsub.s32 0, %v2477
    %v2479 = vrot.slane %v843, %v2478
    %v2480 = vlaneseq
    %v2481 = vshrl.u32 %v2480, 7
    %v2482 = vsub.s32 1, %v2481
    %v2483 = vrot.slane %v843, %v2482
    %v2484 = vlaneseq
    %v2485 = vshrl.u32 %v2484, 7
    %v2486 = vsub.s32 2, %v2485
    %v2487 = vrot.slane %v843, %v2486
    %v2488 = vlaneseq
    %v2489 = vshrl.u32 %v2488, 7
    %v2490 = vsub.s32 3, %v2489
    %v2491 = vrot.slane %v843, %v2490
    %v2492 = vlaneseq
    %v2493 = vshrl.u32 %v2492, 7
    %v2494 = vsub.s32 4, %v2493
    %v2495 = vrot.slane %v843, %v2494
    %v2496 = vlaneseq
    %v2497 = vshrl.u32 %v2496, 7
    %v2498 = vsub.s32 5, %v2497
    %v2499 = vrot.slane %v843, %v2498
    %v2500 = vlaneseq
    %v2501 = vshrl.u32 %v2500, 7
    %v2502 = vsub.s32 6, %v2501
    %v2503 = vrot.slane %v843, %v2502
    %v2504 = vlaneseq
    %v2505 = vshrl.u32 %v2504, 7
    %v2506 = vsub.s32 7, %v2505
    %v2507 = vrot.slane %v843, %v2506
    %v2508 = vlaneseq
    %v2509 = vshrl.u32 %v2508, 7
    %v2510 = vsub.s32 0, %v2509
    %v2511 = vrot.slane %v845, %v2510
    %v2512 = vlaneseq
    %v2513 = vshrl.u32 %v2512, 7
    %v2514 = vsub.s32 1, %v2513
    %v2515 = vrot.slane %v845, %v2514
    %v2516 = vlaneseq
    %v2517 = vshrl.u32 %v2516, 7
    %v2518 = vsub.s32 2, %v2517
    %v2519 = vrot.slane %v845, %v2518
    %v2520 = vlaneseq
    %v2521 = vshrl.u32 %v2520, 7
    %v2522 = vsub.s32 3, %v2521
    %v2523 = vrot.slane %v845, %v2522
    %v2524 = vlaneseq
    %v2525 = vshrl.u32 %v2524, 7
    %v2526 = vsub.s32 4, %v2525
    %v2527 = vrot.slane %v845, %v2526
    %v2528 = vlaneseq
    %v2529 = vshrl.u32 %v2528, 7
    %v2530 = vsub.s32 5, %v2529
    %v2531 = vrot.slane %v845, %v2530
    %v2532 = vlaneseq
    %v2533 = vshrl.u32 %v2532, 7
    %v2534 = vsub.s32 6, %v2533
    %v2535 = vrot.slane %v845, %v2534
    %v2536 = vlaneseq
    %v2537 = vshrl.u32 %v2536, 7
    %v2538 = vsub.s32 7, %v2537
    %v2539 = vrot.slane %v845, %v2538
    %v2540 = vlaneseq
    %v2541 = vshrl.u32 %v2540, 7
    %v2542 = vsub.s32 0, %v2541
    %v2543 = vrot.slane %v847, %v2542
    %v2544 = vlaneseq
    %v2545 = vshrl.u32 %v2544, 7
    %v2546 = vsub.s32 1, %v2545
    %v2547 = vrot.slane %v847, %v2546
    %v2548 = vlaneseq
    %v2549 = vshrl.u32 %v2548, 7
    %v2550 = vsub.s32 2, %v2549
    %v2551 = vrot.slane %v847, %v2550
    %v2552 = vlaneseq
    %v2553 = vshrl.u32 %v2552, 7
    %v2554 = vsub.s32 3, %v2553
    %v2555 = vrot.slane %v847, %v2554
    %v2556 = vlaneseq
    %v2557 = vshrl.u32 %v2556, 7
    %v2558 = vsub.s32 4, %v2557
    %v2559 = vrot.slane %v847, %v2558
    %v2560 = vlaneseq
    %v2561 = vshrl.u32 %v2560, 7
    %v2562 = vsub.s32 5, %v2561
    %v2563 = vrot.slane %v847, %v2562
    %v2564 = vlaneseq
    %v2565 = vshrl.u32 %v2564, 7
    %v2566 = vsub.s32 6, %v2565
    %v2567 = vrot.slane %v847, %v2566
    %v2568 = vlaneseq
    %v2569 = vshrl.u32 %v2568, 7
    %v2570 = vsub.s32 7, %v2569
    %v2571 = vrot.slane %v847, %v2570
    %v2572 = vlaneseq
    %v2573 = vshrl.u32 %v2572, 7
    %v2574 = vsub.s32 0, %v2573
    %v2575 = vrot.slane %v849, %v2574
    %v2576 = vlaneseq
    %v2577 = vshrl.u32 %v2576, 7
    %v2578 = vsub.s32 1, %v2577
    %v2579 = vrot.slane %v849, %v2578
    %v2580 = vlaneseq
    %v2581 = vshrl.u32 %v2580, 7
    %v2582 = vsub.s32 2, %v2581
    %v2583 = vrot.slane %v849, %v2582
    %v2584 = vlaneseq
    %v2585 = vshrl.u32 %v2584, 7
    %v2586 = vsub.s32 3, %v2585
    %v2587 = vrot.slane %v849, %v2586
    %v2588 = vlaneseq
    %v2589 = vshrl.u32 %v2588, 7
    %v2590 = vsub.s32 4, %v2589
    %v2591 = vrot.slane %v849, %v2590
    %v2592 = vlaneseq
    %v2593 = vshrl.u32 %v2592, 7
    %v2594 = vsub.s32 5, %v2593
    %v2595 = vrot.slane %v849, %v2594
    %v2596 = vlaneseq
    %v2597 = vshrl.u32 %v2596, 7
    %v2598 = vsub.s32 6, %v2597
    %v2599 = vrot.slane %v849, %v2598
    %v2600 = vlaneseq
    %v2601 = vshrl.u32 %v2600, 7
    %v2602 = vsub.s32 7, %v2601
    %v2603 = vrot.slane %v849, %v2602
    %v2604 = vlaneseq
    %v2605 = vshrl.u32 %v2604, 7
    %v2606 = vsub.s32 0, %v2605
    %v2607 = vrot.slane %v851, %v2606
    %v2608 = vlaneseq
    %v2609 = vshrl.u32 %v2608, 7
    %v2610 = vsub.s32 1, %v2609
    %v2611 = vrot.slane %v851, %v2610
    %v2612 = vlaneseq
    %v2613 = vshrl.u32 %v2612, 7
    %v2614 = vsub.s32 2, %v2613
    %v2615 = vrot.slane %v851, %v2614
    %v2616 = vlaneseq
    %v2617 = vshrl.u32 %v2616, 7
    %v2618 = vsub.s32 3, %v2617
    %v2619 = vrot.slane %v851, %v2618
    %v2620 = vlaneseq
    %v2621 = vshrl.u32 %v2620, 7
    %v2622 = vsub.s32 4, %v2621
    %v2623 = vrot.slane %v851, %v2622
    %v2624 = vlaneseq
    %v2625 = vshrl.u32 %v2624, 7
    %v2626 = vsub.s32 5, %v2625
    %v2627 = vrot.slane %v851, %v2626
    %v2628 = vlaneseq
    %v2629 = vshrl.u32 %v2628, 7
    %v2630 = vsub.s32 6, %v2629
    %v2631 = vrot.slane %v851, %v2630
    %v2632 = vlaneseq
    %v2633 = vshrl.u32 %v2632, 7
    %v2634 = vsub.s32 7, %v2633
    %v2635 = vrot.slane %v851, %v2634
    %v2636 = vlaneseq
    %v2637 = vshrl.u32 %v2636, 7
    %v2638 = vsub.s32 0, %v2637
    %v2639 = vrot.slane %v853, %v2638
    %v2640 = vlaneseq
    %v2641 = vshrl.u32 %v2640, 7
    %v2642 = vsub.s32 1, %v2641
    %v2643 = vrot.slane %v853, %v2642
    %v2644 = vlaneseq
    %v2645 = vshrl.u32 %v2644, 7
    %v2646 = vsub.s32 2, %v2645
    %v2647 = vrot.slane %v853, %v2646
    %v2648 = vlaneseq
    %v2649 = vshrl.u32 %v2648, 7
    %v2650 = vsub.s32 3, %v2649
    %v2651 = vrot.slane %v853, %v2650
    %v2652 = vlaneseq
    %v2653 = vshrl.u32 %v2652, 7
    %v2654 = vsub.s32 4, %v2653
    %v2655 = vrot.slane %v853, %v2654
    %v2656 = vlaneseq
    %v2657 = vshrl.u32 %v2656, 7
    %v2658 = vsub.s32 5, %v2657
    %v2659 = vrot.slane %v853, %v2658
    %v2660 = vlaneseq
    %v2661 = vshrl.u32 %v2660, 7
    %v2662 = vsub.s32 6, %v2661
    %v2663 = vrot.slane %v853, %v2662
    %v2664 = vlaneseq
    %v2665 = vshrl.u32 %v2664, 7
    %v2666 = vsub.s32 7, %v2665
    %v2667 = vrot.slane %v853, %v2666
    %v2668 = vlaneseq
    %v2669 = vshrl.u32 %v2668, 7
    %v2670 = vsub.s32 0, %v2669
    %v2671 = vrot.slane %v855, %v2670
    %v2672 = vlaneseq
    %v2673 = vshrl.u32 %v2672, 7
    %v2674 = vsub.s32 1, %v2673
    %v2675 = vrot.slane %v855, %v2674
    %v2676 = vlaneseq
    %v2677 = vshrl.u32 %v2676, 7
    %v2678 = vsub.s32 2, %v2677
    %v2679 = vrot.slane %v855, %v2678
    %v2680 = vlaneseq
    %v2681 = vshrl.u32 %v2680, 7
    %v2682 = vsub.s32 3, %v2681
    %v2683 = vrot.slane %v855, %v2682
    %v2684 = vlaneseq
    %v2685 = vshrl.u32 %v2684, 7
    %v2686 = vsub.s32 4, %v2685
    %v2687 = vrot.slane %v855, %v2686
    %v2688 = vlaneseq
    %v2689 = vshrl.u32 %v2688, 7
    %v2690 = vsub.s32 5, %v2689
    %v2691 = vrot.slane %v855, %v2690
    %v2692 = vlaneseq
    %v2693 = vshrl.u32 %v2692, 7
    %v2694 = vsub.s32 6, %v2693
    %v2695 = vrot.slane %v855, %v2694
    %v2696 = vlaneseq
    %v2697 = vshrl.u32 %v2696, 7
    %v2698 = vsub.s32 7, %v2697
    %v2699 = vrot.slane %v855, %v2698
    %v2700 = vlaneseq
    %v2701 = vshrl.u32 %v2700, 7
    %v2702 = vsub.s32 0, %v2701
    %v2703 = vrot.slane %v857, %v2702
    %v2704 = vlaneseq
    %v2705 = vshrl.u32 %v2704, 7
    %v2706 = vsub.s32 1, %v2705
    %v2707 = vrot.slane %v857, %v2706
    %v2708 = vlaneseq
    %v2709 = vshrl.u32 %v2708, 7
    %v2710 = vsub.s32 2, %v2709
    %v2711 = vrot.slane %v857, %v2710
    %v2712 = vlaneseq
    %v2713 = vshrl.u32 %v2712, 7
    %v2714 = vsub.s32 3, %v2713
    %v2715 = vrot.slane %v857, %v2714
    %v2716 = vlaneseq
    %v2717 = vshrl.u32 %v2716, 7
    %v2718 = vsub.s32 4, %v2717
    %v2719 = vrot.slane %v857, %v2718
    %v2720 = vlaneseq
    %v2721 = vshrl.u32 %v2720, 7
    %v2722 = vsub.s32 5, %v2721
    %v2723 = vrot.slane %v857, %v2722
    %v2724 = vlaneseq
    %v2725 = vshrl.u32 %v2724, 7
    %v2726 = vsub.s32 6, %v2725
    %v2727 = vrot.slane %v857, %v2726
    %v2728 = vlaneseq
    %v2729 = vshrl.u32 %v2728, 7
    %v2730 = vsub.s32 7, %v2729
    %v2731 = vrot.slane %v857, %v2730
    %v2732 = vlaneseq
    %v2733 = vshrl.u32 %v2732, 7
    %v2734 = vsub.s32 0, %v2733
    %v2735 = vrot.slane %v859, %v2734
    %v2736 = vlaneseq
    %v2737 = vshrl.u32 %v2736, 7
    %v2738 = vsub.s32 1, %v2737
    %v2739 = vrot.slane %v859, %v2738
    %v2740 = vlaneseq
    %v2741 = vshrl.u32 %v2740, 7
    %v2742 = vsub.s32 2, %v2741
    %v2743 = vrot.slane %v859, %v2742
    %v2744 = vlaneseq
    %v2745 = vshrl.u32 %v2744, 7
    %v2746 = vsub.s32 3, %v2745
    %v2747 = vrot.slane %v859, %v2746
    %v2748 = vlaneseq
    %v2749 = vshrl.u32 %v2748, 7
    %v2750 = vsub.s32 4, %v2749
    %v2751 = vrot.slane %v859, %v2750
    %v2752 = vlaneseq
    %v2753 = vshrl.u32 %v2752, 7
    %v2754 = vsub.s32 5, %v2753
    %v2755 = vrot.slane %v859, %v2754
    %v2756 = vlaneseq
    %v2757 = vshrl.u32 %v2756, 7
    %v2758 = vsub.s32 6, %v2757
    %v2759 = vrot.slane %v859, %v2758
    %v2760 = vlaneseq
    %v2761 = vshrl.u32 %v2760, 7
    %v2762 = vsub.s32 7, %v2761
    %v2763 = vrot.slane %v859, %v2762
    %v2764 = vlaneseq
    %v2765 = vshrl.u32 %v2764, 7
    %v2766 = vsub.s32 0, %v2765
    %v2767 = vrot.slane %v861, %v2766
    %v2768 = vlaneseq
    %v2769 = vshrl.u32 %v2768, 7
    %v2770 = vsub.s32 1, %v2769
    %v2771 = vrot.slane %v861, %v2770
    %v2772 = vlaneseq
    %v2773 = vshrl.u32 %v2772, 7
    %v2774 = vsub.s32 2, %v2773
    %v2775 = vrot.slane %v861, %v2774
    %v2776 = vlaneseq
    %v2777 = vshrl.u32 %v2776, 7
    %v2778 = vsub.s32 3, %v2777
    %v2779 = vrot.slane %v861, %v2778
    %v2780 = vlaneseq
    %v2781 = vshrl.u32 %v2780, 7
    %v2782 = vsub.s32 4, %v2781
    %v2783 = vrot.slane %v861, %v2782
    %v2784 = vlaneseq
    %v2785 = vshrl.u32 %v2784, 7
    %v2786 = vsub.s32 5, %v2785
    %v2787 = vrot.slane %v861, %v2786
    %v2788 = vlaneseq
    %v2789 = vshrl.u32 %v2788, 7
    %v2790 = vsub.s32 6, %v2789
    %v2791 = vrot.slane %v861, %v2790
    %v2792 = vlaneseq
    %v2793 = vshrl.u32 %v2792, 7
    %v2794 = vsub.s32 7, %v2793
    %v2795 = vrot.slane %v861, %v2794
    %v2796 = vlaneseq
    %v2797 = vshrl.u32 %v2796, 7
    %v2798 = vsub.s32 0, %v2797
    %v2799 = vrot.slane %v863, %v2798
    %v2800 = vlaneseq
    %v2801 = vshrl.u32 %v2800, 7
    %v2802 = vsub.s32 1, %v2801
    %v2803 = vrot.slane %v863, %v2802
    %v2804 = vlaneseq
    %v2805 = vshrl.u32 %v2804, 7
    %v2806 = vsub.s32 2, %v2805
    %v2807 = vrot.slane %v863, %v2806
    %v2808 = vlaneseq
    %v2809 = vshrl.u32 %v2808, 7
    %v2810 = vsub.s32 3, %v2809
    %v2811 = vrot.slane %v863, %v2810
    %v2812 = vlaneseq
    %v2813 = vshrl.u32 %v2812, 7
    %v2814 = vsub.s32 4, %v2813
    %v2815 = vrot.slane %v863, %v2814
    %v2816 = vlaneseq
    %v2817 = vshrl.u32 %v2816, 7
    %v2818 = vsub.s32 5, %v2817
    %v2819 = vrot.slane %v863, %v2818
    %v2820 = vlaneseq
    %v2821 = vshrl.u32 %v2820, 7
    %v2822 = vsub.s32 6, %v2821
    %v2823 = vrot.slane %v863, %v2822
    %v2824 = vlaneseq
    %v2825 = vshrl.u32 %v2824, 7
    %v2826 = vsub.s32 7, %v2825
    %v2827 = vrot.slane %v863, %v2826
    %v2828 = vlaneseq
    %v2829 = vshrl.u32 %v2828, 7
    %v2830 = vsub.s32 0, %v2829
    %v2831 = vrot.slane %v865, %v2830
    %v2832 = vlaneseq
    %v2833 = vshrl.u32 %v2832, 7
    %v2834 = vsub.s32 1, %v2833
    %v2835 = vrot.slane %v865, %v2834
    %v2836 = vlaneseq
    %v2837 = vshrl.u32 %v2836, 7
    %v2838 = vsub.s32 2, %v2837
    %v2839 = vrot.slane %v865, %v2838
    %v2840 = vlaneseq
    %v2841 = vshrl.u32 %v2840, 7
    %v2842 = vsub.s32 3, %v2841
    %v2843 = vrot.slane %v865, %v2842
    %v2844 = vlaneseq
    %v2845 = vshrl.u32 %v2844, 7
    %v2846 = vsub.s32 4, %v2845
    %v2847 = vrot.slane %v865, %v2846
    %v2848 = vlaneseq
    %v2849 = vshrl.u32 %v2848, 7
    %v2850 = vsub.s32 5, %v2849
    %v2851 = vrot.slane %v865, %v2850
    %v2852 = vlaneseq
    %v2853 = vshrl.u32 %v2852, 7
    %v2854 = vsub.s32 6, %v2853
    %v2855 = vrot.slane %v865, %v2854
    %v2856 = vlaneseq
    %v2857 = vshrl.u32 %v2856, 7
    %v2858 = vsub.s32 7, %v2857
    %v2859 = vrot.slane %v865, %v2858
    %v2860 = vlaneseq
    %v2861 = vshrl.u32 %v2860, 7
    %v2862 = vsub.s32 0, %v2861
    %v2863 = vrot.slane %v867, %v2862
    %v2864 = vlaneseq
    %v2865 = vshrl.u32 %v2864, 7
    %v2866 = vsub.s32 1, %v2865
    %v2867 = vrot.slane %v867, %v2866
    %v2868 = vlaneseq
    %v2869 = vshrl.u32 %v2868, 7
    %v2870 = vsub.s32 2, %v2869
    %v2871 = vrot.slane %v867, %v2870
    %v2872 = vlaneseq
    %v2873 = vshrl.u32 %v2872, 7
    %v2874 = vsub.s32 3, %v2873
    %v2875 = vrot.slane %v867, %v2874
    %v2876 = vlaneseq
    %v2877 = vshrl.u32 %v2876, 7
    %v2878 = vsub.s32 4, %v2877
    %v2879 = vrot.slane %v867, %v2878
    %v2880 = vlaneseq
    %v2881 = vshrl.u32 %v2880, 7
    %v2882 = vsub.s32 5, %v2881
    %v2883 = vrot.slane %v867, %v2882
    %v2884 = vlaneseq
    %v2885 = vshrl.u32 %v2884, 7
    %v2886 = vsub.s32 6, %v2885
    %v2887 = vrot.slane %v867, %v2886
    %v2888 = vlaneseq
    %v2889 = vshrl.u32 %v2888, 7
    %v2890 = vsub.s32 7, %v2889
    %v2891 = vrot.slane %v867, %v2890
    %v2892 = vlaneseq
    %v2893 = vshrl.u32 %v2892, 7
    %v2894 = vsub.s32 0, %v2893
    %v2895 = vrot.slane %v869, %v2894
    %v2896 = vlaneseq
    %v2897 = vshrl.u32 %v2896, 7
    %v2898 = vsub.s32 1, %v2897
    %v2899 = vrot.slane %v869, %v2898
    %v2900 = vlaneseq
    %v2901 = vshrl.u32 %v2900, 7
    %v2902 = vsub.s32 2, %v2901
    %v2903 = vrot.slane %v869, %v2902
    %v2904 = vlaneseq
    %v2905 = vshrl.u32 %v2904, 7
    %v2906 = vsub.s32 3, %v2905
    %v2907 = vrot.slane %v869, %v2906
    %v2908 = vlaneseq
    %v2909 = vshrl.u32 %v2908, 7
    %v2910 = vsub.s32 4, %v2909
    %v2911 = vrot.slane %v869, %v2910
    %v2912 = vlaneseq
    %v2913 = vshrl.u32 %v2912, 7
    %v2914 = vsub.s32 5, %v2913
    %v2915 = vrot.slane %v869, %v2914
    %v2916 = vlaneseq
    %v2917 = vshrl.u32 %v2916, 7
    %v2918 = vsub.s32 6, %v2917
    %v2919 = vrot.slane %v869, %v2918
    %v2920 = vlaneseq
    %v2921 = vshrl.u32 %v2920, 7
    %v2922 = vsub.s32 7, %v2921
    %v2923 = vrot.slane %v869, %v2922
    %v2924 = vlaneseq
    %v2925 = vshrl.u32 %v2924, 7
    %v2926 = vsub.s32 0, %v2925
    %v2927 = vrot.slane %v871, %v2926
    %v2928 = vlaneseq
    %v2929 = vshrl.u32 %v2928, 7
    %v2930 = vsub.s32 1, %v2929
    %v2931 = vrot.slane %v871, %v2930
    %v2932 = vlaneseq
    %v2933 = vshrl.u32 %v2932, 7
    %v2934 = vsub.s32 2, %v2933
    %v2935 = vrot.slane %v871, %v2934
    %v2936 = vlaneseq
    %v2937 = vshrl.u32 %v2936, 7
    %v2938 = vsub.s32 3, %v2937
    %v2939 = vrot.slane %v871, %v2938
    %v2940 = vlaneseq
    %v2941 = vshrl.u32 %v2940, 7
    %v2942 = vsub.s32 4, %v2941
    %v2943 = vrot.slane %v871, %v2942
    %v2944 = vlaneseq
    %v2945 = vshrl.u32 %v2944, 7
    %v2946 = vsub.s32 5, %v2945
    %v2947 = vrot.slane %v871, %v2946
    %v2948 = vlaneseq
    %v2949 = vshrl.u32 %v2948, 7
    %v2950 = vsub.s32 6, %v2949
    %v2951 = vrot.slane %v871, %v2950
    %v2952 = vlaneseq
    %v2953 = vshrl.u32 %v2952, 7
    %v2954 = vsub.s32 7, %v2953
    %v2955 = vrot.slane %v871, %v2954
    %v2956 = vlaneseq
    %v2957 = vshrl.u32 %v2956, 7
    %v2958 = vsub.s32 0, %v2957
    %v2959 = vrot.slane %v873, %v2958
    %v2960 = vlaneseq
    %v2961 = vshrl.u32 %v2960, 7
    %v2962 = vsub.s32 1, %v2961
    %v2963 = vrot.slane %v873, %v2962
    %v2964 = vlaneseq
    %v2965 = vshrl.u32 %v2964, 7
    %v2966 = vsub.s32 2, %v2965
    %v2967 = vrot.slane %v873, %v2966
    %v2968 = vlaneseq
    %v2969 = vshrl.u32 %v2968, 7
    %v2970 = vsub.s32 3, %v2969
    %v2971 = vrot.slane %v873, %v2970
    %v2972 = vlaneseq
    %v2973 = vshrl.u32 %v2972, 7
    %v2974 = vsub.s32 4, %v2973
    %v2975 = vrot.slane %v873, %v2974
    %v2976 = vlaneseq
    %v2977 = vshrl.u32 %v2976, 7
    %v2978 = vsub.s32 5, %v2977
    %v2979 = vrot.slane %v873, %v2978
    %v2980 = vlaneseq
    %v2981 = vshrl.u32 %v2980, 7
    %v2982 = vsub.s32 6, %v2981
    %v2983 = vrot.slane %v873, %v2982
    %v2984 = vlaneseq
    %v2985 = vshrl.u32 %v2984, 7
    %v2986 = vsub.s32 7, %v2985
    %v2987 = vrot.slane %v873, %v2986
    %v2988 = vlaneseq
    %v2989 = vshrl.u32 %v2988, 7
    %v2990 = vsub.s32 0, %v2989
    %v2991 = vrot.slane %v875, %v2990
    %v2992 = vlaneseq
    %v2993 = vshrl.u32 %v2992, 7
    %v2994 = vsub.s32 1, %v2993
    %v2995 = vrot.slane %v875, %v2994
    %v2996 = vlaneseq
    %v2997 = vshrl.u32 %v2996, 7
    %v2998 = vsub.s32 2, %v2997
    %v2999 = vrot.slane %v875, %v2998
    %v3000 = vlaneseq
    %v3001 = vshrl.u32 %v3000, 7
    %v3002 = vsub.s32 3, %v3001
    %v3003 = vrot.slane %v875, %v3002
    %v3004 = vlaneseq
    %v3005 = vshrl.u32 %v3004, 7
    %v3006 = vsub.s32 4, %v3005
    %v3007 = vrot.slane %v875, %v3006
    %v3008 = vlaneseq
    %v3009 = vshrl.u32 %v3008, 7
    %v3010 = vsub.s32 5, %v3009
    %v3011 = vrot.slane %v875, %v3010
    %v3012 = vlaneseq
    %v3013 = vshrl.u32 %v3012, 7
    %v3014 = vsub.s32 6, %v3013
    %v3015 = vrot.slane %v875, %v3014
    %v3016 = vlaneseq
    %v3017 = vshrl.u32 %v3016, 7
    %v3018 = vsub.s32 7, %v3017
    %v3019 = vrot.slane %v875, %v3018
    %v3020 = vlaneseq
    %v3021 = vshrl.u32 %v3020, 7
    %v3022 = vsub.s32 0, %v3021
    %v3023 = vrot.slane %v877, %v3022
    %v3024 = vlaneseq
    %v3025 = vshrl.u32 %v3024, 7
    %v3026 = vsub.s32 1, %v3025
    %v3027 = vrot.slane %v877, %v3026
    %v3028 = vlaneseq
    %v3029 = vshrl.u32 %v3028, 7
    %v3030 = vsub.s32 2, %v3029
    %v3031 = vrot.slane %v877, %v3030
    %v3032 = vlaneseq
    %v3033 = vshrl.u32 %v3032, 7
    %v3034 = vsub.s32 3, %v3033
    %v3035 = vrot.slane %v877, %v3034
    %v3036 = vlaneseq
    %v3037 = vshrl.u32 %v3036, 7
    %v3038 = vsub.s32 4, %v3037
    %v3039 = vrot.slane %v877, %v3038
    %v3040 = vlaneseq
    %v3041 = vshrl.u32 %v3040, 7
    %v3042 = vsub.s32 5, %v3041
    %v3043 = vrot.slane %v877, %v3042
    %v3044 = vlaneseq
    %v3045 = vshrl.u32 %v3044, 7
    %v3046 = vsub.s32 6, %v3045
    %v3047 = vrot.slane %v877, %v3046
    %v3048 = vlaneseq
    %v3049 = vshrl.u32 %v3048, 7
    %v3050 = vsub.s32 7, %v3049
    %v3051 = vrot.slane %v877, %v3050
    %v3052 = vlaneseq
    %v3053 = vshrl.u32 %v3052, 7
    %v3054 = vsub.s32 0, %v3053
    %v3055 = vrot.slane %v879, %v3054
    %v3056 = vlaneseq
    %v3057 = vshrl.u32 %v3056, 7
    %v3058 = vsub.s32 1, %v3057
    %v3059 = vrot.slane %v879, %v3058
    %v3060 = vlaneseq
    %v3061 = vshrl.u32 %v3060, 7
    %v3062 = vsub.s32 2, %v3061
    %v3063 = vrot.slane %v879, %v3062
    %v3064 = vlaneseq
    %v3065 = vshrl.u32 %v3064, 7
    %v3066 = vsub.s32 3, %v3065
    %v3067 = vrot.slane %v879, %v3066
    %v3068 = vlaneseq
    %v3069 = vshrl.u32 %v3068, 7
    %v3070 = vsub.s32 4, %v3069
    %v3071 = vrot.slane %v879, %v3070
    %v3072 = vlaneseq
    %v3073 = vshrl.u32 %v3072, 7
    %v3074 = vsub.s32 5, %v3073
    %v3075 = vrot.slane %v879, %v3074
    %v3076 = vlaneseq
    %v3077 = vshrl.u32 %v3076, 7
    %v3078 = vsub.s32 6, %v3077
    %v3079 = vrot.slane %v879, %v3078
    %v3080 = vlaneseq
    %v3081 = vshrl.u32 %v3080, 7
    %v3082 = vsub.s32 7, %v3081
    %v3083 = vrot.slane %v879, %v3082
    %v3084 = vlaneseq
    %v3085 = vshrl.u32 %v3084, 7
    %v3086 = vsub.s32 0, %v3085
    %v3087 = vrot.slane %v881, %v3086
    %v3088 = vlaneseq
    %v3089 = vshrl.u32 %v3088, 7
    %v3090 = vsub.s32 1, %v3089
    %v3091 = vrot.slane %v881, %v3090
    %v3092 = vlaneseq
    %v3093 = vshrl.u32 %v3092, 7
    %v3094 = vsub.s32 2, %v3093
    %v3095 = vrot.slane %v881, %v3094
    %v3096 = vlaneseq
    %v3097 = vshrl.u32 %v3096, 7
    %v3098 = vsub.s32 3, %v3097
    %v3099 = vrot.slane %v881, %v3098
    %v3100 = vlaneseq
    %v3101 = vshrl.u32 %v3100, 7
    %v3102 = vsub.s32 4, %v3101
    %v3103 = vrot.slane %v881, %v3102
    %v3104 = vlaneseq
    %v3105 = vshrl.u32 %v3104, 7
    %v3106 = vsub.s32 5, %v3105
    %v3107 = vrot.slane %v881, %v3106
    %v3108 = vlaneseq
    %v3109 = vshrl.u32 %v3108, 7
    %v3110 = vsub.s32 6, %v3109
    %v3111 = vrot.slane %v881, %v3110
    %v3112 = vlaneseq
    %v3113 = vshrl.u32 %v3112, 7
    %v3114 = vsub.s32 7, %v3113
    %v3115 = vrot.slane %v881, %v3114
    %v3116 = vlaneseq
    %v3117 = vshrl.u32 %v3116, 7
    %v3118 = vsub.s32 0, %v3117
    %v3119 = vrot.slane %v883, %v3118
    %v3120 = vlaneseq
    %v3121 = vshrl.u32 %v3120, 7
    %v3122 = vsub.s32 1, %v3121
    %v3123 = vrot.slane %v883, %v3122
    %v3124 = vlaneseq
    %v3125 = vshrl.u32 %v3124, 7
    %v3126 = vsub.s32 2, %v3125
    %v3127 = vrot.slane %v883, %v3126
    %v3128 = vlaneseq
    %v3129 = vshrl.u32 %v3128, 7
    %v3130 = vsub.s32 3, %v3129
    %v3131 = vrot.slane %v883, %v3130
    %v3132 = vlaneseq
    %v3133 = vshrl.u32 %v3132, 7
    %v3134 = vsub.s32 4, %v3133
    %v3135 = vrot.slane %v883, %v3134
    %v3136 = vlaneseq
    %v3137 = vshrl.u32 %v3136, 7
    %v3138 = vsub.s32 5, %v3137
    %v3139 = vrot.slane %v883, %v3138
    %v3140 = vlaneseq
    %v3141 = vshrl.u32 %v3140, 7
    %v3142 = vsub.s32 6, %v3141
    %v3143 = vrot.slane %v883, %v3142
    %v3144 = vlaneseq
    %v3145 = vshrl.u32 %v3144, 7
    %v3146 = vsub.s32 7, %v3145
    %v3147 = vrot.slane %v883, %v3146
    %v3148 = vlaneseq
    %v3149 = vshrl.u32 %v3148, 7
    %v3150 = vsub.s32 0, %v3149
    %v3151 = vrot.slane %v885, %v3150
    %v3152 = vlaneseq
    %v3153 = vshrl.u32 %v3152, 7
    %v3154 = vsub.s32 1, %v3153
    %v3155 = vrot.slane %v885, %v3154
    %v3156 = vlaneseq
    %v3157 = vshrl.u32 %v3156, 7
    %v3158 = vsub.s32 2, %v3157
    %v3159 = vrot.slane %v885, %v3158
    %v3160 = vlaneseq
    %v3161 = vshrl.u32 %v3160, 7
    %v3162 = vsub.s32 3, %v3161
    %v3163 = vrot.slane %v885, %v3162
    %v3164 = vlaneseq
    %v3165 = vshrl.u32 %v3164, 7
    %v3166 = vsub.s32 4, %v3165
    %v3167 = vrot.slane %v885, %v3166
    %v3168 = vlaneseq
    %v3169 = vshrl.u32 %v3168, 7
    %v3170 = vsub.s32 5, %v3169
    %v3171 = vrot.slane %v885, %v3170
    %v3172 = vlaneseq
    %v3173 = vshrl.u32 %v3172, 7
    %v3174 = vsub.s32 6, %v3173
    %v3175 = vrot.slane %v885, %v3174
    %v3176 = vlaneseq
    %v3177 = vshrl.u32 %v3176, 7
    %v3178 = vsub.s32 7, %v3177
    %v3179 = vrot.slane %v885, %v3178
    %v3180 = vlaneseq
    %v3181 = vshrl.u32 %v3180, 7
    %v3182 = vsub.s32 0, %v3181
    %v3183 = vrot.slane %v887, %v3182
    %v3184 = vlaneseq
    %v3185 = vshrl.u32 %v3184, 7
    %v3186 = vsub.s32 1, %v3185
    %v3187 = vrot.slane %v887, %v3186
    %v3188 = vlaneseq
    %v3189 = vshrl.u32 %v3188, 7
    %v3190 = vsub.s32 2, %v3189
    %v3191 = vrot.slane %v887, %v3190
    %v3192 = vlaneseq
    %v3193 = vshrl.u32 %v3192, 7
    %v3194 = vsub.s32 3, %v3193
    %v3195 = vrot.slane %v887, %v3194
    %v3196 = vlaneseq
    %v3197 = vshrl.u32 %v3196, 7
    %v3198 = vsub.s32 4, %v3197
    %v3199 = vrot.slane %v887, %v3198
    %v3200 = vlaneseq
    %v3201 = vshrl.u32 %v3200, 7
    %v3202 = vsub.s32 5, %v3201
    %v3203 = vrot.slane %v887, %v3202
    %v3204 = vlaneseq
    %v3205 = vshrl.u32 %v3204, 7
    %v3206 = vsub.s32 6, %v3205
    %v3207 = vrot.slane %v887, %v3206
    %v3208 = vlaneseq
    %v3209 = vshrl.u32 %v3208, 7
    %v3210 = vsub.s32 7, %v3209
    %v3211 = vrot.slane %v887, %v3210
    %v3212 = vlaneseq
    %v3213 = vshrl.u32 %v3212, 7
    %v3214 = vsub.s32 0, %v3213
    %v3215 = vrot.slane %v889, %v3214
    %v3216 = vlaneseq
    %v3217 = vshrl.u32 %v3216, 7
    %v3218 = vsub.s32 1, %v3217
    %v3219 = vrot.slane %v889, %v3218
    %v3220 = vlaneseq
    %v3221 = vshrl.u32 %v3220, 7
    %v3222 = vsub.s32 2, %v3221
    %v3223 = vrot.slane %v889, %v3222
    %v3224 = vlaneseq
    %v3225 = vshrl.u32 %v3224, 7
    %v3226 = vsub.s32 3, %v3225
    %v3227 = vrot.slane %v889, %v3226
    %v3228 = vlaneseq
    %v3229 = vshrl.u32 %v3228, 7
    %v3230 = vsub.s32 4, %v3229
    %v3231 = vrot.slane %v889, %v3230
    %v3232 = vlaneseq
    %v3233 = vshrl.u32 %v3232, 7
    %v3234 = vsub.s32 5, %v3233
    %v3235 = vrot.slane %v889, %v3234
    %v3236 = vlaneseq
    %v3237 = vshrl.u32 %v3236, 7
    %v3238 = vsub.s32 6, %v3237
    %v3239 = vrot.slane %v889, %v3238
    %v3240 = vlaneseq
    %v3241 = vshrl.u32 %v3240, 7
    %v3242 = vsub.s32 7, %v3241
    %v3243 = vrot.slane %v889, %v3242
    %v3244 = vlaneseq
    %v3245 = vshrl.u32 %v3244, 7
    %v3246 = vsub.s32 0, %v3245
    %v3247 = vrot.slane %v891, %v3246
    %v3248 = vlaneseq
    %v3249 = vshrl.u32 %v3248, 7
    %v3250 = vsub.s32 1, %v3249
    %v3251 = vrot.slane %v891, %v3250
    %v3252 = vlaneseq
    %v3253 = vshrl.u32 %v3252, 7
    %v3254 = vsub.s32 2, %v3253
    %v3255 = vrot.slane %v891, %v3254
    %v3256 = vlaneseq
    %v3257 = vshrl.u32 %v3256, 7
    %v3258 = vsub.s32 3, %v3257
    %v3259 = vrot.slane %v891, %v3258
    %v3260 = vlaneseq
    %v3261 = vshrl.u32 %v3260, 7
    %v3262 = vsub.s32 4, %v3261
    %v3263 = vrot.slane %v891, %v3262
    %v3264 = vlaneseq
    %v3265 = vshrl.u32 %v3264, 7
    %v3266 = vsub.s32 5, %v3265
    %v3267 = vrot.slane %v891, %v3266
    %v3268 = vlaneseq
    %v3269 = vshrl.u32 %v3268, 7
    %v3270 = vsub.s32 6, %v3269
    %v3271 = vrot.slane %v891, %v3270
    %v3272 = vlaneseq
    %v3273 = vshrl.u32 %v3272, 7
    %v3274 = vsub.s32 7, %v3273
    %v3275 = vrot.slane %v891, %v3274
    %v3276 = vlaneseq
    %v3277 = vshrl.u32 %v3276, 7
    %v3278 = vsub.s32 0, %v3277
    %v3279 = vrot.slane %v893, %v3278
    %v3280 = vlaneseq
    %v3281 = vshrl.u32 %v3280, 7
    %v3282 = vsub.s32 1, %v3281
    %v3283 = vrot.slane %v893, %v3282
    %v3284 = vlaneseq
    %v3285 = vshrl.u32 %v3284, 7
    %v3286 = vsub.s32 2, %v3285
    %v3287 = vrot.slane %v893, %v3286
    %v3288 = vlaneseq
    %v3289 = vshrl.u32 %v3288, 7
    %v3290 = vsub.s32 3, %v3289
    %v3291 = vrot.slane %v893, %v3290
    %v3292 = vlaneseq
    %v3293 = vshrl.u32 %v3292, 7
    %v3294 = vsub.s32 4, %v3293
    %v3295 = vrot.slane %v893, %v3294
    %v3296 = vlaneseq
    %v3297 = vshrl.u32 %v3296, 7
    %v3298 = vsub.s32 5, %v3297
    %v3299 = vrot.slane %v893, %v3298
    %v3300 = vlaneseq
    %v3301 = vshrl.u32 %v3300, 7
    %v3302 = vsub.s32 6, %v3301
    %v3303 = vrot.slane %v893, %v3302
    %v3304 = vlaneseq
    %v3305 = vshrl.u32 %v3304, 7
    %v3306 = vsub.s32 7, %v3305
    %v3307 = vrot.slane %v893, %v3306
    %v3308 = vlaneseq
    %v3309 = vshrl.u32 %v3308, 7
    %v3310 = vsub.s32 0, %v3309
    %v3311 = vrot.slane %v895, %v3310
    %v3312 = vlaneseq
    %v3313 = vshrl.u32 %v3312, 7
    %v3314 = vsub.s32 1, %v3313
    %v3315 = vrot.slane %v895, %v3314
    %v3316 = vlaneseq
    %v3317 = vshrl.u32 %v3316, 7
    %v3318 = vsub.s32 2, %v3317
    %v3319 = vrot.slane %v895, %v3318
    %v3320 = vlaneseq
    %v3321 = vshrl.u32 %v3320, 7
    %v3322 = vsub.s32 3, %v3321
    %v3323 = vrot.slane %v895, %v3322
    %v3324 = vlaneseq
    %v3325 = vshrl.u32 %v3324, 7
    %v3326 = vsub.s32 4, %v3325
    %v3327 = vrot.slane %v895, %v3326
    %v3328 = vlaneseq
    %v3329 = vshrl.u32 %v3328, 7
    %v3330 = vsub.s32 5, %v3329
    %v3331 = vrot.slane %v895, %v3330
    %v3332 = vlaneseq
    %v3333 = vshrl.u32 %v3332, 7
    %v3334 = vsub.s32 6, %v3333
    %v3335 = vrot.slane %v895, %v3334
    %v3336 = vlaneseq
    %v3337 = vshrl.u32 %v3336, 7
    %v3338 = vsub.s32 7, %v3337
    %v3339 = vrot.slane %v895, %v3338
    %v3340 = vlaneseq
    %v3341 = vshrl.u32 %v3340, 7
    %v3342 = vsub.s32 0, %v3341
    %v3343 = vrot.slane %v897, %v3342
    %v3344 = vlaneseq
    %v3345 = vshrl.u32 %v3344, 7
    %v3346 = vsub.s32 1, %v3345
    %v3347 = vrot.slane %v897, %v3346
    %v3348 = vlaneseq
    %v3349 = vshrl.u32 %v3348, 7
    %v3350 = vsub.s32 2, %v3349
    %v3351 = vrot.slane %v897, %v3350
    %v3352 = vlaneseq
    %v3353 = vshrl.u32 %v3352, 7
    %v3354 = vsub.s32 3, %v3353
    %v3355 = vrot.slane %v897, %v3354
    %v3356 = vlaneseq
    %v3357 = vshrl.u32 %v3356, 7
    %v3358 = vsub.s32 4, %v3357
    %v3359 = vrot.slane %v897, %v3358
    %v3360 = vlaneseq
    %v3361 = vshrl.u32 %v3360, 7
    %v3362 = vsub.s32 5, %v3361
    %v3363 = vrot.slane %v897, %v3362
    %v3364 = vlaneseq
    %v3365 = vshrl.u32 %v3364, 7
    %v3366 = vsub.s32 6, %v3365
    %v3367 = vrot.slane %v897, %v3366
    %v3368 = vlaneseq
    %v3369 = vshrl.u32 %v3368, 7
    %v3370 = vsub.s32 7, %v3369
    %v3371 = vrot.slane %v897, %v3370
    %v3372 = vlaneseq
    %v3373 = vshrl.u32 %v3372, 7
    %v3374 = vsub.s32 0, %v3373
    %v3375 = vrot.slane %v899, %v3374
    %v3376 = vlaneseq
    %v3377 = vshrl.u32 %v3376, 7
    %v3378 = vsub.s32 1, %v3377
    %v3379 = vrot.slane %v899, %v3378
    %v3380 = vlaneseq
    %v3381 = vshrl.u32 %v3380, 7
    %v3382 = vsub.s32 2, %v3381
    %v3383 = vrot.slane %v899, %v3382
    %v3384 = vlaneseq
    %v3385 = vshrl.u32 %v3384, 7
    %v3386 = vsub.s32 3, %v3385
    %v3387 = vrot.slane %v899, %v3386
    %v3388 = vlaneseq
    %v3389 = vshrl.u32 %v3388, 7
    %v3390 = vsub.s32 4, %v3389
    %v3391 = vrot.slane %v899, %v3390
    %v3392 = vlaneseq
    %v3393 = vshrl.u32 %v3392, 7
    %v3394 = vsub.s32 5, %v3393
    %v3395 = vrot.slane %v899, %v3394
    %v3396 = vlaneseq
    %v3397 = vshrl.u32 %v3396, 7
    %v3398 = vsub.s32 6, %v3397
    %v3399 = vrot.slane %v899, %v3398
    %v3400 = vlaneseq
    %v3401 = vshrl.u32 %v3400, 7
    %v3402 = vsub.s32 7, %v3401
    %v3403 = vrot.slane %v899, %v3402
    %v3404 = vlaneseq
    %v3405 = vshrl.u32 %v3404, 7
    %v3406 = vsub.s32 0, %v3405
    %v3407 = vrot.slane %v901, %v3406
    %v3408 = vlaneseq
    %v3409 = vshrl.u32 %v3408, 7
    %v3410 = vsub.s32 1, %v3409
    %v3411 = vrot.slane %v901, %v3410
    %v3412 = vlaneseq
    %v3413 = vshrl.u32 %v3412, 7
    %v3414 = vsub.s32 2, %v3413
    %v3415 = vrot.slane %v901, %v3414
    %v3416 = vlaneseq
    %v3417 = vshrl.u32 %v3416, 7
    %v3418 = vsub.s32 3, %v3417
    %v3419 = vrot.slane %v901, %v3418
    %v3420 = vlaneseq
    %v3421 = vshrl.u32 %v3420, 7
    %v3422 = vsub.s32 4, %v3421
    %v3423 = vrot.slane %v901, %v3422
    %v3424 = vlaneseq
    %v3425 = vshrl.u32 %v3424, 7
    %v3426 = vsub.s32 5, %v3425
    %v3427 = vrot.slane %v901, %v3426
    %v3428 = vlaneseq
    %v3429 = vshrl.u32 %v3428, 7
    %v3430 = vsub.s32 6, %v3429
    %v3431 = vrot.slane %v901, %v3430
    %v3432 = vlaneseq
    %v3433 = vshrl.u32 %v3432, 7
    %v3434 = vsub.s32 7, %v3433
    %v3435 = vrot.slane %v901, %v3434
    %v3436 = vlaneseq
    %v3437 = vshrl.u32 %v3436, 7
    %v3438 = vsub.s32 0, %v3437
    %v3439 = vrot.slane %v903, %v3438
    %v3440 = vlaneseq
    %v3441 = vshrl.u32 %v3440, 7
    %v3442 = vsub.s32 1, %v3441
    %v3443 = vrot.slane %v903, %v3442
    %v3444 = vlaneseq
    %v3445 = vshrl.u32 %v3444, 7
    %v3446 = vsub.s32 2, %v3445
    %v3447 = vrot.slane %v903, %v3446
    %v3448 = vlaneseq
    %v3449 = vshrl.u32 %v3448, 7
    %v3450 = vsub.s32 3, %v3449
    %v3451 = vrot.slane %v903, %v3450
    %v3452 = vlaneseq
    %v3453 = vshrl.u32 %v3452, 7
    %v3454 = vsub.s32 4, %v3453
    %v3455 = vrot.slane %v903, %v3454
    %v3456 = vlaneseq
    %v3457 = vshrl.u32 %v3456, 7
    %v3458 = vsub.s32 5, %v3457
    %v3459 = vrot.slane %v903, %v3458
    %v3460 = vlaneseq
    %v3461 = vshrl.u32 %v3460, 7
    %v3462 = vsub.s32 6, %v3461
    %v3463 = vrot.slane %v903, %v3462
    %v3464 = vlaneseq
    %v3465 = vshrl.u32 %v3464, 7
    %v3466 = vsub.s32 7, %v3465
    %v3467 = vrot.slane %v903, %v3466
    %v3468 = vlaneseq
    %v3469 = vshrl.u32 %v3468, 7
    %v3470 = vsub.s32 0, %v3469
    %v3471 = vrot.slane %v905, %v3470
    %v3472 = vlaneseq
    %v3473 = vshrl.u32 %v3472, 7
    %v3474 = vsub.s32 1, %v3473
    %v3475 = vrot.slane %v905, %v3474
    %v3476 = vlaneseq
    %v3477 = vshrl.u32 %v3476, 7
    %v3478 = vsub.s32 2, %v3477
    %v3479 = vrot.slane %v905, %v3478
    %v3480 = vlaneseq
    %v3481 = vshrl.u32 %v3480, 7
    %v3482 = vsub.s32 3, %v3481
    %v3483 = vrot.slane %v905, %v3482
    %v3484 = vlaneseq
    %v3485 = vshrl.u32 %v3484, 7
    %v3486 = vsub.s32 4, %v3485
    %v3487 = vrot.slane %v905, %v3486
    %v3488 = vlaneseq
    %v3489 = vshrl.u32 %v3488, 7
    %v3490 = vsub.s32 5, %v3489
    %v3491 = vrot.slane %v905, %v3490
    %v3492 = vlaneseq
    %v3493 = vshrl.u32 %v3492, 7
    %v3494 = vsub.s32 6, %v3493
    %v3495 = vrot.slane %v905, %v3494
    %v3496 = vlaneseq
    %v3497 = vshrl.u32 %v3496, 7
    %v3498 = vsub.s32 7, %v3497
    %v3499 = vrot.slane %v905, %v3498
    %v3500 = vlaneseq
    %v3501 = vshrl.u32 %v3500, 7
    %v3502 = vsub.s32 0, %v3501
    %v3503 = vrot.slane %v907, %v3502
    %v3504 = vlaneseq
    %v3505 = vshrl.u32 %v3504, 7
    %v3506 = vsub.s32 1, %v3505
    %v3507 = vrot.slane %v907, %v3506
    %v3508 = vlaneseq
    %v3509 = vshrl.u32 %v3508, 7
    %v3510 = vsub.s32 2, %v3509
    %v3511 = vrot.slane %v907, %v3510
    %v3512 = vlaneseq
    %v3513 = vshrl.u32 %v3512, 7
    %v3514 = vsub.s32 3, %v3513
    %v3515 = vrot.slane %v907, %v3514
    %v3516 = vlaneseq
    %v3517 = vshrl.u32 %v3516, 7
    %v3518 = vsub.s32 4, %v3517
    %v3519 = vrot.slane %v907, %v3518
    %v3520 = vlaneseq
    %v3521 = vshrl.u32 %v3520, 7
    %v3522 = vsub.s32 5, %v3521
    %v3523 = vrot.slane %v907, %v3522
    %v3524 = vlaneseq
    %v3525 = vshrl.u32 %v3524, 7
    %v3526 = vsub.s32 6, %v3525
    %v3527 = vrot.slane %v907, %v3526
    %v3528 = vlaneseq
    %v3529 = vshrl.u32 %v3528, 7
    %v3530 = vsub.s32 7, %v3529
    %v3531 = vrot.slane %v907, %v3530
    %v3532 = vlaneseq
    %v3533 = vshrl.u32 %v3532, 7
    %v3534 = vsub.s32 0, %v3533
    %v3535 = vrot.slane %v909, %v3534
    %v3536 = vlaneseq
    %v3537 = vshrl.u32 %v3536, 7
    %v3538 = vsub.s32 1, %v3537
    %v3539 = vrot.slane %v909, %v3538
    %v3540 = vlaneseq
    %v3541 = vshrl.u32 %v3540, 7
    %v3542 = vsub.s32 2, %v3541
    %v3543 = vrot.slane %v909, %v3542
    %v3544 = vlaneseq
    %v3545 = vshrl.u32 %v3544, 7
    %v3546 = vsub.s32 3, %v3545
    %v3547 = vrot.slane %v909, %v3546
    %v3548 = vlaneseq
    %v3549 = vshrl.u32 %v3548, 7
    %v3550 = vsub.s32 4, %v3549
    %v3551 = vrot.slane %v909, %v3550
    %v3552 = vlaneseq
    %v3553 = vshrl.u32 %v3552, 7
    %v3554 = vsub.s32 5, %v3553
    %v3555 = vrot.slane %v909, %v3554
    %v3556 = vlaneseq
    %v3557 = vshrl.u32 %v3556, 7
    %v3558 = vsub.s32 6, %v3557
    %v3559 = vrot.slane %v909, %v3558
    %v3560 = vlaneseq
    %v3561 = vshrl.u32 %v3560, 7
    %v3562 = vsub.s32 7, %v3561
    %v3563 = vrot.slane %v909, %v3562
    %v3564 = vlaneseq
    %v3565 = vshrl.u32 %v3564, 7
    %v3566 = vsub.s32 0, %v3565
    %v3567 = vrot.slane %v911, %v3566
    %v3568 = vlaneseq
    %v3569 = vshrl.u32 %v3568, 7
    %v3570 = vsub.s32 1, %v3569
    %v3571 = vrot.slane %v911, %v3570
    %v3572 = vlaneseq
    %v3573 = vshrl.u32 %v3572, 7
    %v3574 = vsub.s32 2, %v3573
    %v3575 = vrot.slane %v911, %v3574
    %v3576 = vlaneseq
    %v3577 = vshrl.u32 %v3576, 7
    %v3578 = vsub.s32 3, %v3577
    %v3579 = vrot.slane %v911, %v3578
    %v3580 = vlaneseq
    %v3581 = vshrl.u32 %v3580, 7
    %v3582 = vsub.s32 4, %v3581
    %v3583 = vrot.slane %v911, %v3582
    %v3584 = vlaneseq
    %v3585 = vshrl.u32 %v3584, 7
    %v3586 = vsub.s32 5, %v3585
    %v3587 = vrot.slane %v911, %v3586
    %v3588 = vlaneseq
    %v3589 = vshrl.u32 %v3588, 7
    %v3590 = vsub.s32 6, %v3589
    %v3591 = vrot.slane %v911, %v3590
    %v3592 = vlaneseq
    %v3593 = vshrl.u32 %v3592, 7
    %v3594 = vsub.s32 7, %v3593
    %v3595 = vrot.slane %v911, %v3594
    %v3596 = vlaneseq
    %v3597 = vshrl.u32 %v3596, 7
    %v3598 = vsub.s32 0, %v3597
    %v3599 = vrot.slane %v913, %v3598
    %v3600 = vlaneseq
    %v3601 = vshrl.u32 %v3600, 7
    %v3602 = vsub.s32 1, %v3601
    %v3603 = vrot.slane %v913, %v3602
    %v3604 = vlaneseq
    %v3605 = vshrl.u32 %v3604, 7
    %v3606 = vsub.s32 2, %v3605
    %v3607 = vrot.slane %v913, %v3606
    %v3608 = vlaneseq
    %v3609 = vshrl.u32 %v3608, 7
    %v3610 = vsub.s32 3, %v3609
    %v3611 = vrot.slane %v913, %v3610
    %v3612 = vlaneseq
    %v3613 = vshrl.u32 %v3612, 7
    %v3614 = vsub.s32 4, %v3613
    %v3615 = vrot.slane %v913, %v3614
    %v3616 = vlaneseq
    %v3617 = vshrl.u32 %v3616, 7
    %v3618 = vsub.s32 5, %v3617
    %v3619 = vrot.slane %v913, %v3618
    %v3620 = vlaneseq
    %v3621 = vshrl.u32 %v3620, 7
    %v3622 = vsub.s32 6, %v3621
    %v3623 = vrot.slane %v913, %v3622
    %v3624 = vlaneseq
    %v3625 = vshrl.u32 %v3624, 7
    %v3626 = vsub.s32 7, %v3625
    %v3627 = vrot.slane %v913, %v3626
    %v3628 = vlaneseq
    %v3629 = vshrl.u32 %v3628, 7
    %v3630 = vsub.s32 0, %v3629
    %v3631 = vrot.slane %v915, %v3630
    %v3632 = vlaneseq
    %v3633 = vshrl.u32 %v3632, 7
    %v3634 = vsub.s32 1, %v3633
    %v3635 = vrot.slane %v915, %v3634
    %v3636 = vlaneseq
    %v3637 = vshrl.u32 %v3636, 7
    %v3638 = vsub.s32 2, %v3637
    %v3639 = vrot.slane %v915, %v3638
    %v3640 = vlaneseq
    %v3641 = vshrl.u32 %v3640, 7
    %v3642 = vsub.s32 3, %v3641
    %v3643 = vrot.slane %v915, %v3642
    %v3644 = vlaneseq
    %v3645 = vshrl.u32 %v3644, 7
    %v3646 = vsub.s32 4, %v3645
    %v3647 = vrot.slane %v915, %v3646
    %v3648 = vlaneseq
    %v3649 = vshrl.u32 %v3648, 7
    %v3650 = vsub.s32 5, %v3649
    %v3651 = vrot.slane %v915, %v3650
    %v3652 = vlaneseq
    %v3653 = vshrl.u32 %v3652, 7
    %v3654 = vsub.s32 6, %v3653
    %v3655 = vrot.slane %v915, %v3654
    %v3656 = vlaneseq
    %v3657 = vshrl.u32 %v3656, 7
    %v3658 = vsub.s32 7, %v3657
    %v3659 = vrot.slane %v915, %v3658
    %v3660 = vlaneseq
    %v3661 = vshrl.u32 %v3660, 7
    %v3662 = vsub.s32 0, %v3661
    %v3663 = vrot.slane %v917, %v3662
    %v3664 = vlaneseq
    %v3665 = vshrl.u32 %v3664, 7
    %v3666 = vsub.s32 1, %v3665
    %v3667 = vrot.slane %v917, %v3666
    %v3668 = vlaneseq
    %v3669 = vshrl.u32 %v3668, 7
    %v3670 = vsub.s32 2, %v3669
    %v3671 = vrot.slane %v917, %v3670
    %v3672 = vlaneseq
    %v3673 = vshrl.u32 %v3672, 7
    %v3674 = vsub.s32 3, %v3673
    %v3675 = vrot.slane %v917, %v3674
    %v3676 = vlaneseq
    %v3677 = vshrl.u32 %v3676, 7
    %v3678 = vsub.s32 4, %v3677
    %v3679 = vrot.slane %v917, %v3678
    %v3680 = vlaneseq
    %v3681 = vshrl.u32 %v3680, 7
    %v3682 = vsub.s32 5, %v3681
    %v3683 = vrot.slane %v917, %v3682
    %v3684 = vlaneseq
    %v3685 = vshrl.u32 %v3684, 7
    %v3686 = vsub.s32 6, %v3685
    %v3687 = vrot.slane %v917, %v3686
    %v3688 = vlaneseq
    %v3689 = vshrl.u32 %v3688, 7
    %v3690 = vsub.s32 7, %v3689
    %v3691 = vrot.slane %v917, %v3690
    %v3692 = vlaneseq
    %v3693 = vshrl.u32 %v3692, 7
    %v3694 = vsub.s32 0, %v3693
    %v3695 = vrot.slane %v919, %v3694
    %v3696 = vlaneseq
    %v3697 = vshrl.u32 %v3696, 7
    %v3698 = vsub.s32 1, %v3697
    %v3699 = vrot.slane %v919, %v3698
    %v3700 = vlaneseq
    %v3701 = vshrl.u32 %v3700, 7
    %v3702 = vsub.s32 2, %v3701
    %v3703 = vrot.slane %v919, %v3702
    %v3704 = vlaneseq
    %v3705 = vshrl.u32 %v3704, 7
    %v3706 = vsub.s32 3, %v3705
    %v3707 = vrot.slane %v919, %v3706
    %v3708 = vlaneseq
    %v3709 = vshrl.u32 %v3708, 7
    %v3710 = vsub.s32 4, %v3709
    %v3711 = vrot.slane %v919, %v3710
    %v3712 = vlaneseq
    %v3713 = vshrl.u32 %v3712, 7
    %v3714 = vsub.s32 5, %v3713
    %v3715 = vrot.slane %v919, %v3714
    %v3716 = vlaneseq
    %v3717 = vshrl.u32 %v3716, 7
    %v3718 = vsub.s32 6, %v3717
    %v3719 = vrot.slane %v919, %v3718
    %v3720 = vlaneseq
    %v3721 = vshrl.u32 %v3720, 7
    %v3722 = vsub.s32 7, %v3721
    %v3723 = vrot.slane %v919, %v3722
    %v3724 = vlaneseq
    %v3725 = vshrl.u32 %v3724, 7
    %v3726 = vsub.s32 0, %v3725
    %v3727 = vrot.slane %v921, %v3726
    %v3728 = vlaneseq
    %v3729 = vshrl.u32 %v3728, 7
    %v3730 = vsub.s32 1, %v3729
    %v3731 = vrot.slane %v921, %v3730
    %v3732 = vlaneseq
    %v3733 = vshrl.u32 %v3732, 7
    %v3734 = vsub.s32 2, %v3733
    %v3735 = vrot.slane %v921, %v3734
    %v3736 = vlaneseq
    %v3737 = vshrl.u32 %v3736, 7
    %v3738 = vsub.s32 3, %v3737
    %v3739 = vrot.slane %v921, %v3738
    %v3740 = vlaneseq
    %v3741 = vshrl.u32 %v3740, 7
    %v3742 = vsub.s32 4, %v3741
    %v3743 = vrot.slane %v921, %v3742
    %v3744 = vlaneseq
    %v3745 = vshrl.u32 %v3744, 7
    %v3746 = vsub.s32 5, %v3745
    %v3747 = vrot.slane %v921, %v3746
    %v3748 = vlaneseq
    %v3749 = vshrl.u32 %v3748, 7
    %v3750 = vsub.s32 6, %v3749
    %v3751 = vrot.slane %v921, %v3750
    %v3752 = vlaneseq
    %v3753 = vshrl.u32 %v3752, 7
    %v3754 = vsub.s32 7, %v3753
    %v3755 = vrot.slane %v921, %v3754
    %v3756 = vlaneseq
    %v3757 = vshrl.u32 %v3756, 7
    %v3758 = vsub.s32 0, %v3757
    %v3759 = vrot.slane %v923, %v3758
    %v3760 = vlaneseq
    %v3761 = vshrl.u32 %v3760, 7
    %v3762 = vsub.s32 1, %v3761
    %v3763 = vrot.slane %v923, %v3762
    %v3764 = vlaneseq
    %v3765 = vshrl.u32 %v3764, 7
    %v3766 = vsub.s32 2, %v3765
    %v3767 = vrot.slane %v923, %v3766
    %v3768 = vlaneseq
    %v3769 = vshrl.u32 %v3768, 7
    %v3770 = vsub.s32 3, %v3769
    %v3771 = vrot.slane %v923, %v3770
    %v3772 = vlaneseq
    %v3773 = vshrl.u32 %v3772, 7
    %v3774 = vsub.s32 4, %v3773
    %v3775 = vrot.slane %v923, %v3774
    %v3776 = vlaneseq
    %v3777 = vshrl.u32 %v3776, 7
    %v3778 = vsub.s32 5, %v3777
    %v3779 = vrot.slane %v923, %v3778
    %v3780 = vlaneseq
    %v3781 = vshrl.u32 %v3780, 7
    %v3782 = vsub.s32 6, %v3781
    %v3783 = vrot.slane %v923, %v3782
    %v3784 = vlaneseq
    %v3785 = vshrl.u32 %v3784, 7
    %v3786 = vsub.s32 7, %v3785
    %v3787 = vrot.slane %v923, %v3786
    %v3788 = vlaneseq
    %v3789 = vshrl.u32 %v3788, 7
    %v3790 = vsub.s32 0, %v3789
    %v3791 = vrot.slane %v925, %v3790
    %v3792 = vlaneseq
    %v3793 = vshrl.u32 %v3792, 7
    %v3794 = vsub.s32 1, %v3793
    %v3795 = vrot.slane %v925, %v3794
    %v3796 = vlaneseq
    %v3797 = vshrl.u32 %v3796, 7
    %v3798 = vsub.s32 2, %v3797
    %v3799 = vrot.slane %v925, %v3798
    %v3800 = vlaneseq
    %v3801 = vshrl.u32 %v3800, 7
    %v3802 = vsub.s32 3, %v3801
    %v3803 = vrot.slane %v925, %v3802
    %v3804 = vlaneseq
    %v3805 = vshrl.u32 %v3804, 7
    %v3806 = vsub.s32 4, %v3805
    %v3807 = vrot.slane %v925, %v3806
    %v3808 = vlaneseq
    %v3809 = vshrl.u32 %v3808, 7
    %v3810 = vsub.s32 5, %v3809
    %v3811 = vrot.slane %v925, %v3810
    %v3812 = vlaneseq
    %v3813 = vshrl.u32 %v3812, 7
    %v3814 = vsub.s32 6, %v3813
    %v3815 = vrot.slane %v925, %v3814
    %v3816 = vlaneseq
    %v3817 = vshrl.u32 %v3816, 7
    %v3818 = vsub.s32 7, %v3817
    %v3819 = vrot.slane %v925, %v3818
    %v3820 = vlaneseq
    %v3821 = vshrl.u32 %v3820, 7
    %v3822 = vsub.s32 0, %v3821
    %v3823 = vrot.slane %v927, %v3822
    %v3824 = vlaneseq
    %v3825 = vshrl.u32 %v3824, 7
    %v3826 = vsub.s32 1, %v3825
    %v3827 = vrot.slane %v927, %v3826
    %v3828 = vlaneseq
    %v3829 = vshrl.u32 %v3828, 7
    %v3830 = vsub.s32 2, %v3829
    %v3831 = vrot.slane %v927, %v3830
    %v3832 = vlaneseq
    %v3833 = vshrl.u32 %v3832, 7
    %v3834 = vsub.s32 3, %v3833
    %v3835 = vrot.slane %v927, %v3834
    %v3836 = vlaneseq
    %v3837 = vshrl.u32 %v3836, 7
    %v3838 = vsub.s32 4, %v3837
    %v3839 = vrot.slane %v927, %v3838
    %v3840 = vlaneseq
    %v3841 = vshrl.u32 %v3840, 7
    %v3842 = vsub.s32 5, %v3841
    %v3843 = vrot.slane %v927, %v3842
    %v3844 = vlaneseq
    %v3845 = vshrl.u32 %v3844, 7
    %v3846 = vsub.s32 6, %v3845
    %v3847 = vrot.slane %v927, %v3846
    %v3848 = vlaneseq
    %v3849 = vshrl.u32 %v3848, 7
    %v3850 = vsub.s32 7, %v3849
    %v3851 = vrot.slane %v927, %v3850
    %v3852 = vlaneseq
    %v3853 = vshrl.u32 %v3852, 7
    %v3854 = vsub.s32 0, %v3853
    %v3855 = vrot.slane %v929, %v3854
    %v3856 = vlaneseq
    %v3857 = vshrl.u32 %v3856, 7
    %v3858 = vsub.s32 1, %v3857
    %v3859 = vrot.slane %v929, %v3858
    %v3860 = vlaneseq
    %v3861 = vshrl.u32 %v3860, 7
    %v3862 = vsub.s32 2, %v3861
    %v3863 = vrot.slane %v929, %v3862
    %v3864 = vlaneseq
    %v3865 = vshrl.u32 %v3864, 7
    %v3866 = vsub.s32 3, %v3865
    %v3867 = vrot.slane %v929, %v3866
    %v3868 = vlaneseq
    %v3869 = vshrl.u32 %v3868, 7
    %v3870 = vsub.s32 4, %v3869
    %v3871 = vrot.slane %v929, %v3870
    %v3872 = vlaneseq
    %v3873 = vshrl.u32 %v3872, 7
    %v3874 = vsub.s32 5, %v3873
    %v3875 = vrot.slane %v929, %v3874
    %v3876 = vlaneseq
    %v3877 = vshrl.u32 %v3876, 7
    %v3878 = vsub.s32 6, %v3877
    %v3879 = vrot.slane %v929, %v3878
    %v3880 = vlaneseq
    %v3881 = vshrl.u32 %v3880, 7
    %v3882 = vsub.s32 7, %v3881
    %v3883 = vrot.slane %v929, %v3882
    %v3884 = vlaneseq
    %v3885 = vshrl.u32 %v3884, 7
    %v3886 = vsub.s32 0, %v3885
    %v3887 = vrot.slane %v931, %v3886
    %v3888 = vlaneseq
    %v3889 = vshrl.u32 %v3888, 7
    %v3890 = vsub.s32 1, %v3889
    %v3891 = vrot.slane %v931, %v3890
    %v3892 = vlaneseq
    %v3893 = vshrl.u32 %v3892, 7
    %v3894 = vsub.s32 2, %v3893
    %v3895 = vrot.slane %v931, %v3894
    %v3896 = vlaneseq
    %v3897 = vshrl.u32 %v3896, 7
    %v3898 = vsub.s32 3, %v3897
    %v3899 = vrot.slane %v931, %v3898
    %v3900 = vlaneseq
    %v3901 = vshrl.u32 %v3900, 7
    %v3902 = vsub.s32 4, %v3901
    %v3903 = vrot.slane %v931, %v3902
    %v3904 = vlaneseq
    %v3905 = vshrl.u32 %v3904, 7
    %v3906 = vsub.s32 5, %v3905
    %v3907 = vrot.slane %v931, %v3906
    %v3908 = vlaneseq
    %v3909 = vshrl.u32 %v3908, 7
    %v3910 = vsub.s32 6, %v3909
    %v3911 = vrot.slane %v931, %v3910
    %v3912 = vlaneseq
    %v3913 = vshrl.u32 %v3912, 7
    %v3914 = vsub.s32 7, %v3913
    %v3915 = vrot.slane %v931, %v3914
    %v3916 = vlaneseq
    %v3917 = vshrl.u32 %v3916, 7
    %v3918 = vsub.s32 0, %v3917
    %v3919 = vrot.slane %v933, %v3918
    %v3920 = vlaneseq
    %v3921 = vshrl.u32 %v3920, 7
    %v3922 = vsub.s32 1, %v3921
    %v3923 = vrot.slane %v933, %v3922
    %v3924 = vlaneseq
    %v3925 = vshrl.u32 %v3924, 7
    %v3926 = vsub.s32 2, %v3925
    %v3927 = vrot.slane %v933, %v3926
    %v3928 = vlaneseq
    %v3929 = vshrl.u32 %v3928, 7
    %v3930 = vsub.s32 3, %v3929
    %v3931 = vrot.slane %v933, %v3930
    %v3932 = vlaneseq
    %v3933 = vshrl.u32 %v3932, 7
    %v3934 = vsub.s32 4, %v3933
    %v3935 = vrot.slane %v933, %v3934
    %v3936 = vlaneseq
    %v3937 = vshrl.u32 %v3936, 7
    %v3938 = vsub.s32 5, %v3937
    %v3939 = vrot.slane %v933, %v3938
    %v3940 = vlaneseq
    %v3941 = vshrl.u32 %v3940, 7
    %v3942 = vsub.s32 6, %v3941
    %v3943 = vrot.slane %v933, %v3942
    %v3944 = vlaneseq
    %v3945 = vshrl.u32 %v3944, 7
    %v3946 = vsub.s32 7, %v3945
    %v3947 = vrot.slane %v933, %v3946
    %v3948 = vlaneseq
    %v3949 = vshrl.u32 %v3948, 7
    %v3950 = vsub.s32 0, %v3949
    %v3951 = vrot.slane %v935, %v3950
    %v3952 = vlaneseq
    %v3953 = vshrl.u32 %v3952, 7
    %v3954 = vsub.s32 1, %v3953
    %v3955 = vrot.slane %v935, %v3954
    %v3956 = vlaneseq
    %v3957 = vshrl.u32 %v3956, 7
    %v3958 = vsub.s32 2, %v3957
    %v3959 = vrot.slane %v935, %v3958
    %v3960 = vlaneseq
    %v3961 = vshrl.u32 %v3960, 7
    %v3962 = vsub.s32 3, %v3961
    %v3963 = vrot.slane %v935, %v3962
    %v3964 = vlaneseq
    %v3965 = vshrl.u32 %v3964, 7
    %v3966 = vsub.s32 4, %v3965
    %v3967 = vrot.slane %v935, %v3966
    %v3968 = vlaneseq
    %v3969 = vshrl.u32 %v3968, 7
    %v3970 = vsub.s32 5, %v3969
    %v3971 = vrot.slane %v935, %v3970
    %v3972 = vlaneseq
    %v3973 = vshrl.u32 %v3972, 7
    %v3974 = vsub.s32 6, %v3973
    %v3975 = vrot.slane %v935, %v3974
    %v3976 = vlaneseq
    %v3977 = vshrl.u32 %v3976, 7
    %v3978 = vsub.s32 7, %v3977
    %v3979 = vrot.slane %v935, %v3978
    %v3980 = vcombine.low %v1935, %v1939
    %v3981 = vcombine.low %v1943, %v1947
    %v3982 = vcombine.low %v1951, %v1955
    %v3983 = vcombine.low %v1959, %v1963
    %v3985 = vunpack.c.l.s4 1966171168
    %v3986 = vunpack.c.0.s8 %v3985
    %v3987 = vlaneseq
    %v3988 = vshrl.u32 %v3987, 7
    %v3989 = vsub.s32 %v3986, %v3988
    %v3990 = vrot.slane %v3980, %v3989
    %v3992 = vunpack.c.l.s4 1966171168
    %v3993 = vunpack.c.0.s8 %v3992
    %v3994 = vlaneseq
    %v3995 = vshrl.u32 %v3994, 7
    %v3996 = vsub.s32 %v3993, %v3995
    %v3997 = vrot.slane %v3981, %v3996
    %v3999 = vunpack.c.l.s4 1966171168
    %v4000 = vunpack.c.0.s8 %v3999
    %v4001 = vlaneseq
    %v4002 = vshrl.u32 %v4001, 7
    %v4003 = vsub.s32 %v4000, %v4002
    %v4004 = vrot.slane %v3982, %v4003
    %v4006 = vunpack.c.l.s4 1966171168
    %v4007 = vunpack.c.0.s8 %v4006
    %v4008 = vlaneseq
    %v4009 = vshrl.u32 %v4008, 7
    %v4010 = vsub.s32 %v4007, %v4009
    %v4011 = vrot.slane %v3983, %v4010
    %v4012 = vcombine.low %v3990, %v3997
    %v4013 = vcombine.low %v4004, %v4011
    %v4015 = vunpack.c.l.s4 1966171168
    %v4016 = vunpack.c.0.s8 %v4015
    %v4017 = vlaneseq
    %v4018 = vshrl.u32 %v4017, 7
    %v4019 = vsub.s32 %v4016, %v4018
    %v4020 = vrot.slane %v4012, %v4019
    %v4022 = vunpack.c.l.s4 1966171168
    %v4023 = vunpack.c.0.s8 %v4022
    %v4024 = vlaneseq
    %v4025 = vshrl.u32 %v4024, 7
    %v4026 = vsub.s32 %v4023, %v4025
    %v4027 = vrot.slane %v4013, %v4026
    %v4028 = vcombine.low %v4020, %v4027
    %v4029 = vcombine.low %v1967, %v1971
    %v4030 = vcombine.low %v1975, %v1979
    %v4031 = vcombine.low %v1983, %v1987
    %v4032 = vcombine.low %v1991, %v1995
    %v4034 = vunpack.c.l.s4 1966171168
    %v4035 = vunpack.c.0.s8 %v4034
    %v4036 = vlaneseq
    %v4037 = vshrl.u32 %v4036, 7
    %v4038 = vsub.s32 %v4035, %v4037
    %v4039 = vrot.slane %v4029, %v4038
    %v4041 = vunpack.c.l.s4 1966171168
    %v4042 = vunpack.c.0.s8 %v4041
    %v4043 = vlaneseq
    %v4044 = vshrl.u32 %v4043, 7
    %v4045 = vsub.s32 %v4042, %v4044
    %v4046 = vrot.slane %v4030, %v4045
    %v4048 = vunpack.c.l.s4 1966171168
    %v4049 = vunpack.c.0.s8 %v4048
    %v4050 = vlaneseq
    %v4051 = vshrl.u32 %v4050, 7
    %v4052 = vsub.s32 %v4049, %v4051
    %v4053 = vrot.slane %v4031, %v4052
    %v4055 = vunpack.c.l.s4 1966171168
    %v4056 = vunpack.c.0.s8 %v4055
    %v4057 = vlaneseq
    %v4058 = vshrl.u32 %v4057, 7
    %v4059 = vsub.s32 %v4056, %v4058
    %v4060 = vrot.slane %v4032, %v4059
    %v4061 = vcombine.low %v4039, %v4046
    %v4062 = vcombine.low %v4053, %v4060
    %v4064 = vunpack.c.l.s4 1966171168
    %v4065 = vunpack.c.0.s8 %v4064
    %v4066 = vlaneseq
    %v4067 = vshrl.u32 %v4066, 7
    %v4068 = vsub.s32 %v4065, %v4067
    %v4069 = vrot.slane %v4061, %v4068
    %v4071 = vunpack.c.l.s4 1966171168
    %v4072 = vunpack.c.0.s8 %v4071
    %v4073 = vlaneseq
    %v4074 = vshrl.u32 %v4073, 7
    %v4075 = vsub.s32 %v4072, %v4074
    %v4076 = vrot.slane %v4062, %v4075
    %v4077 = vcombine.low %v4069, %v4076
    %v4078 = vcombine.low %v1999, %v2003
    %v4079 = vcombine.low %v2007, %v2011
    %v4080 = vcombine.low %v2015, %v2019
    %v4081 = vcombine.low %v2023, %v2027
    %v4083 = vunpack.c.l.s4 1966171168
    %v4084 = vunpack.c.0.s8 %v4083
    %v4085 = vlaneseq
    %v4086 = vshrl.u32 %v4085, 7
    %v4087 = vsub.s32 %v4084, %v4086
    %v4088 = vrot.slane %v4078, %v4087
    %v4090 = vunpack.c.l.s4 1966171168
    %v4091 = vunpack.c.0.s8 %v4090
    %v4092 = vlaneseq
    %v4093 = vshrl.u32 %v4092, 7
    %v4094 = vsub.s32 %v4091, %v4093
    %v4095 = vrot.slane %v4079, %v4094
    %v4097 = vunpack.c.l.s4 1966171168
    %v4098 = vunpack.c.0.s8 %v4097
    %v4099 = vlaneseq
    %v4100 = vshrl.u32 %v4099, 7
    %v4101 = vsub.s32 %v4098, %v4100
    %v4102 = vrot.slane %v4080, %v4101
    %v4104 = vunpack.c.l.s4 1966171168
    %v4105 = vunpack.c.0.s8 %v4104
    %v4106 = vlaneseq
    %v4107 = vshrl.u32 %v4106, 7
    %v4108 = vsub.s32 %v4105, %v4107
    %v4109 = vrot.slane %v4081, %v4108
    %v4110 = vcombine.low %v4088, %v4095
    %v4111 = vcombine.low %v4102, %v4109
    %v4113 = vunpack.c.l.s4 1966171168
    %v4114 = vunpack.c.0.s8 %v4113
    %v4115 = vlaneseq
    %v4116 = vshrl.u32 %v4115, 7
    %v4117 = vsub.s32 %v4114, %v4116
    %v4118 = vrot.slane %v4110, %v4117
    %v4120 = vunpack.c.l.s4 1966171168
    %v4121 = vunpack.c.0.s8 %v4120
    %v4122 = vlaneseq
    %v4123 = vshrl.u32 %v4122, 7
    %v4124 = vsub.s32 %v4121, %v4123
    %v4125 = vrot.slane %v4111, %v4124
    %v4126 = vcombine.low %v4118, %v4125
    %v4127 = vcombine.low %v2031, %v2035
    %v4128 = vcombine.low %v2039, %v2043
    %v4129 = vcombine.low %v2047, %v2051
    %v4130 = vcombine.low %v2055, %v2059
    %v4132 = vunpack.c.l.s4 1966171168
    %v4133 = vunpack.c.0.s8 %v4132
    %v4134 = vlaneseq
    %v4135 = vshrl.u32 %v4134, 7
    %v4136 = vsub.s32 %v4133, %v4135
    %v4137 = vrot.slane %v4127, %v4136
    %v4139 = vunpack.c.l.s4 1966171168
    %v4140 = vunpack.c.0.s8 %v4139
    %v4141 = vlaneseq
    %v4142 = vshrl.u32 %v4141, 7
    %v4143 = vsub.s32 %v4140, %v4142
    %v4144 = vrot.slane %v4128, %v4143
    %v4146 = vunpack.c.l.s4 1966171168
    %v4147 = vunpack.c.0.s8 %v4146
    %v4148 = vlaneseq
    %v4149 = vshrl.u32 %v4148, 7
    %v4150 = vsub.s32 %v4147, %v4149
    %v4151 = vrot.slane %v4129, %v4150
    %v4153 = vunpack.c.l.s4 1966171168
    %v4154 = vunpack.c.0.s8 %v4153
    %v4155 = vlaneseq
    %v4156 = vshrl.u32 %v4155, 7
    %v4157 = vsub.s32 %v4154, %v4156
    %v4158 = vrot.slane %v4130, %v4157
    %v4159 = vcombine.low %v4137, %v4144
    %v4160 = vcombine.low %v4151, %v4158
    %v4162 = vunpack.c.l.s4 1966171168
    %v4163 = vunpack.c.0.s8 %v4162
    %v4164 = vlaneseq
    %v4165 = vshrl.u32 %v4164, 7
    %v4166 = vsub.s32 %v4163, %v4165
    %v4167 = vrot.slane %v4159, %v4166
    %v4169 = vunpack.c.l.s4 1966171168
    %v4170 = vunpack.c.0.s8 %v4169
    %v4171 = vlaneseq
    %v4172 = vshrl.u32 %v4171, 7
    %v4173 = vsub.s32 %v4170, %v4172
    %v4174 = vrot.slane %v4160, %v4173
    %v4175 = vcombine.low %v4167, %v4174
    %v4176 = vcombine.low %v2063, %v2067
    %v4177 = vcombine.low %v2071, %v2075
    %v4178 = vcombine.low %v2079, %v2083
    %v4179 = vcombine.low %v2087, %v2091
    %v4181 = vunpack.c.l.s4 1966171168
    %v4182 = vunpack.c.0.s8 %v4181
    %v4183 = vlaneseq
    %v4184 = vshrl.u32 %v4183, 7
    %v4185 = vsub.s32 %v4182, %v4184
    %v4186 = vrot.slane %v4176, %v4185
    %v4188 = vunpack.c.l.s4 1966171168
    %v4189 = vunpack.c.0.s8 %v4188
    %v4190 = vlaneseq
    %v4191 = vshrl.u32 %v4190, 7
    %v4192 = vsub.s32 %v4189, %v4191
    %v4193 = vrot.slane %v4177, %v4192
    %v4195 = vunpack.c.l.s4 1966171168
    %v4196 = vunpack.c.0.s8 %v4195
    %v4197 = vlaneseq
    %v4198 = vshrl.u32 %v4197, 7
    %v4199 = vsub.s32 %v4196, %v4198
    %v4200 = vrot.slane %v4178, %v4199
    %v4202 = vunpack.c.l.s4 1966171168
    %v4203 = vunpack.c.0.s8 %v4202
    %v4204 = vlaneseq
    %v4205 = vshrl.u32 %v4204, 7
    %v4206 = vsub.s32 %v4203, %v4205
    %v4207 = vrot.slane %v4179, %v4206
    %v4208 = vcombine.low %v4186, %v4193
    %v4209 = vcombine.low %v4200, %v4207
    %v4211 = vunpack.c.l.s4 1966171168
    %v4212 = vunpack.c.0.s8 %v4211
    %v4213 = vlaneseq
    %v4214 = vshrl.u32 %v4213, 7
    %v4215 = vsub.s32 %v4212, %v4214
    %v4216 = vrot.slane %v4208, %v4215
    %v4218 = vunpack.c.l.s4 1966171168
    %v4219 = vunpack.c.0.s8 %v4218
    %v4220 = vlaneseq
    %v4221 = vshrl.u32 %v4220, 7
    %v4222 = vsub.s32 %v4219, %v4221
    %v4223 = vrot.slane %v4209, %v4222
    %v4224 = vcombine.low %v4216, %v4223
    %v4225 = vcombine.low %v2095, %v2099
    %v4226 = vcombine.low %v2103, %v2107
    %v4227 = vcombine.low %v2111, %v2115
    %v4228 = vcombine.low %v2119, %v2123
    %v4230 = vunpack.c.l.s4 1966171168
    %v4231 = vunpack.c.0.s8 %v4230
    %v4232 = vlaneseq
    %v4233 = vshrl.u32 %v4232, 7
    %v4234 = vsub.s32 %v4231, %v4233
    %v4235 = vrot.slane %v4225, %v4234
    %v4237 = vunpack.c.l.s4 1966171168
    %v4238 = vunpack.c.0.s8 %v4237
    %v4239 = vlaneseq
    %v4240 = vshrl.u32 %v4239, 7
    %v4241 = vsub.s32 %v4238, %v4240
    %v4242 = vrot.slane %v4226, %v4241
    %v4244 = vunpack.c.l.s4 1966171168
    %v4245 = vunpack.c.0.s8 %v4244
    %v4246 = vlaneseq
    %v4247 = vshrl.u32 %v4246, 7
    %v4248 = vsub.s32 %v4245, %v4247
    %v4249 = vrot.slane %v4227, %v4248
    %v4251 = vunpack.c.l.s4 1966171168
    %v4252 = vunpack.c.0.s8 %v4251
    %v4253 = vlaneseq
    %v4254 = vshrl.u32 %v4253, 7
    %v4255 = vsub.s32 %v4252, %v4254
    %v4256 = vrot.slane %v4228, %v4255
    %v4257 = vcombine.low %v4235, %v4242
    %v4258 = vcombine.low %v4249, %v4256
    %v4260 = vunpack.c.l.s4 1966171168
    %v4261 = vunpack.c.0.s8 %v4260
    %v4262 = vlaneseq
    %v4263 = vshrl.u32 %v4262, 7
    %v4264 = vsub.s32 %v4261, %v4263
    %v4265 = vrot.slane %v4257, %v4264
    %v4267 = vunpack.c.l.s4 1966171168
    %v4268 = vunpack.c.0.s8 %v4267
    %v4269 = vlaneseq
    %v4270 = vshrl.u32 %v4269, 7
    %v4271 = vsub.s32 %v4268, %v4270
    %v4272 = vrot.slane %v4258, %v4271
    %v4273 = vcombine.low %v4265, %v4272
    %v4274 = vcombine.low %v2127, %v2131
    %v4275 = vcombine.low %v2135, %v2139
    %v4276 = vcombine.low %v2143, %v2147
    %v4277 = vcombine.low %v2151, %v2155
    %v4279 = vunpack.c.l.s4 1966171168
    %v4280 = vunpack.c.0.s8 %v4279
    %v4281 = vlaneseq
    %v4282 = vshrl.u32 %v4281, 7
    %v4283 = vsub.s32 %v4280, %v4282
    %v4284 = vrot.slane %v4274, %v4283
    %v4286 = vunpack.c.l.s4 1966171168
    %v4287 = vunpack.c.0.s8 %v4286
    %v4288 = vlaneseq
    %v4289 = vshrl.u32 %v4288, 7
    %v4290 = vsub.s32 %v4287, %v4289
    %v4291 = vrot.slane %v4275, %v4290
    %v4293 = vunpack.c.l.s4 1966171168
    %v4294 = vunpack.c.0.s8 %v4293
    %v4295 = vlaneseq
    %v4296 = vshrl.u32 %v4295, 7
    %v4297 = vsub.s32 %v4294, %v4296
    %v4298 = vrot.slane %v4276, %v4297
    %v4300 = vunpack.c.l.s4 1966171168
    %v4301 = vunpack.c.0.s8 %v4300
    %v4302 = vlaneseq
    %v4303 = vshrl.u32 %v4302, 7
    %v4304 = vsub.s32 %v4301, %v4303
    %v4305 = vrot.slane %v4277, %v4304
    %v4306 = vcombine.low %v4284, %v4291
    %v4307 = vcombine.low %v4298, %v4305
    %v4309 = vunpack.c.l.s4 1966171168
    %v4310 = vunpack.c.0.s8 %v4309
    %v4311 = vlaneseq
    %v4312 = vshrl.u32 %v4311, 7
    %v4313 = vsub.s32 %v4310, %v4312
    %v4314 = vrot.slane %v4306, %v4313
    %v4316 = vunpack.c.l.s4 1966171168
    %v4317 = vunpack.c.0.s8 %v4316
    %v4318 = vlaneseq
    %v4319 = vshrl.u32 %v4318, 7
    %v4320 = vsub.s32 %v4317, %v4319
    %v4321 = vrot.slane %v4307, %v4320
    %v4322 = vcombine.low %v4314, %v4321
    %v4323 = vcombine.low %v2159, %v2163
    %v4324 = vcombine.low %v2167, %v2171
    %v4325 = vcombine.low %v2175, %v2179
    %v4326 = vcombine.low %v2183, %v2187
    %v4328 = vunpack.c.l.s4 1966171168
    %v4329 = vunpack.c.0.s8 %v4328
    %v4330 = vlaneseq
    %v4331 = vshrl.u32 %v4330, 7
    %v4332 = vsub.s32 %v4329, %v4331
    %v4333 = vrot.slane %v4323, %v4332
    %v4335 = vunpack.c.l.s4 1966171168
    %v4336 = vunpack.c.0.s8 %v4335
    %v4337 = vlaneseq
    %v4338 = vshrl.u32 %v4337, 7
    %v4339 = vsub.s32 %v4336, %v4338
    %v4340 = vrot.slane %v4324, %v4339
    %v4342 = vunpack.c.l.s4 1966171168
    %v4343 = vunpack.c.0.s8 %v4342
    %v4344 = vlaneseq
    %v4345 = vshrl.u32 %v4344, 7
    %v4346 = vsub.s32 %v4343, %v4345
    %v4347 = vrot.slane %v4325, %v4346
    %v4349 = vunpack.c.l.s4 1966171168
    %v4350 = vunpack.c.0.s8 %v4349
    %v4351 = vlaneseq
    %v4352 = vshrl.u32 %v4351, 7
    %v4353 = vsub.s32 %v4350, %v4352
    %v4354 = vrot.slane %v4326, %v4353
    %v4355 = vcombine.low %v4333, %v4340
    %v4356 = vcombine.low %v4347, %v4354
    %v4358 = vunpack.c.l.s4 1966171168
    %v4359 = vunpack.c.0.s8 %v4358
    %v4360 = vlaneseq
    %v4361 = vshrl.u32 %v4360, 7
    %v4362 = vsub.s32 %v4359, %v4361
    %v4363 = vrot.slane %v4355, %v4362
    %v4365 = vunpack.c.l.s4 1966171168
    %v4366 = vunpack.c.0.s8 %v4365
    %v4367 = vlaneseq
    %v4368 = vshrl.u32 %v4367, 7
    %v4369 = vsub.s32 %v4366, %v4368
    %v4370 = vrot.slane %v4356, %v4369
    %v4371 = vcombine.low %v4363, %v4370
    %v4372 = vcombine.low %v2191, %v2195
    %v4373 = vcombine.low %v2199, %v2203
    %v4374 = vcombine.low %v2207, %v2211
    %v4375 = vcombine.low %v2215, %v2219
    %v4377 = vunpack.c.l.s4 1966171168
    %v4378 = vunpack.c.0.s8 %v4377
    %v4379 = vlaneseq
    %v4380 = vshrl.u32 %v4379, 7
    %v4381 = vsub.s32 %v4378, %v4380
    %v4382 = vrot.slane %v4372, %v4381
    %v4384 = vunpack.c.l.s4 1966171168
    %v4385 = vunpack.c.0.s8 %v4384
    %v4386 = vlaneseq
    %v4387 = vshrl.u32 %v4386, 7
    %v4388 = vsub.s32 %v4385, %v4387
    %v4389 = vrot.slane %v4373, %v4388
    %v4391 = vunpack.c.l.s4 1966171168
    %v4392 = vunpack.c.0.s8 %v4391
    %v4393 = vlaneseq
    %v4394 = vshrl.u32 %v4393, 7
    %v4395 = vsub.s32 %v4392, %v4394
    %v4396 = vrot.slane %v4374, %v4395
    %v4398 = vunpack.c.l.s4 1966171168
    %v4399 = vunpack.c.0.s8 %v4398
    %v4400 = vlaneseq
    %v4401 = vshrl.u32 %v4400, 7
    %v4402 = vsub.s32 %v4399, %v4401
    %v4403 = vrot.slane %v4375, %v4402
    %v4404 = vcombine.low %v4382, %v4389
    %v4405 = vcombine.low %v4396, %v4403
    %v4407 = vunpack.c.l.s4 1966171168
    %v4408 = vunpack.c.0.s8 %v4407
    %v4409 = vlaneseq
    %v4410 = vshrl.u32 %v4409, 7
    %v4411 = vsub.s32 %v4408, %v4410
    %v4412 = vrot.slane %v4404, %v4411
    %v4414 = vunpack.c.l.s4 1966171168
    %v4415 = vunpack.c.0.s8 %v4414
    %v4416 = vlaneseq
    %v4417 = vshrl.u32 %v4416, 7
    %v4418 = vsub.s32 %v4415, %v4417
    %v4419 = vrot.slane %v4405, %v4418
    %v4420 = vcombine.low %v4412, %v4419
    %v4421 = vcombine.low %v2223, %v2227
    %v4422 = vcombine.low %v2231, %v2235
    %v4423 = vcombine.low %v2239, %v2243
    %v4424 = vcombine.low %v2247, %v2251
    %v4426 = vunpack.c.l.s4 1966171168
    %v4427 = vunpack.c.0.s8 %v4426
    %v4428 = vlaneseq
    %v4429 = vshrl.u32 %v4428, 7
    %v4430 = vsub.s32 %v4427, %v4429
    %v4431 = vrot.slane %v4421, %v4430
    %v4433 = vunpack.c.l.s4 1966171168
    %v4434 = vunpack.c.0.s8 %v4433
    %v4435 = vlaneseq
    %v4436 = vshrl.u32 %v4435, 7
    %v4437 = vsub.s32 %v4434, %v4436
    %v4438 = vrot.slane %v4422, %v4437
    %v4440 = vunpack.c.l.s4 1966171168
    %v4441 = vunpack.c.0.s8 %v4440
    %v4442 = vlaneseq
    %v4443 = vshrl.u32 %v4442, 7
    %v4444 = vsub.s32 %v4441, %v4443
    %v4445 = vrot.slane %v4423, %v4444
    %v4447 = vunpack.c.l.s4 1966171168
    %v4448 = vunpack.c.0.s8 %v4447
    %v4449 = vlaneseq
    %v4450 = vshrl.u32 %v4449, 7
    %v4451 = vsub.s32 %v4448, %v4450
    %v4452 = vrot.slane %v4424, %v4451
    %v4453 = vcombine.low %v4431, %v4438
    %v4454 = vcombine.low %v4445, %v4452
    %v4456 = vunpack.c.l.s4 1966171168
    %v4457 = vunpack.c.0.s8 %v4456
    %v4458 = vlaneseq
    %v4459 = vshrl.u32 %v4458, 7
    %v4460 = vsub.s32 %v4457, %v4459
    %v4461 = vrot.slane %v4453, %v4460
    %v4463 = vunpack.c.l.s4 1966171168
    %v4464 = vunpack.c.0.s8 %v4463
    %v4465 = vlaneseq
    %v4466 = vshrl.u32 %v4465, 7
    %v4467 = vsub.s32 %v4464, %v4466
    %v4468 = vrot.slane %v4454, %v4467
    %v4469 = vcombine.low %v4461, %v4468
    %v4470 = vcombine.low %v2255, %v2259
    %v4471 = vcombine.low %v2263, %v2267
    %v4472 = vcombine.low %v2271, %v2275
    %v4473 = vcombine.low %v2279, %v2283
    %v4475 = vunpack.c.l.s4 1966171168
    %v4476 = vunpack.c.0.s8 %v4475
    %v4477 = vlaneseq
    %v4478 = vshrl.u32 %v4477, 7
    %v4479 = vsub.s32 %v4476, %v4478
    %v4480 = vrot.slane %v4470, %v4479
    %v4482 = vunpack.c.l.s4 1966171168
    %v4483 = vunpack.c.0.s8 %v4482
    %v4484 = vlaneseq
    %v4485 = vshrl.u32 %v4484, 7
    %v4486 = vsub.s32 %v4483, %v4485
    %v4487 = vrot.slane %v4471, %v4486
    %v4489 = vunpack.c.l.s4 1966171168
    %v4490 = vunpack.c.0.s8 %v4489
    %v4491 = vlaneseq
    %v4492 = vshrl.u32 %v4491, 7
    %v4493 = vsub.s32 %v4490, %v4492
    %v4494 = vrot.slane %v4472, %v4493
    %v4496 = vunpack.c.l.s4 1966171168
    %v4497 = vunpack.c.0.s8 %v4496
    %v4498 = vlaneseq
    %v4499 = vshrl.u32 %v4498, 7
    %v4500 = vsub.s32 %v4497, %v4499
    %v4501 = vrot.slane %v4473, %v4500
    %v4502 = vcombine.low %v4480, %v4487
    %v4503 = vcombine.low %v4494, %v4501
    %v4505 = vunpack.c.l.s4 1966171168
    %v4506 = vunpack.c.0.s8 %v4505
    %v4507 = vlaneseq
    %v4508 = vshrl.u32 %v4507, 7
    %v4509 = vsub.s32 %v4506, %v4508
    %v4510 = vrot.slane %v4502, %v4509
    %v4512 = vunpack.c.l.s4 1966171168
    %v4513 = vunpack.c.0.s8 %v4512
    %v4514 = vlaneseq
    %v4515 = vshrl.u32 %v4514, 7
    %v4516 = vsub.s32 %v4513, %v4515
    %v4517 = vrot.slane %v4503, %v4516
    %v4518 = vcombine.low %v4510, %v4517
    %v4519 = vcombine.low %v2287, %v2291
    %v4520 = vcombine.low %v2295, %v2299
    %v4521 = vcombine.low %v2303, %v2307
    %v4522 = vcombine.low %v2311, %v2315
    %v4524 = vunpack.c.l.s4 1966171168
    %v4525 = vunpack.c.0.s8 %v4524
    %v4526 = vlaneseq
    %v4527 = vshrl.u32 %v4526, 7
    %v4528 = vsub.s32 %v4525, %v4527
    %v4529 = vrot.slane %v4519, %v4528
    %v4531 = vunpack.c.l.s4 1966171168
    %v4532 = vunpack.c.0.s8 %v4531
    %v4533 = vlaneseq
    %v4534 = vshrl.u32 %v4533, 7
    %v4535 = vsub.s32 %v4532, %v4534
    %v4536 = vrot.slane %v4520, %v4535
    %v4538 = vunpack.c.l.s4 1966171168
    %v4539 = vunpack.c.0.s8 %v4538
    %v4540 = vlaneseq
    %v4541 = vshrl.u32 %v4540, 7
    %v4542 = vsub.s32 %v4539, %v4541
    %v4543 = vrot.slane %v4521, %v4542
    %v4545 = vunpack.c.l.s4 1966171168
    %v4546 = vunpack.c.0.s8 %v4545
    %v4547 = vlaneseq
    %v4548 = vshrl.u32 %v4547, 7
    %v4549 = vsub.s32 %v4546, %v4548
    %v4550 = vrot.slane %v4522, %v4549
    %v4551 = vcombine.low %v4529, %v4536
    %v4552 = vcombine.low %v4543, %v4550
    %v4554 = vunpack.c.l.s4 1966171168
    %v4555 = vunpack.c.0.s8 %v4554
    %v4556 = vlaneseq
    %v4557 = vshrl.u32 %v4556, 7
    %v4558 = vsub.s32 %v4555, %v4557
    %v4559 = vrot.slane %v4551, %v4558
    %v4561 = vunpack.c.l.s4 1966171168
    %v4562 = vunpack.c.0.s8 %v4561
    %v4563 = vlaneseq
    %v4564 = vshrl.u32 %v4563, 7
    %v4565 = vsub.s32 %v4562, %v4564
    %v4566 = vrot.slane %v4552, %v4565
    %v4567 = vcombine.low %v4559, %v4566
    %v4568 = vcombine.low %v2319, %v2323
    %v4569 = vcombine.low %v2327, %v2331
    %v4570 = vcombine.low %v2335, %v2339
    %v4571 = vcombine.low %v2343, %v2347
    %v4573 = vunpack.c.l.s4 1966171168
    %v4574 = vunpack.c.0.s8 %v4573
    %v4575 = vlaneseq
    %v4576 = vshrl.u32 %v4575, 7
    %v4577 = vsub.s32 %v4574, %v4576
    %v4578 = vrot.slane %v4568, %v4577
    %v4580 = vunpack.c.l.s4 1966171168
    %v4581 = vunpack.c.0.s8 %v4580
    %v4582 = vlaneseq
    %v4583 = vshrl.u32 %v4582, 7
    %v4584 = vsub.s32 %v4581, %v4583
    %v4585 = vrot.slane %v4569, %v4584
    %v4587 = vunpack.c.l.s4 1966171168
    %v4588 = vunpack.c.0.s8 %v4587
    %v4589 = vlaneseq
    %v4590 = vshrl.u32 %v4589, 7
    %v4591 = vsub.s32 %v4588, %v4590
    %v4592 = vrot.slane %v4570, %v4591
    %v4594 = vunpack.c.l.s4 1966171168
    %v4595 = vunpack.c.0.s8 %v4594
    %v4596 = vlaneseq
    %v4597 = vshrl.u32 %v4596, 7
    %v4598 = vsub.s32 %v4595, %v4597
    %v4599 = vrot.slane %v4571, %v4598
    %v4600 = vcombine.low %v4578, %v4585
    %v4601 = vcombine.low %v4592, %v4599
    %v4603 = vunpack.c.l.s4 1966171168
    %v4604 = vunpack.c.0.s8 %v4603
    %v4605 = vlaneseq
    %v4606 = vshrl.u32 %v4605, 7
    %v4607 = vsub.s32 %v4604, %v4606
    %v4608 = vrot.slane %v4600, %v4607
    %v4610 = vunpack.c.l.s4 1966171168
    %v4611 = vunpack.c.0.s8 %v4610
    %v4612 = vlaneseq
    %v4613 = vshrl.u32 %v4612, 7
    %v4614 = vsub.s32 %v4611, %v4613
    %v4615 = vrot.slane %v4601, %v4614
    %v4616 = vcombine.low %v4608, %v4615
    %v4617 = vcombine.low %v2351, %v2355
    %v4618 = vcombine.low %v2359, %v2363
    %v4619 = vcombine.low %v2367, %v2371
    %v4620 = vcombine.low %v2375, %v2379
    %v4622 = vunpack.c.l.s4 1966171168
    %v4623 = vunpack.c.0.s8 %v4622
    %v4624 = vlaneseq
    %v4625 = vshrl.u32 %v4624, 7
    %v4626 = vsub.s32 %v4623, %v4625
    %v4627 = vrot.slane %v4617, %v4626
    %v4629 = vunpack.c.l.s4 1966171168
    %v4630 = vunpack.c.0.s8 %v4629
    %v4631 = vlaneseq
    %v4632 = vshrl.u32 %v4631, 7
    %v4633 = vsub.s32 %v4630, %v4632
    %v4634 = vrot.slane %v4618, %v4633
    %v4636 = vunpack.c.l.s4 1966171168
    %v4637 = vunpack.c.0.s8 %v4636
    %v4638 = vlaneseq
    %v4639 = vshrl.u32 %v4638, 7
    %v4640 = vsub.s32 %v4637, %v4639
    %v4641 = vrot.slane %v4619, %v4640
    %v4643 = vunpack.c.l.s4 1966171168
    %v4644 = vunpack.c.0.s8 %v4643
    %v4645 = vlaneseq
    %v4646 = vshrl.u32 %v4645, 7
    %v4647 = vsub.s32 %v4644, %v4646
    %v4648 = vrot.slane %v4620, %v4647
    %v4649 = vcombine.low %v4627, %v4634
    %v4650 = vcombine.low %v4641, %v4648
    %v4652 = vunpack.c.l.s4 1966171168
    %v4653 = vunpack.c.0.s8 %v4652
    %v4654 = vlaneseq
    %v4655 = vshrl.u32 %v4654, 7
    %v4656 = vsub.s32 %v4653, %v4655
    %v4657 = vrot.slane %v4649, %v4656
    %v4659 = vunpack.c.l.s4 1966171168
    %v4660 = vunpack.c.0.s8 %v4659
    %v4661 = vlaneseq
    %v4662 = vshrl.u32 %v4661, 7
    %v4663 = vsub.s32 %v4660, %v4662
    %v4664 = vrot.slane %v4650, %v4663
    %v4665 = vcombine.low %v4657, %v4664
    %v4666 = vcombine.low %v2383, %v2387
    %v4667 = vcombine.low %v2391, %v2395
    %v4668 = vcombine.low %v2399, %v2403
    %v4669 = vcombine.low %v2407, %v2411
    %v4671 = vunpack.c.l.s4 1966171168
    %v4672 = vunpack.c.0.s8 %v4671
    %v4673 = vlaneseq
    %v4674 = vshrl.u32 %v4673, 7
    %v4675 = vsub.s32 %v4672, %v4674
    %v4676 = vrot.slane %v4666, %v4675
    %v4678 = vunpack.c.l.s4 1966171168
    %v4679 = vunpack.c.0.s8 %v4678
    %v4680 = vlaneseq
    %v4681 = vshrl.u32 %v4680, 7
    %v4682 = vsub.s32 %v4679, %v4681
    %v4683 = vrot.slane %v4667, %v4682
    %v4685 = vunpack.c.l.s4 1966171168
    %v4686 = vunpack.c.0.s8 %v4685
    %v4687 = vlaneseq
    %v4688 = vshrl.u32 %v4687, 7
    %v4689 = vsub.s32 %v4686, %v4688
    %v4690 = vrot.slane %v4668, %v4689
    %v4692 = vunpack.c.l.s4 1966171168
    %v4693 = vunpack.c.0.s8 %v4692
    %v4694 = vlaneseq
    %v4695 = vshrl.u32 %v4694, 7
    %v4696 = vsub.s32 %v4693, %v4695
    %v4697 = vrot.slane %v4669, %v4696
    %v4698 = vcombine.low %v4676, %v4683
    %v4699 = vcombine.low %v4690, %v4697
    %v4701 = vunpack.c.l.s4 1966171168
    %v4702 = vunpack.c.0.s8 %v4701
    %v4703 = vlaneseq
    %v4704 = vshrl.u32 %v4703, 7
    %v4705 = vsub.s32 %v4702, %v4704
    %v4706 = vrot.slane %v4698, %v4705
    %v4708 = vunpack.c.l.s4 1966171168
    %v4709 = vunpack.c.0.s8 %v4708
    %v4710 = vlaneseq
    %v4711 = vshrl.u32 %v4710, 7
    %v4712 = vsub.s32 %v4709, %v4711
    %v4713 = vrot.slane %v4699, %v4712
    %v4714 = vcombine.low %v4706, %v4713
    %v4715 = vcombine.low %v2415, %v2419
    %v4716 = vcombine.low %v2423, %v2427
    %v4717 = vcombine.low %v2431, %v2435
    %v4718 = vcombine.low %v2439, %v2443
    %v4720 = vunpack.c.l.s4 1966171168
    %v4721 = vunpack.c.0.s8 %v4720
    %v4722 = vlaneseq
    %v4723 = vshrl.u32 %v4722, 7
    %v4724 = vsub.s32 %v4721, %v4723
    %v4725 = vrot.slane %v4715, %v4724
    %v4727 = vunpack.c.l.s4 1966171168
    %v4728 = vunpack.c.0.s8 %v4727
    %v4729 = vlaneseq
    %v4730 = vshrl.u32 %v4729, 7
    %v4731 = vsub.s32 %v4728, %v4730
    %v4732 = vrot.slane %v4716, %v4731
    %v4734 = vunpack.c.l.s4 1966171168
    %v4735 = vunpack.c.0.s8 %v4734
    %v4736 = vlaneseq
    %v4737 = vshrl.u32 %v4736, 7
    %v4738 = vsub.s32 %v4735, %v4737
    %v4739 = vrot.slane %v4717, %v4738
    %v4741 = vunpack.c.l.s4 1966171168
    %v4742 = vunpack.c.0.s8 %v4741
    %v4743 = vlaneseq
    %v4744 = vshrl.u32 %v4743, 7
    %v4745 = vsub.s32 %v4742, %v4744
    %v4746 = vrot.slane %v4718, %v4745
    %v4747 = vcombine.low %v4725, %v4732
    %v4748 = vcombine.low %v4739, %v4746
    %v4750 = vunpack.c.l.s4 1966171168
    %v4751 = vunpack.c.0.s8 %v4750
    %v4752 = vlaneseq
    %v4753 = vshrl.u32 %v4752, 7
    %v4754 = vsub.s32 %v4751, %v4753
    %v4755 = vrot.slane %v4747, %v4754
    %v4757 = vunpack.c.l.s4 1966171168
    %v4758 = vunpack.c.0.s8 %v4757
    %v4759 = vlaneseq
    %v4760 = vshrl.u32 %v4759, 7
    %v4761 = vsub.s32 %v4758, %v4760
    %v4762 = vrot.slane %v4748, %v4761
    %v4763 = vcombine.low %v4755, %v4762
    %v4764 = vcombine.low %v2447, %v2451
    %v4765 = vcombine.low %v2455, %v2459
    %v4766 = vcombine.low %v2463, %v2467
    %v4767 = vcombine.low %v2471, %v2475
    %v4769 = vunpack.c.l.s4 1966171168
    %v4770 = vunpack.c.0.s8 %v4769
    %v4771 = vlaneseq
    %v4772 = vshrl.u32 %v4771, 7
    %v4773 = vsub.s32 %v4770, %v4772
    %v4774 = vrot.slane %v4764, %v4773
    %v4776 = vunpack.c.l.s4 1966171168
    %v4777 = vunpack.c.0.s8 %v4776
    %v4778 = vlaneseq
    %v4779 = vshrl.u32 %v4778, 7
    %v4780 = vsub.s32 %v4777, %v4779
    %v4781 = vrot.slane %v4765, %v4780
    %v4783 = vunpack.c.l.s4 1966171168
    %v4784 = vunpack.c.0.s8 %v4783
    %v4785 = vlaneseq
    %v4786 = vshrl.u32 %v4785, 7
    %v4787 = vsub.s32 %v4784, %v4786
    %v4788 = vrot.slane %v4766, %v4787
    %v4790 = vunpack.c.l.s4 1966171168
    %v4791 = vunpack.c.0.s8 %v4790
    %v4792 = vlaneseq
    %v4793 = vshrl.u32 %v4792, 7
    %v4794 = vsub.s32 %v4791, %v4793
    %v4795 = vrot.slane %v4767, %v4794
    %v4796 = vcombine.low %v4774, %v4781
    %v4797 = vcombine.low %v4788, %v4795
    %v4799 = vunpack.c.l.s4 1966171168
    %v4800 = vunpack.c.0.s8 %v4799
    %v4801 = vlaneseq
    %v4802 = vshrl.u32 %v4801, 7
    %v4803 = vsub.s32 %v4800, %v4802
    %v4804 = vrot.slane %v4796, %v4803
    %v4806 = vunpack.c.l.s4 1966171168
    %v4807 = vunpack.c.0.s8 %v4806
    %v4808 = vlaneseq
    %v4809 = vshrl.u32 %v4808, 7
    %v4810 = vsub.s32 %v4807, %v4809
    %v4811 = vrot.slane %v4797, %v4810
    %v4812 = vcombine.low %v4804, %v4811
    %v4813 = vcombine.low %v2479, %v2483
    %v4814 = vcombine.low %v2487, %v2491
    %v4815 = vcombine.low %v2495, %v2499
    %v4816 = vcombine.low %v2503, %v2507
    %v4818 = vunpack.c.l.s4 1966171168
    %v4819 = vunpack.c.0.s8 %v4818
    %v4820 = vlaneseq
    %v4821 = vshrl.u32 %v4820, 7
    %v4822 = vsub.s32 %v4819, %v4821
    %v4823 = vrot.slane %v4813, %v4822
    %v4825 = vunpack.c.l.s4 1966171168
    %v4826 = vunpack.c.0.s8 %v4825
    %v4827 = vlaneseq
    %v4828 = vshrl.u32 %v4827, 7
    %v4829 = vsub.s32 %v4826, %v4828
    %v4830 = vrot.slane %v4814, %v4829
    %v4832 = vunpack.c.l.s4 1966171168
    %v4833 = vunpack.c.0.s8 %v4832
    %v4834 = vlaneseq
    %v4835 = vshrl.u32 %v4834, 7
    %v4836 = vsub.s32 %v4833, %v4835
    %v4837 = vrot.slane %v4815, %v4836
    %v4839 = vunpack.c.l.s4 1966171168
    %v4840 = vunpack.c.0.s8 %v4839
    %v4841 = vlaneseq
    %v4842 = vshrl.u32 %v4841, 7
    %v4843 = vsub.s32 %v4840, %v4842
    %v4844 = vrot.slane %v4816, %v4843
    %v4845 = vcombine.low %v4823, %v4830
    %v4846 = vcombine.low %v4837, %v4844
    %v4848 = vunpack.c.l.s4 1966171168
    %v4849 = vunpack.c.0.s8 %v4848
    %v4850 = vlaneseq
    %v4851 = vshrl.u32 %v4850, 7
    %v4852 = vsub.s32 %v4849, %v4851
    %v4853 = vrot.slane %v4845, %v4852
    %v4855 = vunpack.c.l.s4 1966171168
    %v4856 = vunpack.c.0.s8 %v4855
    %v4857 = vlaneseq
    %v4858 = vshrl.u32 %v4857, 7
    %v4859 = vsub.s32 %v4856, %v4858
    %v4860 = vrot.slane %v4846, %v4859
    %v4861 = vcombine.low %v4853, %v4860
    %v4862 = vcombine.low %v2511, %v2515
    %v4863 = vcombine.low %v2519, %v2523
    %v4864 = vcombine.low %v2527, %v2531
    %v4865 = vcombine.low %v2535, %v2539
    %v4867 = vunpack.c.l.s4 1966171168
    %v4868 = vunpack.c.0.s8 %v4867
    %v4869 = vlaneseq
    %v4870 = vshrl.u32 %v4869, 7
    %v4871 = vsub.s32 %v4868, %v4870
    %v4872 = vrot.slane %v4862, %v4871
    %v4874 = vunpack.c.l.s4 1966171168
    %v4875 = vunpack.c.0.s8 %v4874
    %v4876 = vlaneseq
    %v4877 = vshrl.u32 %v4876, 7
    %v4878 = vsub.s32 %v4875, %v4877
    %v4879 = vrot.slane %v4863, %v4878
    %v4881 = vunpack.c.l.s4 1966171168
    %v4882 = vunpack.c.0.s8 %v4881
    %v4883 = vlaneseq
    %v4884 = vshrl.u32 %v4883, 7
    %v4885 = vsub.s32 %v4882, %v4884
    %v4886 = vrot.slane %v4864, %v4885
    %v4888 = vunpack.c.l.s4 1966171168
    %v4889 = vunpack.c.0.s8 %v4888
    %v4890 = vlaneseq
    %v4891 = vshrl.u32 %v4890, 7
    %v4892 = vsub.s32 %v4889, %v4891
    %v4893 = vrot.slane %v4865, %v4892
    %v4894 = vcombine.low %v4872, %v4879
    %v4895 = vcombine.low %v4886, %v4893
    %v4897 = vunpack.c.l.s4 1966171168
    %v4898 = vunpack.c.0.s8 %v4897
    %v4899 = vlaneseq
    %v4900 = vshrl.u32 %v4899, 7
    %v4901 = vsub.s32 %v4898, %v4900
    %v4902 = vrot.slane %v4894, %v4901
    %v4904 = vunpack.c.l.s4 1966171168
    %v4905 = vunpack.c.0.s8 %v4904
    %v4906 = vlaneseq
    %v4907 = vshrl.u32 %v4906, 7
    %v4908 = vsub.s32 %v4905, %v4907
    %v4909 = vrot.slane %v4895, %v4908
    %v4910 = vcombine.low %v4902, %v4909
    %v4911 = vcombine.low %v2543, %v2547
    %v4912 = vcombine.low %v2551, %v2555
    %v4913 = vcombine.low %v2559, %v2563
    %v4914 = vcombine.low %v2567, %v2571
    %v4916 = vunpack.c.l.s4 1966171168
    %v4917 = vunpack.c.0.s8 %v4916
    %v4918 = vlaneseq
    %v4919 = vshrl.u32 %v4918, 7
    %v4920 = vsub.s32 %v4917, %v4919
    %v4921 = vrot.slane %v4911, %v4920
    %v4923 = vunpack.c.l.s4 1966171168
    %v4924 = vunpack.c.0.s8 %v4923
    %v4925 = vlaneseq
    %v4926 = vshrl.u32 %v4925, 7
    %v4927 = vsub.s32 %v4924, %v4926
    %v4928 = vrot.slane %v4912, %v4927
    %v4930 = vunpack.c.l.s4 1966171168
    %v4931 = vunpack.c.0.s8 %v4930
    %v4932 = vlaneseq
    %v4933 = vshrl.u32 %v4932, 7
    %v4934 = vsub.s32 %v4931, %v4933
    %v4935 = vrot.slane %v4913, %v4934
    %v4937 = vunpack.c.l.s4 1966171168
    %v4938 = vunpack.c.0.s8 %v4937
    %v4939 = vlaneseq
    %v4940 = vshrl.u32 %v4939, 7
    %v4941 = vsub.s32 %v4938, %v4940
    %v4942 = vrot.slane %v4914, %v4941
    %v4943 = vcombine.low %v4921, %v4928
    %v4944 = vcombine.low %v4935, %v4942
    %v4946 = vunpack.c.l.s4 1966171168
    %v4947 = vunpack.c.0.s8 %v4946
    %v4948 = vlaneseq
    %v4949 = vshrl.u32 %v4948, 7
    %v4950 = vsub.s32 %v4947, %v4949
    %v4951 = vrot.slane %v4943, %v4950
    %v4953 = vunpack.c.l.s4 1966171168
    %v4954 = vunpack.c.0.s8 %v4953
    %v4955 = vlaneseq
    %v4956 = vshrl.u32 %v4955, 7
    %v4957 = vsub.s32 %v4954, %v4956
    %v4958 = vrot.slane %v4944, %v4957
    %v4959 = vcombine.low %v4951, %v4958
    %v4960 = vcombine.low %v2575, %v2579
    %v4961 = vcombine.low %v2583, %v2587
    %v4962 = vcombine.low %v2591, %v2595
    %v4963 = vcombine.low %v2599, %v2603
    %v4965 = vunpack.c.l.s4 1966171168
    %v4966 = vunpack.c.0.s8 %v4965
    %v4967 = vlaneseq
    %v4968 = vshrl.u32 %v4967, 7
    %v4969 = vsub.s32 %v4966, %v4968
    %v4970 = vrot.slane %v4960, %v4969
    %v4972 = vunpack.c.l.s4 1966171168
    %v4973 = vunpack.c.0.s8 %v4972
    %v4974 = vlaneseq
    %v4975 = vshrl.u32 %v4974, 7
    %v4976 = vsub.s32 %v4973, %v4975
    %v4977 = vrot.slane %v4961, %v4976
    %v4979 = vunpack.c.l.s4 1966171168
    %v4980 = vunpack.c.0.s8 %v4979
    %v4981 = vlaneseq
    %v4982 = vshrl.u32 %v4981, 7
    %v4983 = vsub.s32 %v4980, %v4982
    %v4984 = vrot.slane %v4962, %v4983
    %v4986 = vunpack.c.l.s4 1966171168
    %v4987 = vunpack.c.0.s8 %v4986
    %v4988 = vlaneseq
    %v4989 = vshrl.u32 %v4988, 7
    %v4990 = vsub.s32 %v4987, %v4989
    %v4991 = vrot.slane %v4963, %v4990
    %v4992 = vcombine.low %v4970, %v4977
    %v4993 = vcombine.low %v4984, %v4991
    %v4995 = vunpack.c.l.s4 1966171168
    %v4996 = vunpack.c.0.s8 %v4995
    %v4997 = vlaneseq
    %v4998 = vshrl.u32 %v4997, 7
    %v4999 = vsub.s32 %v4996, %v4998
    %v5000 = vrot.slane %v4992, %v4999
    %v5002 = vunpack.c.l.s4 1966171168
    %v5003 = vunpack.c.0.s8 %v5002
    %v5004 = vlaneseq
    %v5005 = vshrl.u32 %v5004, 7
    %v5006 = vsub.s32 %v5003, %v5005
    %v5007 = vrot.slane %v4993, %v5006
    %v5008 = vcombine.low %v5000, %v5007
    %v5009 = vcombine.low %v2607, %v2611
    %v5010 = vcombine.low %v2615, %v2619
    %v5011 = vcombine.low %v2623, %v2627
    %v5012 = vcombine.low %v2631, %v2635
    %v5014 = vunpack.c.l.s4 1966171168
    %v5015 = vunpack.c.0.s8 %v5014
    %v5016 = vlaneseq
    %v5017 = vshrl.u32 %v5016, 7
    %v5018 = vsub.s32 %v5015, %v5017
    %v5019 = vrot.slane %v5009, %v5018
    %v5021 = vunpack.c.l.s4 1966171168
    %v5022 = vunpack.c.0.s8 %v5021
    %v5023 = vlaneseq
    %v5024 = vshrl.u32 %v5023, 7
    %v5025 = vsub.s32 %v5022, %v5024
    %v5026 = vrot.slane %v5010, %v5025
    %v5028 = vunpack.c.l.s4 1966171168
    %v5029 = vunpack.c.0.s8 %v5028
    %v5030 = vlaneseq
    %v5031 = vshrl.u32 %v5030, 7
    %v5032 = vsub.s32 %v5029, %v5031
    %v5033 = vrot.slane %v5011, %v5032
    %v5035 = vunpack.c.l.s4 1966171168
    %v5036 = vunpack.c.0.s8 %v5035
    %v5037 = vlaneseq
    %v5038 = vshrl.u32 %v5037, 7
    %v5039 = vsub.s32 %v5036, %v5038
    %v5040 = vrot.slane %v5012, %v5039
    %v5041 = vcombine.low %v5019, %v5026
    %v5042 = vcombine.low %v5033, %v5040
    %v5044 = vunpack.c.l.s4 1966171168
    %v5045 = vunpack.c.0.s8 %v5044
    %v5046 = vlaneseq
    %v5047 = vshrl.u32 %v5046, 7
    %v5048 = vsub.s32 %v5045, %v5047
    %v5049 = vrot.slane %v5041, %v5048
    %v5051 = vunpack.c.l.s4 1966171168
    %v5052 = vunpack.c.0.s8 %v5051
    %v5053 = vlaneseq
    %v5054 = vshrl.u32 %v5053, 7
    %v5055 = vsub.s32 %v5052, %v5054
    %v5056 = vrot.slane %v5042, %v5055
    %v5057 = vcombine.low %v5049, %v5056
    %v5058 = vcombine.low %v2639, %v2643
    %v5059 = vcombine.low %v2647, %v2651
    %v5060 = vcombine.low %v2655, %v2659
    %v5061 = vcombine.low %v2663, %v2667
    %v5063 = vunpack.c.l.s4 1966171168
    %v5064 = vunpack.c.0.s8 %v5063
    %v5065 = vlaneseq
    %v5066 = vshrl.u32 %v5065, 7
    %v5067 = vsub.s32 %v5064, %v5066
    %v5068 = vrot.slane %v5058, %v5067
    %v5070 = vunpack.c.l.s4 1966171168
    %v5071 = vunpack.c.0.s8 %v5070
    %v5072 = vlaneseq
    %v5073 = vshrl.u32 %v5072, 7
    %v5074 = vsub.s32 %v5071, %v5073
    %v5075 = vrot.slane %v5059, %v5074
    %v5077 = vunpack.c.l.s4 1966171168
    %v5078 = vunpack.c.0.s8 %v5077
    %v5079 = vlaneseq
    %v5080 = vshrl.u32 %v5079, 7
    %v5081 = vsub.s32 %v5078, %v5080
    %v5082 = vrot.slane %v5060, %v5081
    %v5084 = vunpack.c.l.s4 1966171168
    %v5085 = vunpack.c.0.s8 %v5084
    %v5086 = vlaneseq
    %v5087 = vshrl.u32 %v5086, 7
    %v5088 = vsub.s32 %v5085, %v5087
    %v5089 = vrot.slane %v5061, %v5088
    %v5090 = vcombine.low %v5068, %v5075
    %v5091 = vcombine.low %v5082, %v5089
    %v5093 = vunpack.c.l.s4 1966171168
    %v5094 = vunpack.c.0.s8 %v5093
    %v5095 = vlaneseq
    %v5096 = vshrl.u32 %v5095, 7
    %v5097 = vsub.s32 %v5094, %v5096
    %v5098 = vrot.slane %v5090, %v5097
    %v5100 = vunpack.c.l.s4 1966171168
    %v5101 = vunpack.c.0.s8 %v5100
    %v5102 = vlaneseq
    %v5103 = vshrl.u32 %v5102, 7
    %v5104 = vsub.s32 %v5101, %v5103
    %v5105 = vrot.slane %v5091, %v5104
    %v5106 = vcombine.low %v5098, %v5105
    %v5107 = vcombine.low %v2671, %v2675
    %v5108 = vcombine.low %v2679, %v2683
    %v5109 = vcombine.low %v2687, %v2691
    %v5110 = vcombine.low %v2695, %v2699
    %v5112 = vunpack.c.l.s4 1966171168
    %v5113 = vunpack.c.0.s8 %v5112
    %v5114 = vlaneseq
    %v5115 = vshrl.u32 %v5114, 7
    %v5116 = vsub.s32 %v5113, %v5115
    %v5117 = vrot.slane %v5107, %v5116
    %v5119 = vunpack.c.l.s4 1966171168
    %v5120 = vunpack.c.0.s8 %v5119
    %v5121 = vlaneseq
    %v5122 = vshrl.u32 %v5121, 7
    %v5123 = vsub.s32 %v5120, %v5122
    %v5124 = vrot.slane %v5108, %v5123
    %v5126 = vunpack.c.l.s4 1966171168
    %v5127 = vunpack.c.0.s8 %v5126
    %v5128 = vlaneseq
    %v5129 = vshrl.u32 %v5128, 7
    %v5130 = vsub.s32 %v5127, %v5129
    %v5131 = vrot.slane %v5109, %v5130
    %v5133 = vunpack.c.l.s4 1966171168
    %v5134 = vunpack.c.0.s8 %v5133
    %v5135 = vlaneseq
    %v5136 = vshrl.u32 %v5135, 7
    %v5137 = vsub.s32 %v5134, %v5136
    %v5138 = vrot.slane %v5110, %v5137
    %v5139 = vcombine.low %v5117, %v5124
    %v5140 = vcombine.low %v5131, %v5138
    %v5142 = vunpack.c.l.s4 1966171168
    %v5143 = vunpack.c.0.s8 %v5142
    %v5144 = vlaneseq
    %v5145 = vshrl.u32 %v5144, 7
    %v5146 = vsub.s32 %v5143, %v5145
    %v5147 = vrot.slane %v5139, %v5146
    %v5149 = vunpack.c.l.s4 1966171168
    %v5150 = vunpack.c.0.s8 %v5149
    %v5151 = vlaneseq
    %v5152 = vshrl.u32 %v5151, 7
    %v5153 = vsub.s32 %v5150, %v5152
    %v5154 = vrot.slane %v5140, %v5153
    %v5155 = vcombine.low %v5147, %v5154
    %v5156 = vcombine.low %v2703, %v2707
    %v5157 = vcombine.low %v2711, %v2715
    %v5158 = vcombine.low %v2719, %v2723
    %v5159 = vcombine.low %v2727, %v2731
    %v5161 = vunpack.c.l.s4 1966171168
    %v5162 = vunpack.c.0.s8 %v5161
    %v5163 = vlaneseq
    %v5164 = vshrl.u32 %v5163, 7
    %v5165 = vsub.s32 %v5162, %v5164
    %v5166 = vrot.slane %v5156, %v5165
    %v5168 = vunpack.c.l.s4 1966171168
    %v5169 = vunpack.c.0.s8 %v5168
    %v5170 = vlaneseq
    %v5171 = vshrl.u32 %v5170, 7
    %v5172 = vsub.s32 %v5169, %v5171
    %v5173 = vrot.slane %v5157, %v5172
    %v5175 = vunpack.c.l.s4 1966171168
    %v5176 = vunpack.c.0.s8 %v5175
    %v5177 = vlaneseq
    %v5178 = vshrl.u32 %v5177, 7
    %v5179 = vsub.s32 %v5176, %v5178
    %v5180 = vrot.slane %v5158, %v5179
    %v5182 = vunpack.c.l.s4 1966171168
    %v5183 = vunpack.c.0.s8 %v5182
    %v5184 = vlaneseq
    %v5185 = vshrl.u32 %v5184, 7
    %v5186 = vsub.s32 %v5183, %v5185
    %v5187 = vrot.slane %v5159, %v5186
    %v5188 = vcombine.low %v5166, %v5173
    %v5189 = vcombine.low %v5180, %v5187
    %v5191 = vunpack.c.l.s4 1966171168
    %v5192 = vunpack.c.0.s8 %v5191
    %v5193 = vlaneseq
    %v5194 = vshrl.u32 %v5193, 7
    %v5195 = vsub.s32 %v5192, %v5194
    %v5196 = vrot.slane %v5188, %v5195
    %v5198 = vunpack.c.l.s4 1966171168
    %v5199 = vunpack.c.0.s8 %v5198
    %v5200 = vlaneseq
    %v5201 = vshrl.u32 %v5200, 7
    %v5202 = vsub.s32 %v5199, %v5201
    %v5203 = vrot.slane %v5189, %v5202
    %v5204 = vcombine.low %v5196, %v5203
    %v5205 = vcombine.low %v2735, %v2739
    %v5206 = vcombine.low %v2743, %v2747
    %v5207 = vcombine.low %v2751, %v2755
    %v5208 = vcombine.low %v2759, %v2763
    %v5210 = vunpack.c.l.s4 1966171168
    %v5211 = vunpack.c.0.s8 %v5210
    %v5212 = vlaneseq
    %v5213 = vshrl.u32 %v5212, 7
    %v5214 = vsub.s32 %v5211, %v5213
    %v5215 = vrot.slane %v5205, %v5214
    %v5217 = vunpack.c.l.s4 1966171168
    %v5218 = vunpack.c.0.s8 %v5217
    %v5219 = vlaneseq
    %v5220 = vshrl.u32 %v5219, 7
    %v5221 = vsub.s32 %v5218, %v5220
    %v5222 = vrot.slane %v5206, %v5221
    %v5224 = vunpack.c.l.s4 1966171168
    %v5225 = vunpack.c.0.s8 %v5224
    %v5226 = vlaneseq
    %v5227 = vshrl.u32 %v5226, 7
    %v5228 = vsub.s32 %v5225, %v5227
    %v5229 = vrot.slane %v5207, %v5228
    %v5231 = vunpack.c.l.s4 1966171168
    %v5232 = vunpack.c.0.s8 %v5231
    %v5233 = vlaneseq
    %v5234 = vshrl.u32 %v5233, 7
    %v5235 = vsub.s32 %v5232, %v5234
    %v5236 = vrot.slane %v5208, %v5235
    %v5237 = vcombine.low %v5215, %v5222
    %v5238 = vcombine.low %v5229, %v5236
    %v5240 = vunpack.c.l.s4 1966171168
    %v5241 = vunpack.c.0.s8 %v5240
    %v5242 = vlaneseq
    %v5243 = vshrl.u32 %v5242, 7
    %v5244 = vsub.s32 %v5241, %v5243
    %v5245 = vrot.slane %v5237, %v5244
    %v5247 = vunpack.c.l.s4 1966171168
    %v5248 = vunpack.c.0.s8 %v5247
    %v5249 = vlaneseq
    %v5250 = vshrl.u32 %v5249, 7
    %v5251 = vsub.s32 %v5248, %v5250
    %v5252 = vrot.slane %v5238, %v5251
    %v5253 = vcombine.low %v5245, %v5252
    %v5254 = vcombine.low %v2767, %v2771
    %v5255 = vcombine.low %v2775, %v2779
    %v5256 = vcombine.low %v2783, %v2787
    %v5257 = vcombine.low %v2791, %v2795
    %v5259 = vunpack.c.l.s4 1966171168
    %v5260 = vunpack.c.0.s8 %v5259
    %v5261 = vlaneseq
    %v5262 = vshrl.u32 %v5261, 7
    %v5263 = vsub.s32 %v5260, %v5262
    %v5264 = vrot.slane %v5254, %v5263
    %v5266 = vunpack.c.l.s4 1966171168
    %v5267 = vunpack.c.0.s8 %v5266
    %v5268 = vlaneseq
    %v5269 = vshrl.u32 %v5268, 7
    %v5270 = vsub.s32 %v5267, %v5269
    %v5271 = vrot.slane %v5255, %v5270
    %v5273 = vunpack.c.l.s4 1966171168
    %v5274 = vunpack.c.0.s8 %v5273
    %v5275 = vlaneseq
    %v5276 = vshrl.u32 %v5275, 7
    %v5277 = vsub.s32 %v5274, %v5276
    %v5278 = vrot.slane %v5256, %v5277
    %v5280 = vunpack.c.l.s4 1966171168
    %v5281 = vunpack.c.0.s8 %v5280
    %v5282 = vlaneseq
    %v5283 = vshrl.u32 %v5282, 7
    %v5284 = vsub.s32 %v5281, %v5283
    %v5285 = vrot.slane %v5257, %v5284
    %v5286 = vcombine.low %v5264, %v5271
    %v5287 = vcombine.low %v5278, %v5285
    %v5289 = vunpack.c.l.s4 1966171168
    %v5290 = vunpack.c.0.s8 %v5289
    %v5291 = vlaneseq
    %v5292 = vshrl.u32 %v5291, 7
    %v5293 = vsub.s32 %v5290, %v5292
    %v5294 = vrot.slane %v5286, %v5293
    %v5296 = vunpack.c.l.s4 1966171168
    %v5297 = vunpack.c.0.s8 %v5296
    %v5298 = vlaneseq
    %v5299 = vshrl.u32 %v5298, 7
    %v5300 = vsub.s32 %v5297, %v5299
    %v5301 = vrot.slane %v5287, %v5300
    %v5302 = vcombine.low %v5294, %v5301
    %v5303 = vcombine.low %v2799, %v2803
    %v5304 = vcombine.low %v2807, %v2811
    %v5305 = vcombine.low %v2815, %v2819
    %v5306 = vcombine.low %v2823, %v2827
    %v5308 = vunpack.c.l.s4 1966171168
    %v5309 = vunpack.c.0.s8 %v5308
    %v5310 = vlaneseq
    %v5311 = vshrl.u32 %v5310, 7
    %v5312 = vsub.s32 %v5309, %v5311
    %v5313 = vrot.slane %v5303, %v5312
    %v5315 = vunpack.c.l.s4 1966171168
    %v5316 = vunpack.c.0.s8 %v5315
    %v5317 = vlaneseq
    %v5318 = vshrl.u32 %v5317, 7
    %v5319 = vsub.s32 %v5316, %v5318
    %v5320 = vrot.slane %v5304, %v5319
    %v5322 = vunpack.c.l.s4 1966171168
    %v5323 = vunpack.c.0.s8 %v5322
    %v5324 = vlaneseq
    %v5325 = vshrl.u32 %v5324, 7
    %v5326 = vsub.s32 %v5323, %v5325
    %v5327 = vrot.slane %v5305, %v5326
    %v5329 = vunpack.c.l.s4 1966171168
    %v5330 = vunpack.c.0.s8 %v5329
    %v5331 = vlaneseq
    %v5332 = vshrl.u32 %v5331, 7
    %v5333 = vsub.s32 %v5330, %v5332
    %v5334 = vrot.slane %v5306, %v5333
    %v5335 = vcombine.low %v5313, %v5320
    %v5336 = vcombine.low %v5327, %v5334
    %v5338 = vunpack.c.l.s4 1966171168
    %v5339 = vunpack.c.0.s8 %v5338
    %v5340 = vlaneseq
    %v5341 = vshrl.u32 %v5340, 7
    %v5342 = vsub.s32 %v5339, %v5341
    %v5343 = vrot.slane %v5335, %v5342
    %v5345 = vunpack.c.l.s4 1966171168
    %v5346 = vunpack.c.0.s8 %v5345
    %v5347 = vlaneseq
    %v5348 = vshrl.u32 %v5347, 7
    %v5349 = vsub.s32 %v5346, %v5348
    %v5350 = vrot.slane %v5336, %v5349
    %v5351 = vcombine.low %v5343, %v5350
    %v5352 = vcombine.low %v2831, %v2835
    %v5353 = vcombine.low %v2839, %v2843
    %v5354 = vcombine.low %v2847, %v2851
    %v5355 = vcombine.low %v2855, %v2859
    %v5357 = vunpack.c.l.s4 1966171168
    %v5358 = vunpack.c.0.s8 %v5357
    %v5359 = vlaneseq
    %v5360 = vshrl.u32 %v5359, 7
    %v5361 = vsub.s32 %v5358, %v5360
    %v5362 = vrot.slane %v5352, %v5361
    %v5364 = vunpack.c.l.s4 1966171168
    %v5365 = vunpack.c.0.s8 %v5364
    %v5366 = vlaneseq
    %v5367 = vshrl.u32 %v5366, 7
    %v5368 = vsub.s32 %v5365, %v5367
    %v5369 = vrot.slane %v5353, %v5368
    %v5371 = vunpack.c.l.s4 1966171168
    %v5372 = vunpack.c.0.s8 %v5371
    %v5373 = vlaneseq
    %v5374 = vshrl.u32 %v5373, 7
    %v5375 = vsub.s32 %v5372, %v5374
    %v5376 = vrot.slane %v5354, %v5375
    %v5378 = vunpack.c.l.s4 1966171168
    %v5379 = vunpack.c.0.s8 %v5378
    %v5380 = vlaneseq
    %v5381 = vshrl.u32 %v5380, 7
    %v5382 = vsub.s32 %v5379, %v5381
    %v5383 = vrot.slane %v5355, %v5382
    %v5384 = vcombine.low %v5362, %v5369
    %v5385 = vcombine.low %v5376, %v5383
    %v5387 = vunpack.c.l.s4 1966171168
    %v5388 = vunpack.c.0.s8 %v5387
    %v5389 = vlaneseq
    %v5390 = vshrl.u32 %v5389, 7
    %v5391 = vsub.s32 %v5388, %v5390
    %v5392 = vrot.slane %v5384, %v5391
    %v5394 = vunpack.c.l.s4 1966171168
    %v5395 = vunpack.c.0.s8 %v5394
    %v5396 = vlaneseq
    %v5397 = vshrl.u32 %v5396, 7
    %v5398 = vsub.s32 %v5395, %v5397
    %v5399 = vrot.slane %v5385, %v5398
    %v5400 = vcombine.low %v5392, %v5399
    %v5401 = vcombine.low %v2863, %v2867
    %v5402 = vcombine.low %v2871, %v2875
    %v5403 = vcombine.low %v2879, %v2883
    %v5404 = vcombine.low %v2887, %v2891
    %v5406 = vunpack.c.l.s4 1966171168
    %v5407 = vunpack.c.0.s8 %v5406
    %v5408 = vlaneseq
    %v5409 = vshrl.u32 %v5408, 7
    %v5410 = vsub.s32 %v5407, %v5409
    %v5411 = vrot.slane %v5401, %v5410
    %v5413 = vunpack.c.l.s4 1966171168
    %v5414 = vunpack.c.0.s8 %v5413
    %v5415 = vlaneseq
    %v5416 = vshrl.u32 %v5415, 7
    %v5417 = vsub.s32 %v5414, %v5416
    %v5418 = vrot.slane %v5402, %v5417
    %v5420 = vunpack.c.l.s4 1966171168
    %v5421 = vunpack.c.0.s8 %v5420
    %v5422 = vlaneseq
    %v5423 = vshrl.u32 %v5422, 7
    %v5424 = vsub.s32 %v5421, %v5423
    %v5425 = vrot.slane %v5403, %v5424
    %v5427 = vunpack.c.l.s4 1966171168
    %v5428 = vunpack.c.0.s8 %v5427
    %v5429 = vlaneseq
    %v5430 = vshrl.u32 %v5429, 7
    %v5431 = vsub.s32 %v5428, %v5430
    %v5432 = vrot.slane %v5404, %v5431
    %v5433 = vcombine.low %v5411, %v5418
    %v5434 = vcombine.low %v5425, %v5432
    %v5436 = vunpack.c.l.s4 1966171168
    %v5437 = vunpack.c.0.s8 %v5436
    %v5438 = vlaneseq
    %v5439 = vshrl.u32 %v5438, 7
    %v5440 = vsub.s32 %v5437, %v5439
    %v5441 = vrot.slane %v5433, %v5440
    %v5443 = vunpack.c.l.s4 1966171168
    %v5444 = vunpack.c.0.s8 %v5443
    %v5445 = vlaneseq
    %v5446 = vshrl.u32 %v5445, 7
    %v5447 = vsub.s32 %v5444, %v5446
    %v5448 = vrot.slane %v5434, %v5447
    %v5449 = vcombine.low %v5441, %v5448
    %v5450 = vcombine.low %v2895, %v2899
    %v5451 = vcombine.low %v2903, %v2907
    %v5452 = vcombine.low %v2911, %v2915
    %v5453 = vcombine.low %v2919, %v2923
    %v5455 = vunpack.c.l.s4 1966171168
    %v5456 = vunpack.c.0.s8 %v5455
    %v5457 = vlaneseq
    %v5458 = vshrl.u32 %v5457, 7
    %v5459 = vsub.s32 %v5456, %v5458
    %v5460 = vrot.slane %v5450, %v5459
    %v5462 = vunpack.c.l.s4 1966171168
    %v5463 = vunpack.c.0.s8 %v5462
    %v5464 = vlaneseq
    %v5465 = vshrl.u32 %v5464, 7
    %v5466 = vsub.s32 %v5463, %v5465
    %v5467 = vrot.slane %v5451, %v5466
    %v5469 = vunpack.c.l.s4 1966171168
    %v5470 = vunpack.c.0.s8 %v5469
    %v5471 = vlaneseq
    %v5472 = vshrl.u32 %v5471, 7
    %v5473 = vsub.s32 %v5470, %v5472
    %v5474 = vrot.slane %v5452, %v5473
    %v5476 = vunpack.c.l.s4 1966171168
    %v5477 = vunpack.c.0.s8 %v5476
    %v5478 = vlaneseq
    %v5479 = vshrl.u32 %v5478, 7
    %v5480 = vsub.s32 %v5477, %v5479
    %v5481 = vrot.slane %v5453, %v5480
    %v5482 = vcombine.low %v5460, %v5467
    %v5483 = vcombine.low %v5474, %v5481
    %v5485 = vunpack.c.l.s4 1966171168
    %v5486 = vunpack.c.0.s8 %v5485
    %v5487 = vlaneseq
    %v5488 = vshrl.u32 %v5487, 7
    %v5489 = vsub.s32 %v5486, %v5488
    %v5490 = vrot.slane %v5482, %v5489
    %v5492 = vunpack.c.l.s4 1966171168
    %v5493 = vunpack.c.0.s8 %v5492
    %v5494 = vlaneseq
    %v5495 = vshrl.u32 %v5494, 7
    %v5496 = vsub.s32 %v5493, %v5495
    %v5497 = vrot.slane %v5483, %v5496
    %v5498 = vcombine.low %v5490, %v5497
    %v5499 = vcombine.low %v2927, %v2931
    %v5500 = vcombine.low %v2935, %v2939
    %v5501 = vcombine.low %v2943, %v2947
    %v5502 = vcombine.low %v2951, %v2955
    %v5504 = vunpack.c.l.s4 1966171168
    %v5505 = vunpack.c.0.s8 %v5504
    %v5506 = vlaneseq
    %v5507 = vshrl.u32 %v5506, 7
    %v5508 = vsub.s32 %v5505, %v5507
    %v5509 = vrot.slane %v5499, %v5508
    %v5511 = vunpack.c.l.s4 1966171168
    %v5512 = vunpack.c.0.s8 %v5511
    %v5513 = vlaneseq
    %v5514 = vshrl.u32 %v5513, 7
    %v5515 = vsub.s32 %v5512, %v5514
    %v5516 = vrot.slane %v5500, %v5515
    %v5518 = vunpack.c.l.s4 1966171168
    %v5519 = vunpack.c.0.s8 %v5518
    %v5520 = vlaneseq
    %v5521 = vshrl.u32 %v5520, 7
    %v5522 = vsub.s32 %v5519, %v5521
    %v5523 = vrot.slane %v5501, %v5522
    %v5525 = vunpack.c.l.s4 1966171168
    %v5526 = vunpack.c.0.s8 %v5525
    %v5527 = vlaneseq
    %v5528 = vshrl.u32 %v5527, 7
    %v5529 = vsub.s32 %v5526, %v5528
    %v5530 = vrot.slane %v5502, %v5529
    %v5531 = vcombine.low %v5509, %v5516
    %v5532 = vcombine.low %v5523, %v5530
    %v5534 = vunpack.c.l.s4 1966171168
    %v5535 = vunpack.c.0.s8 %v5534
    %v5536 = vlaneseq
    %v5537 = vshrl.u32 %v5536, 7
    %v5538 = vsub.s32 %v5535, %v5537
    %v5539 = vrot.slane %v5531, %v5538
    %v5541 = vunpack.c.l.s4 1966171168
    %v5542 = vunpack.c.0.s8 %v5541
    %v5543 = vlaneseq
    %v5544 = vshrl.u32 %v5543, 7
    %v5545 = vsub.s32 %v5542, %v5544
    %v5546 = vrot.slane %v5532, %v5545
    %v5547 = vcombine.low %v5539, %v5546
    %v5548 = vcombine.low %v2959, %v2963
    %v5549 = vcombine.low %v2967, %v2971
    %v5550 = vcombine.low %v2975, %v2979
    %v5551 = vcombine.low %v2983, %v2987
    %v5553 = vunpack.c.l.s4 1966171168
    %v5554 = vunpack.c.0.s8 %v5553
    %v5555 = vlaneseq
    %v5556 = vshrl.u32 %v5555, 7
    %v5557 = vsub.s32 %v5554, %v5556
    %v5558 = vrot.slane %v5548, %v5557
    %v5560 = vunpack.c.l.s4 1966171168
    %v5561 = vunpack.c.0.s8 %v5560
    %v5562 = vlaneseq
    %v5563 = vshrl.u32 %v5562, 7
    %v5564 = vsub.s32 %v5561, %v5563
    %v5565 = vrot.slane %v5549, %v5564
    %v5567 = vunpack.c.l.s4 1966171168
    %v5568 = vunpack.c.0.s8 %v5567
    %v5569 = vlaneseq
    %v5570 = vshrl.u32 %v5569, 7
    %v5571 = vsub.s32 %v5568, %v5570
    %v5572 = vrot.slane %v5550, %v5571
    %v5574 = vunpack.c.l.s4 1966171168
    %v5575 = vunpack.c.0.s8 %v5574
    %v5576 = vlaneseq
    %v5577 = vshrl.u32 %v5576, 7
    %v5578 = vsub.s32 %v5575, %v5577
    %v5579 = vrot.slane %v5551, %v5578
    %v5580 = vcombine.low %v5558, %v5565
    %v5581 = vcombine.low %v5572, %v5579
    %v5583 = vunpack.c.l.s4 1966171168
    %v5584 = vunpack.c.0.s8 %v5583
    %v5585 = vlaneseq
    %v5586 = vshrl.u32 %v5585, 7
    %v5587 = vsub.s32 %v5584, %v5586
    %v5588 = vrot.slane %v5580, %v5587
    %v5590 = vunpack.c.l.s4 1966171168
    %v5591 = vunpack.c.0.s8 %v5590
    %v5592 = vlaneseq
    %v5593 = vshrl.u32 %v5592, 7
    %v5594 = vsub.s32 %v5591, %v5593
    %v5595 = vrot.slane %v5581, %v5594
    %v5596 = vcombine.low %v5588, %v5595
    %v5597 = vcombine.low %v2991, %v2995
    %v5598 = vcombine.low %v2999, %v3003
    %v5599 = vcombine.low %v3007, %v3011
    %v5600 = vcombine.low %v3015, %v3019
    %v5602 = vunpack.c.l.s4 1966171168
    %v5603 = vunpack.c.0.s8 %v5602
    %v5604 = vlaneseq
    %v5605 = vshrl.u32 %v5604, 7
    %v5606 = vsub.s32 %v5603, %v5605
    %v5607 = vrot.slane %v5597, %v5606
    %v5609 = vunpack.c.l.s4 1966171168
    %v5610 = vunpack.c.0.s8 %v5609
    %v5611 = vlaneseq
    %v5612 = vshrl.u32 %v5611, 7
    %v5613 = vsub.s32 %v5610, %v5612
    %v5614 = vrot.slane %v5598, %v5613
    %v5616 = vunpack.c.l.s4 1966171168
    %v5617 = vunpack.c.0.s8 %v5616
    %v5618 = vlaneseq
    %v5619 = vshrl.u32 %v5618, 7
    %v5620 = vsub.s32 %v5617, %v5619
    %v5621 = vrot.slane %v5599, %v5620
    %v5623 = vunpack.c.l.s4 1966171168
    %v5624 = vunpack.c.0.s8 %v5623
    %v5625 = vlaneseq
    %v5626 = vshrl.u32 %v5625, 7
    %v5627 = vsub.s32 %v5624, %v5626
    %v5628 = vrot.slane %v5600, %v5627
    %v5629 = vcombine.low %v5607, %v5614
    %v5630 = vcombine.low %v5621, %v5628
    %v5632 = vunpack.c.l.s4 1966171168
    %v5633 = vunpack.c.0.s8 %v5632
    %v5634 = vlaneseq
    %v5635 = vshrl.u32 %v5634, 7
    %v5636 = vsub.s32 %v5633, %v5635
    %v5637 = vrot.slane %v5629, %v5636
    %v5639 = vunpack.c.l.s4 1966171168
    %v5640 = vunpack.c.0.s8 %v5639
    %v5641 = vlaneseq
    %v5642 = vshrl.u32 %v5641, 7
    %v5643 = vsub.s32 %v5640, %v5642
    %v5644 = vrot.slane %v5630, %v5643
    %v5645 = vcombine.low %v5637, %v5644
    %v5646 = vcombine.low %v3023, %v3027
    %v5647 = vcombine.low %v3031, %v3035
    %v5648 = vcombine.low %v3039, %v3043
    %v5649 = vcombine.low %v3047, %v3051
    %v5651 = vunpack.c.l.s4 1966171168
    %v5652 = vunpack.c.0.s8 %v5651
    %v5653 = vlaneseq
    %v5654 = vshrl.u32 %v5653, 7
    %v5655 = vsub.s32 %v5652, %v5654
    %v5656 = vrot.slane %v5646, %v5655
    %v5658 = vunpack.c.l.s4 1966171168
    %v5659 = vunpack.c.0.s8 %v5658
    %v5660 = vlaneseq
    %v5661 = vshrl.u32 %v5660, 7
    %v5662 = vsub.s32 %v5659, %v5661
    %v5663 = vrot.slane %v5647, %v5662
    %v5665 = vunpack.c.l.s4 1966171168
    %v5666 = vunpack.c.0.s8 %v5665
    %v5667 = vlaneseq
    %v5668 = vshrl.u32 %v5667, 7
    %v5669 = vsub.s32 %v5666, %v5668
    %v5670 = vrot.slane %v5648, %v5669
    %v5672 = vunpack.c.l.s4 1966171168
    %v5673 = vunpack.c.0.s8 %v5672
    %v5674 = vlaneseq
    %v5675 = vshrl.u32 %v5674, 7
    %v5676 = vsub.s32 %v5673, %v5675
    %v5677 = vrot.slane %v5649, %v5676
    %v5678 = vcombine.low %v5656, %v5663
    %v5679 = vcombine.low %v5670, %v5677
    %v5681 = vunpack.c.l.s4 1966171168
    %v5682 = vunpack.c.0.s8 %v5681
    %v5683 = vlaneseq
    %v5684 = vshrl.u32 %v5683, 7
    %v5685 = vsub.s32 %v5682, %v5684
    %v5686 = vrot.slane %v5678, %v5685
    %v5688 = vunpack.c.l.s4 1966171168
    %v5689 = vunpack.c.0.s8 %v5688
    %v5690 = vlaneseq
    %v5691 = vshrl.u32 %v5690, 7
    %v5692 = vsub.s32 %v5689, %v5691
    %v5693 = vrot.slane %v5679, %v5692
    %v5694 = vcombine.low %v5686, %v5693
    %v5695 = vcombine.low %v3055, %v3059
    %v5696 = vcombine.low %v3063, %v3067
    %v5697 = vcombine.low %v3071, %v3075
    %v5698 = vcombine.low %v3079, %v3083
    %v5700 = vunpack.c.l.s4 1966171168
    %v5701 = vunpack.c.0.s8 %v5700
    %v5702 = vlaneseq
    %v5703 = vshrl.u32 %v5702, 7
    %v5704 = vsub.s32 %v5701, %v5703
    %v5705 = vrot.slane %v5695, %v5704
    %v5707 = vunpack.c.l.s4 1966171168
    %v5708 = vunpack.c.0.s8 %v5707
    %v5709 = vlaneseq
    %v5710 = vshrl.u32 %v5709, 7
    %v5711 = vsub.s32 %v5708, %v5710
    %v5712 = vrot.slane %v5696, %v5711
    %v5714 = vunpack.c.l.s4 1966171168
    %v5715 = vunpack.c.0.s8 %v5714
    %v5716 = vlaneseq
    %v5717 = vshrl.u32 %v5716, 7
    %v5718 = vsub.s32 %v5715, %v5717
    %v5719 = vrot.slane %v5697, %v5718
    %v5721 = vunpack.c.l.s4 1966171168
    %v5722 = vunpack.c.0.s8 %v5721
    %v5723 = vlaneseq
    %v5724 = vshrl.u32 %v5723, 7
    %v5725 = vsub.s32 %v5722, %v5724
    %v5726 = vrot.slane %v5698, %v5725
    %v5727 = vcombine.low %v5705, %v5712
    %v5728 = vcombine.low %v5719, %v5726
    %v5730 = vunpack.c.l.s4 1966171168
    %v5731 = vunpack.c.0.s8 %v5730
    %v5732 = vlaneseq
    %v5733 = vshrl.u32 %v5732, 7
    %v5734 = vsub.s32 %v5731, %v5733
    %v5735 = vrot.slane %v5727, %v5734
    %v5737 = vunpack.c.l.s4 1966171168
    %v5738 = vunpack.c.0.s8 %v5737
    %v5739 = vlaneseq
    %v5740 = vshrl.u32 %v5739, 7
    %v5741 = vsub.s32 %v5738, %v5740
    %v5742 = vrot.slane %v5728, %v5741
    %v5743 = vcombine.low %v5735, %v5742
    %v5744 = vcombine.low %v3087, %v3091
    %v5745 = vcombine.low %v3095, %v3099
    %v5746 = vcombine.low %v3103, %v3107
    %v5747 = vcombine.low %v3111, %v3115
    %v5749 = vunpack.c.l.s4 1966171168
    %v5750 = vunpack.c.0.s8 %v5749
    %v5751 = vlaneseq
    %v5752 = vshrl.u32 %v5751, 7
    %v5753 = vsub.s32 %v5750, %v5752
    %v5754 = vrot.slane %v5744, %v5753
    %v5756 = vunpack.c.l.s4 1966171168
    %v5757 = vunpack.c.0.s8 %v5756
    %v5758 = vlaneseq
    %v5759 = vshrl.u32 %v5758, 7
    %v5760 = vsub.s32 %v5757, %v5759
    %v5761 = vrot.slane %v5745, %v5760
    %v5763 = vunpack.c.l.s4 1966171168
    %v5764 = vunpack.c.0.s8 %v5763
    %v5765 = vlaneseq
    %v5766 = vshrl.u32 %v5765, 7
    %v5767 = vsub.s32 %v5764, %v5766
    %v5768 = vrot.slane %v5746, %v5767
    %v5770 = vunpack.c.l.s4 1966171168
    %v5771 = vunpack.c.0.s8 %v5770
    %v5772 = vlaneseq
    %v5773 = vshrl.u32 %v5772, 7
    %v5774 = vsub.s32 %v5771, %v5773
    %v5775 = vrot.slane %v5747, %v5774
    %v5776 = vcombine.low %v5754, %v5761
    %v5777 = vcombine.low %v5768, %v5775
    %v5779 = vunpack.c.l.s4 1966171168
    %v5780 = vunpack.c.0.s8 %v5779
    %v5781 = vlaneseq
    %v5782 = vshrl.u32 %v5781, 7
    %v5783 = vsub.s32 %v5780, %v5782
    %v5784 = vrot.slane %v5776, %v5783
    %v5786 = vunpack.c.l.s4 1966171168
    %v5787 = vunpack.c.0.s8 %v5786
    %v5788 = vlaneseq
    %v5789 = vshrl.u32 %v5788, 7
    %v5790 = vsub.s32 %v5787, %v5789
    %v5791 = vrot.slane %v5777, %v5790
    %v5792 = vcombine.low %v5784, %v5791
    %v5793 = vcombine.low %v3119, %v3123
    %v5794 = vcombine.low %v3127, %v3131
    %v5795 = vcombine.low %v3135, %v3139
    %v5796 = vcombine.low %v3143, %v3147
    %v5798 = vunpack.c.l.s4 1966171168
    %v5799 = vunpack.c.0.s8 %v5798
    %v5800 = vlaneseq
    %v5801 = vshrl.u32 %v5800, 7
    %v5802 = vsub.s32 %v5799, %v5801
    %v5803 = vrot.slane %v5793, %v5802
    %v5805 = vunpack.c.l.s4 1966171168
    %v5806 = vunpack.c.0.s8 %v5805
    %v5807 = vlaneseq
    %v5808 = vshrl.u32 %v5807, 7
    %v5809 = vsub.s32 %v5806, %v5808
    %v5810 = vrot.slane %v5794, %v5809
    %v5812 = vunpack.c.l.s4 1966171168
    %v5813 = vunpack.c.0.s8 %v5812
    %v5814 = vlaneseq
    %v5815 = vshrl.u32 %v5814, 7
    %v5816 = vsub.s32 %v5813, %v5815
    %v5817 = vrot.slane %v5795, %v5816
    %v5819 = vunpack.c.l.s4 1966171168
    %v5820 = vunpack.c.0.s8 %v5819
    %v5821 = vlaneseq
    %v5822 = vshrl.u32 %v5821, 7
    %v5823 = vsub.s32 %v5820, %v5822
    %v5824 = vrot.slane %v5796, %v5823
    %v5825 = vcombine.low %v5803, %v5810
    %v5826 = vcombine.low %v5817, %v5824
    %v5828 = vunpack.c.l.s4 1966171168
    %v5829 = vunpack.c.0.s8 %v5828
    %v5830 = vlaneseq
    %v5831 = vshrl.u32 %v5830, 7
    %v5832 = vsub.s32 %v5829, %v5831
    %v5833 = vrot.slane %v5825, %v5832
    %v5835 = vunpack.c.l.s4 1966171168
    %v5836 = vunpack.c.0.s8 %v5835
    %v5837 = vlaneseq
    %v5838 = vshrl.u32 %v5837, 7
    %v5839 = vsub.s32 %v5836, %v5838
    %v5840 = vrot.slane %v5826, %v5839
    %v5841 = vcombine.low %v5833, %v5840
    %v5842 = vcombine.low %v3151, %v3155
    %v5843 = vcombine.low %v3159, %v3163
    %v5844 = vcombine.low %v3167, %v3171
    %v5845 = vcombine.low %v3175, %v3179
    %v5847 = vunpack.c.l.s4 1966171168
    %v5848 = vunpack.c.0.s8 %v5847
    %v5849 = vlaneseq
    %v5850 = vshrl.u32 %v5849, 7
    %v5851 = vsub.s32 %v5848, %v5850
    %v5852 = vrot.slane %v5842, %v5851
    %v5854 = vunpack.c.l.s4 1966171168
    %v5855 = vunpack.c.0.s8 %v5854
    %v5856 = vlaneseq
    %v5857 = vshrl.u32 %v5856, 7
    %v5858 = vsub.s32 %v5855, %v5857
    %v5859 = vrot.slane %v5843, %v5858
    %v5861 = vunpack.c.l.s4 1966171168
    %v5862 = vunpack.c.0.s8 %v5861
    %v5863 = vlaneseq
    %v5864 = vshrl.u32 %v5863, 7
    %v5865 = vsub.s32 %v5862, %v5864
    %v5866 = vrot.slane %v5844, %v5865
    %v5868 = vunpack.c.l.s4 1966171168
    %v5869 = vunpack.c.0.s8 %v5868
    %v5870 = vlaneseq
    %v5871 = vshrl.u32 %v5870, 7
    %v5872 = vsub.s32 %v5869, %v5871
    %v5873 = vrot.slane %v5845, %v5872
    %v5874 = vcombine.low %v5852, %v5859
    %v5875 = vcombine.low %v5866, %v5873
    %v5877 = vunpack.c.l.s4 1966171168
    %v5878 = vunpack.c.0.s8 %v5877
    %v5879 = vlaneseq
    %v5880 = vshrl.u32 %v5879, 7
    %v5881 = vsub.s32 %v5878, %v5880
    %v5882 = vrot.slane %v5874, %v5881
    %v5884 = vunpack.c.l.s4 1966171168
    %v5885 = vunpack.c.0.s8 %v5884
    %v5886 = vlaneseq
    %v5887 = vshrl.u32 %v5886, 7
    %v5888 = vsub.s32 %v5885, %v5887
    %v5889 = vrot.slane %v5875, %v5888
    %v5890 = vcombine.low %v5882, %v5889
    %v5891 = vcombine.low %v3183, %v3187
    %v5892 = vcombine.low %v3191, %v3195
    %v5893 = vcombine.low %v3199, %v3203
    %v5894 = vcombine.low %v3207, %v3211
    %v5896 = vunpack.c.l.s4 1966171168
    %v5897 = vunpack.c.0.s8 %v5896
    %v5898 = vlaneseq
    %v5899 = vshrl.u32 %v5898, 7
    %v5900 = vsub.s32 %v5897, %v5899
    %v5901 = vrot.slane %v5891, %v5900
    %v5903 = vunpack.c.l.s4 1966171168
    %v5904 = vunpack.c.0.s8 %v5903
    %v5905 = vlaneseq
    %v5906 = vshrl.u32 %v5905, 7
    %v5907 = vsub.s32 %v5904, %v5906
    %v5908 = vrot.slane %v5892, %v5907
    %v5910 = vunpack.c.l.s4 1966171168
    %v5911 = vunpack.c.0.s8 %v5910
    %v5912 = vlaneseq
    %v5913 = vshrl.u32 %v5912, 7
    %v5914 = vsub.s32 %v5911, %v5913
    %v5915 = vrot.slane %v5893, %v5914
    %v5917 = vunpack.c.l.s4 1966171168
    %v5918 = vunpack.c.0.s8 %v5917
    %v5919 = vlaneseq
    %v5920 = vshrl.u32 %v5919, 7
    %v5921 = vsub.s32 %v5918, %v5920
    %v5922 = vrot.slane %v5894, %v5921
    %v5923 = vcombine.low %v5901, %v5908
    %v5924 = vcombine.low %v5915, %v5922
    %v5926 = vunpack.c.l.s4 1966171168
    %v5927 = vunpack.c.0.s8 %v5926
    %v5928 = vlaneseq
    %v5929 = vshrl.u32 %v5928, 7
    %v5930 = vsub.s32 %v5927, %v5929
    %v5931 = vrot.slane %v5923, %v5930
    %v5933 = vunpack.c.l.s4 1966171168
    %v5934 = vunpack.c.0.s8 %v5933
    %v5935 = vlaneseq
    %v5936 = vshrl.u32 %v5935, 7
    %v5937 = vsub.s32 %v5934, %v5936
    %v5938 = vrot.slane %v5924, %v5937
    %v5939 = vcombine.low %v5931, %v5938
    %v5940 = vcombine.low %v3215, %v3219
    %v5941 = vcombine.low %v3223, %v3227
    %v5942 = vcombine.low %v3231, %v3235
    %v5943 = vcombine.low %v3239, %v3243
    %v5945 = vunpack.c.l.s4 1966171168
    %v5946 = vunpack.c.0.s8 %v5945
    %v5947 = vlaneseq
    %v5948 = vshrl.u32 %v5947, 7
    %v5949 = vsub.s32 %v5946, %v5948
    %v5950 = vrot.slane %v5940, %v5949
    %v5952 = vunpack.c.l.s4 1966171168
    %v5953 = vunpack.c.0.s8 %v5952
    %v5954 = vlaneseq
    %v5955 = vshrl.u32 %v5954, 7
    %v5956 = vsub.s32 %v5953, %v5955
    %v5957 = vrot.slane %v5941, %v5956
    %v5959 = vunpack.c.l.s4 1966171168
    %v5960 = vunpack.c.0.s8 %v5959
    %v5961 = vlaneseq
    %v5962 = vshrl.u32 %v5961, 7
    %v5963 = vsub.s32 %v5960, %v5962
    %v5964 = vrot.slane %v5942, %v5963
    %v5966 = vunpack.c.l.s4 1966171168
    %v5967 = vunpack.c.0.s8 %v5966
    %v5968 = vlaneseq
    %v5969 = vshrl.u32 %v5968, 7
    %v5970 = vsub.s32 %v5967, %v5969
    %v5971 = vrot.slane %v5943, %v5970
    %v5972 = vcombine.low %v5950, %v5957
    %v5973 = vcombine.low %v5964, %v5971
    %v5975 = vunpack.c.l.s4 1966171168
    %v5976 = vunpack.c.0.s8 %v5975
    %v5977 = vlaneseq
    %v5978 = vshrl.u32 %v5977, 7
    %v5979 = vsub.s32 %v5976, %v5978
    %v5980 = vrot.slane %v5972, %v5979
    %v5982 = vunpack.c.l.s4 1966171168
    %v5983 = vunpack.c.0.s8 %v5982
    %v5984 = vlaneseq
    %v5985 = vshrl.u32 %v5984, 7
    %v5986 = vsub.s32 %v5983, %v5985
    %v5987 = vrot.slane %v5973, %v5986
    %v5988 = vcombine.low %v5980, %v5987
    %v5989 = vcombine.low %v3247, %v3251
    %v5990 = vcombine.low %v3255, %v3259
    %v5991 = vcombine.low %v3263, %v3267
    %v5992 = vcombine.low %v3271, %v3275
    %v5994 = vunpack.c.l.s4 1966171168
    %v5995 = vunpack.c.0.s8 %v5994
    %v5996 = vlaneseq
    %v5997 = vshrl.u32 %v5996, 7
    %v5998 = vsub.s32 %v5995, %v5997
    %v5999 = vrot.slane %v5989, %v5998
    %v6001 = vunpack.c.l.s4 1966171168
    %v6002 = vunpack.c.0.s8 %v6001
    %v6003 = vlaneseq
    %v6004 = vshrl.u32 %v6003, 7
    %v6005 = vsub.s32 %v6002, %v6004
    %v6006 = vrot.slane %v5990, %v6005
    %v6008 = vunpack.c.l.s4 1966171168
    %v6009 = vunpack.c.0.s8 %v6008
    %v6010 = vlaneseq
    %v6011 = vshrl.u32 %v6010, 7
    %v6012 = vsub.s32 %v6009, %v6011
    %v6013 = vrot.slane %v5991, %v6012
    %v6015 = vunpack.c.l.s4 1966171168
    %v6016 = vunpack.c.0.s8 %v6015
    %v6017 = vlaneseq
    %v6018 = vshrl.u32 %v6017, 7
    %v6019 = vsub.s32 %v6016, %v6018
    %v6020 = vrot.slane %v5992, %v6019
    %v6021 = vcombine.low %v5999, %v6006
    %v6022 = vcombine.low %v6013, %v6020
    %v6024 = vunpack.c.l.s4 1966171168
    %v6025 = vunpack.c.0.s8 %v6024
    %v6026 = vlaneseq
    %v6027 = vshrl.u32 %v6026, 7
    %v6028 = vsub.s32 %v6025, %v6027
    %v6029 = vrot.slane %v6021, %v6028
    %v6031 = vunpack.c.l.s4 1966171168
    %v6032 = vunpack.c.0.s8 %v6031
    %v6033 = vlaneseq
    %v6034 = vshrl.u32 %v6033, 7
    %v6035 = vsub.s32 %v6032, %v6034
    %v6036 = vrot.slane %v6022, %v6035
    %v6037 = vcombine.low %v6029, %v6036
    %v6038 = vcombine.low %v3279, %v3283
    %v6039 = vcombine.low %v3287, %v3291
    %v6040 = vcombine.low %v3295, %v3299
    %v6041 = vcombine.low %v3303, %v3307
    %v6043 = vunpack.c.l.s4 1966171168
    %v6044 = vunpack.c.0.s8 %v6043
    %v6045 = vlaneseq
    %v6046 = vshrl.u32 %v6045, 7
    %v6047 = vsub.s32 %v6044, %v6046
    %v6048 = vrot.slane %v6038, %v6047
    %v6050 = vunpack.c.l.s4 1966171168
    %v6051 = vunpack.c.0.s8 %v6050
    %v6052 = vlaneseq
    %v6053 = vshrl.u32 %v6052, 7
    %v6054 = vsub.s32 %v6051, %v6053
    %v6055 = vrot.slane %v6039, %v6054
    %v6057 = vunpack.c.l.s4 1966171168
    %v6058 = vunpack.c.0.s8 %v6057
    %v6059 = vlaneseq
    %v6060 = vshrl.u32 %v6059, 7
    %v6061 = vsub.s32 %v6058, %v6060
    %v6062 = vrot.slane %v6040, %v6061
    %v6064 = vunpack.c.l.s4 1966171168
    %v6065 = vunpack.c.0.s8 %v6064
    %v6066 = vlaneseq
    %v6067 = vshrl.u32 %v6066, 7
    %v6068 = vsub.s32 %v6065, %v6067
    %v6069 = vrot.slane %v6041, %v6068
    %v6070 = vcombine.low %v6048, %v6055
    %v6071 = vcombine.low %v6062, %v6069
    %v6073 = vunpack.c.l.s4 1966171168
    %v6074 = vunpack.c.0.s8 %v6073
    %v6075 = vlaneseq
    %v6076 = vshrl.u32 %v6075, 7
    %v6077 = vsub.s32 %v6074, %v6076
    %v6078 = vrot.slane %v6070, %v6077
    %v6080 = vunpack.c.l.s4 1966171168
    %v6081 = vunpack.c.0.s8 %v6080
    %v6082 = vlaneseq
    %v6083 = vshrl.u32 %v6082, 7
    %v6084 = vsub.s32 %v6081, %v6083
    %v6085 = vrot.slane %v6071, %v6084
    %v6086 = vcombine.low %v6078, %v6085
    %v6087 = vcombine.low %v3311, %v3315
    %v6088 = vcombine.low %v3319, %v3323
    %v6089 = vcombine.low %v3327, %v3331
    %v6090 = vcombine.low %v3335, %v3339
    %v6092 = vunpack.c.l.s4 1966171168
    %v6093 = vunpack.c.0.s8 %v6092
    %v6094 = vlaneseq
    %v6095 = vshrl.u32 %v6094, 7
    %v6096 = vsub.s32 %v6093, %v6095
    %v6097 = vrot.slane %v6087, %v6096
    %v6099 = vunpack.c.l.s4 1966171168
    %v6100 = vunpack.c.0.s8 %v6099
    %v6101 = vlaneseq
    %v6102 = vshrl.u32 %v6101, 7
    %v6103 = vsub.s32 %v6100, %v6102
    %v6104 = vrot.slane %v6088, %v6103
    %v6106 = vunpack.c.l.s4 1966171168
    %v6107 = vunpack.c.0.s8 %v6106
    %v6108 = vlaneseq
    %v6109 = vshrl.u32 %v6108, 7
    %v6110 = vsub.s32 %v6107, %v6109
    %v6111 = vrot.slane %v6089, %v6110
    %v6113 = vunpack.c.l.s4 1966171168
    %v6114 = vunpack.c.0.s8 %v6113
    %v6115 = vlaneseq
    %v6116 = vshrl.u32 %v6115, 7
    %v6117 = vsub.s32 %v6114, %v6116
    %v6118 = vrot.slane %v6090, %v6117
    %v6119 = vcombine.low %v6097, %v6104
    %v6120 = vcombine.low %v6111, %v6118
    %v6122 = vunpack.c.l.s4 1966171168
    %v6123 = vunpack.c.0.s8 %v6122
    %v6124 = vlaneseq
    %v6125 = vshrl.u32 %v6124, 7
    %v6126 = vsub.s32 %v6123, %v6125
    %v6127 = vrot.slane %v6119, %v6126
    %v6129 = vunpack.c.l.s4 1966171168
    %v6130 = vunpack.c.0.s8 %v6129
    %v6131 = vlaneseq
    %v6132 = vshrl.u32 %v6131, 7
    %v6133 = vsub.s32 %v6130, %v6132
    %v6134 = vrot.slane %v6120, %v6133
    %v6135 = vcombine.low %v6127, %v6134
    %v6136 = vcombine.low %v3343, %v3347
    %v6137 = vcombine.low %v3351, %v3355
    %v6138 = vcombine.low %v3359, %v3363
    %v6139 = vcombine.low %v3367, %v3371
    %v6141 = vunpack.c.l.s4 1966171168
    %v6142 = vunpack.c.0.s8 %v6141
    %v6143 = vlaneseq
    %v6144 = vshrl.u32 %v6143, 7
    %v6145 = vsub.s32 %v6142, %v6144
    %v6146 = vrot.slane %v6136, %v6145
    %v6148 = vunpack.c.l.s4 1966171168
    %v6149 = vunpack.c.0.s8 %v6148
    %v6150 = vlaneseq
    %v6151 = vshrl.u32 %v6150, 7
    %v6152 = vsub.s32 %v6149, %v6151
    %v6153 = vrot.slane %v6137, %v6152
    %v6155 = vunpack.c.l.s4 1966171168
    %v6156 = vunpack.c.0.s8 %v6155
    %v6157 = vlaneseq
    %v6158 = vshrl.u32 %v6157, 7
    %v6159 = vsub.s32 %v6156, %v6158
    %v6160 = vrot.slane %v6138, %v6159
    %v6162 = vunpack.c.l.s4 1966171168
    %v6163 = vunpack.c.0.s8 %v6162
    %v6164 = vlaneseq
    %v6165 = vshrl.u32 %v6164, 7
    %v6166 = vsub.s32 %v6163, %v6165
    %v6167 = vrot.slane %v6139, %v6166
    %v6168 = vcombine.low %v6146, %v6153
    %v6169 = vcombine.low %v6160, %v6167
    %v6171 = vunpack.c.l.s4 1966171168
    %v6172 = vunpack.c.0.s8 %v6171
    %v6173 = vlaneseq
    %v6174 = vshrl.u32 %v6173, 7
    %v6175 = vsub.s32 %v6172, %v6174
    %v6176 = vrot.slane %v6168, %v6175
    %v6178 = vunpack.c.l.s4 1966171168
    %v6179 = vunpack.c.0.s8 %v6178
    %v6180 = vlaneseq
    %v6181 = vshrl.u32 %v6180, 7
    %v6182 = vsub.s32 %v6179, %v6181
    %v6183 = vrot.slane %v6169, %v6182
    %v6184 = vcombine.low %v6176, %v6183
    %v6185 = vcombine.low %v3375, %v3379
    %v6186 = vcombine.low %v3383, %v3387
    %v6187 = vcombine.low %v3391, %v3395
    %v6188 = vcombine.low %v3399, %v3403
    %v6190 = vunpack.c.l.s4 1966171168
    %v6191 = vunpack.c.0.s8 %v6190
    %v6192 = vlaneseq
    %v6193 = vshrl.u32 %v6192, 7
    %v6194 = vsub.s32 %v6191, %v6193
    %v6195 = vrot.slane %v6185, %v6194
    %v6197 = vunpack.c.l.s4 1966171168
    %v6198 = vunpack.c.0.s8 %v6197
    %v6199 = vlaneseq
    %v6200 = vshrl.u32 %v6199, 7
    %v6201 = vsub.s32 %v6198, %v6200
    %v6202 = vrot.slane %v6186, %v6201
    %v6204 = vunpack.c.l.s4 1966171168
    %v6205 = vunpack.c.0.s8 %v6204
    %v6206 = vlaneseq
    %v6207 = vshrl.u32 %v6206, 7
    %v6208 = vsub.s32 %v6205, %v6207
    %v6209 = vrot.slane %v6187, %v6208
    %v6211 = vunpack.c.l.s4 1966171168
    %v6212 = vunpack.c.0.s8 %v6211
    %v6213 = vlaneseq
    %v6214 = vshrl.u32 %v6213, 7
    %v6215 = vsub.s32 %v6212, %v6214
    %v6216 = vrot.slane %v6188, %v6215
    %v6217 = vcombine.low %v6195, %v6202
    %v6218 = vcombine.low %v6209, %v6216
    %v6220 = vunpack.c.l.s4 1966171168
    %v6221 = vunpack.c.0.s8 %v6220
    %v6222 = vlaneseq
    %v6223 = vshrl.u32 %v6222, 7
    %v6224 = vsub.s32 %v6221, %v6223
    %v6225 = vrot.slane %v6217, %v6224
    %v6227 = vunpack.c.l.s4 1966171168
    %v6228 = vunpack.c.0.s8 %v6227
    %v6229 = vlaneseq
    %v6230 = vshrl.u32 %v6229, 7
    %v6231 = vsub.s32 %v6228, %v6230
    %v6232 = vrot.slane %v6218, %v6231
    %v6233 = vcombine.low %v6225, %v6232
    %v6234 = vcombine.low %v3407, %v3411
    %v6235 = vcombine.low %v3415, %v3419
    %v6236 = vcombine.low %v3423, %v3427
    %v6237 = vcombine.low %v3431, %v3435
    %v6239 = vunpack.c.l.s4 1966171168
    %v6240 = vunpack.c.0.s8 %v6239
    %v6241 = vlaneseq
    %v6242 = vshrl.u32 %v6241, 7
    %v6243 = vsub.s32 %v6240, %v6242
    %v6244 = vrot.slane %v6234, %v6243
    %v6246 = vunpack.c.l.s4 1966171168
    %v6247 = vunpack.c.0.s8 %v6246
    %v6248 = vlaneseq
    %v6249 = vshrl.u32 %v6248, 7
    %v6250 = vsub.s32 %v6247, %v6249
    %v6251 = vrot.slane %v6235, %v6250
    %v6253 = vunpack.c.l.s4 1966171168
    %v6254 = vunpack.c.0.s8 %v6253
    %v6255 = vlaneseq
    %v6256 = vshrl.u32 %v6255, 7
    %v6257 = vsub.s32 %v6254, %v6256
    %v6258 = vrot.slane %v6236, %v6257
    %v6260 = vunpack.c.l.s4 1966171168
    %v6261 = vunpack.c.0.s8 %v6260
    %v6262 = vlaneseq
    %v6263 = vshrl.u32 %v6262, 7
    %v6264 = vsub.s32 %v6261, %v6263
    %v6265 = vrot.slane %v6237, %v6264
    %v6266 = vcombine.low %v6244, %v6251
    %v6267 = vcombine.low %v6258, %v6265
    %v6269 = vunpack.c.l.s4 1966171168
    %v6270 = vunpack.c.0.s8 %v6269
    %v6271 = vlaneseq
    %v6272 = vshrl.u32 %v6271, 7
    %v6273 = vsub.s32 %v6270, %v6272
    %v6274 = vrot.slane %v6266, %v6273
    %v6276 = vunpack.c.l.s4 1966171168
    %v6277 = vunpack.c.0.s8 %v6276
    %v6278 = vlaneseq
    %v6279 = vshrl.u32 %v6278, 7
    %v6280 = vsub.s32 %v6277, %v6279
    %v6281 = vrot.slane %v6267, %v6280
    %v6282 = vcombine.low %v6274, %v6281
    %v6283 = vcombine.low %v3439, %v3443
    %v6284 = vcombine.low %v3447, %v3451
    %v6285 = vcombine.low %v3455, %v3459
    %v6286 = vcombine.low %v3463, %v3467
    %v6288 = vunpack.c.l.s4 1966171168
    %v6289 = vunpack.c.0.s8 %v6288
    %v6290 = vlaneseq
    %v6291 = vshrl.u32 %v6290, 7
    %v6292 = vsub.s32 %v6289, %v6291
    %v6293 = vrot.slane %v6283, %v6292
    %v6295 = vunpack.c.l.s4 1966171168
    %v6296 = vunpack.c.0.s8 %v6295
    %v6297 = vlaneseq
    %v6298 = vshrl.u32 %v6297, 7
    %v6299 = vsub.s32 %v6296, %v6298
    %v6300 = vrot.slane %v6284, %v6299
    %v6302 = vunpack.c.l.s4 1966171168
    %v6303 = vunpack.c.0.s8 %v6302
    %v6304 = vlaneseq
    %v6305 = vshrl.u32 %v6304, 7
    %v6306 = vsub.s32 %v6303, %v6305
    %v6307 = vrot.slane %v6285, %v6306
    %v6309 = vunpack.c.l.s4 1966171168
    %v6310 = vunpack.c.0.s8 %v6309
    %v6311 = vlaneseq
    %v6312 = vshrl.u32 %v6311, 7
    %v6313 = vsub.s32 %v6310, %v6312
    %v6314 = vrot.slane %v6286, %v6313
    %v6315 = vcombine.low %v6293, %v6300
    %v6316 = vcombine.low %v6307, %v6314
    %v6318 = vunpack.c.l.s4 1966171168
    %v6319 = vunpack.c.0.s8 %v6318
    %v6320 = vlaneseq
    %v6321 = vshrl.u32 %v6320, 7
    %v6322 = vsub.s32 %v6319, %v6321
    %v6323 = vrot.slane %v6315, %v6322
    %v6325 = vunpack.c.l.s4 1966171168
    %v6326 = vunpack.c.0.s8 %v6325
    %v6327 = vlaneseq
    %v6328 = vshrl.u32 %v6327, 7
    %v6329 = vsub.s32 %v6326, %v6328
    %v6330 = vrot.slane %v6316, %v6329
    %v6331 = vcombine.low %v6323, %v6330
    %v6332 = vcombine.low %v3471, %v3475
    %v6333 = vcombine.low %v3479, %v3483
    %v6334 = vcombine.low %v3487, %v3491
    %v6335 = vcombine.low %v3495, %v3499
    %v6337 = vunpack.c.l.s4 1966171168
    %v6338 = vunpack.c.0.s8 %v6337
    %v6339 = vlaneseq
    %v6340 = vshrl.u32 %v6339, 7
    %v6341 = vsub.s32 %v6338, %v6340
    %v6342 = vrot.slane %v6332, %v6341
    %v6344 = vunpack.c.l.s4 1966171168
    %v6345 = vunpack.c.0.s8 %v6344
    %v6346 = vlaneseq
    %v6347 = vshrl.u32 %v6346, 7
    %v6348 = vsub.s32 %v6345, %v6347
    %v6349 = vrot.slane %v6333, %v6348
    %v6351 = vunpack.c.l.s4 1966171168
    %v6352 = vunpack.c.0.s8 %v6351
    %v6353 = vlaneseq
    %v6354 = vshrl.u32 %v6353, 7
    %v6355 = vsub.s32 %v6352, %v6354
    %v6356 = vrot.slane %v6334, %v6355
    %v6358 = vunpack.c.l.s4 1966171168
    %v6359 = vunpack.c.0.s8 %v6358
    %v6360 = vlaneseq
    %v6361 = vshrl.u32 %v6360, 7
    %v6362 = vsub.s32 %v6359, %v6361
    %v6363 = vrot.slane %v6335, %v6362
    %v6364 = vcombine.low %v6342, %v6349
    %v6365 = vcombine.low %v6356, %v6363
    %v6367 = vunpack.c.l.s4 1966171168
    %v6368 = vunpack.c.0.s8 %v6367
    %v6369 = vlaneseq
    %v6370 = vshrl.u32 %v6369, 7
    %v6371 = vsub.s32 %v6368, %v6370
    %v6372 = vrot.slane %v6364, %v6371
    %v6374 = vunpack.c.l.s4 1966171168
    %v6375 = vunpack.c.0.s8 %v6374
    %v6376 = vlaneseq
    %v6377 = vshrl.u32 %v6376, 7
    %v6378 = vsub.s32 %v6375, %v6377
    %v6379 = vrot.slane %v6365, %v6378
    %v6380 = vcombine.low %v6372, %v6379
    %v6381 = vcombine.low %v3503, %v3507
    %v6382 = vcombine.low %v3511, %v3515
    %v6383 = vcombine.low %v3519, %v3523
    %v6384 = vcombine.low %v3527, %v3531
    %v6386 = vunpack.c.l.s4 1966171168
    %v6387 = vunpack.c.0.s8 %v6386
    %v6388 = vlaneseq
    %v6389 = vshrl.u32 %v6388, 7
    %v6390 = vsub.s32 %v6387, %v6389
    %v6391 = vrot.slane %v6381, %v6390
    %v6393 = vunpack.c.l.s4 1966171168
    %v6394 = vunpack.c.0.s8 %v6393
    %v6395 = vlaneseq
    %v6396 = vshrl.u32 %v6395, 7
    %v6397 = vsub.s32 %v6394, %v6396
    %v6398 = vrot.slane %v6382, %v6397
    %v6400 = vunpack.c.l.s4 1966171168
    %v6401 = vunpack.c.0.s8 %v6400
    %v6402 = vlaneseq
    %v6403 = vshrl.u32 %v6402, 7
    %v6404 = vsub.s32 %v6401, %v6403
    %v6405 = vrot.slane %v6383, %v6404
    %v6407 = vunpack.c.l.s4 1966171168
    %v6408 = vunpack.c.0.s8 %v6407
    %v6409 = vlaneseq
    %v6410 = vshrl.u32 %v6409, 7
    %v6411 = vsub.s32 %v6408, %v6410
    %v6412 = vrot.slane %v6384, %v6411
    %v6413 = vcombine.low %v6391, %v6398
    %v6414 = vcombine.low %v6405, %v6412
    %v6416 = vunpack.c.l.s4 1966171168
    %v6417 = vunpack.c.0.s8 %v6416
    %v6418 = vlaneseq
    %v6419 = vshrl.u32 %v6418, 7
    %v6420 = vsub.s32 %v6417, %v6419
    %v6421 = vrot.slane %v6413, %v6420
    %v6423 = vunpack.c.l.s4 1966171168
    %v6424 = vunpack.c.0.s8 %v6423
    %v6425 = vlaneseq
    %v6426 = vshrl.u32 %v6425, 7
    %v6427 = vsub.s32 %v6424, %v6426
    %v6428 = vrot.slane %v6414, %v6427
    %v6429 = vcombine.low %v6421, %v6428
    %v6430 = vcombine.low %v3535, %v3539
    %v6431 = vcombine.low %v3543, %v3547
    %v6432 = vcombine.low %v3551, %v3555
    %v6433 = vcombine.low %v3559, %v3563
    %v6435 = vunpack.c.l.s4 1966171168
    %v6436 = vunpack.c.0.s8 %v6435
    %v6437 = vlaneseq
    %v6438 = vshrl.u32 %v6437, 7
    %v6439 = vsub.s32 %v6436, %v6438
    %v6440 = vrot.slane %v6430, %v6439
    %v6442 = vunpack.c.l.s4 1966171168
    %v6443 = vunpack.c.0.s8 %v6442
    %v6444 = vlaneseq
    %v6445 = vshrl.u32 %v6444, 7
    %v6446 = vsub.s32 %v6443, %v6445
    %v6447 = vrot.slane %v6431, %v6446
    %v6449 = vunpack.c.l.s4 1966171168
    %v6450 = vunpack.c.0.s8 %v6449
    %v6451 = vlaneseq
    %v6452 = vshrl.u32 %v6451, 7
    %v6453 = vsub.s32 %v6450, %v6452
    %v6454 = vrot.slane %v6432, %v6453
    %v6456 = vunpack.c.l.s4 1966171168
    %v6457 = vunpack.c.0.s8 %v6456
    %v6458 = vlaneseq
    %v6459 = vshrl.u32 %v6458, 7
    %v6460 = vsub.s32 %v6457, %v6459
    %v6461 = vrot.slane %v6433, %v6460
    %v6462 = vcombine.low %v6440, %v6447
    %v6463 = vcombine.low %v6454, %v6461
    %v6465 = vunpack.c.l.s4 1966171168
    %v6466 = vunpack.c.0.s8 %v6465
    %v6467 = vlaneseq
    %v6468 = vshrl.u32 %v6467, 7
    %v6469 = vsub.s32 %v6466, %v6468
    %v6470 = vrot.slane %v6462, %v6469
    %v6472 = vunpack.c.l.s4 1966171168
    %v6473 = vunpack.c.0.s8 %v6472
    %v6474 = vlaneseq
    %v6475 = vshrl.u32 %v6474, 7
    %v6476 = vsub.s32 %v6473, %v6475
    %v6477 = vrot.slane %v6463, %v6476
    %v6478 = vcombine.low %v6470, %v6477
    %v6479 = vcombine.low %v3567, %v3571
    %v6480 = vcombine.low %v3575, %v3579
    %v6481 = vcombine.low %v3583, %v3587
    %v6482 = vcombine.low %v3591, %v3595
    %v6484 = vunpack.c.l.s4 1966171168
    %v6485 = vunpack.c.0.s8 %v6484
    %v6486 = vlaneseq
    %v6487 = vshrl.u32 %v6486, 7
    %v6488 = vsub.s32 %v6485, %v6487
    %v6489 = vrot.slane %v6479, %v6488
    %v6491 = vunpack.c.l.s4 1966171168
    %v6492 = vunpack.c.0.s8 %v6491
    %v6493 = vlaneseq
    %v6494 = vshrl.u32 %v6493, 7
    %v6495 = vsub.s32 %v6492, %v6494
    %v6496 = vrot.slane %v6480, %v6495
    %v6498 = vunpack.c.l.s4 1966171168
    %v6499 = vunpack.c.0.s8 %v6498
    %v6500 = vlaneseq
    %v6501 = vshrl.u32 %v6500, 7
    %v6502 = vsub.s32 %v6499, %v6501
    %v6503 = vrot.slane %v6481, %v6502
    %v6505 = vunpack.c.l.s4 1966171168
    %v6506 = vunpack.c.0.s8 %v6505
    %v6507 = vlaneseq
    %v6508 = vshrl.u32 %v6507, 7
    %v6509 = vsub.s32 %v6506, %v6508
    %v6510 = vrot.slane %v6482, %v6509
    %v6511 = vcombine.low %v6489, %v6496
    %v6512 = vcombine.low %v6503, %v6510
    %v6514 = vunpack.c.l.s4 1966171168
    %v6515 = vunpack.c.0.s8 %v6514
    %v6516 = vlaneseq
    %v6517 = vshrl.u32 %v6516, 7
    %v6518 = vsub.s32 %v6515, %v6517
    %v6519 = vrot.slane %v6511, %v6518
    %v6521 = vunpack.c.l.s4 1966171168
    %v6522 = vunpack.c.0.s8 %v6521
    %v6523 = vlaneseq
    %v6524 = vshrl.u32 %v6523, 7
    %v6525 = vsub.s32 %v6522, %v6524
    %v6526 = vrot.slane %v6512, %v6525
    %v6527 = vcombine.low %v6519, %v6526
    %v6528 = vcombine.low %v3599, %v3603
    %v6529 = vcombine.low %v3607, %v3611
    %v6530 = vcombine.low %v3615, %v3619
    %v6531 = vcombine.low %v3623, %v3627
    %v6533 = vunpack.c.l.s4 1966171168
    %v6534 = vunpack.c.0.s8 %v6533
    %v6535 = vlaneseq
    %v6536 = vshrl.u32 %v6535, 7
    %v6537 = vsub.s32 %v6534, %v6536
    %v6538 = vrot.slane %v6528, %v6537
    %v6540 = vunpack.c.l.s4 1966171168
    %v6541 = vunpack.c.0.s8 %v6540
    %v6542 = vlaneseq
    %v6543 = vshrl.u32 %v6542, 7
    %v6544 = vsub.s32 %v6541, %v6543
    %v6545 = vrot.slane %v6529, %v6544
    %v6547 = vunpack.c.l.s4 1966171168
    %v6548 = vunpack.c.0.s8 %v6547
    %v6549 = vlaneseq
    %v6550 = vshrl.u32 %v6549, 7
    %v6551 = vsub.s32 %v6548, %v6550
    %v6552 = vrot.slane %v6530, %v6551
    %v6554 = vunpack.c.l.s4 1966171168
    %v6555 = vunpack.c.0.s8 %v6554
    %v6556 = vlaneseq
    %v6557 = vshrl.u32 %v6556, 7
    %v6558 = vsub.s32 %v6555, %v6557
    %v6559 = vrot.slane %v6531, %v6558
    %v6560 = vcombine.low %v6538, %v6545
    %v6561 = vcombine.low %v6552, %v6559
    %v6563 = vunpack.c.l.s4 1966171168
    %v6564 = vunpack.c.0.s8 %v6563
    %v6565 = vlaneseq
    %v6566 = vshrl.u32 %v6565, 7
    %v6567 = vsub.s32 %v6564, %v6566
    %v6568 = vrot.slane %v6560, %v6567
    %v6570 = vunpack.c.l.s4 1966171168
    %v6571 = vunpack.c.0.s8 %v6570
    %v6572 = vlaneseq
    %v6573 = vshrl.u32 %v6572, 7
    %v6574 = vsub.s32 %v6571, %v6573
    %v6575 = vrot.slane %v6561, %v6574
    %v6576 = vcombine.low %v6568, %v6575
    %v6577 = vcombine.low %v3631, %v3635
    %v6578 = vcombine.low %v3639, %v3643
    %v6579 = vcombine.low %v3647, %v3651
    %v6580 = vcombine.low %v3655, %v3659
    %v6582 = vunpack.c.l.s4 1966171168
    %v6583 = vunpack.c.0.s8 %v6582
    %v6584 = vlaneseq
    %v6585 = vshrl.u32 %v6584, 7
    %v6586 = vsub.s32 %v6583, %v6585
    %v6587 = vrot.slane %v6577, %v6586
    %v6589 = vunpack.c.l.s4 1966171168
    %v6590 = vunpack.c.0.s8 %v6589
    %v6591 = vlaneseq
    %v6592 = vshrl.u32 %v6591, 7
    %v6593 = vsub.s32 %v6590, %v6592
    %v6594 = vrot.slane %v6578, %v6593
    %v6596 = vunpack.c.l.s4 1966171168
    %v6597 = vunpack.c.0.s8 %v6596
    %v6598 = vlaneseq
    %v6599 = vshrl.u32 %v6598, 7
    %v6600 = vsub.s32 %v6597, %v6599
    %v6601 = vrot.slane %v6579, %v6600
    %v6603 = vunpack.c.l.s4 1966171168
    %v6604 = vunpack.c.0.s8 %v6603
    %v6605 = vlaneseq
    %v6606 = vshrl.u32 %v6605, 7
    %v6607 = vsub.s32 %v6604, %v6606
    %v6608 = vrot.slane %v6580, %v6607
    %v6609 = vcombine.low %v6587, %v6594
    %v6610 = vcombine.low %v6601, %v6608
    %v6612 = vunpack.c.l.s4 1966171168
    %v6613 = vunpack.c.0.s8 %v6612
    %v6614 = vlaneseq
    %v6615 = vshrl.u32 %v6614, 7
    %v6616 = vsub.s32 %v6613, %v6615
    %v6617 = vrot.slane %v6609, %v6616
    %v6619 = vunpack.c.l.s4 1966171168
    %v6620 = vunpack.c.0.s8 %v6619
    %v6621 = vlaneseq
    %v6622 = vshrl.u32 %v6621, 7
    %v6623 = vsub.s32 %v6620, %v6622
    %v6624 = vrot.slane %v6610, %v6623
    %v6625 = vcombine.low %v6617, %v6624
    %v6626 = vcombine.low %v3663, %v3667
    %v6627 = vcombine.low %v3671, %v3675
    %v6628 = vcombine.low %v3679, %v3683
    %v6629 = vcombine.low %v3687, %v3691
    %v6631 = vunpack.c.l.s4 1966171168
    %v6632 = vunpack.c.0.s8 %v6631
    %v6633 = vlaneseq
    %v6634 = vshrl.u32 %v6633, 7
    %v6635 = vsub.s32 %v6632, %v6634
    %v6636 = vrot.slane %v6626, %v6635
    %v6638 = vunpack.c.l.s4 1966171168
    %v6639 = vunpack.c.0.s8 %v6638
    %v6640 = vlaneseq
    %v6641 = vshrl.u32 %v6640, 7
    %v6642 = vsub.s32 %v6639, %v6641
    %v6643 = vrot.slane %v6627, %v6642
    %v6645 = vunpack.c.l.s4 1966171168
    %v6646 = vunpack.c.0.s8 %v6645
    %v6647 = vlaneseq
    %v6648 = vshrl.u32 %v6647, 7
    %v6649 = vsub.s32 %v6646, %v6648
    %v6650 = vrot.slane %v6628, %v6649
    %v6652 = vunpack.c.l.s4 1966171168
    %v6653 = vunpack.c.0.s8 %v6652
    %v6654 = vlaneseq
    %v6655 = vshrl.u32 %v6654, 7
    %v6656 = vsub.s32 %v6653, %v6655
    %v6657 = vrot.slane %v6629, %v6656
    %v6658 = vcombine.low %v6636, %v6643
    %v6659 = vcombine.low %v6650, %v6657
    %v6661 = vunpack.c.l.s4 1966171168
    %v6662 = vunpack.c.0.s8 %v6661
    %v6663 = vlaneseq
    %v6664 = vshrl.u32 %v6663, 7
    %v6665 = vsub.s32 %v6662, %v6664
    %v6666 = vrot.slane %v6658, %v6665
    %v6668 = vunpack.c.l.s4 1966171168
    %v6669 = vunpack.c.0.s8 %v6668
    %v6670 = vlaneseq
    %v6671 = vshrl.u32 %v6670, 7
    %v6672 = vsub.s32 %v6669, %v6671
    %v6673 = vrot.slane %v6659, %v6672
    %v6674 = vcombine.low %v6666, %v6673
    %v6675 = vcombine.low %v3695, %v3699
    %v6676 = vcombine.low %v3703, %v3707
    %v6677 = vcombine.low %v3711, %v3715
    %v6678 = vcombine.low %v3719, %v3723
    %v6680 = vunpack.c.l.s4 1966171168
    %v6681 = vunpack.c.0.s8 %v6680
    %v6682 = vlaneseq
    %v6683 = vshrl.u32 %v6682, 7
    %v6684 = vsub.s32 %v6681, %v6683
    %v6685 = vrot.slane %v6675, %v6684
    %v6687 = vunpack.c.l.s4 1966171168
    %v6688 = vunpack.c.0.s8 %v6687
    %v6689 = vlaneseq
    %v6690 = vshrl.u32 %v6689, 7
    %v6691 = vsub.s32 %v6688, %v6690
    %v6692 = vrot.slane %v6676, %v6691
    %v6694 = vunpack.c.l.s4 1966171168
    %v6695 = vunpack.c.0.s8 %v6694
    %v6696 = vlaneseq
    %v6697 = vshrl.u32 %v6696, 7
    %v6698 = vsub.s32 %v6695, %v6697
    %v6699 = vrot.slane %v6677, %v6698
    %v6701 = vunpack.c.l.s4 1966171168
    %v6702 = vunpack.c.0.s8 %v6701
    %v6703 = vlaneseq
    %v6704 = vshrl.u32 %v6703, 7
    %v6705 = vsub.s32 %v6702, %v6704
    %v6706 = vrot.slane %v6678, %v6705
    %v6707 = vcombine.low %v6685, %v6692
    %v6708 = vcombine.low %v6699, %v6706
    %v6710 = vunpack.c.l.s4 1966171168
    %v6711 = vunpack.c.0.s8 %v6710
    %v6712 = vlaneseq
    %v6713 = vshrl.u32 %v6712, 7
    %v6714 = vsub.s32 %v6711, %v6713
    %v6715 = vrot.slane %v6707, %v6714
    %v6717 = vunpack.c.l.s4 1966171168
    %v6718 = vunpack.c.0.s8 %v6717
    %v6719 = vlaneseq
    %v6720 = vshrl.u32 %v6719, 7
    %v6721 = vsub.s32 %v6718, %v6720
    %v6722 = vrot.slane %v6708, %v6721
    %v6723 = vcombine.low %v6715, %v6722
    %v6724 = vcombine.low %v3727, %v3731
    %v6725 = vcombine.low %v3735, %v3739
    %v6726 = vcombine.low %v3743, %v3747
    %v6727 = vcombine.low %v3751, %v3755
    %v6729 = vunpack.c.l.s4 1966171168
    %v6730 = vunpack.c.0.s8 %v6729
    %v6731 = vlaneseq
    %v6732 = vshrl.u32 %v6731, 7
    %v6733 = vsub.s32 %v6730, %v6732
    %v6734 = vrot.slane %v6724, %v6733
    %v6736 = vunpack.c.l.s4 1966171168
    %v6737 = vunpack.c.0.s8 %v6736
    %v6738 = vlaneseq
    %v6739 = vshrl.u32 %v6738, 7
    %v6740 = vsub.s32 %v6737, %v6739
    %v6741 = vrot.slane %v6725, %v6740
    %v6743 = vunpack.c.l.s4 1966171168
    %v6744 = vunpack.c.0.s8 %v6743
    %v6745 = vlaneseq
    %v6746 = vshrl.u32 %v6745, 7
    %v6747 = vsub.s32 %v6744, %v6746
    %v6748 = vrot.slane %v6726, %v6747
    %v6750 = vunpack.c.l.s4 1966171168
    %v6751 = vunpack.c.0.s8 %v6750
    %v6752 = vlaneseq
    %v6753 = vshrl.u32 %v6752, 7
    %v6754 = vsub.s32 %v6751, %v6753
    %v6755 = vrot.slane %v6727, %v6754
    %v6756 = vcombine.low %v6734, %v6741
    %v6757 = vcombine.low %v6748, %v6755
    %v6759 = vunpack.c.l.s4 1966171168
    %v6760 = vunpack.c.0.s8 %v6759
    %v6761 = vlaneseq
    %v6762 = vshrl.u32 %v6761, 7
    %v6763 = vsub.s32 %v6760, %v6762
    %v6764 = vrot.slane %v6756, %v6763
    %v6766 = vunpack.c.l.s4 1966171168
    %v6767 = vunpack.c.0.s8 %v6766
    %v6768 = vlaneseq
    %v6769 = vshrl.u32 %v6768, 7
    %v6770 = vsub.s32 %v6767, %v6769
    %v6771 = vrot.slane %v6757, %v6770
    %v6772 = vcombine.low %v6764, %v6771
    %v6773 = vcombine.low %v3759, %v3763
    %v6774 = vcombine.low %v3767, %v3771
    %v6775 = vcombine.low %v3775, %v3779
    %v6776 = vcombine.low %v3783, %v3787
    %v6778 = vunpack.c.l.s4 1966171168
    %v6779 = vunpack.c.0.s8 %v6778
    %v6780 = vlaneseq
    %v6781 = vshrl.u32 %v6780, 7
    %v6782 = vsub.s32 %v6779, %v6781
    %v6783 = vrot.slane %v6773, %v6782
    %v6785 = vunpack.c.l.s4 1966171168
    %v6786 = vunpack.c.0.s8 %v6785
    %v6787 = vlaneseq
    %v6788 = vshrl.u32 %v6787, 7
    %v6789 = vsub.s32 %v6786, %v6788
    %v6790 = vrot.slane %v6774, %v6789
    %v6792 = vunpack.c.l.s4 1966171168
    %v6793 = vunpack.c.0.s8 %v6792
    %v6794 = vlaneseq
    %v6795 = vshrl.u32 %v6794, 7
    %v6796 = vsub.s32 %v6793, %v6795
    %v6797 = vrot.slane %v6775, %v6796
    %v6799 = vunpack.c.l.s4 1966171168
    %v6800 = vunpack.c.0.s8 %v6799
    %v6801 = vlaneseq
    %v6802 = vshrl.u32 %v6801, 7
    %v6803 = vsub.s32 %v6800, %v6802
    %v6804 = vrot.slane %v6776, %v6803
    %v6805 = vcombine.low %v6783, %v6790
    %v6806 = vcombine.low %v6797, %v6804
    %v6808 = vunpack.c.l.s4 1966171168
    %v6809 = vunpack.c.0.s8 %v6808
    %v6810 = vlaneseq
    %v6811 = vshrl.u32 %v6810, 7
    %v6812 = vsub.s32 %v6809, %v6811
    %v6813 = vrot.slane %v6805, %v6812
    %v6815 = vunpack.c.l.s4 1966171168
    %v6816 = vunpack.c.0.s8 %v6815
    %v6817 = vlaneseq
    %v6818 = vshrl.u32 %v6817, 7
    %v6819 = vsub.s32 %v6816, %v6818
    %v6820 = vrot.slane %v6806, %v6819
    %v6821 = vcombine.low %v6813, %v6820
    %v6822 = vcombine.low %v3791, %v3795
    %v6823 = vcombine.low %v3799, %v3803
    %v6824 = vcombine.low %v3807, %v3811
    %v6825 = vcombine.low %v3815, %v3819
    %v6827 = vunpack.c.l.s4 1966171168
    %v6828 = vunpack.c.0.s8 %v6827
    %v6829 = vlaneseq
    %v6830 = vshrl.u32 %v6829, 7
    %v6831 = vsub.s32 %v6828, %v6830
    %v6832 = vrot.slane %v6822, %v6831
    %v6834 = vunpack.c.l.s4 1966171168
    %v6835 = vunpack.c.0.s8 %v6834
    %v6836 = vlaneseq
    %v6837 = vshrl.u32 %v6836, 7
    %v6838 = vsub.s32 %v6835, %v6837
    %v6839 = vrot.slane %v6823, %v6838
    %v6841 = vunpack.c.l.s4 1966171168
    %v6842 = vunpack.c.0.s8 %v6841
    %v6843 = vlaneseq
    %v6844 = vshrl.u32 %v6843, 7
    %v6845 = vsub.s32 %v6842, %v6844
    %v6846 = vrot.slane %v6824, %v6845
    %v6848 = vunpack.c.l.s4 1966171168
    %v6849 = vunpack.c.0.s8 %v6848
    %v6850 = vlaneseq
    %v6851 = vshrl.u32 %v6850, 7
    %v6852 = vsub.s32 %v6849, %v6851
    %v6853 = vrot.slane %v6825, %v6852
    %v6854 = vcombine.low %v6832, %v6839
    %v6855 = vcombine.low %v6846, %v6853
    %v6857 = vunpack.c.l.s4 1966171168
    %v6858 = vunpack.c.0.s8 %v6857
    %v6859 = vlaneseq
    %v6860 = vshrl.u32 %v6859, 7
    %v6861 = vsub.s32 %v6858, %v6860
    %v6862 = vrot.slane %v6854, %v6861
    %v6864 = vunpack.c.l.s4 1966171168
    %v6865 = vunpack.c.0.s8 %v6864
    %v6866 = vlaneseq
    %v6867 = vshrl.u32 %v6866, 7
    %v6868 = vsub.s32 %v6865, %v6867
    %v6869 = vrot.slane %v6855, %v6868
    %v6870 = vcombine.low %v6862, %v6869
    %v6871 = vcombine.low %v3823, %v3827
    %v6872 = vcombine.low %v3831, %v3835
    %v6873 = vcombine.low %v3839, %v3843
    %v6874 = vcombine.low %v3847, %v3851
    %v6876 = vunpack.c.l.s4 1966171168
    %v6877 = vunpack.c.0.s8 %v6876
    %v6878 = vlaneseq
    %v6879 = vshrl.u32 %v6878, 7
    %v6880 = vsub.s32 %v6877, %v6879
    %v6881 = vrot.slane %v6871, %v6880
    %v6883 = vunpack.c.l.s4 1966171168
    %v6884 = vunpack.c.0.s8 %v6883
    %v6885 = vlaneseq
    %v6886 = vshrl.u32 %v6885, 7
    %v6887 = vsub.s32 %v6884, %v6886
    %v6888 = vrot.slane %v6872, %v6887
    %v6890 = vunpack.c.l.s4 1966171168
    %v6891 = vunpack.c.0.s8 %v6890
    %v6892 = vlaneseq
    %v6893 = vshrl.u32 %v6892, 7
    %v6894 = vsub.s32 %v6891, %v6893
    %v6895 = vrot.slane %v6873, %v6894
    %v6897 = vunpack.c.l.s4 1966171168
    %v6898 = vunpack.c.0.s8 %v6897
    %v6899 = vlaneseq
    %v6900 = vshrl.u32 %v6899, 7
    %v6901 = vsub.s32 %v6898, %v6900
    %v6902 = vrot.slane %v6874, %v6901
    %v6903 = vcombine.low %v6881, %v6888
    %v6904 = vcombine.low %v6895, %v6902
    %v6906 = vunpack.c.l.s4 1966171168
    %v6907 = vunpack.c.0.s8 %v6906
    %v6908 = vlaneseq
    %v6909 = vshrl.u32 %v6908, 7
    %v6910 = vsub.s32 %v6907, %v6909
    %v6911 = vrot.slane %v6903, %v6910
    %v6913 = vunpack.c.l.s4 1966171168
    %v6914 = vunpack.c.0.s8 %v6913
    %v6915 = vlaneseq
    %v6916 = vshrl.u32 %v6915, 7
    %v6917 = vsub.s32 %v6914, %v6916
    %v6918 = vrot.slane %v6904, %v6917
    %v6919 = vcombine.low %v6911, %v6918
    %v6920 = vcombine.low %v3855, %v3859
    %v6921 = vcombine.low %v3863, %v3867
    %v6922 = vcombine.low %v3871, %v3875
    %v6923 = vcombine.low %v3879, %v3883
    %v6925 = vunpack.c.l.s4 1966171168
    %v6926 = vunpack.c.0.s8 %v6925
    %v6927 = vlaneseq
    %v6928 = vshrl.u32 %v6927, 7
    %v6929 = vsub.s32 %v6926, %v6928
    %v6930 = vrot.slane %v6920, %v6929
    %v6932 = vunpack.c.l.s4 1966171168
    %v6933 = vunpack.c.0.s8 %v6932
    %v6934 = vlaneseq
    %v6935 = vshrl.u32 %v6934, 7
    %v6936 = vsub.s32 %v6933, %v6935
    %v6937 = vrot.slane %v6921, %v6936
    %v6939 = vunpack.c.l.s4 1966171168
    %v6940 = vunpack.c.0.s8 %v6939
    %v6941 = vlaneseq
    %v6942 = vshrl.u32 %v6941, 7
    %v6943 = vsub.s32 %v6940, %v6942
    %v6944 = vrot.slane %v6922, %v6943
    %v6946 = vunpack.c.l.s4 1966171168
    %v6947 = vunpack.c.0.s8 %v6946
    %v6948 = vlaneseq
    %v6949 = vshrl.u32 %v6948, 7
    %v6950 = vsub.s32 %v6947, %v6949
    %v6951 = vrot.slane %v6923, %v6950
    %v6952 = vcombine.low %v6930, %v6937
    %v6953 = vcombine.low %v6944, %v6951
    %v6955 = vunpack.c.l.s4 1966171168
    %v6956 = vunpack.c.0.s8 %v6955
    %v6957 = vlaneseq
    %v6958 = vshrl.u32 %v6957, 7
    %v6959 = vsub.s32 %v6956, %v6958
    %v6960 = vrot.slane %v6952, %v6959
    %v6962 = vunpack.c.l.s4 1966171168
    %v6963 = vunpack.c.0.s8 %v6962
    %v6964 = vlaneseq
    %v6965 = vshrl.u32 %v6964, 7
    %v6966 = vsub.s32 %v6963, %v6965
    %v6967 = vrot.slane %v6953, %v6966
    %v6968 = vcombine.low %v6960, %v6967
    %v6969 = vcombine.low %v3887, %v3891
    %v6970 = vcombine.low %v3895, %v3899
    %v6971 = vcombine.low %v3903, %v3907
    %v6972 = vcombine.low %v3911, %v3915
    %v6974 = vunpack.c.l.s4 1966171168
    %v6975 = vunpack.c.0.s8 %v6974
    %v6976 = vlaneseq
    %v6977 = vshrl.u32 %v6976, 7
    %v6978 = vsub.s32 %v6975, %v6977
    %v6979 = vrot.slane %v6969, %v6978
    %v6981 = vunpack.c.l.s4 1966171168
    %v6982 = vunpack.c.0.s8 %v6981
    %v6983 = vlaneseq
    %v6984 = vshrl.u32 %v6983, 7
    %v6985 = vsub.s32 %v6982, %v6984
    %v6986 = vrot.slane %v6970, %v6985
    %v6988 = vunpack.c.l.s4 1966171168
    %v6989 = vunpack.c.0.s8 %v6988
    %v6990 = vlaneseq
    %v6991 = vshrl.u32 %v6990, 7
    %v6992 = vsub.s32 %v6989, %v6991
    %v6993 = vrot.slane %v6971, %v6992
    %v6995 = vunpack.c.l.s4 1966171168
    %v6996 = vunpack.c.0.s8 %v6995
    %v6997 = vlaneseq
    %v6998 = vshrl.u32 %v6997, 7
    %v6999 = vsub.s32 %v6996, %v6998
    %v7000 = vrot.slane %v6972, %v6999
    %v7001 = vcombine.low %v6979, %v6986
    %v7002 = vcombine.low %v6993, %v7000
    %v7004 = vunpack.c.l.s4 1966171168
    %v7005 = vunpack.c.0.s8 %v7004
    %v7006 = vlaneseq
    %v7007 = vshrl.u32 %v7006, 7
    %v7008 = vsub.s32 %v7005, %v7007
    %v7009 = vrot.slane %v7001, %v7008
    %v7011 = vunpack.c.l.s4 1966171168
    %v7012 = vunpack.c.0.s8 %v7011
    %v7013 = vlaneseq
    %v7014 = vshrl.u32 %v7013, 7
    %v7015 = vsub.s32 %v7012, %v7014
    %v7016 = vrot.slane %v7002, %v7015
    %v7017 = vcombine.low %v7009, %v7016
    %v7018 = vcombine.low %v3919, %v3923
    %v7019 = vcombine.low %v3927, %v3931
    %v7020 = vcombine.low %v3935, %v3939
    %v7021 = vcombine.low %v3943, %v3947
    %v7023 = vunpack.c.l.s4 1966171168
    %v7024 = vunpack.c.0.s8 %v7023
    %v7025 = vlaneseq
    %v7026 = vshrl.u32 %v7025, 7
    %v7027 = vsub.s32 %v7024, %v7026
    %v7028 = vrot.slane %v7018, %v7027
    %v7030 = vunpack.c.l.s4 1966171168
    %v7031 = vunpack.c.0.s8 %v7030
    %v7032 = vlaneseq
    %v7033 = vshrl.u32 %v7032, 7
    %v7034 = vsub.s32 %v7031, %v7033
    %v7035 = vrot.slane %v7019, %v7034
    %v7037 = vunpack.c.l.s4 1966171168
    %v7038 = vunpack.c.0.s8 %v7037
    %v7039 = vlaneseq
    %v7040 = vshrl.u32 %v7039, 7
    %v7041 = vsub.s32 %v7038, %v7040
    %v7042 = vrot.slane %v7020, %v7041
    %v7044 = vunpack.c.l.s4 1966171168
    %v7045 = vunpack.c.0.s8 %v7044
    %v7046 = vlaneseq
    %v7047 = vshrl.u32 %v7046, 7
    %v7048 = vsub.s32 %v7045, %v7047
    %v7049 = vrot.slane %v7021, %v7048
    %v7050 = vcombine.low %v7028, %v7035
    %v7051 = vcombine.low %v7042, %v7049
    %v7053 = vunpack.c.l.s4 1966171168
    %v7054 = vunpack.c.0.s8 %v7053
    %v7055 = vlaneseq
    %v7056 = vshrl.u32 %v7055, 7
    %v7057 = vsub.s32 %v7054, %v7056
    %v7058 = vrot.slane %v7050, %v7057
    %v7060 = vunpack.c.l.s4 1966171168
    %v7061 = vunpack.c.0.s8 %v7060
    %v7062 = vlaneseq
    %v7063 = vshrl.u32 %v7062, 7
    %v7064 = vsub.s32 %v7061, %v7063
    %v7065 = vrot.slane %v7051, %v7064
    %v7066 = vcombine.low %v7058, %v7065
    %v7067 = vcombine.low %v3951, %v3955
    %v7068 = vcombine.low %v3959, %v3963
    %v7069 = vcombine.low %v3967, %v3971
    %v7070 = vcombine.low %v3975, %v3979
    %v7072 = vunpack.c.l.s4 1966171168
    %v7073 = vunpack.c.0.s8 %v7072
    %v7074 = vlaneseq
    %v7075 = vshrl.u32 %v7074, 7
    %v7076 = vsub.s32 %v7073, %v7075
    %v7077 = vrot.slane %v7067, %v7076
    %v7079 = vunpack.c.l.s4 1966171168
    %v7080 = vunpack.c.0.s8 %v7079
    %v7081 = vlaneseq
    %v7082 = vshrl.u32 %v7081, 7
    %v7083 = vsub.s32 %v7080, %v7082
    %v7084 = vrot.slane %v7068, %v7083
    %v7086 = vunpack.c.l.s4 1966171168
    %v7087 = vunpack.c.0.s8 %v7086
    %v7088 = vlaneseq
    %v7089 = vshrl.u32 %v7088, 7
    %v7090 = vsub.s32 %v7087, %v7089
    %v7091 = vrot.slane %v7069, %v7090
    %v7093 = vunpack.c.l.s4 1966171168
    %v7094 = vunpack.c.0.s8 %v7093
    %v7095 = vlaneseq
    %v7096 = vshrl.u32 %v7095, 7
    %v7097 = vsub.s32 %v7094, %v7096
    %v7098 = vrot.slane %v7070, %v7097
    %v7099 = vcombine.low %v7077, %v7084
    %v7100 = vcombine.low %v7091, %v7098
    %v7102 = vunpack.c.l.s4 1966171168
    %v7103 = vunpack.c.0.s8 %v7102
    %v7104 = vlaneseq
    %v7105 = vshrl.u32 %v7104, 7
    %v7106 = vsub.s32 %v7103, %v7105
    %v7107 = vrot.slane %v7099, %v7106
    %v7109 = vunpack.c.l.s4 1966171168
    %v7110 = vunpack.c.0.s8 %v7109
    %v7111 = vlaneseq
    %v7112 = vshrl.u32 %v7111, 7
    %v7113 = vsub.s32 %v7110, %v7112
    %v7114 = vrot.slane %v7100, %v7113
    %v7115 = vcombine.low %v7107, %v7114
    %7116 = vset.pattern.permute.xlu0 0
    %7117 = vperm.xlu0 %7116, %v4028
    %v7118 = vpop.permute.xlu0 %7117
    %7119 = vset.pattern.permute.xlu0 0
    %7120 = vperm.xlu0 %7119, %v4077
    %v7121 = vpop.permute.xlu0 %7120
    %7122 = vset.pattern.permute.xlu0 0
    %7123 = vperm.xlu0 %7122, %v4126
    %v7124 = vpop.permute.xlu0 %7123
    %7125 = vset.pattern.permute.xlu0 0
    %7126 = vperm.xlu0 %7125, %v4175
    %v7127 = vpop.permute.xlu0 %7126
    %7128 = vset.pattern.permute.xlu0 0
    %7129 = vperm.xlu0 %7128, %v4224
    %v7130 = vpop.permute.xlu0 %7129
    %7131 = vset.pattern.permute.xlu0 0
    %7132 = vperm.xlu0 %7131, %v4273
    %v7133 = vpop.permute.xlu0 %7132
    %7134 = vset.pattern.permute.xlu0 0
    %7135 = vperm.xlu0 %7134, %v4322
    %v7136 = vpop.permute.xlu0 %7135
    %7137 = vset.pattern.permute.xlu0 0
    %7138 = vperm.xlu0 %7137, %v4371
    %v7139 = vpop.permute.xlu0 %7138
    %7140 = vset.pattern.permute.xlu0 0
    %7141 = vperm.xlu0 %7140, %v4420
    %v7142 = vpop.permute.xlu0 %7141
    %7143 = vset.pattern.permute.xlu0 0
    %7144 = vperm.xlu0 %7143, %v4469
    %v7145 = vpop.permute.xlu0 %7144
    %7146 = vset.pattern.permute.xlu0 0
    %7147 = vperm.xlu0 %7146, %v4518
    %v7148 = vpop.permute.xlu0 %7147
    %7149 = vset.pattern.permute.xlu0 0
    %7150 = vperm.xlu0 %7149, %v4567
    %v7151 = vpop.permute.xlu0 %7150
    %7152 = vset.pattern.permute.xlu0 0
    %7153 = vperm.xlu0 %7152, %v4616
    %v7154 = vpop.permute.xlu0 %7153
    %7155 = vset.pattern.permute.xlu0 0
    %7156 = vperm.xlu0 %7155, %v4665
    %v7157 = vpop.permute.xlu0 %7156
    %7158 = vset.pattern.permute.xlu0 0
    %7159 = vperm.xlu0 %7158, %v4714
    %v7160 = vpop.permute.xlu0 %7159
    %7161 = vset.pattern.permute.xlu0 0
    %7162 = vperm.xlu0 %7161, %v4763
    %v7163 = vpop.permute.xlu0 %7162
    %7164 = vset.pattern.permute.xlu0 0
    %7165 = vperm.xlu0 %7164, %v4812
    %v7166 = vpop.permute.xlu0 %7165
    %7167 = vset.pattern.permute.xlu0 0
    %7168 = vperm.xlu0 %7167, %v4861
    %v7169 = vpop.permute.xlu0 %7168
    %7170 = vset.pattern.permute.xlu0 0
    %7171 = vperm.xlu0 %7170, %v4910
    %v7172 = vpop.permute.xlu0 %7171
    %7173 = vset.pattern.permute.xlu0 0
    %7174 = vperm.xlu0 %7173, %v4959
    %v7175 = vpop.permute.xlu0 %7174
    %7176 = vset.pattern.permute.xlu0 0
    %7177 = vperm.xlu0 %7176, %v5008
    %v7178 = vpop.permute.xlu0 %7177
    %7179 = vset.pattern.permute.xlu0 0
    %7180 = vperm.xlu0 %7179, %v5057
    %v7181 = vpop.permute.xlu0 %7180
    %7182 = vset.pattern.permute.xlu0 0
    %7183 = vperm.xlu0 %7182, %v5106
    %v7184 = vpop.permute.xlu0 %7183
    %7185 = vset.pattern.permute.xlu0 0
    %7186 = vperm.xlu0 %7185, %v5155
    %v7187 = vpop.permute.xlu0 %7186
    %7188 = vset.pattern.permute.xlu0 0
    %7189 = vperm.xlu0 %7188, %v5204
    %v7190 = vpop.permute.xlu0 %7189
    %7191 = vset.pattern.permute.xlu0 0
    %7192 = vperm.xlu0 %7191, %v5253
    %v7193 = vpop.permute.xlu0 %7192
    %7194 = vset.pattern.permute.xlu0 0
    %7195 = vperm.xlu0 %7194, %v5302
    %v7196 = vpop.permute.xlu0 %7195
    %7197 = vset.pattern.permute.xlu0 0
    %7198 = vperm.xlu0 %7197, %v5351
    %v7199 = vpop.permute.xlu0 %7198
    %7200 = vset.pattern.permute.xlu0 0
    %7201 = vperm.xlu0 %7200, %v5400
    %v7202 = vpop.permute.xlu0 %7201
    %7203 = vset.pattern.permute.xlu0 0
    %7204 = vperm.xlu0 %7203, %v5449
    %v7205 = vpop.permute.xlu0 %7204
    %7206 = vset.pattern.permute.xlu0 0
    %7207 = vperm.xlu0 %7206, %v5498
    %v7208 = vpop.permute.xlu0 %7207
    %7209 = vset.pattern.permute.xlu0 0
    %7210 = vperm.xlu0 %7209, %v5547
    %v7211 = vpop.permute.xlu0 %7210
    %7212 = vset.pattern.permute.xlu0 0
    %7213 = vperm.xlu0 %7212, %v5596
    %v7214 = vpop.permute.xlu0 %7213
    %7215 = vset.pattern.permute.xlu0 0
    %7216 = vperm.xlu0 %7215, %v5645
    %v7217 = vpop.permute.xlu0 %7216
    %7218 = vset.pattern.permute.xlu0 0
    %7219 = vperm.xlu0 %7218, %v5694
    %v7220 = vpop.permute.xlu0 %7219
    %7221 = vset.pattern.permute.xlu0 0
    %7222 = vperm.xlu0 %7221, %v5743
    %v7223 = vpop.permute.xlu0 %7222
    %7224 = vset.pattern.permute.xlu0 0
    %7225 = vperm.xlu0 %7224, %v5792
    %v7226 = vpop.permute.xlu0 %7225
    %7227 = vset.pattern.permute.xlu0 0
    %7228 = vperm.xlu0 %7227, %v5841
    %v7229 = vpop.permute.xlu0 %7228
    %7230 = vset.pattern.permute.xlu0 0
    %7231 = vperm.xlu0 %7230, %v5890
    %v7232 = vpop.permute.xlu0 %7231
    %7233 = vset.pattern.permute.xlu0 0
    %7234 = vperm.xlu0 %7233, %v5939
    %v7235 = vpop.permute.xlu0 %7234
    %7236 = vset.pattern.permute.xlu0 0
    %7237 = vperm.xlu0 %7236, %v5988
    %v7238 = vpop.permute.xlu0 %7237
    %7239 = vset.pattern.permute.xlu0 0
    %7240 = vperm.xlu0 %7239, %v6037
    %v7241 = vpop.permute.xlu0 %7240
    %7242 = vset.pattern.permute.xlu0 0
    %7243 = vperm.xlu0 %7242, %v6086
    %v7244 = vpop.permute.xlu0 %7243
    %7245 = vset.pattern.permute.xlu0 0
    %7246 = vperm.xlu0 %7245, %v6135
    %v7247 = vpop.permute.xlu0 %7246
    %7248 = vset.pattern.permute.xlu0 0
    %7249 = vperm.xlu0 %7248, %v6184
    %v7250 = vpop.permute.xlu0 %7249
    %7251 = vset.pattern.permute.xlu0 0
    %7252 = vperm.xlu0 %7251, %v6233
    %v7253 = vpop.permute.xlu0 %7252
    %7254 = vset.pattern.permute.xlu0 0
    %7255 = vperm.xlu0 %7254, %v6282
    %v7256 = vpop.permute.xlu0 %7255
    %7257 = vset.pattern.permute.xlu0 0
    %7258 = vperm.xlu0 %7257, %v6331
    %v7259 = vpop.permute.xlu0 %7258
    %7260 = vset.pattern.permute.xlu0 0
    %7261 = vperm.xlu0 %7260, %v6380
    %v7262 = vpop.permute.xlu0 %7261
    %7263 = vset.pattern.permute.xlu0 0
    %7264 = vperm.xlu0 %7263, %v6429
    %v7265 = vpop.permute.xlu0 %7264
    %7266 = vset.pattern.permute.xlu0 0
    %7267 = vperm.xlu0 %7266, %v6478
    %v7268 = vpop.permute.xlu0 %7267
    %7269 = vset.pattern.permute.xlu0 0
    %7270 = vperm.xlu0 %7269, %v6527
    %v7271 = vpop.permute.xlu0 %7270
    %7272 = vset.pattern.permute.xlu0 0
    %7273 = vperm.xlu0 %7272, %v6576
    %v7274 = vpop.permute.xlu0 %7273
    %7275 = vset.pattern.permute.xlu0 0
    %7276 = vperm.xlu0 %7275, %v6625
    %v7277 = vpop.permute.xlu0 %7276
    %7278 = vset.pattern.permute.xlu0 0
    %7279 = vperm.xlu0 %7278, %v6674
    %v7280 = vpop.permute.xlu0 %7279
    %7281 = vset.pattern.permute.xlu0 0
    %7282 = vperm.xlu0 %7281, %v6723
    %v7283 = vpop.permute.xlu0 %7282
    %7284 = vset.pattern.permute.xlu0 0
    %7285 = vperm.xlu0 %7284, %v6772
    %v7286 = vpop.permute.xlu0 %7285
    %7287 = vset.pattern.permute.xlu0 0
    %7288 = vperm.xlu0 %7287, %v6821
    %v7289 = vpop.permute.xlu0 %7288
    %7290 = vset.pattern.permute.xlu0 0
    %7291 = vperm.xlu0 %7290, %v6870
    %v7292 = vpop.permute.xlu0 %7291
    %7293 = vset.pattern.permute.xlu0 0
    %7294 = vperm.xlu0 %7293, %v6919
    %v7295 = vpop.permute.xlu0 %7294
    %7296 = vset.pattern.permute.xlu0 0
    %7297 = vperm.xlu0 %7296, %v6968
    %v7298 = vpop.permute.xlu0 %7297
    %7299 = vset.pattern.permute.xlu0 0
    %7300 = vperm.xlu0 %7299, %v7017
    %v7301 = vpop.permute.xlu0 %7300
    %7302 = vset.pattern.permute.xlu0 0
    %7303 = vperm.xlu0 %7302, %v7066
    %v7304 = vpop.permute.xlu0 %7303
    %7305 = vset.pattern.permute.xlu0 0
    %7306 = vperm.xlu0 %7305, %v7115
    %v7307 = vpop.permute.xlu0 %7306
    %v7308 = vlaneseq
    %v7309 = vshrl.u32 %v7308, 7
    %v7310 = vsub.s32 %v937, %v7309
    %v7311 = vrot.slane %v7118, %v7310
    %v7312 = vadd.s32 %v937, 4294967288
    %v7313 = vlaneseq
    %v7314 = vshrl.u32 %v7313, 7
    %v7315 = vsub.s32 %v7312, %v7314
    %v7316 = vrot.slane %v7121, %v7315
    %vm7317 = vcmask 130112
    %v7318 = vsel %vm7317, %v7316, %v7311
    %v7319 = vadd.s32 %v937, 4294967280
    %v7320 = vlaneseq
    %v7321 = vshrl.u32 %v7320, 7
    %v7322 = vsub.s32 %v7319, %v7321
    %v7323 = vrot.slane %v7124, %v7322
    %vm7324 = vcmask 195712
    %v7325 = vsel %vm7324, %v7323, %v7318
    %v7326 = vadd.s32 %v937, 4294967272
    %v7327 = vlaneseq
    %v7328 = vshrl.u32 %v7327, 7
    %v7329 = vsub.s32 %v7326, %v7328
    %v7330 = vrot.slane %v7127, %v7329
    %vm7331 = vcmask 261312
    %v7332 = vsel %vm7331, %v7330, %v7325
    %v7333 = vadd.s32 %v937, 4294967264
    %v7334 = vlaneseq
    %v7335 = vshrl.u32 %v7334, 7
    %v7336 = vsub.s32 %v7333, %v7335
    %v7337 = vrot.slane %v7130, %v7336
    %vm7338 = vcmask 326912
    %v7339 = vsel %vm7338, %v7337, %v7332
    %v7340 = vadd.s32 %v937, 4294967256
    %v7341 = vlaneseq
    %v7342 = vshrl.u32 %v7341, 7
    %v7343 = vsub.s32 %v7340, %v7342
    %v7344 = vrot.slane %v7133, %v7343
    %vm7345 = vcmask 392512
    %v7346 = vsel %vm7345, %v7344, %v7339
    %v7347 = vadd.s32 %v937, 4294967248
    %v7348 = vlaneseq
    %v7349 = vshrl.u32 %v7348, 7
    %v7350 = vsub.s32 %v7347, %v7349
    %v7351 = vrot.slane %v7136, %v7350
    %vm7352 = vcmask 458112
    %v7353 = vsel %vm7352, %v7351, %v7346
    %v7354 = vadd.s32 %v937, 4294967240
    %v7355 = vlaneseq
    %v7356 = vshrl.u32 %v7355, 7
    %v7357 = vsub.s32 %v7354, %v7356
    %v7358 = vrot.slane %v7139, %v7357
    %vm7359 = vcmask 523712
    %v7360 = vsel %vm7359, %v7358, %v7353
    %v7361 = vadd.s32 %v937, 4294967232
    %v7362 = vlaneseq
    %v7363 = vshrl.u32 %v7362, 7
    %v7364 = vsub.s32 %v7361, %v7363
    %v7365 = vrot.slane %v7142, %v7364
    %vm7366 = vcmask 589312
    %v7367 = vsel %vm7366, %v7365, %v7360
    %v7368 = vadd.s32 %v937, 4294967224
    %v7369 = vlaneseq
    %v7370 = vshrl.u32 %v7369, 7
    %v7371 = vsub.s32 %v7368, %v7370
    %v7372 = vrot.slane %v7145, %v7371
    %vm7373 = vcmask 654912
    %v7374 = vsel %vm7373, %v7372, %v7367
    %v7375 = vadd.s32 %v937, 4294967216
    %v7376 = vlaneseq
    %v7377 = vshrl.u32 %v7376, 7
    %v7378 = vsub.s32 %v7375, %v7377
    %v7379 = vrot.slane %v7148, %v7378
    %vm7380 = vcmask 720512
    %v7381 = vsel %vm7380, %v7379, %v7374
    %v7382 = vadd.s32 %v937, 4294967208
    %v7383 = vlaneseq
    %v7384 = vshrl.u32 %v7383, 7
    %v7385 = vsub.s32 %v7382, %v7384
    %v7386 = vrot.slane %v7151, %v7385
    %vm7387 = vcmask 786112
    %v7388 = vsel %vm7387, %v7386, %v7381
    %v7389 = vadd.s32 %v937, 4294967200
    %v7390 = vlaneseq
    %v7391 = vshrl.u32 %v7390, 7
    %v7392 = vsub.s32 %v7389, %v7391
    %v7393 = vrot.slane %v7154, %v7392
    %vm7394 = vcmask 851712
    %v7395 = vsel %vm7394, %v7393, %v7388
    %v7396 = vadd.s32 %v937, 4294967192
    %v7397 = vlaneseq
    %v7398 = vshrl.u32 %v7397, 7
    %v7399 = vsub.s32 %v7396, %v7398
    %v7400 = vrot.slane %v7157, %v7399
    %vm7401 = vcmask 917312
    %v7402 = vsel %vm7401, %v7400, %v7395
    %v7403 = vadd.s32 %v937, 4294967184
    %v7404 = vlaneseq
    %v7405 = vshrl.u32 %v7404, 7
    %v7406 = vsub.s32 %v7403, %v7405
    %v7407 = vrot.slane %v7160, %v7406
    %vm7408 = vcmask 982912
    %v7409 = vsel %vm7408, %v7407, %v7402
    %v7410 = vadd.s32 %v937, 4294967176
    %v7411 = vlaneseq
    %v7412 = vshrl.u32 %v7411, 7
    %v7413 = vsub.s32 %v7410, %v7412
    %v7414 = vrot.slane %v7163, %v7413
    %vm7415 = vcmask 1048512
    %v7416 = vsel %vm7415, %v7414, %v7409
    %v7417 = vlaneseq
    %v7418 = vshrl.u32 %v7417, 7
    %v7419 = vsub.s32 %v937, %v7418
    %v7420 = vrot.slane %v7166, %v7419
    %v7421 = vlaneseq
    %v7422 = vshrl.u32 %v7421, 7
    %v7423 = vsub.s32 %v7312, %v7422
    %v7424 = vrot.slane %v7169, %v7423
    %v7425 = vsel %vm7317, %v7424, %v7420
    %v7426 = vlaneseq
    %v7427 = vshrl.u32 %v7426, 7
    %v7428 = vsub.s32 %v7319, %v7427
    %v7429 = vrot.slane %v7172, %v7428
    %v7430 = vsel %vm7324, %v7429, %v7425
    %v7431 = vlaneseq
    %v7432 = vshrl.u32 %v7431, 7
    %v7433 = vsub.s32 %v7326, %v7432
    %v7434 = vrot.slane %v7175, %v7433
    %v7435 = vsel %vm7331, %v7434, %v7430
    %v7436 = vlaneseq
    %v7437 = vshrl.u32 %v7436, 7
    %v7438 = vsub.s32 %v7333, %v7437
    %v7439 = vrot.slane %v7178, %v7438
    %v7440 = vsel %vm7338, %v7439, %v7435
    %v7441 = vlaneseq
    %v7442 = vshrl.u32 %v7441, 7
    %v7443 = vsub.s32 %v7340, %v7442
    %v7444 = vrot.slane %v7181, %v7443
    %v7445 = vsel %vm7345, %v7444, %v7440
    %v7446 = vlaneseq
    %v7447 = vshrl.u32 %v7446, 7
    %v7448 = vsub.s32 %v7347, %v7447
    %v7449 = vrot.slane %v7184, %v7448
    %v7450 = vsel %vm7352, %v7449, %v7445
    %v7451 = vlaneseq
    %v7452 = vshrl.u32 %v7451, 7
    %v7453 = vsub.s32 %v7354, %v7452
    %v7454 = vrot.slane %v7187, %v7453
    %v7455 = vsel %vm7359, %v7454, %v7450
    %v7456 = vlaneseq
    %v7457 = vshrl.u32 %v7456, 7
    %v7458 = vsub.s32 %v7361, %v7457
    %v7459 = vrot.slane %v7190, %v7458
    %v7460 = vsel %vm7366, %v7459, %v7455
    %v7461 = vlaneseq
    %v7462 = vshrl.u32 %v7461, 7
    %v7463 = vsub.s32 %v7368, %v7462
    %v7464 = vrot.slane %v7193, %v7463
    %v7465 = vsel %vm7373, %v7464, %v7460
    %v7466 = vlaneseq
    %v7467 = vshrl.u32 %v7466, 7
    %v7468 = vsub.s32 %v7375, %v7467
    %v7469 = vrot.slane %v7196, %v7468
    %v7470 = vsel %vm7380, %v7469, %v7465
    %v7471 = vlaneseq
    %v7472 = vshrl.u32 %v7471, 7
    %v7473 = vsub.s32 %v7382, %v7472
    %v7474 = vrot.slane %v7199, %v7473
    %v7475 = vsel %vm7387, %v7474, %v7470
    %v7476 = vlaneseq
    %v7477 = vshrl.u32 %v7476, 7
    %v7478 = vsub.s32 %v7389, %v7477
    %v7479 = vrot.slane %v7202, %v7478
    %v7480 = vsel %vm7394, %v7479, %v7475
    %v7481 = vlaneseq
    %v7482 = vshrl.u32 %v7481, 7
    %v7483 = vsub.s32 %v7396, %v7482
    %v7484 = vrot.slane %v7205, %v7483
    %v7485 = vsel %vm7401, %v7484, %v7480
    %v7486 = vlaneseq
    %v7487 = vshrl.u32 %v7486, 7
    %v7488 = vsub.s32 %v7403, %v7487
    %v7489 = vrot.slane %v7208, %v7488
    %v7490 = vsel %vm7408, %v7489, %v7485
    %v7491 = vlaneseq
    %v7492 = vshrl.u32 %v7491, 7
    %v7493 = vsub.s32 %v7410, %v7492
    %v7494 = vrot.slane %v7211, %v7493
    %v7495 = vsel %vm7415, %v7494, %v7490
    %v7496 = vlaneseq
    %v7497 = vshrl.u32 %v7496, 7
    %v7498 = vsub.s32 %v937, %v7497
    %v7499 = vrot.slane %v7214, %v7498
    %v7500 = vlaneseq
    %v7501 = vshrl.u32 %v7500, 7
    %v7502 = vsub.s32 %v7312, %v7501
    %v7503 = vrot.slane %v7217, %v7502
    %v7504 = vsel %vm7317, %v7503, %v7499
    %v7505 = vlaneseq
    %v7506 = vshrl.u32 %v7505, 7
    %v7507 = vsub.s32 %v7319, %v7506
    %v7508 = vrot.slane %v7220, %v7507
    %v7509 = vsel %vm7324, %v7508, %v7504
    %v7510 = vlaneseq
    %v7511 = vshrl.u32 %v7510, 7
    %v7512 = vsub.s32 %v7326, %v7511
    %v7513 = vrot.slane %v7223, %v7512
    %v7514 = vsel %vm7331, %v7513, %v7509
    %v7515 = vlaneseq
    %v7516 = vshrl.u32 %v7515, 7
    %v7517 = vsub.s32 %v7333, %v7516
    %v7518 = vrot.slane %v7226, %v7517
    %v7519 = vsel %vm7338, %v7518, %v7514
    %v7520 = vlaneseq
    %v7521 = vshrl.u32 %v7520, 7
    %v7522 = vsub.s32 %v7340, %v7521
    %v7523 = vrot.slane %v7229, %v7522
    %v7524 = vsel %vm7345, %v7523, %v7519
    %v7525 = vlaneseq
    %v7526 = vshrl.u32 %v7525, 7
    %v7527 = vsub.s32 %v7347, %v7526
    %v7528 = vrot.slane %v7232, %v7527
    %v7529 = vsel %vm7352, %v7528, %v7524
    %v7530 = vlaneseq
    %v7531 = vshrl.u32 %v7530, 7
    %v7532 = vsub.s32 %v7354, %v7531
    %v7533 = vrot.slane %v7235, %v7532
    %v7534 = vsel %vm7359, %v7533, %v7529
    %v7535 = vlaneseq
    %v7536 = vshrl.u32 %v7535, 7
    %v7537 = vsub.s32 %v7361, %v7536
    %v7538 = vrot.slane %v7238, %v7537
    %v7539 = vsel %vm7366, %v7538, %v7534
    %v7540 = vlaneseq
    %v7541 = vshrl.u32 %v7540, 7
    %v7542 = vsub.s32 %v7368, %v7541
    %v7543 = vrot.slane %v7241, %v7542
    %v7544 = vsel %vm7373, %v7543, %v7539
    %v7545 = vlaneseq
    %v7546 = vshrl.u32 %v7545, 7
    %v7547 = vsub.s32 %v7375, %v7546
    %v7548 = vrot.slane %v7244, %v7547
    %v7549 = vsel %vm7380, %v7548, %v7544
    %v7550 = vlaneseq
    %v7551 = vshrl.u32 %v7550, 7
    %v7552 = vsub.s32 %v7382, %v7551
    %v7553 = vrot.slane %v7247, %v7552
    %v7554 = vsel %vm7387, %v7553, %v7549
    %v7555 = vlaneseq
    %v7556 = vshrl.u32 %v7555, 7
    %v7557 = vsub.s32 %v7389, %v7556
    %v7558 = vrot.slane %v7250, %v7557
    %v7559 = vsel %vm7394, %v7558, %v7554
    %v7560 = vlaneseq
    %v7561 = vshrl.u32 %v7560, 7
    %v7562 = vsub.s32 %v7396, %v7561
    %v7563 = vrot.slane %v7253, %v7562
    %v7564 = vsel %vm7401, %v7563, %v7559
    %v7565 = vlaneseq
    %v7566 = vshrl.u32 %v7565, 7
    %v7567 = vsub.s32 %v7403, %v7566
    %v7568 = vrot.slane %v7256, %v7567
    %v7569 = vsel %vm7408, %v7568, %v7564
    %v7570 = vlaneseq
    %v7571 = vshrl.u32 %v7570, 7
    %v7572 = vsub.s32 %v7410, %v7571
    %v7573 = vrot.slane %v7259, %v7572
    %v7574 = vsel %vm7415, %v7573, %v7569
    %v7575 = vlaneseq
    %v7576 = vshrl.u32 %v7575, 7
    %v7577 = vsub.s32 %v937, %v7576
    %v7578 = vrot.slane %v7262, %v7577
    %v7579 = vlaneseq
    %v7580 = vshrl.u32 %v7579, 7
    %v7581 = vsub.s32 %v7312, %v7580
    %v7582 = vrot.slane %v7265, %v7581
    %v7583 = vsel %vm7317, %v7582, %v7578
    %v7584 = vlaneseq
    %v7585 = vshrl.u32 %v7584, 7
    %v7586 = vsub.s32 %v7319, %v7585
    %v7587 = vrot.slane %v7268, %v7586
    %v7588 = vsel %vm7324, %v7587, %v7583
    %v7589 = vlaneseq
    %v7590 = vshrl.u32 %v7589, 7
    %v7591 = vsub.s32 %v7326, %v7590
    %v7592 = vrot.slane %v7271, %v7591
    %v7593 = vsel %vm7331, %v7592, %v7588
    %v7594 = vlaneseq
    %v7595 = vshrl.u32 %v7594, 7
    %v7596 = vsub.s32 %v7333, %v7595
    %v7597 = vrot.slane %v7274, %v7596
    %v7598 = vsel %vm7338, %v7597, %v7593
    %v7599 = vlaneseq
    %v7600 = vshrl.u32 %v7599, 7
    %v7601 = vsub.s32 %v7340, %v7600
    %v7602 = vrot.slane %v7277, %v7601
    %v7603 = vsel %vm7345, %v7602, %v7598
    %v7604 = vlaneseq
    %v7605 = vshrl.u32 %v7604, 7
    %v7606 = vsub.s32 %v7347, %v7605
    %v7607 = vrot.slane %v7280, %v7606
    %v7608 = vsel %vm7352, %v7607, %v7603
    %v7609 = vlaneseq
    %v7610 = vshrl.u32 %v7609, 7
    %v7611 = vsub.s32 %v7354, %v7610
    %v7612 = vrot.slane %v7283, %v7611
    %v7613 = vsel %vm7359, %v7612, %v7608
    %v7614 = vlaneseq
    %v7615 = vshrl.u32 %v7614, 7
    %v7616 = vsub.s32 %v7361, %v7615
    %v7617 = vrot.slane %v7286, %v7616
    %v7618 = vsel %vm7366, %v7617, %v7613
    %v7619 = vlaneseq
    %v7620 = vshrl.u32 %v7619, 7
    %v7621 = vsub.s32 %v7368, %v7620
    %v7622 = vrot.slane %v7289, %v7621
    %v7623 = vsel %vm7373, %v7622, %v7618
    %v7624 = vlaneseq
    %v7625 = vshrl.u32 %v7624, 7
    %v7626 = vsub.s32 %v7375, %v7625
    %v7627 = vrot.slane %v7292, %v7626
    %v7628 = vsel %vm7380, %v7627, %v7623
    %v7629 = vlaneseq
    %v7630 = vshrl.u32 %v7629, 7
    %v7631 = vsub.s32 %v7382, %v7630
    %v7632 = vrot.slane %v7295, %v7631
    %v7633 = vsel %vm7387, %v7632, %v7628
    %v7634 = vlaneseq
    %v7635 = vshrl.u32 %v7634, 7
    %v7636 = vsub.s32 %v7389, %v7635
    %v7637 = vrot.slane %v7298, %v7636
    %v7638 = vsel %vm7394, %v7637, %v7633
    %v7639 = vlaneseq
    %v7640 = vshrl.u32 %v7639, 7
    %v7641 = vsub.s32 %v7396, %v7640
    %v7642 = vrot.slane %v7301, %v7641
    %v7643 = vsel %vm7401, %v7642, %v7638
    %v7644 = vlaneseq
    %v7645 = vshrl.u32 %v7644, 7
    %v7646 = vsub.s32 %v7403, %v7645
    %v7647 = vrot.slane %v7304, %v7646
    %v7648 = vsel %vm7408, %v7647, %v7643
    %v7649 = vlaneseq
    %v7650 = vshrl.u32 %v7649, 7
    %v7651 = vsub.s32 %v7410, %v7650
    %v7652 = vrot.slane %v7307, %v7651
    %v7653 = vsel %vm7415, %v7652, %v7648
    %v7654 = vcombine.low %v7416, %v7495
    %v7655 = vcombine.low %v7574, %v7653
    %v7657 = vunpack.c.l.s4 1966171168
    %v7658 = vunpack.c.0.s8 %v7657
    %v7659 = vlaneseq
    %v7660 = vshrl.u32 %v7659, 7
    %v7661 = vsub.s32 %v7658, %v7660
    %v7662 = vrot.slane %v7654, %v7661
    %v7664 = vunpack.c.l.s4 1966171168
    %v7665 = vunpack.c.0.s8 %v7664
    %v7666 = vlaneseq
    %v7667 = vshrl.u32 %v7666, 7
    %v7668 = vsub.s32 %v7665, %v7667
    %v7669 = vrot.slane %v7655, %v7668
    %v7670 = vcombine.low %v7662, %v7669
    %v7672 = vunpack.c.l.s4 1966171168
    %v7673 = vunpack.c.0.s8 %v7672
    %v7674 = vlaneseq
    %v7675 = vshrl.u32 %v7674, 7
    %v7676 = vsub.s32 %v7673, %v7675
    %v7677 = vrot.slane %v7670, %v7676
    %v7678 = vlaneseq
    %vm7679 = vcmp.ge.s32.totalorder %v7678, 0
    %vm7680 = vcmp.lt.s32.totalorder %v7678, 512
    %vm7681 = vmand %vm7679, %vm7680
    %7682 = vst.msk [vmem:[%s6] sm:$0xf] %vm7681, %v7677
    %s7683 = smul.u32 0, 512
    %v7684 = vlaneseq
    %v7685 = vshrl.u32 %v7684, 7
    %v7686 = vadd.s32 %v7685, 8
    %v7687 = vadd.s32 %v7685, 16
    %v7688 = vadd.s32 %v7685, 24
    %v7689 = vadd.s32 %v7685, 32
    %v7690 = vadd.s32 %v7685, 40
    %v7691 = vadd.s32 %v7685, 48
    %v7692 = vadd.s32 %v7685, 56
    %v7693 = vadd.s32 %v7685, 64
    %v7694 = vadd.s32 %v7685, 72
    %v7695 = vadd.s32 %v7685, 80
    %v7696 = vadd.s32 %v7685, 88
    %v7697 = vadd.s32 %v7685, 96
    %v7698 = vadd.s32 %v7685, 104
    %v7699 = vadd.s32 %v7685, 112
    %v7700 = vadd.s32 %v7685, 120
    %v7701 = vadd.s32 %v7685, 128
    %v7702 = vadd.s32 %v7685, 136
    %v7703 = vadd.s32 %v7685, 144
    %v7704 = vadd.s32 %v7685, 152
    %v7705 = vadd.s32 %v7685, 160
    %v7706 = vadd.s32 %v7685, 168
    %v7707 = vadd.s32 %v7685, 176
    %v7708 = vadd.s32 %v7685, 184
    %v7709 = vadd.s32 %v7685, 192
    %v7710 = vadd.s32 %v7685, 200
    %v7711 = vadd.s32 %v7685, 208
    %v7712 = vadd.s32 %v7685, 216
    %v7713 = vadd.s32 %v7685, 224
    %v7714 = vadd.s32 %v7685, 232
    %v7715 = vadd.s32 %v7685, 240
    %v7716 = vadd.s32 %v7685, 248
    %v7717 = vadd.s32 %v7685, 256
    %v7718 = vadd.s32 %v7685, 264
    %v7719 = vadd.s32 %v7685, 272
    %v7720 = vadd.s32 %v7685, 280
    %v7721 = vadd.s32 %v7685, 288
    %v7722 = vadd.s32 %v7685, 296
    %v7723 = vadd.s32 %v7685, 304
    %v7724 = vadd.s32 %v7685, 312
    %v7725 = vadd.s32 %v7685, 320
    %v7726 = vadd.s32 %v7685, 328
    %v7727 = vadd.s32 %v7685, 336
    %v7728 = vadd.s32 %v7685, 344
    %v7729 = vadd.s32 %v7685, 352
    %v7730 = vadd.s32 %v7685, 360
    %v7731 = vadd.s32 %v7685, 368
    %v7732 = vadd.s32 %v7685, 376
    %v7733 = vadd.s32 %v7685, 384
    %v7734 = vadd.s32 %v7685, 392
    %v7735 = vadd.s32 %v7685, 400
    %v7736 = vadd.s32 %v7685, 408
    %v7737 = vadd.s32 %v7685, 416
    %v7738 = vadd.s32 %v7685, 424
    %v7739 = vadd.s32 %v7685, 432
    %v7740 = vadd.s32 %v7685, 440
    %v7741 = vadd.s32 %v7685, 448
    %v7742 = vadd.s32 %v7685, 456
    %v7743 = vadd.s32 %v7685, 464
    %v7744 = vadd.s32 %v7685, 472
    %v7745 = vadd.s32 %v7685, 480
    %v7746 = vadd.s32 %v7685, 488
    %v7747 = vadd.s32 %v7685, 496
    %v7748 = vadd.s32 %v7685, 504
    %v7749 = vstv %s7683
    %v7750 = vadd.s32 %v7685, %v7749
    %v7751 = vadd.s32 %v7686, %v7749
    %v7752 = vadd.s32 %v7687, %v7749
    %v7753 = vadd.s32 %v7688, %v7749
    %v7754 = vadd.s32 %v7689, %v7749
    %v7755 = vadd.s32 %v7690, %v7749
    %v7756 = vadd.s32 %v7691, %v7749
    %v7757 = vadd.s32 %v7692, %v7749
    %v7758 = vadd.s32 %v7693, %v7749
    %v7759 = vadd.s32 %v7694, %v7749
    %v7760 = vadd.s32 %v7695, %v7749
    %v7761 = vadd.s32 %v7696, %v7749
    %v7762 = vadd.s32 %v7697, %v7749
    %v7763 = vadd.s32 %v7698, %v7749
    %v7764 = vadd.s32 %v7699, %v7749
    %v7765 = vadd.s32 %v7700, %v7749
    %v7766 = vadd.s32 %v7701, %v7749
    %v7767 = vadd.s32 %v7702, %v7749
    %v7768 = vadd.s32 %v7703, %v7749
    %v7769 = vadd.s32 %v7704, %v7749
    %v7770 = vadd.s32 %v7705, %v7749
    %v7771 = vadd.s32 %v7706, %v7749
    %v7772 = vadd.s32 %v7707, %v7749
    %v7773 = vadd.s32 %v7708, %v7749
    %v7774 = vadd.s32 %v7709, %v7749
    %v7775 = vadd.s32 %v7710, %v7749
    %v7776 = vadd.s32 %v7711, %v7749
    %v7777 = vadd.s32 %v7712, %v7749
    %v7778 = vadd.s32 %v7713, %v7749
    %v7779 = vadd.s32 %v7714, %v7749
    %v7780 = vadd.s32 %v7715, %v7749
    %v7781 = vadd.s32 %v7716, %v7749
    %v7782 = vadd.s32 %v7717, %v7749
    %v7783 = vadd.s32 %v7718, %v7749
    %v7784 = vadd.s32 %v7719, %v7749
    %v7785 = vadd.s32 %v7720, %v7749
    %v7786 = vadd.s32 %v7721, %v7749
    %v7787 = vadd.s32 %v7722, %v7749
    %v7788 = vadd.s32 %v7723, %v7749
    %v7789 = vadd.s32 %v7724, %v7749
    %v7790 = vadd.s32 %v7725, %v7749
    %v7791 = vadd.s32 %v7726, %v7749
    %v7792 = vadd.s32 %v7727, %v7749
    %v7793 = vadd.s32 %v7728, %v7749
    %v7794 = vadd.s32 %v7729, %v7749
    %v7795 = vadd.s32 %v7730, %v7749
    %v7796 = vadd.s32 %v7731, %v7749
    %v7797 = vadd.s32 %v7732, %v7749
    %v7798 = vadd.s32 %v7733, %v7749
    %v7799 = vadd.s32 %v7734, %v7749
    %v7800 = vadd.s32 %v7735, %v7749
    %v7801 = vadd.s32 %v7736, %v7749
    %v7802 = vadd.s32 %v7737, %v7749
    %v7803 = vadd.s32 %v7738, %v7749
    %v7804 = vadd.s32 %v7739, %v7749
    %v7805 = vadd.s32 %v7740, %v7749
    %v7806 = vadd.s32 %v7741, %v7749
    %v7807 = vadd.s32 %v7742, %v7749
    %v7808 = vadd.s32 %v7743, %v7749
    %v7809 = vadd.s32 %v7744, %v7749
    %v7810 = vadd.s32 %v7745, %v7749
    %v7811 = vadd.s32 %v7746, %v7749
    %v7812 = vadd.s32 %v7747, %v7749
    %v7813 = vadd.s32 %v7748, %v7749
    %vm7814 = vcmp.lt.s32.totalorder %v7750, 512
    %vm7815 = vcmp.lt.s32.totalorder %v7751, 512
    %vm7816 = vcmp.lt.s32.totalorder %v7752, 512
    %vm7817 = vcmp.lt.s32.totalorder %v7753, 512
    %vm7818 = vcmp.lt.s32.totalorder %v7754, 512
    %vm7819 = vcmp.lt.s32.totalorder %v7755, 512
    %vm7820 = vcmp.lt.s32.totalorder %v7756, 512
    %vm7821 = vcmp.lt.s32.totalorder %v7757, 512
    %vm7822 = vcmp.lt.s32.totalorder %v7758, 512
    %vm7823 = vcmp.lt.s32.totalorder %v7759, 512
    %vm7824 = vcmp.lt.s32.totalorder %v7760, 512
    %vm7825 = vcmp.lt.s32.totalorder %v7761, 512
    %vm7826 = vcmp.lt.s32.totalorder %v7762, 512
    %vm7827 = vcmp.lt.s32.totalorder %v7763, 512
    %vm7828 = vcmp.lt.s32.totalorder %v7764, 512
    %vm7829 = vcmp.lt.s32.totalorder %v7765, 512
    %vm7830 = vcmp.lt.s32.totalorder %v7766, 512
    %vm7831 = vcmp.lt.s32.totalorder %v7767, 512
    %vm7832 = vcmp.lt.s32.totalorder %v7768, 512
    %vm7833 = vcmp.lt.s32.totalorder %v7769, 512
    %vm7834 = vcmp.lt.s32.totalorder %v7770, 512
    %vm7835 = vcmp.lt.s32.totalorder %v7771, 512
    %vm7836 = vcmp.lt.s32.totalorder %v7772, 512
    %vm7837 = vcmp.lt.s32.totalorder %v7773, 512
    %vm7838 = vcmp.lt.s32.totalorder %v7774, 512
    %vm7839 = vcmp.lt.s32.totalorder %v7775, 512
    %vm7840 = vcmp.lt.s32.totalorder %v7776, 512
    %vm7841 = vcmp.lt.s32.totalorder %v7777, 512
    %vm7842 = vcmp.lt.s32.totalorder %v7778, 512
    %vm7843 = vcmp.lt.s32.totalorder %v7779, 512
    %vm7844 = vcmp.lt.s32.totalorder %v7780, 512
    %vm7845 = vcmp.lt.s32.totalorder %v7781, 512
    %vm7846 = vcmp.lt.s32.totalorder %v7782, 512
    %vm7847 = vcmp.lt.s32.totalorder %v7783, 512
    %vm7848 = vcmp.lt.s32.totalorder %v7784, 512
    %vm7849 = vcmp.lt.s32.totalorder %v7785, 512
    %vm7850 = vcmp.lt.s32.totalorder %v7786, 512
    %vm7851 = vcmp.lt.s32.totalorder %v7787, 512
    %vm7852 = vcmp.lt.s32.totalorder %v7788, 512
    %vm7853 = vcmp.lt.s32.totalorder %v7789, 512
    %vm7854 = vcmp.lt.s32.totalorder %v7790, 512
    %vm7855 = vcmp.lt.s32.totalorder %v7791, 512
    %vm7856 = vcmp.lt.s32.totalorder %v7792, 512
    %vm7857 = vcmp.lt.s32.totalorder %v7793, 512
    %vm7858 = vcmp.lt.s32.totalorder %v7794, 512
    %vm7859 = vcmp.lt.s32.totalorder %v7795, 512
    %vm7860 = vcmp.lt.s32.totalorder %v7796, 512
    %vm7861 = vcmp.lt.s32.totalorder %v7797, 512
    %vm7862 = vcmp.lt.s32.totalorder %v7798, 512
    %vm7863 = vcmp.lt.s32.totalorder %v7799, 512
    %vm7864 = vcmp.lt.s32.totalorder %v7800, 512
    %vm7865 = vcmp.lt.s32.totalorder %v7801, 512
    %vm7866 = vcmp.lt.s32.totalorder %v7802, 512
    %vm7867 = vcmp.lt.s32.totalorder %v7803, 512
    %vm7868 = vcmp.lt.s32.totalorder %v7804, 512
    %vm7869 = vcmp.lt.s32.totalorder %v7805, 512
    %vm7870 = vcmp.lt.s32.totalorder %v7806, 512
    %vm7871 = vcmp.lt.s32.totalorder %v7807, 512
    %vm7872 = vcmp.lt.s32.totalorder %v7808, 512
    %vm7873 = vcmp.lt.s32.totalorder %v7809, 512
    %vm7874 = vcmp.lt.s32.totalorder %v7810, 512
    %vm7875 = vcmp.lt.s32.totalorder %v7811, 512
    %vm7876 = vcmp.lt.s32.totalorder %v7812, 512
    %vm7877 = vcmp.lt.s32.totalorder %v7813, 512
    %v7878 = vsub.f32 %v1614, %v26
    %v7879 = vsub.f32 %v1617, %v27
    %v7880 = vsub.f32 %v1622, %v28
    %v7881 = vsub.f32 %v1625, %v29
    %v7882 = vsub.f32 %v1630, %v30
    %v7883 = vsub.f32 %v1633, %v31
    %v7884 = vsub.f32 %v1638, %v32
    %v7885 = vsub.f32 %v1641, %v33
    %v7886 = vsub.f32 %v1646, %v34
    %v7887 = vsub.f32 %v1649, %v35
    %v7888 = vsub.f32 %v1654, %v36
    %v7889 = vsub.f32 %v1657, %v37
    %v7890 = vsub.f32 %v1662, %v38
    %v7891 = vsub.f32 %v1665, %v39
    %v7892 = vsub.f32 %v1670, %v40
    %v7893 = vsub.f32 %v1673, %v41
    %v7894 = vsub.f32 %v1678, %v42
    %v7895 = vsub.f32 %v1681, %v43
    %v7896 = vsub.f32 %v1686, %v44
    %v7897 = vsub.f32 %v1689, %v45
    %v7898 = vsub.f32 %v1694, %v46
    %v7899 = vsub.f32 %v1697, %v47
    %v7900 = vsub.f32 %v1702, %v48
    %v7901 = vsub.f32 %v1705, %v49
    %v7902 = vsub.f32 %v1710, %v50
    %v7903 = vsub.f32 %v1713, %v51
    %v7904 = vsub.f32 %v1718, %v52
    %v7905 = vsub.f32 %v1721, %v53
    %v7906 = vsub.f32 %v1726, %v54
    %v7907 = vsub.f32 %v1729, %v55
    %v7908 = vsub.f32 %v1734, %v56
    %v7909 = vsub.f32 %v1737, %v57
    %v7910 = vsub.f32 %v1742, %v58
    %v7911 = vsub.f32 %v1745, %v59
    %v7912 = vsub.f32 %v1750, %v60
    %v7913 = vsub.f32 %v1753, %v61
    %v7914 = vsub.f32 %v1758, %v62
    %v7915 = vsub.f32 %v1761, %v63
    %v7916 = vsub.f32 %v1766, %v64
    %v7917 = vsub.f32 %v1769, %v65
    %v7918 = vsub.f32 %v1774, %v66
    %v7919 = vsub.f32 %v1777, %v67
    %v7920 = vsub.f32 %v1782, %v68
    %v7921 = vsub.f32 %v1785, %v69
    %v7922 = vsub.f32 %v1790, %v70
    %v7923 = vsub.f32 %v1793, %v71
    %v7924 = vsub.f32 %v1798, %v72
    %v7925 = vsub.f32 %v1801, %v73
    %v7926 = vsub.f32 %v1806, %v74
    %v7927 = vsub.f32 %v1809, %v75
    %v7928 = vsub.f32 %v1814, %v76
    %v7929 = vsub.f32 %v1817, %v77
    %v7930 = vsub.f32 %v1822, %v78
    %v7931 = vsub.f32 %v1825, %v79
    %v7932 = vsub.f32 %v1830, %v80
    %v7933 = vsub.f32 %v1833, %v81
    %v7934 = vsub.f32 %v1838, %v82
    %v7935 = vsub.f32 %v1841, %v83
    %v7936 = vsub.f32 %v1846, %v84
    %v7937 = vsub.f32 %v1849, %v85
    %v7938 = vsub.f32 %v1854, %v86
    %v7939 = vsub.f32 %v1857, %v87
    %v7940 = vsub.f32 %v1862, %v88
    %v7941 = vsub.f32 %v1865, %v89
    %v7942 = vmul.f32 %v7878, %v7878
    %v7943 = vmul.f32 %v7879, %v7879
    %v7944 = vmul.f32 %v7880, %v7880
    %v7945 = vmul.f32 %v7881, %v7881
    %v7946 = vmul.f32 %v7882, %v7882
    %v7947 = vmul.f32 %v7883, %v7883
    %v7948 = vmul.f32 %v7884, %v7884
    %v7949 = vmul.f32 %v7885, %v7885
    %v7950 = vmul.f32 %v7886, %v7886
    %v7951 = vmul.f32 %v7887, %v7887
    %v7952 = vmul.f32 %v7888, %v7888
    %v7953 = vmul.f32 %v7889, %v7889
    %v7954 = vmul.f32 %v7890, %v7890
    %v7955 = vmul.f32 %v7891, %v7891
    %v7956 = vmul.f32 %v7892, %v7892
    %v7957 = vmul.f32 %v7893, %v7893
    %v7958 = vmul.f32 %v7894, %v7894
    %v7959 = vmul.f32 %v7895, %v7895
    %v7960 = vmul.f32 %v7896, %v7896
    %v7961 = vmul.f32 %v7897, %v7897
    %v7962 = vmul.f32 %v7898, %v7898
    %v7963 = vmul.f32 %v7899, %v7899
    %v7964 = vmul.f32 %v7900, %v7900
    %v7965 = vmul.f32 %v7901, %v7901
    %v7966 = vmul.f32 %v7902, %v7902
    %v7967 = vmul.f32 %v7903, %v7903
    %v7968 = vmul.f32 %v7904, %v7904
    %v7969 = vmul.f32 %v7905, %v7905
    %v7970 = vmul.f32 %v7906, %v7906
    %v7971 = vmul.f32 %v7907, %v7907
    %v7972 = vmul.f32 %v7908, %v7908
    %v7973 = vmul.f32 %v7909, %v7909
    %v7974 = vmul.f32 %v7910, %v7910
    %v7975 = vmul.f32 %v7911, %v7911
    %v7976 = vmul.f32 %v7912, %v7912
    %v7977 = vmul.f32 %v7913, %v7913
    %v7978 = vmul.f32 %v7914, %v7914
    %v7979 = vmul.f32 %v7915, %v7915
    %v7980 = vmul.f32 %v7916, %v7916
    %v7981 = vmul.f32 %v7917, %v7917
    %v7982 = vmul.f32 %v7918, %v7918
    %v7983 = vmul.f32 %v7919, %v7919
    %v7984 = vmul.f32 %v7920, %v7920
    %v7985 = vmul.f32 %v7921, %v7921
    %v7986 = vmul.f32 %v7922, %v7922
    %v7987 = vmul.f32 %v7923, %v7923
    %v7988 = vmul.f32 %v7924, %v7924
    %v7989 = vmul.f32 %v7925, %v7925
    %v7990 = vmul.f32 %v7926, %v7926
    %v7991 = vmul.f32 %v7927, %v7927
    %v7992 = vmul.f32 %v7928, %v7928
    %v7993 = vmul.f32 %v7929, %v7929
    %v7994 = vmul.f32 %v7930, %v7930
    %v7995 = vmul.f32 %v7931, %v7931
    %v7996 = vmul.f32 %v7932, %v7932
    %v7997 = vmul.f32 %v7933, %v7933
    %v7998 = vmul.f32 %v7934, %v7934
    %v7999 = vmul.f32 %v7935, %v7935
    %v8000 = vmul.f32 %v7936, %v7936
    %v8001 = vmul.f32 %v7937, %v7937
    %v8002 = vmul.f32 %v7938, %v7938
    %v8003 = vmul.f32 %v7939, %v7939
    %v8004 = vmul.f32 %v7940, %v7940
    %v8005 = vmul.f32 %v7941, %v7941
    %v8006 = vsel %vm91, %v7942, 0.0
    %8007 = vadd.xlane.f32.xlu0 %v8006
    %v8008 = vpop.xlane.xlu0 %8007
    %v8009 = vsel %vm91, %v7943, 0.0
    %8010 = vadd.xlane.f32.xlu0 %v8009
    %v8011 = vpop.xlane.xlu0 %8010
    %v8012 = vsel %vm91, %v7944, 0.0
    %8013 = vadd.xlane.f32.xlu0 %v8012
    %v8014 = vpop.xlane.xlu0 %8013
    %v8015 = vsel %vm91, %v7945, 0.0
    %8016 = vadd.xlane.f32.xlu0 %v8015
    %v8017 = vpop.xlane.xlu0 %8016
    %v8018 = vsel %vm91, %v7946, 0.0
    %8019 = vadd.xlane.f32.xlu0 %v8018
    %v8020 = vpop.xlane.xlu0 %8019
    %v8021 = vsel %vm91, %v7947, 0.0
    %8022 = vadd.xlane.f32.xlu0 %v8021
    %v8023 = vpop.xlane.xlu0 %8022
    %v8024 = vsel %vm91, %v7948, 0.0
    %8025 = vadd.xlane.f32.xlu0 %v8024
    %v8026 = vpop.xlane.xlu0 %8025
    %v8027 = vsel %vm91, %v7949, 0.0
    %8028 = vadd.xlane.f32.xlu0 %v8027
    %v8029 = vpop.xlane.xlu0 %8028
    %v8030 = vsel %vm91, %v7950, 0.0
    %8031 = vadd.xlane.f32.xlu0 %v8030
    %v8032 = vpop.xlane.xlu0 %8031
    %v8033 = vsel %vm91, %v7951, 0.0
    %8034 = vadd.xlane.f32.xlu0 %v8033
    %v8035 = vpop.xlane.xlu0 %8034
    %v8036 = vsel %vm91, %v7952, 0.0
    %8037 = vadd.xlane.f32.xlu0 %v8036
    %v8038 = vpop.xlane.xlu0 %8037
    %v8039 = vsel %vm91, %v7953, 0.0
    %8040 = vadd.xlane.f32.xlu0 %v8039
    %v8041 = vpop.xlane.xlu0 %8040
    %v8042 = vsel %vm91, %v7954, 0.0
    %8043 = vadd.xlane.f32.xlu0 %v8042
    %v8044 = vpop.xlane.xlu0 %8043
    %v8045 = vsel %vm91, %v7955, 0.0
    %8046 = vadd.xlane.f32.xlu0 %v8045
    %v8047 = vpop.xlane.xlu0 %8046
    %v8048 = vsel %vm91, %v7956, 0.0
    %8049 = vadd.xlane.f32.xlu0 %v8048
    %v8050 = vpop.xlane.xlu0 %8049
    %v8051 = vsel %vm91, %v7957, 0.0
    %8052 = vadd.xlane.f32.xlu0 %v8051
    %v8053 = vpop.xlane.xlu0 %8052
    %v8054 = vsel %vm91, %v7958, 0.0
    %8055 = vadd.xlane.f32.xlu0 %v8054
    %v8056 = vpop.xlane.xlu0 %8055
    %v8057 = vsel %vm91, %v7959, 0.0
    %8058 = vadd.xlane.f32.xlu0 %v8057
    %v8059 = vpop.xlane.xlu0 %8058
    %v8060 = vsel %vm91, %v7960, 0.0
    %8061 = vadd.xlane.f32.xlu0 %v8060
    %v8062 = vpop.xlane.xlu0 %8061
    %v8063 = vsel %vm91, %v7961, 0.0
    %8064 = vadd.xlane.f32.xlu0 %v8063
    %v8065 = vpop.xlane.xlu0 %8064
    %v8066 = vsel %vm91, %v7962, 0.0
    %8067 = vadd.xlane.f32.xlu0 %v8066
    %v8068 = vpop.xlane.xlu0 %8067
    %v8069 = vsel %vm91, %v7963, 0.0
    %8070 = vadd.xlane.f32.xlu0 %v8069
    %v8071 = vpop.xlane.xlu0 %8070
    %v8072 = vsel %vm91, %v7964, 0.0
    %8073 = vadd.xlane.f32.xlu0 %v8072
    %v8074 = vpop.xlane.xlu0 %8073
    %v8075 = vsel %vm91, %v7965, 0.0
    %8076 = vadd.xlane.f32.xlu0 %v8075
    %v8077 = vpop.xlane.xlu0 %8076
    %v8078 = vsel %vm91, %v7966, 0.0
    %8079 = vadd.xlane.f32.xlu0 %v8078
    %v8080 = vpop.xlane.xlu0 %8079
    %v8081 = vsel %vm91, %v7967, 0.0
    %8082 = vadd.xlane.f32.xlu0 %v8081
    %v8083 = vpop.xlane.xlu0 %8082
    %v8084 = vsel %vm91, %v7968, 0.0
    %8085 = vadd.xlane.f32.xlu0 %v8084
    %v8086 = vpop.xlane.xlu0 %8085
    %v8087 = vsel %vm91, %v7969, 0.0
    %8088 = vadd.xlane.f32.xlu0 %v8087
    %v8089 = vpop.xlane.xlu0 %8088
    %v8090 = vsel %vm91, %v7970, 0.0
    %8091 = vadd.xlane.f32.xlu0 %v8090
    %v8092 = vpop.xlane.xlu0 %8091
    %v8093 = vsel %vm91, %v7971, 0.0
    %8094 = vadd.xlane.f32.xlu0 %v8093
    %v8095 = vpop.xlane.xlu0 %8094
    %v8096 = vsel %vm91, %v7972, 0.0
    %8097 = vadd.xlane.f32.xlu0 %v8096
    %v8098 = vpop.xlane.xlu0 %8097
    %v8099 = vsel %vm91, %v7973, 0.0
    %8100 = vadd.xlane.f32.xlu0 %v8099
    %v8101 = vpop.xlane.xlu0 %8100
    %v8102 = vsel %vm91, %v7974, 0.0
    %8103 = vadd.xlane.f32.xlu0 %v8102
    %v8104 = vpop.xlane.xlu0 %8103
    %v8105 = vsel %vm91, %v7975, 0.0
    %8106 = vadd.xlane.f32.xlu0 %v8105
    %v8107 = vpop.xlane.xlu0 %8106
    %v8108 = vsel %vm91, %v7976, 0.0
    %8109 = vadd.xlane.f32.xlu0 %v8108
    %v8110 = vpop.xlane.xlu0 %8109
    %v8111 = vsel %vm91, %v7977, 0.0
    %8112 = vadd.xlane.f32.xlu0 %v8111
    %v8113 = vpop.xlane.xlu0 %8112
    %v8114 = vsel %vm91, %v7978, 0.0
    %8115 = vadd.xlane.f32.xlu0 %v8114
    %v8116 = vpop.xlane.xlu0 %8115
    %v8117 = vsel %vm91, %v7979, 0.0
    %8118 = vadd.xlane.f32.xlu0 %v8117
    %v8119 = vpop.xlane.xlu0 %8118
    %v8120 = vsel %vm91, %v7980, 0.0
    %8121 = vadd.xlane.f32.xlu0 %v8120
    %v8122 = vpop.xlane.xlu0 %8121
    %v8123 = vsel %vm91, %v7981, 0.0
    %8124 = vadd.xlane.f32.xlu0 %v8123
    %v8125 = vpop.xlane.xlu0 %8124
    %v8126 = vsel %vm91, %v7982, 0.0
    %8127 = vadd.xlane.f32.xlu0 %v8126
    %v8128 = vpop.xlane.xlu0 %8127
    %v8129 = vsel %vm91, %v7983, 0.0
    %8130 = vadd.xlane.f32.xlu0 %v8129
    %v8131 = vpop.xlane.xlu0 %8130
    %v8132 = vsel %vm91, %v7984, 0.0
    %8133 = vadd.xlane.f32.xlu0 %v8132
    %v8134 = vpop.xlane.xlu0 %8133
    %v8135 = vsel %vm91, %v7985, 0.0
    %8136 = vadd.xlane.f32.xlu0 %v8135
    %v8137 = vpop.xlane.xlu0 %8136
    %v8138 = vsel %vm91, %v7986, 0.0
    %8139 = vadd.xlane.f32.xlu0 %v8138
    %v8140 = vpop.xlane.xlu0 %8139
    %v8141 = vsel %vm91, %v7987, 0.0
    %8142 = vadd.xlane.f32.xlu0 %v8141
    %v8143 = vpop.xlane.xlu0 %8142
    %v8144 = vsel %vm91, %v7988, 0.0
    %8145 = vadd.xlane.f32.xlu0 %v8144
    %v8146 = vpop.xlane.xlu0 %8145
    %v8147 = vsel %vm91, %v7989, 0.0
    %8148 = vadd.xlane.f32.xlu0 %v8147
    %v8149 = vpop.xlane.xlu0 %8148
    %v8150 = vsel %vm91, %v7990, 0.0
    %8151 = vadd.xlane.f32.xlu0 %v8150
    %v8152 = vpop.xlane.xlu0 %8151
    %v8153 = vsel %vm91, %v7991, 0.0
    %8154 = vadd.xlane.f32.xlu0 %v8153
    %v8155 = vpop.xlane.xlu0 %8154
    %v8156 = vsel %vm91, %v7992, 0.0
    %8157 = vadd.xlane.f32.xlu0 %v8156
    %v8158 = vpop.xlane.xlu0 %8157
    %v8159 = vsel %vm91, %v7993, 0.0
    %8160 = vadd.xlane.f32.xlu0 %v8159
    %v8161 = vpop.xlane.xlu0 %8160
    %v8162 = vsel %vm91, %v7994, 0.0
    %8163 = vadd.xlane.f32.xlu0 %v8162
    %v8164 = vpop.xlane.xlu0 %8163
    %v8165 = vsel %vm91, %v7995, 0.0
    %8166 = vadd.xlane.f32.xlu0 %v8165
    %v8167 = vpop.xlane.xlu0 %8166
    %v8168 = vsel %vm91, %v7996, 0.0
    %8169 = vadd.xlane.f32.xlu0 %v8168
    %v8170 = vpop.xlane.xlu0 %8169
    %v8171 = vsel %vm91, %v7997, 0.0
    %8172 = vadd.xlane.f32.xlu0 %v8171
    %v8173 = vpop.xlane.xlu0 %8172
    %v8174 = vsel %vm91, %v7998, 0.0
    %8175 = vadd.xlane.f32.xlu0 %v8174
    %v8176 = vpop.xlane.xlu0 %8175
    %v8177 = vsel %vm91, %v7999, 0.0
    %8178 = vadd.xlane.f32.xlu0 %v8177
    %v8179 = vpop.xlane.xlu0 %8178
    %v8180 = vsel %vm91, %v8000, 0.0
    %8181 = vadd.xlane.f32.xlu0 %v8180
    %v8182 = vpop.xlane.xlu0 %8181
    %v8183 = vsel %vm91, %v8001, 0.0
    %8184 = vadd.xlane.f32.xlu0 %v8183
    %v8185 = vpop.xlane.xlu0 %8184
    %v8186 = vsel %vm91, %v8002, 0.0
    %8187 = vadd.xlane.f32.xlu0 %v8186
    %v8188 = vpop.xlane.xlu0 %8187
    %v8189 = vsel %vm91, %v8003, 0.0
    %8190 = vadd.xlane.f32.xlu0 %v8189
    %v8191 = vpop.xlane.xlu0 %8190
    %v8192 = vsel %vm91, %v8004, 0.0
    %8193 = vadd.xlane.f32.xlu0 %v8192
    %v8194 = vpop.xlane.xlu0 %8193
    %v8195 = vsel %vm91, %v8005, 0.0
    %8196 = vadd.xlane.f32.xlu0 %v8195
    %v8197 = vpop.xlane.xlu0 %8196
    %v8198 = vsel %vm7814, %v8008, 0.0
    %v8199 = vsel %vm7815, %v8011, 0.0
    %v8200 = vsel %vm7816, %v8014, 0.0
    %v8201 = vsel %vm7817, %v8017, 0.0
    %v8202 = vsel %vm7818, %v8020, 0.0
    %v8203 = vsel %vm7819, %v8023, 0.0
    %v8204 = vsel %vm7820, %v8026, 0.0
    %v8205 = vsel %vm7821, %v8029, 0.0
    %v8206 = vsel %vm7822, %v8032, 0.0
    %v8207 = vsel %vm7823, %v8035, 0.0
    %v8208 = vsel %vm7824, %v8038, 0.0
    %v8209 = vsel %vm7825, %v8041, 0.0
    %v8210 = vsel %vm7826, %v8044, 0.0
    %v8211 = vsel %vm7827, %v8047, 0.0
    %v8212 = vsel %vm7828, %v8050, 0.0
    %v8213 = vsel %vm7829, %v8053, 0.0
    %v8214 = vsel %vm7830, %v8056, 0.0
    %v8215 = vsel %vm7831, %v8059, 0.0
    %v8216 = vsel %vm7832, %v8062, 0.0
    %v8217 = vsel %vm7833, %v8065, 0.0
    %v8218 = vsel %vm7834, %v8068, 0.0
    %v8219 = vsel %vm7835, %v8071, 0.0
    %v8220 = vsel %vm7836, %v8074, 0.0
    %v8221 = vsel %vm7837, %v8077, 0.0
    %v8222 = vsel %vm7838, %v8080, 0.0
    %v8223 = vsel %vm7839, %v8083, 0.0
    %v8224 = vsel %vm7840, %v8086, 0.0
    %v8225 = vsel %vm7841, %v8089, 0.0
    %v8226 = vsel %vm7842, %v8092, 0.0
    %v8227 = vsel %vm7843, %v8095, 0.0
    %v8228 = vsel %vm7844, %v8098, 0.0
    %v8229 = vsel %vm7845, %v8101, 0.0
    %v8230 = vsel %vm7846, %v8104, 0.0
    %v8231 = vsel %vm7847, %v8107, 0.0
    %v8232 = vsel %vm7848, %v8110, 0.0
    %v8233 = vsel %vm7849, %v8113, 0.0
    %v8234 = vsel %vm7850, %v8116, 0.0
    %v8235 = vsel %vm7851, %v8119, 0.0
    %v8236 = vsel %vm7852, %v8122, 0.0
    %v8237 = vsel %vm7853, %v8125, 0.0
    %v8238 = vsel %vm7854, %v8128, 0.0
    %v8239 = vsel %vm7855, %v8131, 0.0
    %v8240 = vsel %vm7856, %v8134, 0.0
    %v8241 = vsel %vm7857, %v8137, 0.0
    %v8242 = vsel %vm7858, %v8140, 0.0
    %v8243 = vsel %vm7859, %v8143, 0.0
    %v8244 = vsel %vm7860, %v8146, 0.0
    %v8245 = vsel %vm7861, %v8149, 0.0
    %v8246 = vsel %vm7862, %v8152, 0.0
    %v8247 = vsel %vm7863, %v8155, 0.0
    %v8248 = vsel %vm7864, %v8158, 0.0
    %v8249 = vsel %vm7865, %v8161, 0.0
    %v8250 = vsel %vm7866, %v8164, 0.0
    %v8251 = vsel %vm7867, %v8167, 0.0
    %v8252 = vsel %vm7868, %v8170, 0.0
    %v8253 = vsel %vm7869, %v8173, 0.0
    %v8254 = vsel %vm7870, %v8176, 0.0
    %v8255 = vsel %vm7871, %v8179, 0.0
    %v8256 = vsel %vm7872, %v8182, 0.0
    %v8257 = vsel %vm7873, %v8185, 0.0
    %v8258 = vsel %vm7874, %v8188, 0.0
    %v8259 = vsel %vm7875, %v8191, 0.0
    %v8260 = vsel %vm7876, %v8194, 0.0
    %v8261 = vsel %vm7877, %v8197, 0.0
    %vm8262 = vcmask 7168
    %v8263 = vsel %vm8262, %v8198, 0.0
    %v8264 = vsel %vm8262, %v8199, 0.0
    %v8265 = vadd.f32 %v8263, %v8264
    %v8266 = vsel %vm8262, %v8200, 0.0
    %v8267 = vadd.f32 %v8265, %v8266
    %v8268 = vsel %vm8262, %v8201, 0.0
    %v8269 = vadd.f32 %v8267, %v8268
    %v8270 = vsel %vm8262, %v8202, 0.0
    %v8271 = vadd.f32 %v8269, %v8270
    %v8272 = vsel %vm8262, %v8203, 0.0
    %v8273 = vadd.f32 %v8271, %v8272
    %v8274 = vsel %vm8262, %v8204, 0.0
    %v8275 = vadd.f32 %v8273, %v8274
    %v8276 = vsel %vm8262, %v8205, 0.0
    %v8277 = vadd.f32 %v8275, %v8276
    %v8278 = vsel %vm8262, %v8206, 0.0
    %v8279 = vadd.f32 %v8277, %v8278
    %v8280 = vsel %vm8262, %v8207, 0.0
    %v8281 = vadd.f32 %v8279, %v8280
    %v8282 = vsel %vm8262, %v8208, 0.0
    %v8283 = vadd.f32 %v8281, %v8282
    %v8284 = vsel %vm8262, %v8209, 0.0
    %v8285 = vadd.f32 %v8283, %v8284
    %v8286 = vsel %vm8262, %v8210, 0.0
    %v8287 = vadd.f32 %v8285, %v8286
    %v8288 = vsel %vm8262, %v8211, 0.0
    %v8289 = vadd.f32 %v8287, %v8288
    %v8290 = vsel %vm8262, %v8212, 0.0
    %v8291 = vadd.f32 %v8289, %v8290
    %v8292 = vsel %vm8262, %v8213, 0.0
    %v8293 = vadd.f32 %v8291, %v8292
    %v8294 = vsel %vm8262, %v8214, 0.0
    %v8295 = vadd.f32 %v8293, %v8294
    %v8296 = vsel %vm8262, %v8215, 0.0
    %v8297 = vadd.f32 %v8295, %v8296
    %v8298 = vsel %vm8262, %v8216, 0.0
    %v8299 = vadd.f32 %v8297, %v8298
    %v8300 = vsel %vm8262, %v8217, 0.0
    %v8301 = vadd.f32 %v8299, %v8300
    %v8302 = vsel %vm8262, %v8218, 0.0
    %v8303 = vadd.f32 %v8301, %v8302
    %v8304 = vsel %vm8262, %v8219, 0.0
    %v8305 = vadd.f32 %v8303, %v8304
    %v8306 = vsel %vm8262, %v8220, 0.0
    %v8307 = vadd.f32 %v8305, %v8306
    %v8308 = vsel %vm8262, %v8221, 0.0
    %v8309 = vadd.f32 %v8307, %v8308
    %v8310 = vsel %vm8262, %v8222, 0.0
    %v8311 = vadd.f32 %v8309, %v8310
    %v8312 = vsel %vm8262, %v8223, 0.0
    %v8313 = vadd.f32 %v8311, %v8312
    %v8314 = vsel %vm8262, %v8224, 0.0
    %v8315 = vadd.f32 %v8313, %v8314
    %v8316 = vsel %vm8262, %v8225, 0.0
    %v8317 = vadd.f32 %v8315, %v8316
    %v8318 = vsel %vm8262, %v8226, 0.0
    %v8319 = vadd.f32 %v8317, %v8318
    %v8320 = vsel %vm8262, %v8227, 0.0
    %v8321 = vadd.f32 %v8319, %v8320
    %v8322 = vsel %vm8262, %v8228, 0.0
    %v8323 = vadd.f32 %v8321, %v8322
    %v8324 = vsel %vm8262, %v8229, 0.0
    %v8325 = vadd.f32 %v8323, %v8324
    %v8326 = vsel %vm8262, %v8230, 0.0
    %v8327 = vadd.f32 %v8325, %v8326
    %v8328 = vsel %vm8262, %v8231, 0.0
    %v8329 = vadd.f32 %v8327, %v8328
    %v8330 = vsel %vm8262, %v8232, 0.0
    %v8331 = vadd.f32 %v8329, %v8330
    %v8332 = vsel %vm8262, %v8233, 0.0
    %v8333 = vadd.f32 %v8331, %v8332
    %v8334 = vsel %vm8262, %v8234, 0.0
    %v8335 = vadd.f32 %v8333, %v8334
    %v8336 = vsel %vm8262, %v8235, 0.0
    %v8337 = vadd.f32 %v8335, %v8336
    %v8338 = vsel %vm8262, %v8236, 0.0
    %v8339 = vadd.f32 %v8337, %v8338
    %v8340 = vsel %vm8262, %v8237, 0.0
    %v8341 = vadd.f32 %v8339, %v8340
    %v8342 = vsel %vm8262, %v8238, 0.0
    %v8343 = vadd.f32 %v8341, %v8342
    %v8344 = vsel %vm8262, %v8239, 0.0
    %v8345 = vadd.f32 %v8343, %v8344
    %v8346 = vsel %vm8262, %v8240, 0.0
    %v8347 = vadd.f32 %v8345, %v8346
    %v8348 = vsel %vm8262, %v8241, 0.0
    %v8349 = vadd.f32 %v8347, %v8348
    %v8350 = vsel %vm8262, %v8242, 0.0
    %v8351 = vadd.f32 %v8349, %v8350
    %v8352 = vsel %vm8262, %v8243, 0.0
    %v8353 = vadd.f32 %v8351, %v8352
    %v8354 = vsel %vm8262, %v8244, 0.0
    %v8355 = vadd.f32 %v8353, %v8354
    %v8356 = vsel %vm8262, %v8245, 0.0
    %v8357 = vadd.f32 %v8355, %v8356
    %v8358 = vsel %vm8262, %v8246, 0.0
    %v8359 = vadd.f32 %v8357, %v8358
    %v8360 = vsel %vm8262, %v8247, 0.0
    %v8361 = vadd.f32 %v8359, %v8360
    %v8362 = vsel %vm8262, %v8248, 0.0
    %v8363 = vadd.f32 %v8361, %v8362
    %v8364 = vsel %vm8262, %v8249, 0.0
    %v8365 = vadd.f32 %v8363, %v8364
    %v8366 = vsel %vm8262, %v8250, 0.0
    %v8367 = vadd.f32 %v8365, %v8366
    %v8368 = vsel %vm8262, %v8251, 0.0
    %v8369 = vadd.f32 %v8367, %v8368
    %v8370 = vsel %vm8262, %v8252, 0.0
    %v8371 = vadd.f32 %v8369, %v8370
    %v8372 = vsel %vm8262, %v8253, 0.0
    %v8373 = vadd.f32 %v8371, %v8372
    %v8374 = vsel %vm8262, %v8254, 0.0
    %v8375 = vadd.f32 %v8373, %v8374
    %v8376 = vsel %vm8262, %v8255, 0.0
    %v8377 = vadd.f32 %v8375, %v8376
    %v8378 = vsel %vm8262, %v8256, 0.0
    %v8379 = vadd.f32 %v8377, %v8378
    %v8380 = vsel %vm8262, %v8257, 0.0
    %v8381 = vadd.f32 %v8379, %v8380
    %v8382 = vsel %vm8262, %v8258, 0.0
    %v8383 = vadd.f32 %v8381, %v8382
    %v8384 = vsel %vm8262, %v8259, 0.0
    %v8385 = vadd.f32 %v8383, %v8384
    %v8386 = vsel %vm8262, %v8260, 0.0
    %v8387 = vadd.f32 %v8385, %v8386
    %v8388 = vsel %vm8262, %v8261, 0.0
    %v8389 = vadd.f32 %v8387, %v8388
    %8390 = vadd.xlane.f32.xlu0 %v8389
    %v8391 = vpop.xlane.xlu0 %8390
    %v8392 = vrot.slane %v8391, 4
    %v8393 = vadd.f32 %v8391, %v8392
    %v8394 = vrot.slane %v8393, 2
    %v8395 = vadd.f32 %v8393, %v8394
    %v8396 = vrot.slane %v8395, 1
    %v8397 = vadd.f32 %v8395, %v8396
    %s8398 = vtos %v8397
    %v8399 = vstv %s8398
    %vm8400 = vcmask 0
    %8401 = vst.msk [vmem:[#allocation2] sm:$0x1] %vm8400, %v8399
    %v8402 = vadd.s32 %v937, 128
    %v8403 = vadd.s32 %v937, 256
    %v8404 = vadd.s32 %v937, 384
    %v8405 = vadd.s32 %v937, %v7749
    %v8406 = vadd.s32 %v8402, %v7749
    %v8407 = vadd.s32 %v8403, %v7749
    %v8408 = vadd.s32 %v8404, %v7749
    %vm8409 = vcmp.lt.s32.totalorder %v8405, 512
    %vm8410 = vcmp.lt.s32.totalorder %v8406, 512
    %vm8411 = vcmp.lt.s32.totalorder %v8407, 512
    %vm8412 = vcmp.lt.s32.totalorder %v8408, 512
    %v8413 = vsel %vm8409, 1, 0
    %v8414 = vsel %vm8410, 1, 0
    %v8415 = vsel %vm8411, 1, 0
    %v8416 = vsel %vm8412, 1, 0
    %v8417 = vcvt.s32.f32 %v8413
    %v8418 = vcvt.s32.f32 %v8414
    %v8419 = vcvt.s32.f32 %v8415
    %v8420 = vcvt.s32.f32 %v8416
    %v8421 = vpack.c.bf16 %v8417, %v8417
    %v8422 = vpack.c.bf16 %v8418, %v8418
    %v8423 = vpack.c.bf16 %v8419, %v8419
    %v8424 = vpack.c.bf16 %v8420, %v8420
    %8425 = vmatprep.subr.bf16.mxu0 0
    %8426 = vmatpush1.bf16.msra.mxu0 %v1130
    %8427 = vmatprep.subr.bf16.mxu0 0
    %8428 = vmatpush1.bf16.msra.mxu0 %v1131
    %8429 = vmatprep.subr.bf16.mxu0 0
    %8430 = vmatpush1.bf16.msra.mxu0 %v1132
    %8431 = vmatprep.subr.bf16.mxu0 0
    %8432 = vmatpush1.bf16.msra.mxu0 %v1133
    %8433 = vmatprep.subr.bf16.mxu0 0
    %8434 = vmatpush1.bf16.msra.mxu0 %v1134
    %8435 = vmatprep.subr.bf16.mxu0 0
    %8436 = vmatpush1.bf16.msra.mxu0 %v1135
    %8437 = vmatprep.subr.bf16.mxu0 0
    %8438 = vmatpush1.bf16.msra.mxu0 %v1136
    %8439 = vmatprep.subr.bf16.mxu0 0
    %8440 = vmatpush1.bf16.msra.mxu0 %v1137
    %8441 = vmatprep.subr.bf16.mxu0 0
    %8442 = vmatpush1.bf16.msra.mxu0 %v1138
    %8443 = vmatprep.subr.bf16.mxu0 0
    %8444 = vmatpush1.bf16.msra.mxu0 %v1139
    %8445 = vmatprep.subr.bf16.mxu0 0
    %8446 = vmatpush1.bf16.msra.mxu0 %v1140
    %8447 = vmatprep.subr.bf16.mxu0 0
    %8448 = vmatpush1.bf16.msra.mxu0 %v1141
    %8449 = vmatprep.subr.bf16.mxu0 0
    %8450 = vmatpush1.bf16.msra.mxu0 %v1142
    %8451 = vmatprep.subr.bf16.mxu0 0
    %8452 = vmatpush1.bf16.msra.mxu0 %v1143
    %8453 = vmatprep.subr.bf16.mxu0 0
    %8454 = vmatpush1.bf16.msra.mxu0 %v1144
    %8455 = vmatprep.subr.bf16.mxu0 0
    %8456 = vmatpush1.bf16.msra.mxu0 %v1145
    %8457 = vmatprep.mubr.bf16.mxu0 %v8422
    %8458 = vmatmul.mubr.bf16.gmra.mrb[0].mxu0 %v8421
    %v8459 = vpop.f32.mrb[0].mxu0
    %v8460 = vadd.f32 0.0, %v8459
    %v8461 = vpop.f32.mrb[0].mxu0
    %v8462 = vpop.f32.mrb[0].mxu0
    %v8463 = vpop.f32.mrb[0].mxu0
    %8464 = vdwg.mxu0
    %8465 = vmatprep.subr.bf16.mxu0 0
    %8466 = vmatpush1.bf16.msra.mxu0 %v1146
    %8467 = vmatprep.subr.bf16.mxu0 0
    %8468 = vmatpush1.bf16.msra.mxu0 %v1147
    %8469 = vmatprep.subr.bf16.mxu0 0
    %8470 = vmatpush1.bf16.msra.mxu0 %v1148
    %8471 = vmatprep.subr.bf16.mxu0 0
    %8472 = vmatpush1.bf16.msra.mxu0 %v1149
    %8473 = vmatprep.subr.bf16.mxu0 0
    %8474 = vmatpush1.bf16.msra.mxu0 %v1150
    %8475 = vmatprep.subr.bf16.mxu0 0
    %8476 = vmatpush1.bf16.msra.mxu0 %v1151
    %8477 = vmatprep.subr.bf16.mxu0 0
    %8478 = vmatpush1.bf16.msra.mxu0 %v1152
    %8479 = vmatprep.subr.bf16.mxu0 0
    %8480 = vmatpush1.bf16.msra.mxu0 %v1153
    %8481 = vmatprep.subr.bf16.mxu0 0
    %8482 = vmatpush1.bf16.msra.mxu0 %v1154
    %8483 = vmatprep.subr.bf16.mxu0 0
    %8484 = vmatpush1.bf16.msra.mxu0 %v1155
    %8485 = vmatprep.subr.bf16.mxu0 0
    %8486 = vmatpush1.bf16.msra.mxu0 %v1156
    %8487 = vmatprep.subr.bf16.mxu0 0
    %8488 = vmatpush1.bf16.msra.mxu0 %v1157
    %8489 = vmatprep.subr.bf16.mxu0 0
    %8490 = vmatpush1.bf16.msra.mxu0 %v1158
    %8491 = vmatprep.subr.bf16.mxu0 0
    %8492 = vmatpush1.bf16.msra.mxu0 %v1159
    %8493 = vmatprep.subr.bf16.mxu0 0
    %8494 = vmatpush1.bf16.msra.mxu0 %v1160
    %8495 = vmatprep.subr.bf16.mxu0 0
    %8496 = vmatpush1.bf16.msra.mxu0 %v1161
    %8497 = vmatprep.mubr.bf16.mxu0 %v8424
    %8498 = vmatmul.mubr.bf16.gmra.mrb[0].mxu0 %v8423
    %v8499 = vpop.f32.mrb[0].mxu0
    %v8500 = vadd.f32 %v8460, %v8499
    %v8501 = vpop.f32.mrb[0].mxu0
    %v8502 = vpop.f32.mrb[0].mxu0
    %v8503 = vpop.f32.mrb[0].mxu0
    %8504 = vdwg.mxu0
    %8505 = vst [vmem:[%s8] sm:$0x1] %v8500
    // Predicated region
    $region22: #{forward.1} parent=1 // pred_check
      _
    $region23: #{forward.1} parent=1 // pred_check_branch
      %8507 = sbr.rel (0) target = $region25
    $region24: #{forward.1} parent=1 // pred_region
      _
    $region25: #{forward.1} parent=1 // pred_fallthru
      _
    // Predicated region
    $region26: #{forward.1} parent=1 // pred_check
      _
    $region27: #{forward.1} parent=1 // pred_check_branch
      %8509 = sbr.rel (0) target = $region29
    $region28: #{forward.1} parent=1 // pred_region
      _
    $region29: #{forward.1} parent=1 // pred_fallthru
      _
    // Predicated region
    $region30: #{forward.1} parent=1 // pred_check
      _
    $region31: #{forward.1} parent=1 // pred_check_branch
      %8511 = sbr.rel (0) target = $region33
    $region32: #{forward.1} parent=1 // pred_region
      %s8513 = ssub.s32 16, 16
      %8514 = vsyncadd [#allocation3], %s8513
      %s8516 = sshll.u32 [#allocation2], 4
      %s8517 = int_to_ptr.vmem [resolvable:$true] %s8516
      %8519 = dma.vmem_to_hbm [thread:$0]  %s8517, 16, %s7, [#allocation3]
    $region33: #{forward.1} parent=1 // pred_fallthru
      _
    // Predicated region
    $region34: #{forward.1} parent=1 // pred_check
      _
    $region35: #{forward.1} parent=1 // pred_check_branch
      %8521 = sbr.rel (0) target = $region37
    $region36: #{forward.1} parent=1 // pred_region
      _
    $region37: #{forward.1} parent=1 // pred_fallthru
      _
    // Predicated region
    $region38: #{forward.1} parent=1 // pred_check
      _
    $region39: #{forward.1} parent=1 // pred_check_branch
      %8523 = sbr.rel (0) target = $region41
    $region40: #{forward.1} parent=1 // pred_region
      _
    $region41: #{forward.1} parent=1 // pred_fallthru
      _
    // Predicated region
    $region42: #{forward.1} parent=1 // pred_check
      _
    $region43: #{forward.1} parent=1 // pred_check_branch
      %8525 = sbr.rel (0) target = $region45
    $region44: #{forward.1} parent=1 // pred_region
      _
    $region45: #{forward.1} parent=1 // pred_fallthru
      _
    // Predicated region
    $region46: #{forward.1} parent=1 // pred_check
      _
    $region47: #{forward.1} parent=1 // pred_check_branch
      %8527 = sbr.rel (0) target = $region49
    $region48: #{forward.1} parent=1 // pred_region
      %8528 = dma.done [#allocation3], 16
    $region49: #{forward.1} parent=1 // pred_fallthru
      _
    // Predicated region
    $region50: #{forward.1} parent=1 // pred_check
      _
    $region51: #{forward.1} parent=1 // pred_check_branch
      %8530 = sbr.rel (0) target = $region53
    $region52: #{forward.1} parent=1 // pred_region
      _
    $region53: #{forward.1} parent=1 // pred_fallthru
      _
    %8531 = vsyncpa [#allocation3], 1

</llo_original>
